<compile_context>
chip_gen: v7x
topology: tpu7x:2x2x1
jax: 0.10.0
libtpu: 0.0.40
codegen_flags: <defaults>
</compile_context>

<pallas_src>
import math
import functools

import jax
import jax.numpy as jnp
from jax.experimental import pallas as pl
from jax.experimental.pallas import tpu as pltpu


# ------------------------------- helpers (traced inside kernel) --------------

def _layernorm(x, gamma, beta, eps=1e-5):
    # x: (M, D) f32, gamma/beta: (1, D) f32
    mu = jnp.mean(x, axis=-1, keepdims=True)
    xc = x - mu
    var = jnp.mean(xc * xc, axis=-1, keepdims=True)
    return xc * jax.lax.rsqrt(var + eps) * gamma + beta


def _gelu_tanh(x):
    c = math.sqrt(2.0 / math.pi)
    return 0.5 * x * (1.0 + jnp.tanh(c * (x + 0.044715 * x * x * x)))


# ------------------------------- Pallas kernel -------------------------------

def block_kernel(x_ref,
                 ln1_g_ref, ln1_b_ref,
                 wq_ref, wk_ref, wv_ref,
                 wo_ref, bo_ref,
                 ln2_g_ref, ln2_b_ref,
                 w1_ref, b1_ref, w2_ref, b2_ref,
                 o_ref,
                 *, num_heads: int):
    bt, N, D = x_ref.shape
    H = num_heads
    dh = D // H
    M = bt * N
    scale = 1.0 / math.sqrt(dh)
    f32, bf16 = jnp.float32, jnp.bfloat16

    # flatten the batch tile into rows (leading-dim merge only; lanes stay D)
    x = x_ref[...].astype(f32).reshape(M, D)                      # (M, D)

    # ---- norm1 (f32) + head-batched QKV projections (bf16 in, f32 acc) ----
    h1 = _layernorm(x, ln1_g_ref[...], ln1_b_ref[...]).astype(bf16)
    # leading-dim broadcast over heads (vreg replication only, no lane moves)
    h1h = jnp.broadcast_to(h1[None], (H, M, D))                   # (H, M, D) bf16
    q = jnp.einsum('hmd,hdk->hmk', h1h, wq_ref[...],
                   preferred_element_type=f32)                    # (H, M, dh)
    k = jnp.einsum('hmd,hdk->hmk', h1h, wk_ref[...],
                   preferred_element_type=f32)
    v = jnp.einsum('hmd,hdk->hmk', h1h, wv_ref[...],
                   preferred_element_type=f32)

    # ---- attention core, batched over heads; tokens attend only within their
    #      own batch element, so unroll the (small, static) batch tile ----
    outs = []
    for b in range(bt):
        rows = slice(b * N, (b + 1) * N)                          # 8-row aligned
        qb = q[:, rows, :].astype(bf16)                           # (H, N, dh)
        kb = k[:, rows, :].astype(bf16)
        vb = v[:, rows, :].astype(bf16)
        # q @ k^T via contraction of the dh axis of both operands (no .T)
        s = jnp.einsum('hqk,hmk->hqm', qb, kb,
                       preferred_element_type=f32) * scale        # (H, N, N) f32
        m_max = jnp.max(s, axis=-1, keepdims=True)
        e = jnp.exp(s - m_max)
        p = e * pl.reciprocal(jnp.sum(e, axis=-1, keepdims=True), approx=True)
        outs.append(jnp.einsum('hqm,hmk->hqk', p.astype(bf16), vb,
                               preferred_element_type=f32))       # (H, N, dh)
    o_heads = jnp.concatenate(outs, axis=1)                       # (H, M, dh), row concat

    # ---- output projection folded per head: sum_h o_h @ Wproj_h
    #      (no (M, D) concat of head outputs is ever materialized) ----
    parts = jnp.einsum('hmk,hkd->hmd', o_heads.astype(bf16), wo_ref[...],
                       preferred_element_type=f32)                # (H, M, D)
    attn = jnp.sum(parts, axis=0) + bo_ref[...]                   # (M, D) f32

    # dropout with p=0.0 is identity
    x1 = x + attn                                                 # residual 1

    # ---- norm2 + MLP (flattened rows, bf16 MXU inputs) ----
    h2 = _layernorm(x1, ln2_g_ref[...], ln2_b_ref[...]).astype(bf16)
    mlp = jnp.dot(h2, w1_ref[...], preferred_element_type=f32) + b1_ref[...]
    mlp = _gelu_tanh(mlp).astype(bf16)
    mlp = jnp.dot(mlp, w2_ref[...], preferred_element_type=f32) + b2_ref[...]

    o_ref[...] = (x1 + mlp).reshape(bt, N, D).astype(o_ref.dtype)  # residual 2


# ------------------------------- wrapper --------------------------------------

def _pick_batch_tile(B: int, min_grid_steps: int = 4) -> int:
    """Largest batch tile that still leaves >= min(min_grid_steps, B) grid steps."""
    target = min(min_grid_steps, B)
    bt = 1
    for cand in range(1, B + 1):
        if B % cand == 0 and B // cand >= target:
            bt = cand
    return bt


def _build_block_call(B, N, D, hid, num_heads, bt, out_dtype, *, single_buffer_weights):
    H = num_heads
    dh = D // H

    def wspec(shape):
        nd = len(shape)
        kwargs = {}
        if single_buffer_weights:
            # constant index_map -> one buffer is enough; halves weight VMEM.
            kwargs["pipeline_mode"] = pl.Buffered(1)
        return pl.BlockSpec(shape, lambda i, _nd=nd: (0,) * _nd, **kwargs)

    in_specs = [
        pl.BlockSpec((bt, N, D), lambda i: (i, 0, 0)),     # x (batch tile)
        wspec((1, D)), wspec((1, D)),                      # ln1 gamma/beta
        wspec((H, D, dh)), wspec((H, D, dh)), wspec((H, D, dh)),  # wq/wk/wv head-major
        wspec((H, dh, D)), wspec((1, D)),                  # wproj (head-major), bproj
        wspec((1, D)), wspec((1, D)),                      # ln2 gamma/beta
        wspec((D, hid)), wspec((1, hid)),                  # w1, b1
        wspec((hid, D)), wspec((1, D)),                    # w2, b2
    ]
    return pl.pallas_call(
        functools.partial(block_kernel, num_heads=num_heads),
        out_shape=jax.ShapeDtypeStruct((B, N, D), out_dtype),
        grid_spec=pltpu.PrefetchScalarGridSpec(
            num_scalar_prefetch=0,
            grid=(B // bt,),
            in_specs=in_specs,
            out_specs=pl.BlockSpec((bt, N, D), lambda i: (i, 0, 0)),
        ),
        compiler_params=pltpu.CompilerParams(
            dimension_semantics=("parallel",),             # shard batch tiles across TCs
            vmem_limit_bytes=48 * 1024 * 1024,             # above 16/32 MiB scoped defaults
        ),
    )


def block_forward(x, params, *, num_heads, bt=None):
    B, N, D = x.shape
    H = num_heads
    dh = D // H
    hid = params["w1"].shape[1]
    if bt is None:
        bt = _pick_batch_tile(B)
    assert B % bt == 0 and D % H == 0

    bf16 = jnp.bfloat16
    wqkv = params["wqkv"]

    # Pre-arrange weights head-major and cast to bf16 (done once; in a real model
    # this lives at parameter-init time, not per forward call).
    def to_heads(w):                                       # (D, D) -> (H, D, dh)
        return w.reshape(D, H, dh).transpose(1, 0, 2).astype(bf16)

    wq = to_heads(wqkv[:, :D])
    wk = to_heads(wqkv[:, D:2 * D])
    wv = to_heads(wqkv[:, 2 * D:])
    wo = params["wproj"].reshape(H, dh, D).astype(bf16)    # (H, dh, D)
    w1 = params["w1"].astype(bf16)
    w2 = params["w2"].astype(bf16)

    args = (x,
            params["ln1_g"], params["ln1_b"],
            wq, wk, wv, wo, params["bproj"],
            params["ln2_g"], params["ln2_b"],
            w1, params["b1"], w2, params["b2"])

    try:
        f = _build_block_call(B, N, D, hid, num_heads, bt, x.dtype,
                              single_buffer_weights=True)
        return jax.block_until_ready(f(*args))
    except Exception:
        # pl.Buffered(1) unsupported on this jax build -> default double-buffering.
        f = _build_block_call(B, N, D, hid, num_heads, bt, x.dtype,
                              single_buffer_weights=False)
        return jax.block_until_ready(f(*args))


# ---------------------- pure-JAX mixed-precision reference --------------------
# Mirrors the kernel's bf16 cast points exactly (LN/softmax/GELU in f32).

def block_reference(x, params, *, num_heads):
    f32, bf16 = jnp.float32, jnp.bfloat16
    B, N, D = x.shape
    H = num_heads
    dh = D // H
    scale = 1.0 / math.sqrt(dh)

    def ln(v, g, b, eps=1e-5):
        mu = jnp.mean(v, axis=-1, keepdims=True)
        xc = v - mu
        var = jnp.mean(xc * xc, axis=-1, keepdims=True)
        return xc * jax.lax.rsqrt(var + eps) * g + b

    wqkv = params["wqkv"].astype(bf16)
    wproj = params["wproj"].astype(bf16)
    w1 = params["w1"].astype(bf16)
    w2 = params["w2"].astype(bf16)

    h = ln(x, params["ln1_g"], params["ln1_b"]).astype(bf16)
    qkv = jnp.einsum('bnd,dk->bnk', h, wqkv, preferred_element_type=f32)
    q, k, v = qkv[..., :D], qkv[..., D:2 * D], qkv[..., 2 * D:]

    def heads(t):
        return t.reshape(B, N, H, dh).transpose(0, 2, 1, 3)      # (B, H, N, dh)

    qb, kb, vb = heads(q).astype(bf16), heads(k).astype(bf16), heads(v).astype(bf16)
    s = jnp.einsum('bhnd,bhmd->bhnm', qb, kb, preferred_element_type=f32) * scale
    p = jax.nn.softmax(s, axis=-1)
    o = jnp.einsum('bhnm,bhmd->bhnd', p.astype(bf16), vb, preferred_element_type=f32)
    o = o.transpose(0, 2, 1, 3).reshape(B, N, D).astype(bf16)
    attn = jnp.einsum('bnd,dk->bnk', o, wproj, preferred_element_type=f32) + params["bproj"]

    x1 = x + attn
    h2 = ln(x1, params["ln2_g"], params["ln2_b"]).astype(bf16)
    m = jnp.einsum('bnd,dk->bnk', h2, w1, preferred_element_type=f32) + params["b1"]
    m = _gelu_tanh(m).astype(bf16)
    m = jnp.einsum('bnk,kd->bnd', m, w2, preferred_element_type=f32) + params["b2"]
    return x1 + m


# ------------------------------- main ------------------------------------------

if __name__ == "__main__":
    B, N, D = 8, 8, 32
    num_heads = 8
    mlp_ratio = 4
    hid = D * mlp_ratio

    key = jax.random.PRNGKey(0)
    ks = jax.random.split(key, 8)

    x = jax.random.normal(ks[0], (B, N, D), dtype=jnp.float32)

    params = {
        "ln1_g": jnp.ones((1, D), jnp.float32),
        "ln1_b": jnp.zeros((1, D), jnp.float32),
        "wqkv": jax.random.normal(ks[1], (D, 3 * D), jnp.float32) * 0.05,
        "wproj": jax.random.normal(ks[2], (D, D), jnp.float32) * 0.05,
        "bproj": jax.random.normal(ks[3], (1, D), jnp.float32) * 0.01,
        "ln2_g": jnp.ones((1, D), jnp.float32),
        "ln2_b": jnp.zeros((1, D), jnp.float32),
        "w1": jax.random.normal(ks[4], (D, hid), jnp.float32) * 0.05,
        "b1": jax.random.normal(ks[5], (1, hid), jnp.float32) * 0.01,
        "w2": jax.random.normal(ks[6], (hid, D), jnp.float32) * 0.05,
        "b2": jax.random.normal(ks[7], (1, D), jnp.float32) * 0.01,
    }

    out = block_forward(x, params, num_heads=num_heads)
    out = jax.block_until_ready(out)

    ref = block_reference(x, params, num_heads=num_heads)
    assert out.shape == (B, N, D)
    max_diff = jnp.max(jnp.abs(out - ref))
    # bf16 MXU inputs + EUP approx reciprocal in softmax -> compare against a
    # matched mixed-precision reference with a tolerance covering the approx recip.
    assert jnp.allclose(out, ref, rtol=1e-2, atol=1e-2), f"max abs diff = {max_diff}"

    print("KERNEL_OK")
</pallas_src>

<mosaic_0001>
module attributes {stable_mosaic.version = 11 : i64} {
  func.func @block_kernel(%arg0: i32, %arg1: memref<2x8x32xf32, #tpu.memory_space<vmem>>, %arg2: memref<1x32xf32, #tpu.memory_space<vmem>>, %arg3: memref<1x32xf32, #tpu.memory_space<vmem>>, %arg4: memref<8x32x4xbf16, #tpu.memory_space<vmem>>, %arg5: memref<8x32x4xbf16, #tpu.memory_space<vmem>>, %arg6: memref<8x32x4xbf16, #tpu.memory_space<vmem>>, %arg7: memref<8x4x32xbf16, #tpu.memory_space<vmem>>, %arg8: memref<1x32xf32, #tpu.memory_space<vmem>>, %arg9: memref<1x32xf32, #tpu.memory_space<vmem>>, %arg10: memref<1x32xf32, #tpu.memory_space<vmem>>, %arg11: memref<32x128xbf16, #tpu.memory_space<vmem>>, %arg12: memref<1x128xf32, #tpu.memory_space<vmem>>, %arg13: memref<128x32xbf16, #tpu.memory_space<vmem>>, %arg14: memref<1x32xf32, #tpu.memory_space<vmem>>, %arg15: memref<2x8x32xf32, #tpu.memory_space<vmem>>) attributes {dimension_semantics = [#tpu.dimension_semantics<parallel>], iteration_bounds = array<i64: 4>, scalar_prefetch = 0 : i64, scratch_operands = 0 : i64, tpu.core_type = #tpu.core_type<tc>, window_params = [{transform_indices = @transform_0, window_bounds = array<i64: 2, 8, 32>}, {pipeline_mode = #tpu.pipeline_mode<synchronous>, transform_indices = @transform_1, window_bounds = array<i64: 1, 32>}, {pipeline_mode = #tpu.pipeline_mode<synchronous>, transform_indices = @transform_2, window_bounds = array<i64: 1, 32>}, {pipeline_mode = #tpu.pipeline_mode<synchronous>, transform_indices = @transform_3, window_bounds = array<i64: 8, 32, 4>}, {pipeline_mode = #tpu.pipeline_mode<synchronous>, transform_indices = @transform_4, window_bounds = array<i64: 8, 32, 4>}, {pipeline_mode = #tpu.pipeline_mode<synchronous>, transform_indices = @transform_5, window_bounds = array<i64: 8, 32, 4>}, {pipeline_mode = #tpu.pipeline_mode<synchronous>, transform_indices = @transform_6, window_bounds = array<i64: 8, 4, 32>}, {pipeline_mode = #tpu.pipeline_mode<synchronous>, transform_indices = @transform_7, window_bounds = array<i64: 1, 32>}, {pipeline_mode = #tpu.pipeline_mode<synchronous>, transform_indices = @transform_8, window_bounds = array<i64: 1, 32>}, {pipeline_mode = #tpu.pipeline_mode<synchronous>, transform_indices = @transform_9, window_bounds = array<i64: 1, 32>}, {pipeline_mode = #tpu.pipeline_mode<synchronous>, transform_indices = @transform_10, window_bounds = array<i64: 32, 128>}, {pipeline_mode = #tpu.pipeline_mode<synchronous>, transform_indices = @transform_11, window_bounds = array<i64: 1, 128>}, {pipeline_mode = #tpu.pipeline_mode<synchronous>, transform_indices = @transform_12, window_bounds = array<i64: 128, 32>}, {pipeline_mode = #tpu.pipeline_mode<synchronous>, transform_indices = @transform_13, window_bounds = array<i64: 1, 32>}, {transform_indices = @transform_14, window_bounds = array<i64: 2, 8, 32>}]} {
    %c0 = arith.constant 0 : index
    %c0_0 = arith.constant 0 : index
    %c0_1 = arith.constant 0 : index
    %0 = vector.load %arg1[%c0, %c0_0, %c0_1] : memref<2x8x32xf32, #tpu.memory_space<vmem>>, vector<2x8x32xf32>
    %1 = vector.shape_cast %0 : vector<2x8x32xf32> to vector<16x32xf32>
    %c0_2 = arith.constant 0 : index
    %c0_3 = arith.constant 0 : index
    %2 = vector.load %arg2[%c0_2, %c0_3] : memref<1x32xf32, #tpu.memory_space<vmem>>, vector<1x32xf32>
    %c0_4 = arith.constant 0 : index
    %c0_5 = arith.constant 0 : index
    %3 = vector.load %arg3[%c0_4, %c0_5] : memref<1x32xf32, #tpu.memory_space<vmem>>, vector<1x32xf32>
    %cst = arith.constant dense<0.000000e+00> : vector<16xf32>
    %4 = vector.multi_reduction <add>, %1, %cst [1] : vector<16x32xf32> to vector<16xf32>
    %5 = vector.shape_cast %4 : vector<16xf32> to vector<16x1xf32>
    %cst_6 = arith.constant 3.200000e+01 : f32
    %6 = vector.broadcast %cst_6 : f32 to vector<16x1xf32>
    %7 = arith.divf %5, %6 : vector<16x1xf32>
    %8 = vector.broadcast %7 : vector<16x1xf32> to vector<16x32xf32>
    %9 = arith.subf %1, %8 : vector<16x32xf32>
    %10 = arith.mulf %9, %9 : vector<16x32xf32>
    %cst_7 = arith.constant dense<0.000000e+00> : vector<16xf32>
    %11 = vector.multi_reduction <add>, %10, %cst_7 [1] : vector<16x32xf32> to vector<16xf32>
    %12 = vector.shape_cast %11 : vector<16xf32> to vector<16x1xf32>
    %cst_8 = arith.constant 3.200000e+01 : f32
    %13 = vector.broadcast %cst_8 : f32 to vector<16x1xf32>
    %14 = arith.divf %12, %13 : vector<16x1xf32>
    %cst_9 = arith.constant 9.99999974E-6 : f32
    %15 = vector.broadcast %cst_9 : f32 to vector<16x1xf32>
    %16 = arith.addf %14, %15 : vector<16x1xf32>
    %17 = math.rsqrt %16 : vector<16x1xf32>
    %18 = vector.broadcast %17 : vector<16x1xf32> to vector<16x32xf32>
    %19 = arith.mulf %9, %18 : vector<16x32xf32>
    %20 = vector.broadcast %2 : vector<1x32xf32> to vector<16x32xf32>
    %21 = arith.mulf %19, %20 : vector<16x32xf32>
    %22 = vector.broadcast %3 : vector<1x32xf32> to vector<16x32xf32>
    %23 = arith.addf %21, %22 : vector<16x32xf32>
    %24 = arith.truncf %23 : vector<16x32xf32> to vector<16x32xbf16>
    %25 = vector.shape_cast %24 : vector<16x32xbf16> to vector<1x16x32xbf16>
    %26 = vector.shape_cast %25 : vector<1x16x32xbf16> to vector<1x16x32xbf16>
    %27 = vector.broadcast %26 : vector<1x16x32xbf16> to vector<8x16x32xbf16>
    %c0_10 = arith.constant 0 : index
    %c0_11 = arith.constant 0 : index
    %c0_12 = arith.constant 0 : index
    %28 = vector.load %arg4[%c0_10, %c0_11, %c0_12] : memref<8x32x4xbf16, #tpu.memory_space<vmem>>, vector<8x32x4xbf16>
    "tpu.trace_start"() <{level = 10 : i32, message = "hmd,hdk->hmk"}> : () -> ()
    %cst_13 = arith.constant dense<0.000000e+00> : vector<8x16x4xf32>
    %29 = tpu.matmul %27, %28, %cst_13 {dimension_numbers = #tpu.dot_dimension_numbers<[2], [1], [1], [2], [0, 0, 0, 1, 1, 2], [0], [0]>} : vector<8x16x32xbf16>, vector<8x32x4xbf16>, vector<8x16x4xf32> -> vector<8x16x4xf32>
    "tpu.trace_stop"() : () -> ()
    %c0_14 = arith.constant 0 : index
    %c0_15 = arith.constant 0 : index
    %c0_16 = arith.constant 0 : index
    %30 = vector.load %arg5[%c0_14, %c0_15, %c0_16] : memref<8x32x4xbf16, #tpu.memory_space<vmem>>, vector<8x32x4xbf16>
    "tpu.trace_start"() <{level = 10 : i32, message = "hmd,hdk->hmk"}> : () -> ()
    %cst_17 = arith.constant dense<0.000000e+00> : vector<8x16x4xf32>
    %31 = tpu.matmul %27, %30, %cst_17 {dimension_numbers = #tpu.dot_dimension_numbers<[2], [1], [1], [2], [0, 0, 0, 1, 1, 2], [0], [0]>} : vector<8x16x32xbf16>, vector<8x32x4xbf16>, vector<8x16x4xf32> -> vector<8x16x4xf32>
    "tpu.trace_stop"() : () -> ()
    %c0_18 = arith.constant 0 : index
    %c0_19 = arith.constant 0 : index
    %c0_20 = arith.constant 0 : index
    %32 = vector.load %arg6[%c0_18, %c0_19, %c0_20] : memref<8x32x4xbf16, #tpu.memory_space<vmem>>, vector<8x32x4xbf16>
    "tpu.trace_start"() <{level = 10 : i32, message = "hmd,hdk->hmk"}> : () -> ()
    %cst_21 = arith.constant dense<0.000000e+00> : vector<8x16x4xf32>
    %33 = tpu.matmul %27, %32, %cst_21 {dimension_numbers = #tpu.dot_dimension_numbers<[2], [1], [1], [2], [0, 0, 0, 1, 1, 2], [0], [0]>} : vector<8x16x32xbf16>, vector<8x32x4xbf16>, vector<8x16x4xf32> -> vector<8x16x4xf32>
    "tpu.trace_stop"() : () -> ()
    %34 = vector.extract_strided_slice %29 {offsets = [0, 0, 0], sizes = [8, 8, 4], strides = [1, 1, 1]} : vector<8x16x4xf32> to vector<8x8x4xf32>
    %35 = arith.truncf %34 : vector<8x8x4xf32> to vector<8x8x4xbf16>
    %36 = vector.extract_strided_slice %31 {offsets = [0, 0, 0], sizes = [8, 8, 4], strides = [1, 1, 1]} : vector<8x16x4xf32> to vector<8x8x4xf32>
    %37 = arith.truncf %36 : vector<8x8x4xf32> to vector<8x8x4xbf16>
    %38 = vector.extract_strided_slice %33 {offsets = [0, 0, 0], sizes = [8, 8, 4], strides = [1, 1, 1]} : vector<8x16x4xf32> to vector<8x8x4xf32>
    %39 = arith.truncf %38 : vector<8x8x4xf32> to vector<8x8x4xbf16>
    "tpu.trace_start"() <{level = 10 : i32, message = "hqk,hmk->hqm"}> : () -> ()
    %cst_22 = arith.constant dense<0.000000e+00> : vector<8x8x8xf32>
    %40 = tpu.matmul %35, %37, %cst_22 {dimension_numbers = #tpu.dot_dimension_numbers<[2], [2], [1], [1], [0, 0, 0, 1, 1, 1], [0], [0]>} : vector<8x8x4xbf16>, vector<8x8x4xbf16>, vector<8x8x8xf32> -> vector<8x8x8xf32>
    "tpu.trace_stop"() : () -> ()
    %cst_23 = arith.constant 5.000000e-01 : f32
    %41 = vector.broadcast %cst_23 : f32 to vector<8x8x8xf32>
    %42 = arith.mulf %40, %41 : vector<8x8x8xf32>
    %cst_24 = arith.constant dense<0xFF800000> : vector<8x8xf32>
    %43 = vector.multi_reduction <maximumf>, %42, %cst_24 [2] : vector<8x8x8xf32> to vector<8x8xf32>
    %44 = vector.shape_cast %43 : vector<8x8xf32> to vector<8x8x1xf32>
    %45 = vector.broadcast %44 : vector<8x8x1xf32> to vector<8x8x8xf32>
    %46 = arith.subf %42, %45 : vector<8x8x8xf32>
    %47 = math.exp %46 : vector<8x8x8xf32>
    %cst_25 = arith.constant dense<0.000000e+00> : vector<8x8xf32>
    %48 = vector.multi_reduction <add>, %47, %cst_25 [2] : vector<8x8x8xf32> to vector<8x8xf32>
    %49 = vector.shape_cast %48 : vector<8x8xf32> to vector<8x8x1xf32>
    %50 = tpu.reciprocal %49 {approx = true} : vector<8x8x1xf32> -> vector<8x8x1xf32>
    %51 = vector.broadcast %50 : vector<8x8x1xf32> to vector<8x8x8xf32>
    %52 = arith.mulf %47, %51 : vector<8x8x8xf32>
    %53 = arith.truncf %52 : vector<8x8x8xf32> to vector<8x8x8xbf16>
    "tpu.trace_start"() <{level = 10 : i32, message = "hqm,hmk->hqk"}> : () -> ()
    %cst_26 = arith.constant dense<0.000000e+00> : vector<8x8x4xf32>
    %54 = tpu.matmul %53, %39, %cst_26 {dimension_numbers = #tpu.dot_dimension_numbers<[2], [1], [1], [2], [0, 0, 0, 1, 1, 2], [0], [0]>} : vector<8x8x8xbf16>, vector<8x8x4xbf16>, vector<8x8x4xf32> -> vector<8x8x4xf32>
    "tpu.trace_stop"() : () -> ()
    %55 = vector.extract_strided_slice %29 {offsets = [0, 8, 0], sizes = [8, 8, 4], strides = [1, 1, 1]} : vector<8x16x4xf32> to vector<8x8x4xf32>
    %56 = arith.truncf %55 : vector<8x8x4xf32> to vector<8x8x4xbf16>
    %57 = vector.extract_strided_slice %31 {offsets = [0, 8, 0], sizes = [8, 8, 4], strides = [1, 1, 1]} : vector<8x16x4xf32> to vector<8x8x4xf32>
    %58 = arith.truncf %57 : vector<8x8x4xf32> to vector<8x8x4xbf16>
    %59 = vector.extract_strided_slice %33 {offsets = [0, 8, 0], sizes = [8, 8, 4], strides = [1, 1, 1]} : vector<8x16x4xf32> to vector<8x8x4xf32>
    %60 = arith.truncf %59 : vector<8x8x4xf32> to vector<8x8x4xbf16>
    "tpu.trace_start"() <{level = 10 : i32, message = "hqk,hmk->hqm"}> : () -> ()
    %cst_27 = arith.constant dense<0.000000e+00> : vector<8x8x8xf32>
    %61 = tpu.matmul %56, %58, %cst_27 {dimension_numbers = #tpu.dot_dimension_numbers<[2], [2], [1], [1], [0, 0, 0, 1, 1, 1], [0], [0]>} : vector<8x8x4xbf16>, vector<8x8x4xbf16>, vector<8x8x8xf32> -> vector<8x8x8xf32>
    "tpu.trace_stop"() : () -> ()
    %cst_28 = arith.constant 5.000000e-01 : f32
    %62 = vector.broadcast %cst_28 : f32 to vector<8x8x8xf32>
    %63 = arith.mulf %61, %62 : vector<8x8x8xf32>
    %cst_29 = arith.constant dense<0xFF800000> : vector<8x8xf32>
    %64 = vector.multi_reduction <maximumf>, %63, %cst_29 [2] : vector<8x8x8xf32> to vector<8x8xf32>
    %65 = vector.shape_cast %64 : vector<8x8xf32> to vector<8x8x1xf32>
    %66 = vector.broadcast %65 : vector<8x8x1xf32> to vector<8x8x8xf32>
    %67 = arith.subf %63, %66 : vector<8x8x8xf32>
    %68 = math.exp %67 : vector<8x8x8xf32>
    %cst_30 = arith.constant dense<0.000000e+00> : vector<8x8xf32>
    %69 = vector.multi_reduction <add>, %68, %cst_30 [2] : vector<8x8x8xf32> to vector<8x8xf32>
    %70 = vector.shape_cast %69 : vector<8x8xf32> to vector<8x8x1xf32>
    %71 = tpu.reciprocal %70 {approx = true} : vector<8x8x1xf32> -> vector<8x8x1xf32>
    %72 = vector.broadcast %71 : vector<8x8x1xf32> to vector<8x8x8xf32>
    %73 = arith.mulf %68, %72 : vector<8x8x8xf32>
    %74 = arith.truncf %73 : vector<8x8x8xf32> to vector<8x8x8xbf16>
    "tpu.trace_start"() <{level = 10 : i32, message = "hqm,hmk->hqk"}> : () -> ()
    %cst_31 = arith.constant dense<0.000000e+00> : vector<8x8x4xf32>
    %75 = tpu.matmul %74, %60, %cst_31 {dimension_numbers = #tpu.dot_dimension_numbers<[2], [1], [1], [2], [0, 0, 0, 1, 1, 2], [0], [0]>} : vector<8x8x8xbf16>, vector<8x8x4xbf16>, vector<8x8x4xf32> -> vector<8x8x4xf32>
    "tpu.trace_stop"() : () -> ()
    %76 = tpu.concatenate %54, %75 in 1 : vector<8x8x4xf32>, vector<8x8x4xf32> -> vector<8x16x4xf32>
    %77 = arith.truncf %76 : vector<8x16x4xf32> to vector<8x16x4xbf16>
    %c0_32 = arith.constant 0 : index
    %c0_33 = arith.constant 0 : index
    %c0_34 = arith.constant 0 : index
    %78 = vector.load %arg7[%c0_32, %c0_33, %c0_34] : memref<8x4x32xbf16, #tpu.memory_space<vmem>>, vector<8x4x32xbf16>
    "tpu.trace_start"() <{level = 10 : i32, message = "hmk,hkd->hmd"}> : () -> ()
    %cst_35 = arith.constant dense<0.000000e+00> : vector<8x16x32xf32>
    %79 = tpu.matmul %77, %78, %cst_35 {dimension_numbers = #tpu.dot_dimension_numbers<[2], [1], [1], [2], [0, 0, 0, 1, 1, 2], [0], [0]>} : vector<8x16x4xbf16>, vector<8x4x32xbf16>, vector<8x16x32xf32> -> vector<8x16x32xf32>
    "tpu.trace_stop"() : () -> ()
    %cst_36 = arith.constant dense<0.000000e+00> : vector<16x32xf32>
    %80 = vector.multi_reduction <add>, %79, %cst_36 [0] : vector<8x16x32xf32> to vector<16x32xf32>
    %c0_37 = arith.constant 0 : index
    %c0_38 = arith.constant 0 : index
    %81 = vector.load %arg8[%c0_37, %c0_38] : memref<1x32xf32, #tpu.memory_space<vmem>>, vector<1x32xf32>
    %82 = vector.broadcast %81 : vector<1x32xf32> to vector<16x32xf32>
    %83 = arith.addf %80, %82 : vector<16x32xf32>
    %84 = arith.addf %1, %83 : vector<16x32xf32>
    %c0_39 = arith.constant 0 : index
    %c0_40 = arith.constant 0 : index
    %85 = vector.load %arg9[%c0_39, %c0_40] : memref<1x32xf32, #tpu.memory_space<vmem>>, vector<1x32xf32>
    %c0_41 = arith.constant 0 : index
    %c0_42 = arith.constant 0 : index
    %86 = vector.load %arg10[%c0_41, %c0_42] : memref<1x32xf32, #tpu.memory_space<vmem>>, vector<1x32xf32>
    %cst_43 = arith.constant dense<0.000000e+00> : vector<16xf32>
    %87 = vector.multi_reduction <add>, %84, %cst_43 [1] : vector<16x32xf32> to vector<16xf32>
    %88 = vector.shape_cast %87 : vector<16xf32> to vector<16x1xf32>
    %cst_44 = arith.constant 3.200000e+01 : f32
    %89 = vector.broadcast %cst_44 : f32 to vector<16x1xf32>
    %90 = arith.divf %88, %89 : vector<16x1xf32>
    %91 = vector.broadcast %90 : vector<16x1xf32> to vector<16x32xf32>
    %92 = arith.subf %84, %91 : vector<16x32xf32>
    %93 = arith.mulf %92, %92 : vector<16x32xf32>
    %cst_45 = arith.constant dense<0.000000e+00> : vector<16xf32>
    %94 = vector.multi_reduction <add>, %93, %cst_45 [1] : vector<16x32xf32> to vector<16xf32>
    %95 = vector.shape_cast %94 : vector<16xf32> to vector<16x1xf32>
    %cst_46 = arith.constant 3.200000e+01 : f32
    %96 = vector.broadcast %cst_46 : f32 to vector<16x1xf32>
    %97 = arith.divf %95, %96 : vector<16x1xf32>
    %cst_47 = arith.constant 9.99999974E-6 : f32
    %98 = vector.broadcast %cst_47 : f32 to vector<16x1xf32>
    %99 = arith.addf %97, %98 : vector<16x1xf32>
    %100 = math.rsqrt %99 : vector<16x1xf32>
    %101 = vector.broadcast %100 : vector<16x1xf32> to vector<16x32xf32>
    %102 = arith.mulf %92, %101 : vector<16x32xf32>
    %103 = vector.broadcast %85 : vector<1x32xf32> to vector<16x32xf32>
    %104 = arith.mulf %102, %103 : vector<16x32xf32>
    %105 = vector.broadcast %86 : vector<1x32xf32> to vector<16x32xf32>
    %106 = arith.addf %104, %105 : vector<16x32xf32>
    %107 = arith.truncf %106 : vector<16x32xf32> to vector<16x32xbf16>
    %c0_48 = arith.constant 0 : index
    %c0_49 = arith.constant 0 : index
    %108 = vector.load %arg11[%c0_48, %c0_49] : memref<32x128xbf16, #tpu.memory_space<vmem>>, vector<32x128xbf16>
    %cst_50 = arith.constant dense<0.000000e+00> : vector<16x128xf32>
    %109 = tpu.matmul %107, %108, %cst_50 {dimension_numbers = #tpu.dot_dimension_numbers<[1], [0], [0], [1], [0, 0, 1, 1], [], []>} : vector<16x32xbf16>, vector<32x128xbf16>, vector<16x128xf32> -> vector<16x128xf32>
    %c0_51 = arith.constant 0 : index
    %c0_52 = arith.constant 0 : index
    %110 = vector.load %arg12[%c0_51, %c0_52] : memref<1x128xf32, #tpu.memory_space<vmem>>, vector<1x128xf32>
    %111 = vector.broadcast %110 : vector<1x128xf32> to vector<16x128xf32>
    %112 = arith.addf %109, %111 : vector<16x128xf32>
    %cst_53 = arith.constant 5.000000e-01 : f32
    %113 = vector.broadcast %cst_53 : f32 to vector<16x128xf32>
    %114 = arith.mulf %113, %112 : vector<16x128xf32>
    %cst_54 = arith.constant 4.471500e-02 : f32
    %115 = vector.broadcast %cst_54 : f32 to vector<16x128xf32>
    %116 = arith.mulf %115, %112 : vector<16x128xf32>
    %117 = arith.mulf %116, %112 : vector<16x128xf32>
    %118 = arith.mulf %117, %112 : vector<16x128xf32>
    %119 = arith.addf %112, %118 : vector<16x128xf32>
    %cst_55 = arith.constant 0.797884583 : f32
    %120 = vector.broadcast %cst_55 : f32 to vector<16x128xf32>
    %121 = arith.mulf %120, %119 : vector<16x128xf32>
    %122 = math.tanh %121 : vector<16x128xf32>
    %cst_56 = arith.constant 1.000000e+00 : f32
    %123 = vector.broadcast %cst_56 : f32 to vector<16x128xf32>
    %124 = arith.addf %123, %122 : vector<16x128xf32>
    %125 = arith.mulf %114, %124 : vector<16x128xf32>
    %126 = arith.truncf %125 : vector<16x128xf32> to vector<16x128xbf16>
    %c0_57 = arith.constant 0 : index
    %c0_58 = arith.constant 0 : index
    %127 = vector.load %arg13[%c0_57, %c0_58] : memref<128x32xbf16, #tpu.memory_space<vmem>>, vector<128x32xbf16>
    %cst_59 = arith.constant dense<0.000000e+00> : vector<16x32xf32>
    %128 = tpu.matmul %126, %127, %cst_59 {dimension_numbers = #tpu.dot_dimension_numbers<[1], [0], [0], [1], [0, 0, 1, 1], [], []>} : vector<16x128xbf16>, vector<128x32xbf16>, vector<16x32xf32> -> vector<16x32xf32>
    %c0_60 = arith.constant 0 : index
    %c0_61 = arith.constant 0 : index
    %129 = vector.load %arg14[%c0_60, %c0_61] : memref<1x32xf32, #tpu.memory_space<vmem>>, vector<1x32xf32>
    %130 = vector.broadcast %129 : vector<1x32xf32> to vector<16x32xf32>
    %131 = arith.addf %128, %130 : vector<16x32xf32>
    %132 = arith.addf %84, %131 : vector<16x32xf32>
    %133 = vector.shape_cast %132 : vector<16x32xf32> to vector<2x8x32xf32>
    %c0_62 = arith.constant 0 : index
    %c0_63 = arith.constant 0 : index
    %c0_64 = arith.constant 0 : index
    %134 = vector.load %arg15[%c0_62, %c0_63, %c0_64] : memref<2x8x32xf32, #tpu.memory_space<vmem>>, vector<2x8x32xf32>
    tpu.vector_store %arg15[%c0_62, %c0_63, %c0_64], %133 {strides = array<i32>} : memref<2x8x32xf32, #tpu.memory_space<vmem>>, vector<2x8x32xf32>,
    return
  }
  func.func @transform_0(%arg0: i32) -> (i32, i32, i32) {
    %c0_i32 = arith.constant 0 : i32
    %c0_i32_0 = arith.constant 0 : i32
    %c0_i32_1 = arith.constant 0 : i32
    return %arg0, %c0_i32, %c0_i32_0 : i32, i32, i32
  }
  func.func @transform_1(%arg0: i32) -> (i32, i32) {
    %c0_i32 = arith.constant 0 : i32
    %c0_i32_0 = arith.constant 0 : i32
    %c0_i32_1 = arith.constant 0 : i32
    return %c0_i32, %c0_i32_0 : i32, i32
  }
  func.func @transform_2(%arg0: i32) -> (i32, i32) {
    %c0_i32 = arith.constant 0 : i32
    %c0_i32_0 = arith.constant 0 : i32
    %c0_i32_1 = arith.constant 0 : i32
    return %c0_i32, %c0_i32_0 : i32, i32
  }
  func.func @transform_3(%arg0: i32) -> (i32, i32, i32) {
    %c0_i32 = arith.constant 0 : i32
    %c0_i32_0 = arith.constant 0 : i32
    %c0_i32_1 = arith.constant 0 : i32
    %c0_i32_2 = arith.constant 0 : i32
    return %c0_i32, %c0_i32_0, %c0_i32_1 : i32, i32, i32
  }
  func.func @transform_4(%arg0: i32) -> (i32, i32, i32) {
    %c0_i32 = arith.constant 0 : i32
    %c0_i32_0 = arith.constant 0 : i32
    %c0_i32_1 = arith.constant 0 : i32
    %c0_i32_2 = arith.constant 0 : i32
    return %c0_i32, %c0_i32_0, %c0_i32_1 : i32, i32, i32
  }
  func.func @transform_5(%arg0: i32) -> (i32, i32, i32) {
    %c0_i32 = arith.constant 0 : i32
    %c0_i32_0 = arith.constant 0 : i32
    %c0_i32_1 = arith.constant 0 : i32
    %c0_i32_2 = arith.constant 0 : i32
    return %c0_i32, %c0_i32_0, %c0_i32_1 : i32, i32, i32
  }
  func.func @transform_6(%arg0: i32) -> (i32, i32, i32) {
    %c0_i32 = arith.constant 0 : i32
    %c0_i32_0 = arith.constant 0 : i32
    %c0_i32_1 = arith.constant 0 : i32
    %c0_i32_2 = arith.constant 0 : i32
    return %c0_i32, %c0_i32_0, %c0_i32_1 : i32, i32, i32
  }
  func.func @transform_7(%arg0: i32) -> (i32, i32) {
    %c0_i32 = arith.constant 0 : i32
    %c0_i32_0 = arith.constant 0 : i32
    %c0_i32_1 = arith.constant 0 : i32
    return %c0_i32, %c0_i32_0 : i32, i32
  }
  func.func @transform_8(%arg0: i32) -> (i32, i32) {
    %c0_i32 = arith.constant 0 : i32
    %c0_i32_0 = arith.constant 0 : i32
    %c0_i32_1 = arith.constant 0 : i32
    return %c0_i32, %c0_i32_0 : i32, i32
  }
  func.func @transform_9(%arg0: i32) -> (i32, i32) {
    %c0_i32 = arith.constant 0 : i32
    %c0_i32_0 = arith.constant 0 : i32
    %c0_i32_1 = arith.constant 0 : i32
    return %c0_i32, %c0_i32_0 : i32, i32
  }
  func.func @transform_10(%arg0: i32) -> (i32, i32) {
    %c0_i32 = arith.constant 0 : i32
    %c0_i32_0 = arith.constant 0 : i32
    %c0_i32_1 = arith.constant 0 : i32
    return %c0_i32, %c0_i32_0 : i32, i32
  }
  func.func @transform_11(%arg0: i32) -> (i32, i32) {
    %c0_i32 = arith.constant 0 : i32
    %c0_i32_0 = arith.constant 0 : i32
    %c0_i32_1 = arith.constant 0 : i32
    return %c0_i32, %c0_i32_0 : i32, i32
  }
  func.func @transform_12(%arg0: i32) -> (i32, i32) {
    %c0_i32 = arith.constant 0 : i32
    %c0_i32_0 = arith.constant 0 : i32
    %c0_i32_1 = arith.constant 0 : i32
    return %c0_i32, %c0_i32_0 : i32, i32
  }
  func.func @transform_13(%arg0: i32) -> (i32, i32) {
    %c0_i32 = arith.constant 0 : i32
    %c0_i32_0 = arith.constant 0 : i32
    %c0_i32_1 = arith.constant 0 : i32
    return %c0_i32, %c0_i32_0 : i32, i32
  }
  func.func @transform_14(%arg0: i32) -> (i32, i32, i32) {
    %c0_i32 = arith.constant 0 : i32
    %c0_i32_0 = arith.constant 0 : i32
    %c0_i32_1 = arith.constant 0 : i32
    return %arg0, %c0_i32, %c0_i32_0 : i32, i32, i32
  }
}

module attributes {stable_mosaic.version = 11 : i64} {
  func.func @block_kernel(%arg0: i32, %arg1: memref<2x8x32xf32, #tpu.memory_space<vmem>>, %arg2: memref<1x32xf32, #tpu.memory_space<vmem>>, %arg3: memref<1x32xf32, #tpu.memory_space<vmem>>, %arg4: memref<8x32x4xbf16, #tpu.memory_space<vmem>>, %arg5: memref<8x32x4xbf16, #tpu.memory_space<vmem>>, %arg6: memref<8x32x4xbf16, #tpu.memory_space<vmem>>, %arg7: memref<8x4x32xbf16, #tpu.memory_space<vmem>>, %arg8: memref<1x32xf32, #tpu.memory_space<vmem>>, %arg9: memref<1x32xf32, #tpu.memory_space<vmem>>, %arg10: memref<1x32xf32, #tpu.memory_space<vmem>>, %arg11: memref<32x128xbf16, #tpu.memory_space<vmem>>, %arg12: memref<1x128xf32, #tpu.memory_space<vmem>>, %arg13: memref<128x32xbf16, #tpu.memory_space<vmem>>, %arg14: memref<1x32xf32, #tpu.memory_space<vmem>>, %arg15: memref<2x8x32xf32, #tpu.memory_space<vmem>>) attributes {dimension_semantics = [#tpu.dimension_semantics<parallel>], iteration_bounds = array<i64: 4>, scalar_prefetch = 0 : i64, scratch_operands = 0 : i64, tpu.core_type = #tpu.core_type<tc>, window_params = [{transform_indices = @transform_0, window_bounds = array<i64: 2, 8, 32>}, {pipeline_mode = #tpu.pipeline_mode<synchronous>, transform_indices = @transform_1, window_bounds = array<i64: 1, 32>}, {pipeline_mode = #tpu.pipeline_mode<synchronous>, transform_indices = @transform_2, window_bounds = array<i64: 1, 32>}, {pipeline_mode = #tpu.pipeline_mode<synchronous>, transform_indices = @transform_3, window_bounds = array<i64: 8, 32, 4>}, {pipeline_mode = #tpu.pipeline_mode<synchronous>, transform_indices = @transform_4, window_bounds = array<i64: 8, 32, 4>}, {pipeline_mode = #tpu.pipeline_mode<synchronous>, transform_indices = @transform_5, window_bounds = array<i64: 8, 32, 4>}, {pipeline_mode = #tpu.pipeline_mode<synchronous>, transform_indices = @transform_6, window_bounds = array<i64: 8, 4, 32>}, {pipeline_mode = #tpu.pipeline_mode<synchronous>, transform_indices = @transform_7, window_bounds = array<i64: 1, 32>}, {pipeline_mode = #tpu.pipeline_mode<synchronous>, transform_indices = @transform_8, window_bounds = array<i64: 1, 32>}, {pipeline_mode = #tpu.pipeline_mode<synchronous>, transform_indices = @transform_9, window_bounds = array<i64: 1, 32>}, {pipeline_mode = #tpu.pipeline_mode<synchronous>, transform_indices = @transform_10, window_bounds = array<i64: 32, 128>}, {pipeline_mode = #tpu.pipeline_mode<synchronous>, transform_indices = @transform_11, window_bounds = array<i64: 1, 128>}, {pipeline_mode = #tpu.pipeline_mode<synchronous>, transform_indices = @transform_12, window_bounds = array<i64: 128, 32>}, {pipeline_mode = #tpu.pipeline_mode<synchronous>, transform_indices = @transform_13, window_bounds = array<i64: 1, 32>}, {transform_indices = @transform_14, window_bounds = array<i64: 2, 8, 32>}]} {
    %c0 = arith.constant 0 : index
    %c0_0 = arith.constant 0 : index
    %c0_1 = arith.constant 0 : index
    %0 = vector.load %arg1[%c0, %c0_0, %c0_1] : memref<2x8x32xf32, #tpu.memory_space<vmem>>, vector<2x8x32xf32>
    %1 = vector.shape_cast %0 : vector<2x8x32xf32> to vector<16x32xf32>
    %c0_2 = arith.constant 0 : index
    %c0_3 = arith.constant 0 : index
    %2 = vector.load %arg2[%c0_2, %c0_3] : memref<1x32xf32, #tpu.memory_space<vmem>>, vector<1x32xf32>
    %c0_4 = arith.constant 0 : index
    %c0_5 = arith.constant 0 : index
    %3 = vector.load %arg3[%c0_4, %c0_5] : memref<1x32xf32, #tpu.memory_space<vmem>>, vector<1x32xf32>
    %cst = arith.constant dense<0.000000e+00> : vector<16xf32>
    %4 = vector.multi_reduction <add>, %1, %cst [1] : vector<16x32xf32> to vector<16xf32>
    %5 = vector.shape_cast %4 : vector<16xf32> to vector<16x1xf32>
    %cst_6 = arith.constant 3.200000e+01 : f32
    %6 = vector.broadcast %cst_6 : f32 to vector<16x1xf32>
    %7 = arith.divf %5, %6 : vector<16x1xf32>
    %8 = vector.broadcast %7 : vector<16x1xf32> to vector<16x32xf32>
    %9 = arith.subf %1, %8 : vector<16x32xf32>
    %10 = arith.mulf %9, %9 : vector<16x32xf32>
    %cst_7 = arith.constant dense<0.000000e+00> : vector<16xf32>
    %11 = vector.multi_reduction <add>, %10, %cst_7 [1] : vector<16x32xf32> to vector<16xf32>
    %12 = vector.shape_cast %11 : vector<16xf32> to vector<16x1xf32>
    %cst_8 = arith.constant 3.200000e+01 : f32
    %13 = vector.broadcast %cst_8 : f32 to vector<16x1xf32>
    %14 = arith.divf %12, %13 : vector<16x1xf32>
    %cst_9 = arith.constant 9.99999974E-6 : f32
    %15 = vector.broadcast %cst_9 : f32 to vector<16x1xf32>
    %16 = arith.addf %14, %15 : vector<16x1xf32>
    %17 = math.rsqrt %16 : vector<16x1xf32>
    %18 = vector.broadcast %17 : vector<16x1xf32> to vector<16x32xf32>
    %19 = arith.mulf %9, %18 : vector<16x32xf32>
    %20 = vector.broadcast %2 : vector<1x32xf32> to vector<16x32xf32>
    %21 = arith.mulf %19, %20 : vector<16x32xf32>
    %22 = vector.broadcast %3 : vector<1x32xf32> to vector<16x32xf32>
    %23 = arith.addf %21, %22 : vector<16x32xf32>
    %24 = arith.truncf %23 : vector<16x32xf32> to vector<16x32xbf16>
    %25 = vector.shape_cast %24 : vector<16x32xbf16> to vector<1x16x32xbf16>
    %26 = vector.shape_cast %25 : vector<1x16x32xbf16> to vector<1x16x32xbf16>
    %27 = vector.broadcast %26 : vector<1x16x32xbf16> to vector<8x16x32xbf16>
    %c0_10 = arith.constant 0 : index
    %c0_11 = arith.constant 0 : index
    %c0_12 = arith.constant 0 : index
    %28 = vector.load %arg4[%c0_10, %c0_11, %c0_12] : memref<8x32x4xbf16, #tpu.memory_space<vmem>>, vector<8x32x4xbf16>
    "tpu.trace_start"() <{level = 10 : i32, message = "hmd,hdk->hmk"}> : () -> ()
    %cst_13 = arith.constant dense<0.000000e+00> : vector<8x16x4xf32>
    %29 = tpu.matmul %27, %28, %cst_13 {dimension_numbers = #tpu.dot_dimension_numbers<[2], [1], [1], [2], [0, 0, 0, 1, 1, 2], [0], [0]>} : vector<8x16x32xbf16>, vector<8x32x4xbf16>, vector<8x16x4xf32> -> vector<8x16x4xf32>
    "tpu.trace_stop"() : () -> ()
    %c0_14 = arith.constant 0 : index
    %c0_15 = arith.constant 0 : index
    %c0_16 = arith.constant 0 : index
    %30 = vector.load %arg5[%c0_14, %c0_15, %c0_16] : memref<8x32x4xbf16, #tpu.memory_space<vmem>>, vector<8x32x4xbf16>
    "tpu.trace_start"() <{level = 10 : i32, message = "hmd,hdk->hmk"}> : () -> ()
    %cst_17 = arith.constant dense<0.000000e+00> : vector<8x16x4xf32>
    %31 = tpu.matmul %27, %30, %cst_17 {dimension_numbers = #tpu.dot_dimension_numbers<[2], [1], [1], [2], [0, 0, 0, 1, 1, 2], [0], [0]>} : vector<8x16x32xbf16>, vector<8x32x4xbf16>, vector<8x16x4xf32> -> vector<8x16x4xf32>
    "tpu.trace_stop"() : () -> ()
    %c0_18 = arith.constant 0 : index
    %c0_19 = arith.constant 0 : index
    %c0_20 = arith.constant 0 : index
    %32 = vector.load %arg6[%c0_18, %c0_19, %c0_20] : memref<8x32x4xbf16, #tpu.memory_space<vmem>>, vector<8x32x4xbf16>
    "tpu.trace_start"() <{level = 10 : i32, message = "hmd,hdk->hmk"}> : () -> ()
    %cst_21 = arith.constant dense<0.000000e+00> : vector<8x16x4xf32>
    %33 = tpu.matmul %27, %32, %cst_21 {dimension_numbers = #tpu.dot_dimension_numbers<[2], [1], [1], [2], [0, 0, 0, 1, 1, 2], [0], [0]>} : vector<8x16x32xbf16>, vector<8x32x4xbf16>, vector<8x16x4xf32> -> vector<8x16x4xf32>
    "tpu.trace_stop"() : () -> ()
    %34 = vector.extract_strided_slice %29 {offsets = [0, 0, 0], sizes = [8, 8, 4], strides = [1, 1, 1]} : vector<8x16x4xf32> to vector<8x8x4xf32>
    %35 = arith.truncf %34 : vector<8x8x4xf32> to vector<8x8x4xbf16>
    %36 = vector.extract_strided_slice %31 {offsets = [0, 0, 0], sizes = [8, 8, 4], strides = [1, 1, 1]} : vector<8x16x4xf32> to vector<8x8x4xf32>
    %37 = arith.truncf %36 : vector<8x8x4xf32> to vector<8x8x4xbf16>
    %38 = vector.extract_strided_slice %33 {offsets = [0, 0, 0], sizes = [8, 8, 4], strides = [1, 1, 1]} : vector<8x16x4xf32> to vector<8x8x4xf32>
    %39 = arith.truncf %38 : vector<8x8x4xf32> to vector<8x8x4xbf16>
    "tpu.trace_start"() <{level = 10 : i32, message = "hqk,hmk->hqm"}> : () -> ()
    %cst_22 = arith.constant dense<0.000000e+00> : vector<8x8x8xf32>
    %40 = tpu.matmul %35, %37, %cst_22 {dimension_numbers = #tpu.dot_dimension_numbers<[2], [2], [1], [1], [0, 0, 0, 1, 1, 1], [0], [0]>} : vector<8x8x4xbf16>, vector<8x8x4xbf16>, vector<8x8x8xf32> -> vector<8x8x8xf32>
    "tpu.trace_stop"() : () -> ()
    %cst_23 = arith.constant 5.000000e-01 : f32
    %41 = vector.broadcast %cst_23 : f32 to vector<8x8x8xf32>
    %42 = arith.mulf %40, %41 : vector<8x8x8xf32>
    %cst_24 = arith.constant dense<0xFF800000> : vector<8x8xf32>
    %43 = vector.multi_reduction <maximumf>, %42, %cst_24 [2] : vector<8x8x8xf32> to vector<8x8xf32>
    %44 = vector.shape_cast %43 : vector<8x8xf32> to vector<8x8x1xf32>
    %45 = vector.broadcast %44 : vector<8x8x1xf32> to vector<8x8x8xf32>
    %46 = arith.subf %42, %45 : vector<8x8x8xf32>
    %47 = math.exp %46 : vector<8x8x8xf32>
    %cst_25 = arith.constant dense<0.000000e+00> : vector<8x8xf32>
    %48 = vector.multi_reduction <add>, %47, %cst_25 [2] : vector<8x8x8xf32> to vector<8x8xf32>
    %49 = vector.shape_cast %48 : vector<8x8xf32> to vector<8x8x1xf32>
    %50 = tpu.reciprocal %49 {approx = true} : vector<8x8x1xf32> -> vector<8x8x1xf32>
    %51 = vector.broadcast %50 : vector<8x8x1xf32> to vector<8x8x8xf32>
    %52 = arith.mulf %47, %51 : vector<8x8x8xf32>
    %53 = arith.truncf %52 : vector<8x8x8xf32> to vector<8x8x8xbf16>
    "tpu.trace_start"() <{level = 10 : i32, message = "hqm,hmk->hqk"}> : () -> ()
    %cst_26 = arith.constant dense<0.000000e+00> : vector<8x8x4xf32>
    %54 = tpu.matmul %53, %39, %cst_26 {dimension_numbers = #tpu.dot_dimension_numbers<[2], [1], [1], [2], [0, 0, 0, 1, 1, 2], [0], [0]>} : vector<8x8x8xbf16>, vector<8x8x4xbf16>, vector<8x8x4xf32> -> vector<8x8x4xf32>
    "tpu.trace_stop"() : () -> ()
    %55 = vector.extract_strided_slice %29 {offsets = [0, 8, 0], sizes = [8, 8, 4], strides = [1, 1, 1]} : vector<8x16x4xf32> to vector<8x8x4xf32>
    %56 = arith.truncf %55 : vector<8x8x4xf32> to vector<8x8x4xbf16>
    %57 = vector.extract_strided_slice %31 {offsets = [0, 8, 0], sizes = [8, 8, 4], strides = [1, 1, 1]} : vector<8x16x4xf32> to vector<8x8x4xf32>
    %58 = arith.truncf %57 : vector<8x8x4xf32> to vector<8x8x4xbf16>
    %59 = vector.extract_strided_slice %33 {offsets = [0, 8, 0], sizes = [8, 8, 4], strides = [1, 1, 1]} : vector<8x16x4xf32> to vector<8x8x4xf32>
    %60 = arith.truncf %59 : vector<8x8x4xf32> to vector<8x8x4xbf16>
    "tpu.trace_start"() <{level = 10 : i32, message = "hqk,hmk->hqm"}> : () -> ()
    %cst_27 = arith.constant dense<0.000000e+00> : vector<8x8x8xf32>
    %61 = tpu.matmul %56, %58, %cst_27 {dimension_numbers = #tpu.dot_dimension_numbers<[2], [2], [1], [1], [0, 0, 0, 1, 1, 1], [0], [0]>} : vector<8x8x4xbf16>, vector<8x8x4xbf16>, vector<8x8x8xf32> -> vector<8x8x8xf32>
    "tpu.trace_stop"() : () -> ()
    %cst_28 = arith.constant 5.000000e-01 : f32
    %62 = vector.broadcast %cst_28 : f32 to vector<8x8x8xf32>
    %63 = arith.mulf %61, %62 : vector<8x8x8xf32>
    %cst_29 = arith.constant dense<0xFF800000> : vector<8x8xf32>
    %64 = vector.multi_reduction <maximumf>, %63, %cst_29 [2] : vector<8x8x8xf32> to vector<8x8xf32>
    %65 = vector.shape_cast %64 : vector<8x8xf32> to vector<8x8x1xf32>
    %66 = vector.broadcast %65 : vector<8x8x1xf32> to vector<8x8x8xf32>
    %67 = arith.subf %63, %66 : vector<8x8x8xf32>
    %68 = math.exp %67 : vector<8x8x8xf32>
    %cst_30 = arith.constant dense<0.000000e+00> : vector<8x8xf32>
    %69 = vector.multi_reduction <add>, %68, %cst_30 [2] : vector<8x8x8xf32> to vector<8x8xf32>
    %70 = vector.shape_cast %69 : vector<8x8xf32> to vector<8x8x1xf32>
    %71 = tpu.reciprocal %70 {approx = true} : vector<8x8x1xf32> -> vector<8x8x1xf32>
    %72 = vector.broadcast %71 : vector<8x8x1xf32> to vector<8x8x8xf32>
    %73 = arith.mulf %68, %72 : vector<8x8x8xf32>
    %74 = arith.truncf %73 : vector<8x8x8xf32> to vector<8x8x8xbf16>
    "tpu.trace_start"() <{level = 10 : i32, message = "hqm,hmk->hqk"}> : () -> ()
    %cst_31 = arith.constant dense<0.000000e+00> : vector<8x8x4xf32>
    %75 = tpu.matmul %74, %60, %cst_31 {dimension_numbers = #tpu.dot_dimension_numbers<[2], [1], [1], [2], [0, 0, 0, 1, 1, 2], [0], [0]>} : vector<8x8x8xbf16>, vector<8x8x4xbf16>, vector<8x8x4xf32> -> vector<8x8x4xf32>
    "tpu.trace_stop"() : () -> ()
    %76 = tpu.concatenate %54, %75 in 1 : vector<8x8x4xf32>, vector<8x8x4xf32> -> vector<8x16x4xf32>
    %77 = arith.truncf %76 : vector<8x16x4xf32> to vector<8x16x4xbf16>
    %c0_32 = arith.constant 0 : index
    %c0_33 = arith.constant 0 : index
    %c0_34 = arith.constant 0 : index
    %78 = vector.load %arg7[%c0_32, %c0_33, %c0_34] : memref<8x4x32xbf16, #tpu.memory_space<vmem>>, vector<8x4x32xbf16>
    "tpu.trace_start"() <{level = 10 : i32, message = "hmk,hkd->hmd"}> : () -> ()
    %cst_35 = arith.constant dense<0.000000e+00> : vector<8x16x32xf32>
    %79 = tpu.matmul %77, %78, %cst_35 {dimension_numbers = #tpu.dot_dimension_numbers<[2], [1], [1], [2], [0, 0, 0, 1, 1, 2], [0], [0]>} : vector<8x16x4xbf16>, vector<8x4x32xbf16>, vector<8x16x32xf32> -> vector<8x16x32xf32>
    "tpu.trace_stop"() : () -> ()
    %cst_36 = arith.constant dense<0.000000e+00> : vector<16x32xf32>
    %80 = vector.multi_reduction <add>, %79, %cst_36 [0] : vector<8x16x32xf32> to vector<16x32xf32>
    %c0_37 = arith.constant 0 : index
    %c0_38 = arith.constant 0 : index
    %81 = vector.load %arg8[%c0_37, %c0_38] : memref<1x32xf32, #tpu.memory_space<vmem>>, vector<1x32xf32>
    %82 = vector.broadcast %81 : vector<1x32xf32> to vector<16x32xf32>
    %83 = arith.addf %80, %82 : vector<16x32xf32>
    %84 = arith.addf %1, %83 : vector<16x32xf32>
    %c0_39 = arith.constant 0 : index
    %c0_40 = arith.constant 0 : index
    %85 = vector.load %arg9[%c0_39, %c0_40] : memref<1x32xf32, #tpu.memory_space<vmem>>, vector<1x32xf32>
    %c0_41 = arith.constant 0 : index
    %c0_42 = arith.constant 0 : index
    %86 = vector.load %arg10[%c0_41, %c0_42] : memref<1x32xf32, #tpu.memory_space<vmem>>, vector<1x32xf32>
    %cst_43 = arith.constant dense<0.000000e+00> : vector<16xf32>
    %87 = vector.multi_reduction <add>, %84, %cst_43 [1] : vector<16x32xf32> to vector<16xf32>
    %88 = vector.shape_cast %87 : vector<16xf32> to vector<16x1xf32>
    %cst_44 = arith.constant 3.200000e+01 : f32
    %89 = vector.broadcast %cst_44 : f32 to vector<16x1xf32>
    %90 = arith.divf %88, %89 : vector<16x1xf32>
    %91 = vector.broadcast %90 : vector<16x1xf32> to vector<16x32xf32>
    %92 = arith.subf %84, %91 : vector<16x32xf32>
    %93 = arith.mulf %92, %92 : vector<16x32xf32>
    %cst_45 = arith.constant dense<0.000000e+00> : vector<16xf32>
    %94 = vector.multi_reduction <add>, %93, %cst_45 [1] : vector<16x32xf32> to vector<16xf32>
    %95 = vector.shape_cast %94 : vector<16xf32> to vector<16x1xf32>
    %cst_46 = arith.constant 3.200000e+01 : f32
    %96 = vector.broadcast %cst_46 : f32 to vector<16x1xf32>
    %97 = arith.divf %95, %96 : vector<16x1xf32>
    %cst_47 = arith.constant 9.99999974E-6 : f32
    %98 = vector.broadcast %cst_47 : f32 to vector<16x1xf32>
    %99 = arith.addf %97, %98 : vector<16x1xf32>
    %100 = math.rsqrt %99 : vector<16x1xf32>
    %101 = vector.broadcast %100 : vector<16x1xf32> to vector<16x32xf32>
    %102 = arith.mulf %92, %101 : vector<16x32xf32>
    %103 = vector.broadcast %85 : vector<1x32xf32> to vector<16x32xf32>
    %104 = arith.mulf %102, %103 : vector<16x32xf32>
    %105 = vector.broadcast %86 : vector<1x32xf32> to vector<16x32xf32>
    %106 = arith.addf %104, %105 : vector<16x32xf32>
    %107 = arith.truncf %106 : vector<16x32xf32> to vector<16x32xbf16>
    %c0_48 = arith.constant 0 : index
    %c0_49 = arith.constant 0 : index
    %108 = vector.load %arg11[%c0_48, %c0_49] : memref<32x128xbf16, #tpu.memory_space<vmem>>, vector<32x128xbf16>
    %cst_50 = arith.constant dense<0.000000e+00> : vector<16x128xf32>
    %109 = tpu.matmul %107, %108, %cst_50 {dimension_numbers = #tpu.dot_dimension_numbers<[1], [0], [0], [1], [0, 0, 1, 1], [], []>} : vector<16x32xbf16>, vector<32x128xbf16>, vector<16x128xf32> -> vector<16x128xf32>
    %c0_51 = arith.constant 0 : index
    %c0_52 = arith.constant 0 : index
    %110 = vector.load %arg12[%c0_51, %c0_52] : memref<1x128xf32, #tpu.memory_space<vmem>>, vector<1x128xf32>
    %111 = vector.broadcast %110 : vector<1x128xf32> to vector<16x128xf32>
    %112 = arith.addf %109, %111 : vector<16x128xf32>
    %cst_53 = arith.constant 5.000000e-01 : f32
    %113 = vector.broadcast %cst_53 : f32 to vector<16x128xf32>
    %114 = arith.mulf %113, %112 : vector<16x128xf32>
    %cst_54 = arith.constant 4.471500e-02 : f32
    %115 = vector.broadcast %cst_54 : f32 to vector<16x128xf32>
    %116 = arith.mulf %115, %112 : vector<16x128xf32>
    %117 = arith.mulf %116, %112 : vector<16x128xf32>
    %118 = arith.mulf %117, %112 : vector<16x128xf32>
    %119 = arith.addf %112, %118 : vector<16x128xf32>
    %cst_55 = arith.constant 0.797884583 : f32
    %120 = vector.broadcast %cst_55 : f32 to vector<16x128xf32>
    %121 = arith.mulf %120, %119 : vector<16x128xf32>
    %122 = math.tanh %121 : vector<16x128xf32>
    %cst_56 = arith.constant 1.000000e+00 : f32
    %123 = vector.broadcast %cst_56 : f32 to vector<16x128xf32>
    %124 = arith.addf %123, %122 : vector<16x128xf32>
    %125 = arith.mulf %114, %124 : vector<16x128xf32>
    %126 = arith.truncf %125 : vector<16x128xf32> to vector<16x128xbf16>
    %c0_57 = arith.constant 0 : index
    %c0_58 = arith.constant 0 : index
    %127 = vector.load %arg13[%c0_57, %c0_58] : memref<128x32xbf16, #tpu.memory_space<vmem>>, vector<128x32xbf16>
    %cst_59 = arith.constant dense<0.000000e+00> : vector<16x32xf32>
    %128 = tpu.matmul %126, %127, %cst_59 {dimension_numbers = #tpu.dot_dimension_numbers<[1], [0], [0], [1], [0, 0, 1, 1], [], []>} : vector<16x128xbf16>, vector<128x32xbf16>, vector<16x32xf32> -> vector<16x32xf32>
    %c0_60 = arith.constant 0 : index
    %c0_61 = arith.constant 0 : index
    %129 = vector.load %arg14[%c0_60, %c0_61] : memref<1x32xf32, #tpu.memory_space<vmem>>, vector<1x32xf32>
    %130 = vector.broadcast %129 : vector<1x32xf32> to vector<16x32xf32>
    %131 = arith.addf %128, %130 : vector<16x32xf32>
    %132 = arith.addf %84, %131 : vector<16x32xf32>
    %133 = vector.shape_cast %132 : vector<16x32xf32> to vector<2x8x32xf32>
    %c0_62 = arith.constant 0 : index
    %c0_63 = arith.constant 0 : index
    %c0_64 = arith.constant 0 : index
    %134 = vector.load %arg15[%c0_62, %c0_63, %c0_64] : memref<2x8x32xf32, #tpu.memory_space<vmem>>, vector<2x8x32xf32>
    tpu.vector_store %arg15[%c0_62, %c0_63, %c0_64], %133 {strides = array<i32>} : memref<2x8x32xf32, #tpu.memory_space<vmem>>, vector<2x8x32xf32>,
    return
  }
  func.func @transform_0(%arg0: i32) -> (i32, i32, i32) {
    %c0_i32 = arith.constant 0 : i32
    %c0_i32_0 = arith.constant 0 : i32
    %c0_i32_1 = arith.constant 0 : i32
    return %arg0, %c0_i32, %c0_i32_0 : i32, i32, i32
  }
  func.func @transform_1(%arg0: i32) -> (i32, i32) {
    %c0_i32 = arith.constant 0 : i32
    %c0_i32_0 = arith.constant 0 : i32
    %c0_i32_1 = arith.constant 0 : i32
    return %c0_i32, %c0_i32_0 : i32, i32
  }
  func.func @transform_2(%arg0: i32) -> (i32, i32) {
    %c0_i32 = arith.constant 0 : i32
    %c0_i32_0 = arith.constant 0 : i32
    %c0_i32_1 = arith.constant 0 : i32
    return %c0_i32, %c0_i32_0 : i32, i32
  }
  func.func @transform_3(%arg0: i32) -> (i32, i32, i32) {
    %c0_i32 = arith.constant 0 : i32
    %c0_i32_0 = arith.constant 0 : i32
    %c0_i32_1 = arith.constant 0 : i32
    %c0_i32_2 = arith.constant 0 : i32
    return %c0_i32, %c0_i32_0, %c0_i32_1 : i32, i32, i32
  }
  func.func @transform_4(%arg0: i32) -> (i32, i32, i32) {
    %c0_i32 = arith.constant 0 : i32
    %c0_i32_0 = arith.constant 0 : i32
    %c0_i32_1 = arith.constant 0 : i32
    %c0_i32_2 = arith.constant 0 : i32
    return %c0_i32, %c0_i32_0, %c0_i32_1 : i32, i32, i32
  }
  func.func @transform_5(%arg0: i32) -> (i32, i32, i32) {
    %c0_i32 = arith.constant 0 : i32
    %c0_i32_0 = arith.constant 0 : i32
    %c0_i32_1 = arith.constant 0 : i32
    %c0_i32_2 = arith.constant 0 : i32
    return %c0_i32, %c0_i32_0, %c0_i32_1 : i32, i32, i32
  }
  func.func @transform_6(%arg0: i32) -> (i32, i32, i32) {
    %c0_i32 = arith.constant 0 : i32
    %c0_i32_0 = arith.constant 0 : i32
    %c0_i32_1 = arith.constant 0 : i32
    %c0_i32_2 = arith.constant 0 : i32
    return %c0_i32, %c0_i32_0, %c0_i32_1 : i32, i32, i32
  }
  func.func @transform_7(%arg0: i32) -> (i32, i32) {
    %c0_i32 = arith.constant 0 : i32
    %c0_i32_0 = arith.constant 0 : i32
    %c0_i32_1 = arith.constant 0 : i32
    return %c0_i32, %c0_i32_0 : i32, i32
  }
  func.func @transform_8(%arg0: i32) -> (i32, i32) {
    %c0_i32 = arith.constant 0 : i32
    %c0_i32_0 = arith.constant 0 : i32
    %c0_i32_1 = arith.constant 0 : i32
    return %c0_i32, %c0_i32_0 : i32, i32
  }
  func.func @transform_9(%arg0: i32) -> (i32, i32) {
    %c0_i32 = arith.constant 0 : i32
    %c0_i32_0 = arith.constant 0 : i32
    %c0_i32_1 = arith.constant 0 : i32
    return %c0_i32, %c0_i32_0 : i32, i32
  }
  func.func @transform_10(%arg0: i32) -> (i32, i32) {
    %c0_i32 = arith.constant 0 : i32
    %c0_i32_0 = arith.constant 0 : i32
    %c0_i32_1 = arith.constant 0 : i32
    return %c0_i32, %c0_i32_0 : i32, i32
  }
  func.func @transform_11(%arg0: i32) -> (i32, i32) {
    %c0_i32 = arith.constant 0 : i32
    %c0_i32_0 = arith.constant 0 : i32
    %c0_i32_1 = arith.constant 0 : i32
    return %c0_i32, %c0_i32_0 : i32, i32
  }
  func.func @transform_12(%arg0: i32) -> (i32, i32) {
    %c0_i32 = arith.constant 0 : i32
    %c0_i32_0 = arith.constant 0 : i32
    %c0_i32_1 = arith.constant 0 : i32
    return %c0_i32, %c0_i32_0 : i32, i32
  }
  func.func @transform_13(%arg0: i32) -> (i32, i32) {
    %c0_i32 = arith.constant 0 : i32
    %c0_i32_0 = arith.constant 0 : i32
    %c0_i32_1 = arith.constant 0 : i32
    return %c0_i32, %c0_i32_0 : i32, i32
  }
  func.func @transform_14(%arg0: i32) -> (i32, i32, i32) {
    %c0_i32 = arith.constant 0 : i32
    %c0_i32_0 = arith.constant 0 : i32
    %c0_i32_1 = arith.constant 0 : i32
    return %arg0, %c0_i32, %c0_i32_0 : i32, i32, i32
  }
}

</mosaic_0001>

<llo_original>
// kernel: tpu_custom_call.1
$region0: #{tpu_custom_call.1}
  #allocation0 [shape = 'u32[]', space=smem, size = 0x4, offset = 0x4, fixed_abs, tag = 'smem constant byte address 0x4 - core index']
  #allocation1 [shape = 'u32[144,128]{1,0:T(1,128)}', space=vmem, size = 0x12000, scoped, tag = 'internal scratch']
  %s0 = inlined_call_operand.vmem [shape: f32[8,8,32], index: 0, kind: input, shape index: {}]
  %s1 = inlined_call_operand.vmem [shape: f32[1,32], index: 1, kind: input, shape index: {}]
  %s2 = inlined_call_operand.vmem [shape: f32[1,32], index: 2, kind: input, shape index: {}]
  %s3 = inlined_call_operand.vmem [shape: bf16[8,32,4], index: 3, kind: input, shape index: {}]
  %s4 = inlined_call_operand.vmem [shape: bf16[8,32,4], index: 4, kind: input, shape index: {}]
  %s5 = inlined_call_operand.vmem [shape: bf16[8,32,4], index: 5, kind: input, shape index: {}]
  %s6 = inlined_call_operand.vmem [shape: bf16[8,4,32], index: 6, kind: input, shape index: {}]
  %s7 = inlined_call_operand.vmem [shape: f32[1,32], index: 7, kind: input, shape index: {}]
  %s8 = inlined_call_operand.vmem [shape: f32[1,32], index: 8, kind: input, shape index: {}]
  %s9 = inlined_call_operand.vmem [shape: f32[1,32], index: 9, kind: input, shape index: {}]
  %s10 = inlined_call_operand.vmem [shape: bf16[32,128], index: 10, kind: input, shape index: {}]
  %s11 = inlined_call_operand.vmem [shape: f32[1,128], index: 11, kind: input, shape index: {}]
  %s12 = inlined_call_operand.vmem [shape: bf16[128,32], index: 12, kind: input, shape index: {}]
  %s13 = inlined_call_operand.vmem [shape: f32[1,32], index: 13, kind: input, shape index: {}]
  %s14 = inlined_call_operand.hbm [shape: f32[8,8,32], index: 14, kind: output, shape index: {}]
  %s15 = sld [smem:[#allocation0]]
  $region89: #{tpu_custom_call.1} parent=0
    _
  %s17 = ssub.s32 1, %s15
  %s18 = scalar_select 0, %s17, %s15
  $region1: #{tpu_custom_call.1} parent=0
    #allocation2 [shape = 'u8[16384]{0}', space=vmem, size = 0x4000, scoped, tag = 'output window, operand 0']
    #allocation3 [shape = 's32[2]{0}', space=sflag, size = 0x8, scoped, tag = 'scoped memory for tpu_custom_call.1']
    %19 = vsyncpa [#allocation3], 0
    %s20 = scalar_lea.sflag [#allocation3], 1
    %21 = vsyncpa %s20, 0
    loop: start=0, step=1, limit=6
    $region2: #{tpu_custom_call.1} parent=1 // loop_pre_header
      _
    $region3: #{tpu_custom_call.1} parent=1 // loop_header
      %s23 = sphi 0, %s27
      %p24 = scmp.ge.s32.totalorder %s23, 6
      %s33 = sphi 0, %s35
      %s36 = sphi 0, %s33
      %s37 = sphi 0, %s36
      %s53 = sphi 0, %s37
      %s57 = sphi 0, %s57
      %s59 = sphi 0, %s57
      %s60 = sphi 0, %s59
      %s74 = sphi 0, %s60
      %s78 = sphi 0, %s78
      %s80 = sphi 0, %s78
      %s81 = sphi 0, %s80
      %s95 = sphi 0, %s81
      %s99 = sphi 0, %s99
      %s101 = sphi 0, %s99
      %s102 = sphi 0, %s101
      %s116 = sphi 0, %s102
      %s120 = sphi 0, %s120
      %s122 = sphi 0, %s120
      %s123 = sphi 0, %s122
      %s137 = sphi 0, %s123
      %s141 = sphi 0, %s141
      %s143 = sphi 0, %s141
      %s144 = sphi 0, %s143
      %s158 = sphi 0, %s144
      %s162 = sphi 0, %s162
      %s164 = sphi 0, %s162
      %s165 = sphi 0, %s164
      %s179 = sphi 0, %s165
      %s183 = sphi 0, %s183
      %s185 = sphi 0, %s183
      %s186 = sphi 0, %s185
      %s200 = sphi 0, %s186
      %s204 = sphi 0, %s204
      %s206 = sphi 0, %s204
      %s207 = sphi 0, %s206
      %s221 = sphi 0, %s207
      %s225 = sphi 0, %s225
      %s227 = sphi 0, %s225
      %s228 = sphi 0, %s227
      %s242 = sphi 0, %s228
      %s246 = sphi 0, %s246
      %s248 = sphi 0, %s246
      %s249 = sphi 0, %s248
      %s263 = sphi 0, %s249
      %s267 = sphi 0, %s267
      %s269 = sphi 0, %s267
      %s270 = sphi 0, %s269
      %s284 = sphi 0, %s270
      %s288 = sphi 0, %s288
      %s290 = sphi 0, %s288
      %s291 = sphi 0, %s290
      %s305 = sphi 0, %s291
      %s309 = sphi 0, %s309
      %s311 = sphi 0, %s309
      %s312 = sphi 0, %s311
      %s326 = sphi 0, %s312
      %s332 = sphi 0, %s334
      %s335 = sphi 0, %s332
      %s336 = sphi 0, %s335
      %s352 = sphi 0, %s336
    $region4: #{tpu_custom_call.1} parent=1 // loop_header_branch
      %26 = sbr.rel (%p24) target = $region8
    $region5: #{tpu_custom_call.1} parent=1 // loop_body
      %s28 = ssub.s32 %s23, 1
      %s29 = ssub.s32 %s23, 2
      %s30 = sadd.s32 %s23, 1
      %s31 = ssub.s32 %s23, %s30
      %p32 = scmp.eq.s32.totalorder %s31, 0
      %s34 = sadd.s32 %s33, 1
      %s35 = scalar_select %p32, %s33, %s34
      %p38 = pneg %p32
      %p39 = scmp.eq.s32.totalorder %s23, 3
      %p40 = por %p38, %p39
      %p41 = scmp.ne.s32.totalorder %s33, %s36
      %p42 = scmp.eq.s32.totalorder %s23, 0
      %p43 = por %p41, %p42
      %p44 = scmp.ne.s32.totalorder %s33, %s36
      %p45 = scmp.eq.s32.totalorder %s28, 3
      %p46 = por %p44, %p45
      %p47 = scmp.ne.s32.totalorder %s36, %s37
      %p48 = scmp.eq.s32.totalorder %s28, 0
      %p49 = por %p47, %p48
      %p50 = scmp.ne.s32.totalorder %s36, %s37
      %p51 = scmp.eq.s32.totalorder %s29, 3
      %p52 = por %p50, %p51
      %p54 = scmp.ne.s32.totalorder %s37, %s53
      %p55 = scmp.eq.s32.totalorder %s29, 0
      %p56 = por %p54, %p55
      %s58 = sadd.s32 %s57, 1
      %p61 = scmp.eq.s32.totalorder %s23, 3
      %p62 = scmp.ne.s32.totalorder %s57, %s59
      %p63 = scmp.eq.s32.totalorder %s23, 0
      %p64 = por %p62, %p63
      %p65 = scmp.ne.s32.totalorder %s57, %s59
      %p66 = scmp.eq.s32.totalorder %s28, 3
      %p67 = por %p65, %p66
      %p68 = scmp.ne.s32.totalorder %s59, %s60
      %p69 = scmp.eq.s32.totalorder %s28, 0
      %p70 = por %p68, %p69
      %p71 = scmp.ne.s32.totalorder %s59, %s60
      %p72 = scmp.eq.s32.totalorder %s29, 3
      %p73 = por %p71, %p72
      %p75 = scmp.ne.s32.totalorder %s60, %s74
      %p76 = scmp.eq.s32.totalorder %s29, 0
      %p77 = por %p75, %p76
      %s79 = sadd.s32 %s78, 1
      %p82 = scmp.eq.s32.totalorder %s23, 3
      %p83 = scmp.ne.s32.totalorder %s78, %s80
      %p84 = scmp.eq.s32.totalorder %s23, 0
      %p85 = por %p83, %p84
      %p86 = scmp.ne.s32.totalorder %s78, %s80
      %p87 = scmp.eq.s32.totalorder %s28, 3
      %p88 = por %p86, %p87
      %p89 = scmp.ne.s32.totalorder %s80, %s81
      %p90 = scmp.eq.s32.totalorder %s28, 0
      %p91 = por %p89, %p90
      %p92 = scmp.ne.s32.totalorder %s80, %s81
      %p93 = scmp.eq.s32.totalorder %s29, 3
      %p94 = por %p92, %p93
      %p96 = scmp.ne.s32.totalorder %s81, %s95
      %p97 = scmp.eq.s32.totalorder %s29, 0
      %p98 = por %p96, %p97
      %s100 = sadd.s32 %s99, 1
      %p103 = scmp.eq.s32.totalorder %s23, 3
      %p104 = scmp.ne.s32.totalorder %s99, %s101
      %p105 = scmp.eq.s32.totalorder %s23, 0
      %p106 = por %p104, %p105
      %p107 = scmp.ne.s32.totalorder %s99, %s101
      %p108 = scmp.eq.s32.totalorder %s28, 3
      %p109 = por %p107, %p108
      %p110 = scmp.ne.s32.totalorder %s101, %s102
      %p111 = scmp.eq.s32.totalorder %s28, 0
      %p112 = por %p110, %p111
      %p113 = scmp.ne.s32.totalorder %s101, %s102
      %p114 = scmp.eq.s32.totalorder %s29, 3
      %p115 = por %p113, %p114
      %p117 = scmp.ne.s32.totalorder %s102, %s116
      %p118 = scmp.eq.s32.totalorder %s29, 0
      %p119 = por %p117, %p118
      %s121 = sadd.s32 %s120, 1
      %p124 = scmp.eq.s32.totalorder %s23, 3
      %p125 = scmp.ne.s32.totalorder %s120, %s122
      %p126 = scmp.eq.s32.totalorder %s23, 0
      %p127 = por %p125, %p126
      %p128 = scmp.ne.s32.totalorder %s120, %s122
      %p129 = scmp.eq.s32.totalorder %s28, 3
      %p130 = por %p128, %p129
      %p131 = scmp.ne.s32.totalorder %s122, %s123
      %p132 = scmp.eq.s32.totalorder %s28, 0
      %p133 = por %p131, %p132
      %p134 = scmp.ne.s32.totalorder %s122, %s123
      %p135 = scmp.eq.s32.totalorder %s29, 3
      %p136 = por %p134, %p135
      %p138 = scmp.ne.s32.totalorder %s123, %s137
      %p139 = scmp.eq.s32.totalorder %s29, 0
      %p140 = por %p138, %p139
      %s142 = sadd.s32 %s141, 1
      %p145 = scmp.eq.s32.totalorder %s23, 3
      %p146 = scmp.ne.s32.totalorder %s141, %s143
      %p147 = scmp.eq.s32.totalorder %s23, 0
      %p148 = por %p146, %p147
      %p149 = scmp.ne.s32.totalorder %s141, %s143
      %p150 = scmp.eq.s32.totalorder %s28, 3
      %p151 = por %p149, %p150
      %p152 = scmp.ne.s32.totalorder %s143, %s144
      %p153 = scmp.eq.s32.totalorder %s28, 0
      %p154 = por %p152, %p153
      %p155 = scmp.ne.s32.totalorder %s143, %s144
      %p156 = scmp.eq.s32.totalorder %s29, 3
      %p157 = por %p155, %p156
      %p159 = scmp.ne.s32.totalorder %s144, %s158
      %p160 = scmp.eq.s32.totalorder %s29, 0
      %p161 = por %p159, %p160
      %s163 = sadd.s32 %s162, 1
      %p166 = scmp.eq.s32.totalorder %s23, 3
      %p167 = scmp.ne.s32.totalorder %s162, %s164
      %p168 = scmp.eq.s32.totalorder %s23, 0
      %p169 = por %p167, %p168
      %p170 = scmp.ne.s32.totalorder %s162, %s164
      %p171 = scmp.eq.s32.totalorder %s28, 3
      %p172 = por %p170, %p171
      %p173 = scmp.ne.s32.totalorder %s164, %s165
      %p174 = scmp.eq.s32.totalorder %s28, 0
      %p175 = por %p173, %p174
      %p176 = scmp.ne.s32.totalorder %s164, %s165
      %p177 = scmp.eq.s32.totalorder %s29, 3
      %p178 = por %p176, %p177
      %p180 = scmp.ne.s32.totalorder %s165, %s179
      %p181 = scmp.eq.s32.totalorder %s29, 0
      %p182 = por %p180, %p181
      %s184 = sadd.s32 %s183, 1
      %p187 = scmp.eq.s32.totalorder %s23, 3
      %p188 = scmp.ne.s32.totalorder %s183, %s185
      %p189 = scmp.eq.s32.totalorder %s23, 0
      %p190 = por %p188, %p189
      %p191 = scmp.ne.s32.totalorder %s183, %s185
      %p192 = scmp.eq.s32.totalorder %s28, 3
      %p193 = por %p191, %p192
      %p194 = scmp.ne.s32.totalorder %s185, %s186
      %p195 = scmp.eq.s32.totalorder %s28, 0
      %p196 = por %p194, %p195
      %p197 = scmp.ne.s32.totalorder %s185, %s186
      %p198 = scmp.eq.s32.totalorder %s29, 3
      %p199 = por %p197, %p198
      %p201 = scmp.ne.s32.totalorder %s186, %s200
      %p202 = scmp.eq.s32.totalorder %s29, 0
      %p203 = por %p201, %p202
      %s205 = sadd.s32 %s204, 1
      %p208 = scmp.eq.s32.totalorder %s23, 3
      %p209 = scmp.ne.s32.totalorder %s204, %s206
      %p210 = scmp.eq.s32.totalorder %s23, 0
      %p211 = por %p209, %p210
      %p212 = scmp.ne.s32.totalorder %s204, %s206
      %p213 = scmp.eq.s32.totalorder %s28, 3
      %p214 = por %p212, %p213
      %p215 = scmp.ne.s32.totalorder %s206, %s207
      %p216 = scmp.eq.s32.totalorder %s28, 0
      %p217 = por %p215, %p216
      %p218 = scmp.ne.s32.totalorder %s206, %s207
      %p219 = scmp.eq.s32.totalorder %s29, 3
      %p220 = por %p218, %p219
      %p222 = scmp.ne.s32.totalorder %s207, %s221
      %p223 = scmp.eq.s32.totalorder %s29, 0
      %p224 = por %p222, %p223
      %s226 = sadd.s32 %s225, 1
      %p229 = scmp.eq.s32.totalorder %s23, 3
      %p230 = scmp.ne.s32.totalorder %s225, %s227
      %p231 = scmp.eq.s32.totalorder %s23, 0
      %p232 = por %p230, %p231
      %p233 = scmp.ne.s32.totalorder %s225, %s227
      %p234 = scmp.eq.s32.totalorder %s28, 3
      %p235 = por %p233, %p234
      %p236 = scmp.ne.s32.totalorder %s227, %s228
      %p237 = scmp.eq.s32.totalorder %s28, 0
      %p238 = por %p236, %p237
      %p239 = scmp.ne.s32.totalorder %s227, %s228
      %p240 = scmp.eq.s32.totalorder %s29, 3
      %p241 = por %p239, %p240
      %p243 = scmp.ne.s32.totalorder %s228, %s242
      %p244 = scmp.eq.s32.totalorder %s29, 0
      %p245 = por %p243, %p244
      %s247 = sadd.s32 %s246, 1
      %p250 = scmp.eq.s32.totalorder %s23, 3
      %p251 = scmp.ne.s32.totalorder %s246, %s248
      %p252 = scmp.eq.s32.totalorder %s23, 0
      %p253 = por %p251, %p252
      %p254 = scmp.ne.s32.totalorder %s246, %s248
      %p255 = scmp.eq.s32.totalorder %s28, 3
      %p256 = por %p254, %p255
      %p257 = scmp.ne.s32.totalorder %s248, %s249
      %p258 = scmp.eq.s32.totalorder %s28, 0
      %p259 = por %p257, %p258
      %p260 = scmp.ne.s32.totalorder %s248, %s249
      %p261 = scmp.eq.s32.totalorder %s29, 3
      %p262 = por %p260, %p261
      %p264 = scmp.ne.s32.totalorder %s249, %s263
      %p265 = scmp.eq.s32.totalorder %s29, 0
      %p266 = por %p264, %p265
      %s268 = sadd.s32 %s267, 1
      %p271 = scmp.eq.s32.totalorder %s23, 3
      %p272 = scmp.ne.s32.totalorder %s267, %s269
      %p273 = scmp.eq.s32.totalorder %s23, 0
      %p274 = por %p272, %p273
      %p275 = scmp.ne.s32.totalorder %s267, %s269
      %p276 = scmp.eq.s32.totalorder %s28, 3
      %p277 = por %p275, %p276
      %p278 = scmp.ne.s32.totalorder %s269, %s270
      %p279 = scmp.eq.s32.totalorder %s28, 0
      %p280 = por %p278, %p279
      %p281 = scmp.ne.s32.totalorder %s269, %s270
      %p282 = scmp.eq.s32.totalorder %s29, 3
      %p283 = por %p281, %p282
      %p285 = scmp.ne.s32.totalorder %s270, %s284
      %p286 = scmp.eq.s32.totalorder %s29, 0
      %p287 = por %p285, %p286
      %s289 = sadd.s32 %s288, 1
      %p292 = scmp.eq.s32.totalorder %s23, 3
      %p293 = scmp.ne.s32.totalorder %s288, %s290
      %p294 = scmp.eq.s32.totalorder %s23, 0
      %p295 = por %p293, %p294
      %p296 = scmp.ne.s32.totalorder %s288, %s290
      %p297 = scmp.eq.s32.totalorder %s28, 3
      %p298 = por %p296, %p297
      %p299 = scmp.ne.s32.totalorder %s290, %s291
      %p300 = scmp.eq.s32.totalorder %s28, 0
      %p301 = por %p299, %p300
      %p302 = scmp.ne.s32.totalorder %s290, %s291
      %p303 = scmp.eq.s32.totalorder %s29, 3
      %p304 = por %p302, %p303
      %p306 = scmp.ne.s32.totalorder %s291, %s305
      %p307 = scmp.eq.s32.totalorder %s29, 0
      %p308 = por %p306, %p307
      %s310 = sadd.s32 %s309, 1
      %p313 = scmp.eq.s32.totalorder %s23, 3
      %p314 = scmp.ne.s32.totalorder %s309, %s311
      %p315 = scmp.eq.s32.totalorder %s23, 0
      %p316 = por %p314, %p315
      %p317 = scmp.ne.s32.totalorder %s309, %s311
      %p318 = scmp.eq.s32.totalorder %s28, 3
      %p319 = por %p317, %p318
      %p320 = scmp.ne.s32.totalorder %s311, %s312
      %p321 = scmp.eq.s32.totalorder %s28, 0
      %p322 = por %p320, %p321
      %p323 = scmp.ne.s32.totalorder %s311, %s312
      %p324 = scmp.eq.s32.totalorder %s29, 3
      %p325 = por %p323, %p324
      %p327 = scmp.ne.s32.totalorder %s312, %s326
      %p328 = scmp.eq.s32.totalorder %s29, 0
      %p329 = por %p327, %p328
      %s330 = ssub.s32 %s23, %s30
      %p331 = scmp.eq.s32.totalorder %s330, 0
      %s333 = sadd.s32 %s332, 1
      %s334 = scalar_select %p331, %s332, %s333
      %p337 = pneg %p331
      %p338 = scmp.eq.s32.totalorder %s23, 3
      %p339 = por %p337, %p338
      %p340 = scmp.ne.s32.totalorder %s332, %s335
      %p341 = scmp.eq.s32.totalorder %s23, 0
      %p342 = por %p340, %p341
      %p343 = scmp.ne.s32.totalorder %s332, %s335
      %p344 = scmp.eq.s32.totalorder %s28, 3
      %p345 = por %p343, %p344
      %p346 = scmp.ne.s32.totalorder %s335, %s336
      %p347 = scmp.eq.s32.totalorder %s28, 0
      %p348 = por %p346, %p347
      %p349 = scmp.ne.s32.totalorder %s335, %s336
      %p350 = scmp.eq.s32.totalorder %s29, 3
      %p351 = por %p349, %p350
      %p353 = scmp.ne.s32.totalorder %s336, %s352
      %p354 = scmp.eq.s32.totalorder %s29, 0
      %p355 = por %p353, %p354
      %p356 = scmp.le.s32.totalorder 1, %s23
      %p357 = scmp.lt.s32.totalorder %s23, 5
      %p358 = pnand %p356, %p357
      %p359 = pneg %p358
      // Predicated region
      $region9: #{tpu_custom_call.1} parent=5 // pred_check
        _
      $region10: #{tpu_custom_call.1} parent=5 // pred_check_branch
        %361 = sbr.rel (%p358) target = $region12
      $region11: #{tpu_custom_call.1} parent=5 // pred_region
        %s362 = ssub.s32 %s23, 1
        // Predicated region
        $region13: #{tpu_custom_call.1} parent=11 // pred_check
          %p363 = pneg %p70
        $region14: #{tpu_custom_call.1} parent=11 // pred_check_branch
          %365 = sbr.rel (%p363) target = $region16
        $region15: #{tpu_custom_call.1} parent=11 // pred_region
          _
        $region16: #{tpu_custom_call.1} parent=11 // pred_fallthru
          _
        // Predicated region
        $region17: #{tpu_custom_call.1} parent=11 // pred_check
          %p366 = pneg %p91
        $region18: #{tpu_custom_call.1} parent=11 // pred_check_branch
          %368 = sbr.rel (%p366) target = $region20
        $region19: #{tpu_custom_call.1} parent=11 // pred_region
          _
        $region20: #{tpu_custom_call.1} parent=11 // pred_fallthru
          _
        // Predicated region
        $region21: #{tpu_custom_call.1} parent=11 // pred_check
          %p369 = pneg %p112
        $region22: #{tpu_custom_call.1} parent=11 // pred_check_branch
          %371 = sbr.rel (%p369) target = $region24
        $region23: #{tpu_custom_call.1} parent=11 // pred_region
          _
        $region24: #{tpu_custom_call.1} parent=11 // pred_fallthru
          _
        // Predicated region
        $region25: #{tpu_custom_call.1} parent=11 // pred_check
          %p372 = pneg %p133
        $region26: #{tpu_custom_call.1} parent=11 // pred_check_branch
          %374 = sbr.rel (%p372) target = $region28
        $region27: #{tpu_custom_call.1} parent=11 // pred_region
          _
        $region28: #{tpu_custom_call.1} parent=11 // pred_fallthru
          _
        // Predicated region
        $region29: #{tpu_custom_call.1} parent=11 // pred_check
          %p375 = pneg %p154
        $region30: #{tpu_custom_call.1} parent=11 // pred_check_branch
          %377 = sbr.rel (%p375) target = $region32
        $region31: #{tpu_custom_call.1} parent=11 // pred_region
          _
        $region32: #{tpu_custom_call.1} parent=11 // pred_fallthru
          _
        // Predicated region
        $region33: #{tpu_custom_call.1} parent=11 // pred_check
          %p378 = pneg %p175
        $region34: #{tpu_custom_call.1} parent=11 // pred_check_branch
          %380 = sbr.rel (%p378) target = $region36
        $region35: #{tpu_custom_call.1} parent=11 // pred_region
          _
        $region36: #{tpu_custom_call.1} parent=11 // pred_fallthru
          _
        // Predicated region
        $region37: #{tpu_custom_call.1} parent=11 // pred_check
          %p381 = pneg %p196
        $region38: #{tpu_custom_call.1} parent=11 // pred_check_branch
          %383 = sbr.rel (%p381) target = $region40
        $region39: #{tpu_custom_call.1} parent=11 // pred_region
          _
        $region40: #{tpu_custom_call.1} parent=11 // pred_fallthru
          _
        // Predicated region
        $region41: #{tpu_custom_call.1} parent=11 // pred_check
          %p384 = pneg %p217
        $region42: #{tpu_custom_call.1} parent=11 // pred_check_branch
          %386 = sbr.rel (%p384) target = $region44
        $region43: #{tpu_custom_call.1} parent=11 // pred_region
          _
        $region44: #{tpu_custom_call.1} parent=11 // pred_fallthru
          _
        // Predicated region
        $region45: #{tpu_custom_call.1} parent=11 // pred_check
          %p387 = pneg %p238
        $region46: #{tpu_custom_call.1} parent=11 // pred_check_branch
          %389 = sbr.rel (%p387) target = $region48
        $region47: #{tpu_custom_call.1} parent=11 // pred_region
          _
        $region48: #{tpu_custom_call.1} parent=11 // pred_fallthru
          _
        // Predicated region
        $region49: #{tpu_custom_call.1} parent=11 // pred_check
          %p390 = pneg %p259
        $region50: #{tpu_custom_call.1} parent=11 // pred_check_branch
          %392 = sbr.rel (%p390) target = $region52
        $region51: #{tpu_custom_call.1} parent=11 // pred_region
          _
        $region52: #{tpu_custom_call.1} parent=11 // pred_fallthru
          _
        // Predicated region
        $region53: #{tpu_custom_call.1} parent=11 // pred_check
          %p393 = pneg %p280
        $region54: #{tpu_custom_call.1} parent=11 // pred_check_branch
          %395 = sbr.rel (%p393) target = $region56
        $region55: #{tpu_custom_call.1} parent=11 // pred_region
          _
        $region56: #{tpu_custom_call.1} parent=11 // pred_fallthru
          _
        // Predicated region
        $region57: #{tpu_custom_call.1} parent=11 // pred_check
          %p396 = pneg %p301
        $region58: #{tpu_custom_call.1} parent=11 // pred_check_branch
          %398 = sbr.rel (%p396) target = $region60
        $region59: #{tpu_custom_call.1} parent=11 // pred_region
          _
        $region60: #{tpu_custom_call.1} parent=11 // pred_fallthru
          _
        // Predicated region
        $region61: #{tpu_custom_call.1} parent=11 // pred_check
          %p399 = pneg %p322
        $region62: #{tpu_custom_call.1} parent=11 // pred_check_branch
          %401 = sbr.rel (%p399) target = $region64
        $region63: #{tpu_custom_call.1} parent=11 // pred_region
          _
        $region64: #{tpu_custom_call.1} parent=11 // pred_fallthru
          _
      $region12: #{tpu_custom_call.1} parent=5 // pred_fallthru
        _
      %p402 = scmp.lt.s32.totalorder %s23, 4
      // Predicated region
      $region65: #{tpu_custom_call.1} parent=5 // pred_check
        %p403 = pneg %p402
      $region66: #{tpu_custom_call.1} parent=5 // pred_check_branch
        %405 = sbr.rel (%p403) target = $region68
      $region67: #{tpu_custom_call.1} parent=5 // pred_region
        // Predicated region
        $region69: #{tpu_custom_call.1} parent=67 // pred_check
          %p406 = pneg %p43
        $region70: #{tpu_custom_call.1} parent=67 // pred_check_branch
          %408 = sbr.rel (%p406) target = $region72
        $region71: #{tpu_custom_call.1} parent=67 // pred_region
          %s409 = smul.u32 2, %s23
          %p410 = scmp.lt.s32.totalorder %s409, 7
          %s411 = scalar_select %p410, %s409, 7
          %s412 = smul.addr %s411, 8
          %s413 = scalar_lea.vmem %s0, %s412
          %s414 = smul.u32 2, %s23
        $region72: #{tpu_custom_call.1} parent=67 // pred_fallthru
          _
      $region68: #{tpu_custom_call.1} parent=5 // pred_fallthru
        _
      %p415 = scmp.le.s32.totalorder 1, %s23
      %p416 = scmp.lt.s32.totalorder %s23, 5
      %p417 = pnand %p415, %p416
      %p418 = pneg %p417
      // Predicated region
      $region73: #{tpu_custom_call.1} parent=5 // pred_check
        _
      $region74: #{tpu_custom_call.1} parent=5 // pred_check_branch
        %420 = sbr.rel (%p417) target = $region76
      $region75: #{tpu_custom_call.1} parent=5 // pred_region
        %s421 = ssub.s32 %s23, 1
        %s422 = smul.u32 2, %s28
        %p423 = scmp.lt.s32.totalorder %s422, 7
        %s424 = scalar_select %p423, %s422, 7
        %s425 = smul.addr %s424, 8
        %s426 = scalar_lea.vmem %s0, %s425
        %p427 = pneg %p49
        %p428 = pneg %p46
        %p429 = pneg %p70
        %p430 = pneg %p67
        %p431 = pneg %p91
        %p432 = pneg %p88
        %p433 = pneg %p112
        %p434 = pneg %p109
        %p435 = pneg %p133
        %p436 = pneg %p130
        %p437 = pneg %p154
        %p438 = pneg %p151
        %p439 = pneg %p175
        %p440 = pneg %p172
        %p441 = pneg %p196
        %p442 = pneg %p193
        %p443 = pneg %p217
        %p444 = pneg %p214
        %p445 = pneg %p238
        %p446 = pneg %p235
        %p447 = pneg %p259
        %p448 = pneg %p256
        %p449 = pneg %p280
        %p450 = pneg %p277
        %p451 = pneg %p301
        %p452 = pneg %p298
        %p453 = pneg %p322
        %p454 = pneg %p319
        %p455 = pneg %p348
        %p456 = pneg %p345
        %s457 = sand.u32 %s335, 1
        %s458 = scalar_lea.sflag [#allocation3], %s457
        %s459 = sand.u32 %s335, 1
        %s460 = smul.addr %s459, 16
        %s461 = scalar_lea.vmem [#allocation2], %s460
        %s462 = smul.u32 2, %s28
        %p463 = scmp.lt.s32.totalorder %s462, 7
        %s464 = scalar_select %p463, %s462, 7
        %s465 = smul.addr %s464, 8
        %s466 = scalar_lea.vmem %s0, %s465
        %s467 = smul.u32 2, %s28
        %s468 = smul.u32 2, %s28
        %v470 = vld [vmem:[%s466] sm:$0xff]
        %v471 = vld [vmem:[%s466 + $0x8] sm:$0xff]
        %v472 = vld [vmem:[%s1] sm:$0x1]
        %v473 = vld [vmem:[%s2] sm:$0x1]
        %vm474 = vcmask 261120
        %v475 = vsel %vm474, %v470, 0.0
        %476 = vadd.xlane.f32.xlu0 %v475
        %v477 = vpop.xlane.xlu0 %476
        %v478 = vsel %vm474, %v471, 0.0
        %479 = vadd.xlane.f32.xlu0 %v478
        %v480 = vpop.xlane.xlu0 %479
        %v481 = vrcp.pop 32.0
        %v482 = vmul.f32 %v477, %v481
        %v483 = vmul.f32 %v480, %v481
        %v484 = vsub.f32 %v470, %v482
        %v485 = vsub.f32 %v471, %v483
        %v486 = vmul.f32 %v484, %v484
        %v487 = vmul.f32 %v485, %v485
        %v488 = vsel %vm474, %v486, 0.0
        %489 = vadd.xlane.f32.xlu0 %v488
        %v490 = vpop.xlane.xlu0 %489
        %v491 = vsel %vm474, %v487, 0.0
        %492 = vadd.xlane.f32.xlu0 %v491
        %v493 = vpop.xlane.xlu0 %492
        %v494 = vmul.f32 %v490, %v481
        %v495 = vmul.f32 %v493, %v481
        %v496 = vadd.f32 %v494, 1e-05
        %v497 = vadd.f32 %v495, 1e-05
        %v498 = vrsqrt.pop %v496
        %v499 = vrsqrt.pop %v497
        %v500 = vmul.f32 %v484, %v498
        %v501 = vmul.f32 %v485, %v499
        %v503 = vlaneseq
        %v504 = vshrl.u32 %v503, 7
        %v505 = vsub.s32 0, %v504
        %v506 = vrot.slane %v472, %v505
        %v508 = vmul.f32 %v500, %v506
        %v509 = vmul.f32 %v501, %v506
        %v511 = vlaneseq
        %v512 = vshrl.u32 %v511, 7
        %v513 = vsub.s32 0, %v512
        %v514 = vrot.slane %v473, %v513
        %v516 = vadd.f32 %v508, %v514
        %v517 = vadd.f32 %v509, %v514
        %v518 = vpack.c.bf16 %v517, %v516
        %v519 = vld [vmem:[%s3] sm:$0xf]
        %v520 = vld [vmem:[%s3 + $0x4] sm:$0xf]
        %v521 = vld [vmem:[%s3 + $0x8] sm:$0xf]
        %v522 = vld [vmem:[%s3 + $0xc] sm:$0xf]
        %v523 = vld [vmem:[%s3 + $0x10] sm:$0xf]
        %v524 = vld [vmem:[%s3 + $0x14] sm:$0xf]
        %v525 = vld [vmem:[%s3 + $0x18] sm:$0xf]
        %v526 = vld [vmem:[%s3 + $0x1c] sm:$0xf]
        %v527 = vld [vmem:[%s3 + $0x20] sm:$0xf]
        %v528 = vld [vmem:[%s3 + $0x24] sm:$0xf]
        %v529 = vld [vmem:[%s3 + $0x28] sm:$0xf]
        %v530 = vld [vmem:[%s3 + $0x2c] sm:$0xf]
        %v531 = vld [vmem:[%s3 + $0x30] sm:$0xf]
        %v532 = vld [vmem:[%s3 + $0x34] sm:$0xf]
        %v533 = vld [vmem:[%s3 + $0x38] sm:$0xf]
        %v534 = vld [vmem:[%s3 + $0x3c] sm:$0xf]
        %v535 = vld [vmem:[%s3 + $0x40] sm:$0xf]
        %v536 = vld [vmem:[%s3 + $0x44] sm:$0xf]
        %v537 = vld [vmem:[%s3 + $0x48] sm:$0xf]
        %v538 = vld [vmem:[%s3 + $0x4c] sm:$0xf]
        %v539 = vld [vmem:[%s3 + $0x50] sm:$0xf]
        %v540 = vld [vmem:[%s3 + $0x54] sm:$0xf]
        %v541 = vld [vmem:[%s3 + $0x58] sm:$0xf]
        %v542 = vld [vmem:[%s3 + $0x5c] sm:$0xf]
        %v543 = vld [vmem:[%s3 + $0x60] sm:$0xf]
        %v544 = vld [vmem:[%s3 + $0x64] sm:$0xf]
        %v545 = vld [vmem:[%s3 + $0x68] sm:$0xf]
        %v546 = vld [vmem:[%s3 + $0x6c] sm:$0xf]
        %v547 = vld [vmem:[%s3 + $0x70] sm:$0xf]
        %v548 = vld [vmem:[%s3 + $0x74] sm:$0xf]
        %v549 = vld [vmem:[%s3 + $0x78] sm:$0xf]
        %v550 = vld [vmem:[%s3 + $0x7c] sm:$0xf]
        %v555 = vunpack.c.l.b16 %v519
        %v556 = vunpack.c.l.b16 %v520
        %v557 = vunpack.c.l.b16 %v521
        %v558 = vunpack.c.l.b16 %v522
        %v559 = vpack.c.b16 %v556, %v555
        %v560 = vpack.c.b16 %v558, %v557
        %v564 = vsel %vm474, %v518, 0
        %566 = vmatprep.subr.bf16.mxu0 0
        %567 = vmatpush1.bf16.msra.mxu0 %v559
        %568 = vmatprep.subr.bf16.mxu0 0
        %569 = vmatpush1.bf16.msra.mxu0 %v560
        %570 = vmatprep.subr.bf16.mxu0 0
        %571 = vmatpush1.bf16.msra.mxu0 0
        %572 = vmatprep.subr.bf16.mxu0 0
        %573 = vmatpush1.bf16.msra.mxu0 0
        %574 = vmatprep.subr.bf16.mxu0 0
        %575 = vmatpush1.bf16.msra.mxu0 0
        %576 = vmatprep.subr.bf16.mxu0 0
        %577 = vmatpush1.bf16.msra.mxu0 0
        %578 = vmatprep.subr.bf16.mxu0 0
        %579 = vmatpush1.bf16.msra.mxu0 0
        %580 = vmatprep.subr.bf16.mxu0 0
        %581 = vmatpush1.bf16.msra.mxu0 0
        %582 = vmatprep.subr.bf16.mxu0 0
        %583 = vmatpush1.bf16.msra.mxu0 0
        %584 = vmatprep.subr.bf16.mxu0 0
        %585 = vmatpush1.bf16.msra.mxu0 0
        %586 = vmatprep.subr.bf16.mxu0 0
        %587 = vmatpush1.bf16.msra.mxu0 0
        %588 = vmatprep.subr.bf16.mxu0 0
        %589 = vmatpush1.bf16.msra.mxu0 0
        %590 = vmatprep.subr.bf16.mxu0 0
        %591 = vmatpush1.bf16.msra.mxu0 0
        %592 = vmatprep.subr.bf16.mxu0 0
        %593 = vmatpush1.bf16.msra.mxu0 0
        %594 = vmatprep.subr.bf16.mxu0 0
        %595 = vmatpush1.bf16.msra.mxu0 0
        %596 = vmatprep.subr.bf16.mxu0 0
        %597 = vmatpush1.bf16.msra.mxu0 0
        %598 = vmatprep.mubr.bf16.mxu0 0
        %599 = vmatmul.mubr.bf16.gmra.mrb[0].mxu0 %v564
        %v600 = vpop.f32.mrb[0].mxu0
        %v601 = vadd.f32 0.0, %v600
        %v602 = vpop.f32.mrb[0].mxu0
        %v603 = vpop.f32.mrb[0].mxu0
        %v604 = vadd.f32 0.0, %v603
        %v605 = vpop.f32.mrb[0].mxu0
        %606 = vdwg.mxu0
        %v611 = vunpack.c.l.b16 %v523
        %v612 = vunpack.c.l.b16 %v524
        %v613 = vunpack.c.l.b16 %v525
        %v614 = vunpack.c.l.b16 %v526
        %v615 = vpack.c.b16 %v612, %v611
        %v616 = vpack.c.b16 %v614, %v613
        %619 = vmatprep.subr.bf16.mxu0 0
        %620 = vmatpush1.bf16.msra.mxu0 %v615
        %621 = vmatprep.subr.bf16.mxu0 0
        %622 = vmatpush1.bf16.msra.mxu0 %v616
        %623 = vmatprep.subr.bf16.mxu0 0
        %624 = vmatpush1.bf16.msra.mxu0 0
        %625 = vmatprep.subr.bf16.mxu0 0
        %626 = vmatpush1.bf16.msra.mxu0 0
        %627 = vmatprep.subr.bf16.mxu0 0
        %628 = vmatpush1.bf16.msra.mxu0 0
        %629 = vmatprep.subr.bf16.mxu0 0
        %630 = vmatpush1.bf16.msra.mxu0 0
        %631 = vmatprep.subr.bf16.mxu0 0
        %632 = vmatpush1.bf16.msra.mxu0 0
        %633 = vmatprep.subr.bf16.mxu0 0
        %634 = vmatpush1.bf16.msra.mxu0 0
        %635 = vmatprep.subr.bf16.mxu0 0
        %636 = vmatpush1.bf16.msra.mxu0 0
        %637 = vmatprep.subr.bf16.mxu0 0
        %638 = vmatpush1.bf16.msra.mxu0 0
        %639 = vmatprep.subr.bf16.mxu0 0
        %640 = vmatpush1.bf16.msra.mxu0 0
        %641 = vmatprep.subr.bf16.mxu0 0
        %642 = vmatpush1.bf16.msra.mxu0 0
        %643 = vmatprep.subr.bf16.mxu0 0
        %644 = vmatpush1.bf16.msra.mxu0 0
        %645 = vmatprep.subr.bf16.mxu0 0
        %646 = vmatpush1.bf16.msra.mxu0 0
        %647 = vmatprep.subr.bf16.mxu0 0
        %648 = vmatpush1.bf16.msra.mxu0 0
        %649 = vmatprep.subr.bf16.mxu0 0
        %650 = vmatpush1.bf16.msra.mxu0 0
        %651 = vmatprep.mubr.bf16.mxu0 0
        %652 = vmatmul.mubr.bf16.gmra.mrb[0].mxu0 %v564
        %v653 = vpop.f32.mrb[0].mxu0
        %v654 = vadd.f32 0.0, %v653
        %v655 = vpop.f32.mrb[0].mxu0
        %v656 = vpop.f32.mrb[0].mxu0
        %v657 = vadd.f32 0.0, %v656
        %v658 = vpop.f32.mrb[0].mxu0
        %659 = vdwg.mxu0
        %v664 = vunpack.c.l.b16 %v527
        %v665 = vunpack.c.l.b16 %v528
        %v666 = vunpack.c.l.b16 %v529
        %v667 = vunpack.c.l.b16 %v530
        %v668 = vpack.c.b16 %v665, %v664
        %v669 = vpack.c.b16 %v667, %v666
        %672 = vmatprep.subr.bf16.mxu0 0
        %673 = vmatpush1.bf16.msra.mxu0 %v668
        %674 = vmatprep.subr.bf16.mxu0 0
        %675 = vmatpush1.bf16.msra.mxu0 %v669
        %676 = vmatprep.subr.bf16.mxu0 0
        %677 = vmatpush1.bf16.msra.mxu0 0
        %678 = vmatprep.subr.bf16.mxu0 0
        %679 = vmatpush1.bf16.msra.mxu0 0
        %680 = vmatprep.subr.bf16.mxu0 0
        %681 = vmatpush1.bf16.msra.mxu0 0
        %682 = vmatprep.subr.bf16.mxu0 0
        %683 = vmatpush1.bf16.msra.mxu0 0
        %684 = vmatprep.subr.bf16.mxu0 0
        %685 = vmatpush1.bf16.msra.mxu0 0
        %686 = vmatprep.subr.bf16.mxu0 0
        %687 = vmatpush1.bf16.msra.mxu0 0
        %688 = vmatprep.subr.bf16.mxu0 0
        %689 = vmatpush1.bf16.msra.mxu0 0
        %690 = vmatprep.subr.bf16.mxu0 0
        %691 = vmatpush1.bf16.msra.mxu0 0
        %692 = vmatprep.subr.bf16.mxu0 0
        %693 = vmatpush1.bf16.msra.mxu0 0
        %694 = vmatprep.subr.bf16.mxu0 0
        %695 = vmatpush1.bf16.msra.mxu0 0
        %696 = vmatprep.subr.bf16.mxu0 0
        %697 = vmatpush1.bf16.msra.mxu0 0
        %698 = vmatprep.subr.bf16.mxu0 0
        %699 = vmatpush1.bf16.msra.mxu0 0
        %700 = vmatprep.subr.bf16.mxu0 0
        %701 = vmatpush1.bf16.msra.mxu0 0
        %702 = vmatprep.subr.bf16.mxu0 0
        %703 = vmatpush1.bf16.msra.mxu0 0
        %704 = vmatprep.mubr.bf16.mxu0 0
        %705 = vmatmul.mubr.bf16.gmra.mrb[0].mxu0 %v564
        %v706 = vpop.f32.mrb[0].mxu0
        %v707 = vadd.f32 0.0, %v706
        %v708 = vpop.f32.mrb[0].mxu0
        %v709 = vpop.f32.mrb[0].mxu0
        %v710 = vadd.f32 0.0, %v709
        %v711 = vpop.f32.mrb[0].mxu0
        %712 = vdwg.mxu0
        %v717 = vunpack.c.l.b16 %v531
        %v718 = vunpack.c.l.b16 %v532
        %v719 = vunpack.c.l.b16 %v533
        %v720 = vunpack.c.l.b16 %v534
        %v721 = vpack.c.b16 %v718, %v717
        %v722 = vpack.c.b16 %v720, %v719
        %725 = vmatprep.subr.bf16.mxu0 0
        %726 = vmatpush1.bf16.msra.mxu0 %v721
        %727 = vmatprep.subr.bf16.mxu0 0
        %728 = vmatpush1.bf16.msra.mxu0 %v722
        %729 = vmatprep.subr.bf16.mxu0 0
        %730 = vmatpush1.bf16.msra.mxu0 0
        %731 = vmatprep.subr.bf16.mxu0 0
        %732 = vmatpush1.bf16.msra.mxu0 0
        %733 = vmatprep.subr.bf16.mxu0 0
        %734 = vmatpush1.bf16.msra.mxu0 0
        %735 = vmatprep.subr.bf16.mxu0 0
        %736 = vmatpush1.bf16.msra.mxu0 0
        %737 = vmatprep.subr.bf16.mxu0 0
        %738 = vmatpush1.bf16.msra.mxu0 0
        %739 = vmatprep.subr.bf16.mxu0 0
        %740 = vmatpush1.bf16.msra.mxu0 0
        %741 = vmatprep.subr.bf16.mxu0 0
        %742 = vmatpush1.bf16.msra.mxu0 0
        %743 = vmatprep.subr.bf16.mxu0 0
        %744 = vmatpush1.bf16.msra.mxu0 0
        %745 = vmatprep.subr.bf16.mxu0 0
        %746 = vmatpush1.bf16.msra.mxu0 0
        %747 = vmatprep.subr.bf16.mxu0 0
        %748 = vmatpush1.bf16.msra.mxu0 0
        %749 = vmatprep.subr.bf16.mxu0 0
        %750 = vmatpush1.bf16.msra.mxu0 0
        %751 = vmatprep.subr.bf16.mxu0 0
        %752 = vmatpush1.bf16.msra.mxu0 0
        %753 = vmatprep.subr.bf16.mxu0 0
        %754 = vmatpush1.bf16.msra.mxu0 0
        %755 = vmatprep.subr.bf16.mxu0 0
        %756 = vmatpush1.bf16.msra.mxu0 0
        %757 = vmatprep.mubr.bf16.mxu0 0
        %758 = vmatmul.mubr.bf16.gmra.mrb[0].mxu0 %v564
        %v759 = vpop.f32.mrb[0].mxu0
        %v760 = vadd.f32 0.0, %v759
        %v761 = vpop.f32.mrb[0].mxu0
        %v762 = vpop.f32.mrb[0].mxu0
        %v763 = vadd.f32 0.0, %v762
        %v764 = vpop.f32.mrb[0].mxu0
        %765 = vdwg.mxu0
        %v770 = vunpack.c.l.b16 %v535
        %v771 = vunpack.c.l.b16 %v536
        %v772 = vunpack.c.l.b16 %v537
        %v773 = vunpack.c.l.b16 %v538
        %v774 = vpack.c.b16 %v771, %v770
        %v775 = vpack.c.b16 %v773, %v772
        %778 = vmatprep.subr.bf16.mxu0 0
        %779 = vmatpush1.bf16.msra.mxu0 %v774
        %780 = vmatprep.subr.bf16.mxu0 0
        %781 = vmatpush1.bf16.msra.mxu0 %v775
        %782 = vmatprep.subr.bf16.mxu0 0
        %783 = vmatpush1.bf16.msra.mxu0 0
        %784 = vmatprep.subr.bf16.mxu0 0
        %785 = vmatpush1.bf16.msra.mxu0 0
        %786 = vmatprep.subr.bf16.mxu0 0
        %787 = vmatpush1.bf16.msra.mxu0 0
        %788 = vmatprep.subr.bf16.mxu0 0
        %789 = vmatpush1.bf16.msra.mxu0 0
        %790 = vmatprep.subr.bf16.mxu0 0
        %791 = vmatpush1.bf16.msra.mxu0 0
        %792 = vmatprep.subr.bf16.mxu0 0
        %793 = vmatpush1.bf16.msra.mxu0 0
        %794 = vmatprep.subr.bf16.mxu0 0
        %795 = vmatpush1.bf16.msra.mxu0 0
        %796 = vmatprep.subr.bf16.mxu0 0
        %797 = vmatpush1.bf16.msra.mxu0 0
        %798 = vmatprep.subr.bf16.mxu0 0
        %799 = vmatpush1.bf16.msra.mxu0 0
        %800 = vmatprep.subr.bf16.mxu0 0
        %801 = vmatpush1.bf16.msra.mxu0 0
        %802 = vmatprep.subr.bf16.mxu0 0
        %803 = vmatpush1.bf16.msra.mxu0 0
        %804 = vmatprep.subr.bf16.mxu0 0
        %805 = vmatpush1.bf16.msra.mxu0 0
        %806 = vmatprep.subr.bf16.mxu0 0
        %807 = vmatpush1.bf16.msra.mxu0 0
        %808 = vmatprep.subr.bf16.mxu0 0
        %809 = vmatpush1.bf16.msra.mxu0 0
        %810 = vmatprep.mubr.bf16.mxu0 0
        %811 = vmatmul.mubr.bf16.gmra.mrb[0].mxu0 %v564
        %v812 = vpop.f32.mrb[0].mxu0
        %v813 = vadd.f32 0.0, %v812
        %v814 = vpop.f32.mrb[0].mxu0
        %v815 = vpop.f32.mrb[0].mxu0
        %v816 = vadd.f32 0.0, %v815
        %v817 = vpop.f32.mrb[0].mxu0
        %818 = vdwg.mxu0
        %v823 = vunpack.c.l.b16 %v539
        %v824 = vunpack.c.l.b16 %v540
        %v825 = vunpack.c.l.b16 %v541
        %v826 = vunpack.c.l.b16 %v542
        %v827 = vpack.c.b16 %v824, %v823
        %v828 = vpack.c.b16 %v826, %v825
        %831 = vmatprep.subr.bf16.mxu0 0
        %832 = vmatpush1.bf16.msra.mxu0 %v827
        %833 = vmatprep.subr.bf16.mxu0 0
        %834 = vmatpush1.bf16.msra.mxu0 %v828
        %835 = vmatprep.subr.bf16.mxu0 0
        %836 = vmatpush1.bf16.msra.mxu0 0
        %837 = vmatprep.subr.bf16.mxu0 0
        %838 = vmatpush1.bf16.msra.mxu0 0
        %839 = vmatprep.subr.bf16.mxu0 0
        %840 = vmatpush1.bf16.msra.mxu0 0
        %841 = vmatprep.subr.bf16.mxu0 0
        %842 = vmatpush1.bf16.msra.mxu0 0
        %843 = vmatprep.subr.bf16.mxu0 0
        %844 = vmatpush1.bf16.msra.mxu0 0
        %845 = vmatprep.subr.bf16.mxu0 0
        %846 = vmatpush1.bf16.msra.mxu0 0
        %847 = vmatprep.subr.bf16.mxu0 0
        %848 = vmatpush1.bf16.msra.mxu0 0
        %849 = vmatprep.subr.bf16.mxu0 0
        %850 = vmatpush1.bf16.msra.mxu0 0
        %851 = vmatprep.subr.bf16.mxu0 0
        %852 = vmatpush1.bf16.msra.mxu0 0
        %853 = vmatprep.subr.bf16.mxu0 0
        %854 = vmatpush1.bf16.msra.mxu0 0
        %855 = vmatprep.subr.bf16.mxu0 0
        %856 = vmatpush1.bf16.msra.mxu0 0
        %857 = vmatprep.subr.bf16.mxu0 0
        %858 = vmatpush1.bf16.msra.mxu0 0
        %859 = vmatprep.subr.bf16.mxu0 0
        %860 = vmatpush1.bf16.msra.mxu0 0
        %861 = vmatprep.subr.bf16.mxu0 0
        %862 = vmatpush1.bf16.msra.mxu0 0
        %863 = vmatprep.mubr.bf16.mxu0 0
        %864 = vmatmul.mubr.bf16.gmra.mrb[0].mxu0 %v564
        %v865 = vpop.f32.mrb[0].mxu0
        %v866 = vadd.f32 0.0, %v865
        %v867 = vpop.f32.mrb[0].mxu0
        %v868 = vpop.f32.mrb[0].mxu0
        %v869 = vadd.f32 0.0, %v868
        %v870 = vpop.f32.mrb[0].mxu0
        %871 = vdwg.mxu0
        %v876 = vunpack.c.l.b16 %v543
        %v877 = vunpack.c.l.b16 %v544
        %v878 = vunpack.c.l.b16 %v545
        %v879 = vunpack.c.l.b16 %v546
        %v880 = vpack.c.b16 %v877, %v876
        %v881 = vpack.c.b16 %v879, %v878
        %884 = vmatprep.subr.bf16.mxu0 0
        %885 = vmatpush1.bf16.msra.mxu0 %v880
        %886 = vmatprep.subr.bf16.mxu0 0
        %887 = vmatpush1.bf16.msra.mxu0 %v881
        %888 = vmatprep.subr.bf16.mxu0 0
        %889 = vmatpush1.bf16.msra.mxu0 0
        %890 = vmatprep.subr.bf16.mxu0 0
        %891 = vmatpush1.bf16.msra.mxu0 0
        %892 = vmatprep.subr.bf16.mxu0 0
        %893 = vmatpush1.bf16.msra.mxu0 0
        %894 = vmatprep.subr.bf16.mxu0 0
        %895 = vmatpush1.bf16.msra.mxu0 0
        %896 = vmatprep.subr.bf16.mxu0 0
        %897 = vmatpush1.bf16.msra.mxu0 0
        %898 = vmatprep.subr.bf16.mxu0 0
        %899 = vmatpush1.bf16.msra.mxu0 0
        %900 = vmatprep.subr.bf16.mxu0 0
        %901 = vmatpush1.bf16.msra.mxu0 0
        %902 = vmatprep.subr.bf16.mxu0 0
        %903 = vmatpush1.bf16.msra.mxu0 0
        %904 = vmatprep.subr.bf16.mxu0 0
        %905 = vmatpush1.bf16.msra.mxu0 0
        %906 = vmatprep.subr.bf16.mxu0 0
        %907 = vmatpush1.bf16.msra.mxu0 0
        %908 = vmatprep.subr.bf16.mxu0 0
        %909 = vmatpush1.bf16.msra.mxu0 0
        %910 = vmatprep.subr.bf16.mxu0 0
        %911 = vmatpush1.bf16.msra.mxu0 0
        %912 = vmatprep.subr.bf16.mxu0 0
        %913 = vmatpush1.bf16.msra.mxu0 0
        %914 = vmatprep.subr.bf16.mxu0 0
        %915 = vmatpush1.bf16.msra.mxu0 0
        %916 = vmatprep.mubr.bf16.mxu0 0
        %917 = vmatmul.mubr.bf16.gmra.mrb[0].mxu0 %v564
        %v918 = vpop.f32.mrb[0].mxu0
        %v919 = vadd.f32 0.0, %v918
        %v920 = vpop.f32.mrb[0].mxu0
        %v921 = vpop.f32.mrb[0].mxu0
        %v922 = vadd.f32 0.0, %v921
        %v923 = vpop.f32.mrb[0].mxu0
        %924 = vdwg.mxu0
        %v929 = vunpack.c.l.b16 %v547
        %v930 = vunpack.c.l.b16 %v548
        %v931 = vunpack.c.l.b16 %v549
        %v932 = vunpack.c.l.b16 %v550
        %v933 = vpack.c.b16 %v930, %v929
        %v934 = vpack.c.b16 %v932, %v931
        %937 = vmatprep.subr.bf16.mxu0 0
        %938 = vmatpush1.bf16.msra.mxu0 %v933
        %939 = vmatprep.subr.bf16.mxu0 0
        %940 = vmatpush1.bf16.msra.mxu0 %v934
        %941 = vmatprep.subr.bf16.mxu0 0
        %942 = vmatpush1.bf16.msra.mxu0 0
        %943 = vmatprep.subr.bf16.mxu0 0
        %944 = vmatpush1.bf16.msra.mxu0 0
        %945 = vmatprep.subr.bf16.mxu0 0
        %946 = vmatpush1.bf16.msra.mxu0 0
        %947 = vmatprep.subr.bf16.mxu0 0
        %948 = vmatpush1.bf16.msra.mxu0 0
        %949 = vmatprep.subr.bf16.mxu0 0
        %950 = vmatpush1.bf16.msra.mxu0 0
        %951 = vmatprep.subr.bf16.mxu0 0
        %952 = vmatpush1.bf16.msra.mxu0 0
        %953 = vmatprep.subr.bf16.mxu0 0
        %954 = vmatpush1.bf16.msra.mxu0 0
        %955 = vmatprep.subr.bf16.mxu0 0
        %956 = vmatpush1.bf16.msra.mxu0 0
        %957 = vmatprep.subr.bf16.mxu0 0
        %958 = vmatpush1.bf16.msra.mxu0 0
        %959 = vmatprep.subr.bf16.mxu0 0
        %960 = vmatpush1.bf16.msra.mxu0 0
        %961 = vmatprep.subr.bf16.mxu0 0
        %962 = vmatpush1.bf16.msra.mxu0 0
        %963 = vmatprep.subr.bf16.mxu0 0
        %964 = vmatpush1.bf16.msra.mxu0 0
        %965 = vmatprep.subr.bf16.mxu0 0
        %966 = vmatpush1.bf16.msra.mxu0 0
        %967 = vmatprep.subr.bf16.mxu0 0
        %968 = vmatpush1.bf16.msra.mxu0 0
        %969 = vmatprep.mubr.bf16.mxu0 0
        %970 = vmatmul.mubr.bf16.gmra.mrb[0].mxu0 %v564
        %v971 = vpop.f32.mrb[0].mxu0
        %v972 = vadd.f32 0.0, %v971
        %v973 = vpop.f32.mrb[0].mxu0
        %v974 = vpop.f32.mrb[0].mxu0
        %v975 = vadd.f32 0.0, %v974
        %v976 = vpop.f32.mrb[0].mxu0
        %977 = vdwg.mxu0
        %v978 = vld [vmem:[%s4] sm:$0xf]
        %v979 = vld [vmem:[%s4 + $0x4] sm:$0xf]
        %v980 = vld [vmem:[%s4 + $0x8] sm:$0xf]
        %v981 = vld [vmem:[%s4 + $0xc] sm:$0xf]
        %v982 = vld [vmem:[%s4 + $0x10] sm:$0xf]
        %v983 = vld [vmem:[%s4 + $0x14] sm:$0xf]
        %v984 = vld [vmem:[%s4 + $0x18] sm:$0xf]
        %v985 = vld [vmem:[%s4 + $0x1c] sm:$0xf]
        %v986 = vld [vmem:[%s4 + $0x20] sm:$0xf]
        %v987 = vld [vmem:[%s4 + $0x24] sm:$0xf]
        %v988 = vld [vmem:[%s4 + $0x28] sm:$0xf]
        %v989 = vld [vmem:[%s4 + $0x2c] sm:$0xf]
        %v990 = vld [vmem:[%s4 + $0x30] sm:$0xf]
        %v991 = vld [vmem:[%s4 + $0x34] sm:$0xf]
        %v992 = vld [vmem:[%s4 + $0x38] sm:$0xf]
        %v993 = vld [vmem:[%s4 + $0x3c] sm:$0xf]
        %v994 = vld [vmem:[%s4 + $0x40] sm:$0xf]
        %v995 = vld [vmem:[%s4 + $0x44] sm:$0xf]
        %v996 = vld [vmem:[%s4 + $0x48] sm:$0xf]
        %v997 = vld [vmem:[%s4 + $0x4c] sm:$0xf]
        %v998 = vld [vmem:[%s4 + $0x50] sm:$0xf]
        %v999 = vld [vmem:[%s4 + $0x54] sm:$0xf]
        %v1000 = vld [vmem:[%s4 + $0x58] sm:$0xf]
        %v1001 = vld [vmem:[%s4 + $0x5c] sm:$0xf]
        %v1002 = vld [vmem:[%s4 + $0x60] sm:$0xf]
        %v1003 = vld [vmem:[%s4 + $0x64] sm:$0xf]
        %v1004 = vld [vmem:[%s4 + $0x68] sm:$0xf]
        %v1005 = vld [vmem:[%s4 + $0x6c] sm:$0xf]
        %v1006 = vld [vmem:[%s4 + $0x70] sm:$0xf]
        %v1007 = vld [vmem:[%s4 + $0x74] sm:$0xf]
        %v1008 = vld [vmem:[%s4 + $0x78] sm:$0xf]
        %v1009 = vld [vmem:[%s4 + $0x7c] sm:$0xf]
        %v1014 = vunpack.c.l.b16 %v978
        %v1015 = vunpack.c.l.b16 %v979
        %v1016 = vunpack.c.l.b16 %v980
        %v1017 = vunpack.c.l.b16 %v981
        %v1018 = vpack.c.b16 %v1015, %v1014
        %v1019 = vpack.c.b16 %v1017, %v1016
        %1022 = vmatprep.subr.bf16.mxu0 0
        %1023 = vmatpush1.bf16.msra.mxu0 %v1018
        %1024 = vmatprep.subr.bf16.mxu0 0
        %1025 = vmatpush1.bf16.msra.mxu0 %v1019
        %1026 = vmatprep.subr.bf16.mxu0 0
        %1027 = vmatpush1.bf16.msra.mxu0 0
        %1028 = vmatprep.subr.bf16.mxu0 0
        %1029 = vmatpush1.bf16.msra.mxu0 0
        %1030 = vmatprep.subr.bf16.mxu0 0
        %1031 = vmatpush1.bf16.msra.mxu0 0
        %1032 = vmatprep.subr.bf16.mxu0 0
        %1033 = vmatpush1.bf16.msra.mxu0 0
        %1034 = vmatprep.subr.bf16.mxu0 0
        %1035 = vmatpush1.bf16.msra.mxu0 0
        %1036 = vmatprep.subr.bf16.mxu0 0
        %1037 = vmatpush1.bf16.msra.mxu0 0
        %1038 = vmatprep.subr.bf16.mxu0 0
        %1039 = vmatpush1.bf16.msra.mxu0 0
        %1040 = vmatprep.subr.bf16.mxu0 0
        %1041 = vmatpush1.bf16.msra.mxu0 0
        %1042 = vmatprep.subr.bf16.mxu0 0
        %1043 = vmatpush1.bf16.msra.mxu0 0
        %1044 = vmatprep.subr.bf16.mxu0 0
        %1045 = vmatpush1.bf16.msra.mxu0 0
        %1046 = vmatprep.subr.bf16.mxu0 0
        %1047 = vmatpush1.bf16.msra.mxu0 0
        %1048 = vmatprep.subr.bf16.mxu0 0
        %1049 = vmatpush1.bf16.msra.mxu0 0
        %1050 = vmatprep.subr.bf16.mxu0 0
        %1051 = vmatpush1.bf16.msra.mxu0 0
        %1052 = vmatprep.subr.bf16.mxu0 0
        %1053 = vmatpush1.bf16.msra.mxu0 0
        %1054 = vmatprep.mubr.bf16.mxu0 0
        %1055 = vmatmul.mubr.bf16.gmra.mrb[0].mxu0 %v564
        %v1056 = vpop.f32.mrb[0].mxu0
        %v1057 = vadd.f32 0.0, %v1056
        %v1058 = vpop.f32.mrb[0].mxu0
        %v1059 = vpop.f32.mrb[0].mxu0
        %v1060 = vadd.f32 0.0, %v1059
        %v1061 = vpop.f32.mrb[0].mxu0
        %1062 = vdwg.mxu0
        %v1067 = vunpack.c.l.b16 %v982
        %v1068 = vunpack.c.l.b16 %v983
        %v1069 = vunpack.c.l.b16 %v984
        %v1070 = vunpack.c.l.b16 %v985
        %v1071 = vpack.c.b16 %v1068, %v1067
        %v1072 = vpack.c.b16 %v1070, %v1069
        %1075 = vmatprep.subr.bf16.mxu0 0
        %1076 = vmatpush1.bf16.msra.mxu0 %v1071
        %1077 = vmatprep.subr.bf16.mxu0 0
        %1078 = vmatpush1.bf16.msra.mxu0 %v1072
        %1079 = vmatprep.subr.bf16.mxu0 0
        %1080 = vmatpush1.bf16.msra.mxu0 0
        %1081 = vmatprep.subr.bf16.mxu0 0
        %1082 = vmatpush1.bf16.msra.mxu0 0
        %1083 = vmatprep.subr.bf16.mxu0 0
        %1084 = vmatpush1.bf16.msra.mxu0 0
        %1085 = vmatprep.subr.bf16.mxu0 0
        %1086 = vmatpush1.bf16.msra.mxu0 0
        %1087 = vmatprep.subr.bf16.mxu0 0
        %1088 = vmatpush1.bf16.msra.mxu0 0
        %1089 = vmatprep.subr.bf16.mxu0 0
        %1090 = vmatpush1.bf16.msra.mxu0 0
        %1091 = vmatprep.subr.bf16.mxu0 0
        %1092 = vmatpush1.bf16.msra.mxu0 0
        %1093 = vmatprep.subr.bf16.mxu0 0
        %1094 = vmatpush1.bf16.msra.mxu0 0
        %1095 = vmatprep.subr.bf16.mxu0 0
        %1096 = vmatpush1.bf16.msra.mxu0 0
        %1097 = vmatprep.subr.bf16.mxu0 0
        %1098 = vmatpush1.bf16.msra.mxu0 0
        %1099 = vmatprep.subr.bf16.mxu0 0
        %1100 = vmatpush1.bf16.msra.mxu0 0
        %1101 = vmatprep.subr.bf16.mxu0 0
        %1102 = vmatpush1.bf16.msra.mxu0 0
        %1103 = vmatprep.subr.bf16.mxu0 0
        %1104 = vmatpush1.bf16.msra.mxu0 0
        %1105 = vmatprep.subr.bf16.mxu0 0
        %1106 = vmatpush1.bf16.msra.mxu0 0
        %1107 = vmatprep.mubr.bf16.mxu0 0
        %1108 = vmatmul.mubr.bf16.gmra.mrb[0].mxu0 %v564
        %v1109 = vpop.f32.mrb[0].mxu0
        %v1110 = vadd.f32 0.0, %v1109
        %v1111 = vpop.f32.mrb[0].mxu0
        %v1112 = vpop.f32.mrb[0].mxu0
        %v1113 = vadd.f32 0.0, %v1112
        %v1114 = vpop.f32.mrb[0].mxu0
        %1115 = vdwg.mxu0
        %v1120 = vunpack.c.l.b16 %v986
        %v1121 = vunpack.c.l.b16 %v987
        %v1122 = vunpack.c.l.b16 %v988
        %v1123 = vunpack.c.l.b16 %v989
        %v1124 = vpack.c.b16 %v1121, %v1120
        %v1125 = vpack.c.b16 %v1123, %v1122
        %1128 = vmatprep.subr.bf16.mxu0 0
        %1129 = vmatpush1.bf16.msra.mxu0 %v1124
        %1130 = vmatprep.subr.bf16.mxu0 0
        %1131 = vmatpush1.bf16.msra.mxu0 %v1125
        %1132 = vmatprep.subr.bf16.mxu0 0
        %1133 = vmatpush1.bf16.msra.mxu0 0
        %1134 = vmatprep.subr.bf16.mxu0 0
        %1135 = vmatpush1.bf16.msra.mxu0 0
        %1136 = vmatprep.subr.bf16.mxu0 0
        %1137 = vmatpush1.bf16.msra.mxu0 0
        %1138 = vmatprep.subr.bf16.mxu0 0
        %1139 = vmatpush1.bf16.msra.mxu0 0
        %1140 = vmatprep.subr.bf16.mxu0 0
        %1141 = vmatpush1.bf16.msra.mxu0 0
        %1142 = vmatprep.subr.bf16.mxu0 0
        %1143 = vmatpush1.bf16.msra.mxu0 0
        %1144 = vmatprep.subr.bf16.mxu0 0
        %1145 = vmatpush1.bf16.msra.mxu0 0
        %1146 = vmatprep.subr.bf16.mxu0 0
        %1147 = vmatpush1.bf16.msra.mxu0 0
        %1148 = vmatprep.subr.bf16.mxu0 0
        %1149 = vmatpush1.bf16.msra.mxu0 0
        %1150 = vmatprep.subr.bf16.mxu0 0
        %1151 = vmatpush1.bf16.msra.mxu0 0
        %1152 = vmatprep.subr.bf16.mxu0 0
        %1153 = vmatpush1.bf16.msra.mxu0 0
        %1154 = vmatprep.subr.bf16.mxu0 0
        %1155 = vmatpush1.bf16.msra.mxu0 0
        %1156 = vmatprep.subr.bf16.mxu0 0
        %1157 = vmatpush1.bf16.msra.mxu0 0
        %1158 = vmatprep.subr.bf16.mxu0 0
        %1159 = vmatpush1.bf16.msra.mxu0 0
        %1160 = vmatprep.mubr.bf16.mxu0 0
        %1161 = vmatmul.mubr.bf16.gmra.mrb[0].mxu0 %v564
        %v1162 = vpop.f32.mrb[0].mxu0
        %v1163 = vadd.f32 0.0, %v1162
        %v1164 = vpop.f32.mrb[0].mxu0
        %v1165 = vpop.f32.mrb[0].mxu0
        %v1166 = vadd.f32 0.0, %v1165
        %v1167 = vpop.f32.mrb[0].mxu0
        %1168 = vdwg.mxu0
        %v1173 = vunpack.c.l.b16 %v990
        %v1174 = vunpack.c.l.b16 %v991
        %v1175 = vunpack.c.l.b16 %v992
        %v1176 = vunpack.c.l.b16 %v993
        %v1177 = vpack.c.b16 %v1174, %v1173
        %v1178 = vpack.c.b16 %v1176, %v1175
        %1181 = vmatprep.subr.bf16.mxu0 0
        %1182 = vmatpush1.bf16.msra.mxu0 %v1177
        %1183 = vmatprep.subr.bf16.mxu0 0
        %1184 = vmatpush1.bf16.msra.mxu0 %v1178
        %1185 = vmatprep.subr.bf16.mxu0 0
        %1186 = vmatpush1.bf16.msra.mxu0 0
        %1187 = vmatprep.subr.bf16.mxu0 0
        %1188 = vmatpush1.bf16.msra.mxu0 0
        %1189 = vmatprep.subr.bf16.mxu0 0
        %1190 = vmatpush1.bf16.msra.mxu0 0
        %1191 = vmatprep.subr.bf16.mxu0 0
        %1192 = vmatpush1.bf16.msra.mxu0 0
        %1193 = vmatprep.subr.bf16.mxu0 0
        %1194 = vmatpush1.bf16.msra.mxu0 0
        %1195 = vmatprep.subr.bf16.mxu0 0
        %1196 = vmatpush1.bf16.msra.mxu0 0
        %1197 = vmatprep.subr.bf16.mxu0 0
        %1198 = vmatpush1.bf16.msra.mxu0 0
        %1199 = vmatprep.subr.bf16.mxu0 0
        %1200 = vmatpush1.bf16.msra.mxu0 0
        %1201 = vmatprep.subr.bf16.mxu0 0
        %1202 = vmatpush1.bf16.msra.mxu0 0
        %1203 = vmatprep.subr.bf16.mxu0 0
        %1204 = vmatpush1.bf16.msra.mxu0 0
        %1205 = vmatprep.subr.bf16.mxu0 0
        %1206 = vmatpush1.bf16.msra.mxu0 0
        %1207 = vmatprep.subr.bf16.mxu0 0
        %1208 = vmatpush1.bf16.msra.mxu0 0
        %1209 = vmatprep.subr.bf16.mxu0 0
        %1210 = vmatpush1.bf16.msra.mxu0 0
        %1211 = vmatprep.subr.bf16.mxu0 0
        %1212 = vmatpush1.bf16.msra.mxu0 0
        %1213 = vmatprep.mubr.bf16.mxu0 0
        %1214 = vmatmul.mubr.bf16.gmra.mrb[0].mxu0 %v564
        %v1215 = vpop.f32.mrb[0].mxu0
        %v1216 = vadd.f32 0.0, %v1215
        %v1217 = vpop.f32.mrb[0].mxu0
        %v1218 = vpop.f32.mrb[0].mxu0
        %v1219 = vadd.f32 0.0, %v1218
        %v1220 = vpop.f32.mrb[0].mxu0
        %1221 = vdwg.mxu0
        %v1226 = vunpack.c.l.b16 %v994
        %v1227 = vunpack.c.l.b16 %v995
        %v1228 = vunpack.c.l.b16 %v996
        %v1229 = vunpack.c.l.b16 %v997
        %v1230 = vpack.c.b16 %v1227, %v1226
        %v1231 = vpack.c.b16 %v1229, %v1228
        %1234 = vmatprep.subr.bf16.mxu0 0
        %1235 = vmatpush1.bf16.msra.mxu0 %v1230
        %1236 = vmatprep.subr.bf16.mxu0 0
        %1237 = vmatpush1.bf16.msra.mxu0 %v1231
        %1238 = vmatprep.subr.bf16.mxu0 0
        %1239 = vmatpush1.bf16.msra.mxu0 0
        %1240 = vmatprep.subr.bf16.mxu0 0
        %1241 = vmatpush1.bf16.msra.mxu0 0
        %1242 = vmatprep.subr.bf16.mxu0 0
        %1243 = vmatpush1.bf16.msra.mxu0 0
        %1244 = vmatprep.subr.bf16.mxu0 0
        %1245 = vmatpush1.bf16.msra.mxu0 0
        %1246 = vmatprep.subr.bf16.mxu0 0
        %1247 = vmatpush1.bf16.msra.mxu0 0
        %1248 = vmatprep.subr.bf16.mxu0 0
        %1249 = vmatpush1.bf16.msra.mxu0 0
        %1250 = vmatprep.subr.bf16.mxu0 0
        %1251 = vmatpush1.bf16.msra.mxu0 0
        %1252 = vmatprep.subr.bf16.mxu0 0
        %1253 = vmatpush1.bf16.msra.mxu0 0
        %1254 = vmatprep.subr.bf16.mxu0 0
        %1255 = vmatpush1.bf16.msra.mxu0 0
        %1256 = vmatprep.subr.bf16.mxu0 0
        %1257 = vmatpush1.bf16.msra.mxu0 0
        %1258 = vmatprep.subr.bf16.mxu0 0
        %1259 = vmatpush1.bf16.msra.mxu0 0
        %1260 = vmatprep.subr.bf16.mxu0 0
        %1261 = vmatpush1.bf16.msra.mxu0 0
        %1262 = vmatprep.subr.bf16.mxu0 0
        %1263 = vmatpush1.bf16.msra.mxu0 0
        %1264 = vmatprep.subr.bf16.mxu0 0
        %1265 = vmatpush1.bf16.msra.mxu0 0
        %1266 = vmatprep.mubr.bf16.mxu0 0
        %1267 = vmatmul.mubr.bf16.gmra.mrb[0].mxu0 %v564
        %v1268 = vpop.f32.mrb[0].mxu0
        %v1269 = vadd.f32 0.0, %v1268
        %v1270 = vpop.f32.mrb[0].mxu0
        %v1271 = vpop.f32.mrb[0].mxu0
        %v1272 = vadd.f32 0.0, %v1271
        %v1273 = vpop.f32.mrb[0].mxu0
        %1274 = vdwg.mxu0
        %v1279 = vunpack.c.l.b16 %v998
        %v1280 = vunpack.c.l.b16 %v999
        %v1281 = vunpack.c.l.b16 %v1000
        %v1282 = vunpack.c.l.b16 %v1001
        %v1283 = vpack.c.b16 %v1280, %v1279
        %v1284 = vpack.c.b16 %v1282, %v1281
        %1287 = vmatprep.subr.bf16.mxu0 0
        %1288 = vmatpush1.bf16.msra.mxu0 %v1283
        %1289 = vmatprep.subr.bf16.mxu0 0
        %1290 = vmatpush1.bf16.msra.mxu0 %v1284
        %1291 = vmatprep.subr.bf16.mxu0 0
        %1292 = vmatpush1.bf16.msra.mxu0 0
        %1293 = vmatprep.subr.bf16.mxu0 0
        %1294 = vmatpush1.bf16.msra.mxu0 0
        %1295 = vmatprep.subr.bf16.mxu0 0
        %1296 = vmatpush1.bf16.msra.mxu0 0
        %1297 = vmatprep.subr.bf16.mxu0 0
        %1298 = vmatpush1.bf16.msra.mxu0 0
        %1299 = vmatprep.subr.bf16.mxu0 0
        %1300 = vmatpush1.bf16.msra.mxu0 0
        %1301 = vmatprep.subr.bf16.mxu0 0
        %1302 = vmatpush1.bf16.msra.mxu0 0
        %1303 = vmatprep.subr.bf16.mxu0 0
        %1304 = vmatpush1.bf16.msra.mxu0 0
        %1305 = vmatprep.subr.bf16.mxu0 0
        %1306 = vmatpush1.bf16.msra.mxu0 0
        %1307 = vmatprep.subr.bf16.mxu0 0
        %1308 = vmatpush1.bf16.msra.mxu0 0
        %1309 = vmatprep.subr.bf16.mxu0 0
        %1310 = vmatpush1.bf16.msra.mxu0 0
        %1311 = vmatprep.subr.bf16.mxu0 0
        %1312 = vmatpush1.bf16.msra.mxu0 0
        %1313 = vmatprep.subr.bf16.mxu0 0
        %1314 = vmatpush1.bf16.msra.mxu0 0
        %1315 = vmatprep.subr.bf16.mxu0 0
        %1316 = vmatpush1.bf16.msra.mxu0 0
        %1317 = vmatprep.subr.bf16.mxu0 0
        %1318 = vmatpush1.bf16.msra.mxu0 0
        %1319 = vmatprep.mubr.bf16.mxu0 0
        %1320 = vmatmul.mubr.bf16.gmra.mrb[0].mxu0 %v564
        %v1321 = vpop.f32.mrb[0].mxu0
        %v1322 = vadd.f32 0.0, %v1321
        %v1323 = vpop.f32.mrb[0].mxu0
        %v1324 = vpop.f32.mrb[0].mxu0
        %v1325 = vadd.f32 0.0, %v1324
        %v1326 = vpop.f32.mrb[0].mxu0
        %1327 = vdwg.mxu0
        %v1332 = vunpack.c.l.b16 %v1002
        %v1333 = vunpack.c.l.b16 %v1003
        %v1334 = vunpack.c.l.b16 %v1004
        %v1335 = vunpack.c.l.b16 %v1005
        %v1336 = vpack.c.b16 %v1333, %v1332
        %v1337 = vpack.c.b16 %v1335, %v1334
        %1340 = vmatprep.subr.bf16.mxu0 0
        %1341 = vmatpush1.bf16.msra.mxu0 %v1336
        %1342 = vmatprep.subr.bf16.mxu0 0
        %1343 = vmatpush1.bf16.msra.mxu0 %v1337
        %1344 = vmatprep.subr.bf16.mxu0 0
        %1345 = vmatpush1.bf16.msra.mxu0 0
        %1346 = vmatprep.subr.bf16.mxu0 0
        %1347 = vmatpush1.bf16.msra.mxu0 0
        %1348 = vmatprep.subr.bf16.mxu0 0
        %1349 = vmatpush1.bf16.msra.mxu0 0
        %1350 = vmatprep.subr.bf16.mxu0 0
        %1351 = vmatpush1.bf16.msra.mxu0 0
        %1352 = vmatprep.subr.bf16.mxu0 0
        %1353 = vmatpush1.bf16.msra.mxu0 0
        %1354 = vmatprep.subr.bf16.mxu0 0
        %1355 = vmatpush1.bf16.msra.mxu0 0
        %1356 = vmatprep.subr.bf16.mxu0 0
        %1357 = vmatpush1.bf16.msra.mxu0 0
        %1358 = vmatprep.subr.bf16.mxu0 0
        %1359 = vmatpush1.bf16.msra.mxu0 0
        %1360 = vmatprep.subr.bf16.mxu0 0
        %1361 = vmatpush1.bf16.msra.mxu0 0
        %1362 = vmatprep.subr.bf16.mxu0 0
        %1363 = vmatpush1.bf16.msra.mxu0 0
        %1364 = vmatprep.subr.bf16.mxu0 0
        %1365 = vmatpush1.bf16.msra.mxu0 0
        %1366 = vmatprep.subr.bf16.mxu0 0
        %1367 = vmatpush1.bf16.msra.mxu0 0
        %1368 = vmatprep.subr.bf16.mxu0 0
        %1369 = vmatpush1.bf16.msra.mxu0 0
        %1370 = vmatprep.subr.bf16.mxu0 0
        %1371 = vmatpush1.bf16.msra.mxu0 0
        %1372 = vmatprep.mubr.bf16.mxu0 0
        %1373 = vmatmul.mubr.bf16.gmra.mrb[0].mxu0 %v564
        %v1374 = vpop.f32.mrb[0].mxu0
        %v1375 = vadd.f32 0.0, %v1374
        %v1376 = vpop.f32.mrb[0].mxu0
        %v1377 = vpop.f32.mrb[0].mxu0
        %v1378 = vadd.f32 0.0, %v1377
        %v1379 = vpop.f32.mrb[0].mxu0
        %1380 = vdwg.mxu0
        %v1385 = vunpack.c.l.b16 %v1006
        %v1386 = vunpack.c.l.b16 %v1007
        %v1387 = vunpack.c.l.b16 %v1008
        %v1388 = vunpack.c.l.b16 %v1009
        %v1389 = vpack.c.b16 %v1386, %v1385
        %v1390 = vpack.c.b16 %v1388, %v1387
        %1393 = vmatprep.subr.bf16.mxu0 0
        %1394 = vmatpush1.bf16.msra.mxu0 %v1389
        %1395 = vmatprep.subr.bf16.mxu0 0
        %1396 = vmatpush1.bf16.msra.mxu0 %v1390
        %1397 = vmatprep.subr.bf16.mxu0 0
        %1398 = vmatpush1.bf16.msra.mxu0 0
        %1399 = vmatprep.subr.bf16.mxu0 0
        %1400 = vmatpush1.bf16.msra.mxu0 0
        %1401 = vmatprep.subr.bf16.mxu0 0
        %1402 = vmatpush1.bf16.msra.mxu0 0
        %1403 = vmatprep.subr.bf16.mxu0 0
        %1404 = vmatpush1.bf16.msra.mxu0 0
        %1405 = vmatprep.subr.bf16.mxu0 0
        %1406 = vmatpush1.bf16.msra.mxu0 0
        %1407 = vmatprep.subr.bf16.mxu0 0
        %1408 = vmatpush1.bf16.msra.mxu0 0
        %1409 = vmatprep.subr.bf16.mxu0 0
        %1410 = vmatpush1.bf16.msra.mxu0 0
        %1411 = vmatprep.subr.bf16.mxu0 0
        %1412 = vmatpush1.bf16.msra.mxu0 0
        %1413 = vmatprep.subr.bf16.mxu0 0
        %1414 = vmatpush1.bf16.msra.mxu0 0
        %1415 = vmatprep.subr.bf16.mxu0 0
        %1416 = vmatpush1.bf16.msra.mxu0 0
        %1417 = vmatprep.subr.bf16.mxu0 0
        %1418 = vmatpush1.bf16.msra.mxu0 0
        %1419 = vmatprep.subr.bf16.mxu0 0
        %1420 = vmatpush1.bf16.msra.mxu0 0
        %1421 = vmatprep.subr.bf16.mxu0 0
        %1422 = vmatpush1.bf16.msra.mxu0 0
        %1423 = vmatprep.subr.bf16.mxu0 0
        %1424 = vmatpush1.bf16.msra.mxu0 0
        %1425 = vmatprep.mubr.bf16.mxu0 0
        %1426 = vmatmul.mubr.bf16.gmra.mrb[0].mxu0 %v564
        %v1427 = vpop.f32.mrb[0].mxu0
        %v1428 = vadd.f32 0.0, %v1427
        %v1429 = vpop.f32.mrb[0].mxu0
        %v1430 = vpop.f32.mrb[0].mxu0
        %v1431 = vadd.f32 0.0, %v1430
        %v1432 = vpop.f32.mrb[0].mxu0
        %1433 = vdwg.mxu0
        %v1434 = vld [vmem:[%s5] sm:$0xf]
        %v1435 = vld [vmem:[%s5 + $0x4] sm:$0xf]
        %v1436 = vld [vmem:[%s5 + $0x8] sm:$0xf]
        %v1437 = vld [vmem:[%s5 + $0xc] sm:$0xf]
        %v1438 = vld [vmem:[%s5 + $0x10] sm:$0xf]
        %v1439 = vld [vmem:[%s5 + $0x14] sm:$0xf]
        %v1440 = vld [vmem:[%s5 + $0x18] sm:$0xf]
        %v1441 = vld [vmem:[%s5 + $0x1c] sm:$0xf]
        %v1442 = vld [vmem:[%s5 + $0x20] sm:$0xf]
        %v1443 = vld [vmem:[%s5 + $0x24] sm:$0xf]
        %v1444 = vld [vmem:[%s5 + $0x28] sm:$0xf]
        %v1445 = vld [vmem:[%s5 + $0x2c] sm:$0xf]
        %v1446 = vld [vmem:[%s5 + $0x30] sm:$0xf]
        %v1447 = vld [vmem:[%s5 + $0x34] sm:$0xf]
        %v1448 = vld [vmem:[%s5 + $0x38] sm:$0xf]
        %v1449 = vld [vmem:[%s5 + $0x3c] sm:$0xf]
        %v1450 = vld [vmem:[%s5 + $0x40] sm:$0xf]
        %v1451 = vld [vmem:[%s5 + $0x44] sm:$0xf]
        %v1452 = vld [vmem:[%s5 + $0x48] sm:$0xf]
        %v1453 = vld [vmem:[%s5 + $0x4c] sm:$0xf]
        %v1454 = vld [vmem:[%s5 + $0x50] sm:$0xf]
        %v1455 = vld [vmem:[%s5 + $0x54] sm:$0xf]
        %v1456 = vld [vmem:[%s5 + $0x58] sm:$0xf]
        %v1457 = vld [vmem:[%s5 + $0x5c] sm:$0xf]
        %v1458 = vld [vmem:[%s5 + $0x60] sm:$0xf]
        %v1459 = vld [vmem:[%s5 + $0x64] sm:$0xf]
        %v1460 = vld [vmem:[%s5 + $0x68] sm:$0xf]
        %v1461 = vld [vmem:[%s5 + $0x6c] sm:$0xf]
        %v1462 = vld [vmem:[%s5 + $0x70] sm:$0xf]
        %v1463 = vld [vmem:[%s5 + $0x74] sm:$0xf]
        %v1464 = vld [vmem:[%s5 + $0x78] sm:$0xf]
        %v1465 = vld [vmem:[%s5 + $0x7c] sm:$0xf]
        %v1470 = vunpack.c.l.b16 %v1434
        %v1471 = vunpack.c.l.b16 %v1435
        %v1472 = vunpack.c.l.b16 %v1436
        %v1473 = vunpack.c.l.b16 %v1437
        %v1474 = vpack.c.b16 %v1471, %v1470
        %v1475 = vpack.c.b16 %v1473, %v1472
        %1478 = vmatprep.subr.bf16.mxu0 0
        %1479 = vmatpush1.bf16.msra.mxu0 %v1474
        %1480 = vmatprep.subr.bf16.mxu0 0
        %1481 = vmatpush1.bf16.msra.mxu0 %v1475
        %1482 = vmatprep.subr.bf16.mxu0 0
        %1483 = vmatpush1.bf16.msra.mxu0 0
        %1484 = vmatprep.subr.bf16.mxu0 0
        %1485 = vmatpush1.bf16.msra.mxu0 0
        %1486 = vmatprep.subr.bf16.mxu0 0
        %1487 = vmatpush1.bf16.msra.mxu0 0
        %1488 = vmatprep.subr.bf16.mxu0 0
        %1489 = vmatpush1.bf16.msra.mxu0 0
        %1490 = vmatprep.subr.bf16.mxu0 0
        %1491 = vmatpush1.bf16.msra.mxu0 0
        %1492 = vmatprep.subr.bf16.mxu0 0
        %1493 = vmatpush1.bf16.msra.mxu0 0
        %1494 = vmatprep.subr.bf16.mxu0 0
        %1495 = vmatpush1.bf16.msra.mxu0 0
        %1496 = vmatprep.subr.bf16.mxu0 0
        %1497 = vmatpush1.bf16.msra.mxu0 0
        %1498 = vmatprep.subr.bf16.mxu0 0
        %1499 = vmatpush1.bf16.msra.mxu0 0
        %1500 = vmatprep.subr.bf16.mxu0 0
        %1501 = vmatpush1.bf16.msra.mxu0 0
        %1502 = vmatprep.subr.bf16.mxu0 0
        %1503 = vmatpush1.bf16.msra.mxu0 0
        %1504 = vmatprep.subr.bf16.mxu0 0
        %1505 = vmatpush1.bf16.msra.mxu0 0
        %1506 = vmatprep.subr.bf16.mxu0 0
        %1507 = vmatpush1.bf16.msra.mxu0 0
        %1508 = vmatprep.subr.bf16.mxu0 0
        %1509 = vmatpush1.bf16.msra.mxu0 0
        %1510 = vmatprep.mubr.bf16.mxu0 0
        %1511 = vmatmul.mubr.bf16.gmra.mrb[0].mxu0 %v564
        %v1512 = vpop.f32.mrb[0].mxu0
        %v1513 = vadd.f32 0.0, %v1512
        %v1514 = vpop.f32.mrb[0].mxu0
        %v1515 = vpop.f32.mrb[0].mxu0
        %v1516 = vadd.f32 0.0, %v1515
        %v1517 = vpop.f32.mrb[0].mxu0
        %1518 = vdwg.mxu0
        %v1523 = vunpack.c.l.b16 %v1438
        %v1524 = vunpack.c.l.b16 %v1439
        %v1525 = vunpack.c.l.b16 %v1440
        %v1526 = vunpack.c.l.b16 %v1441
        %v1527 = vpack.c.b16 %v1524, %v1523
        %v1528 = vpack.c.b16 %v1526, %v1525
        %1531 = vmatprep.subr.bf16.mxu0 0
        %1532 = vmatpush1.bf16.msra.mxu0 %v1527
        %1533 = vmatprep.subr.bf16.mxu0 0
        %1534 = vmatpush1.bf16.msra.mxu0 %v1528
        %1535 = vmatprep.subr.bf16.mxu0 0
        %1536 = vmatpush1.bf16.msra.mxu0 0
        %1537 = vmatprep.subr.bf16.mxu0 0
        %1538 = vmatpush1.bf16.msra.mxu0 0
        %1539 = vmatprep.subr.bf16.mxu0 0
        %1540 = vmatpush1.bf16.msra.mxu0 0
        %1541 = vmatprep.subr.bf16.mxu0 0
        %1542 = vmatpush1.bf16.msra.mxu0 0
        %1543 = vmatprep.subr.bf16.mxu0 0
        %1544 = vmatpush1.bf16.msra.mxu0 0
        %1545 = vmatprep.subr.bf16.mxu0 0
        %1546 = vmatpush1.bf16.msra.mxu0 0
        %1547 = vmatprep.subr.bf16.mxu0 0
        %1548 = vmatpush1.bf16.msra.mxu0 0
        %1549 = vmatprep.subr.bf16.mxu0 0
        %1550 = vmatpush1.bf16.msra.mxu0 0
        %1551 = vmatprep.subr.bf16.mxu0 0
        %1552 = vmatpush1.bf16.msra.mxu0 0
        %1553 = vmatprep.subr.bf16.mxu0 0
        %1554 = vmatpush1.bf16.msra.mxu0 0
        %1555 = vmatprep.subr.bf16.mxu0 0
        %1556 = vmatpush1.bf16.msra.mxu0 0
        %1557 = vmatprep.subr.bf16.mxu0 0
        %1558 = vmatpush1.bf16.msra.mxu0 0
        %1559 = vmatprep.subr.bf16.mxu0 0
        %1560 = vmatpush1.bf16.msra.mxu0 0
        %1561 = vmatprep.subr.bf16.mxu0 0
        %1562 = vmatpush1.bf16.msra.mxu0 0
        %1563 = vmatprep.mubr.bf16.mxu0 0
        %1564 = vmatmul.mubr.bf16.gmra.mrb[0].mxu0 %v564
        %v1565 = vpop.f32.mrb[0].mxu0
        %v1566 = vadd.f32 0.0, %v1565
        %v1567 = vpop.f32.mrb[0].mxu0
        %v1568 = vpop.f32.mrb[0].mxu0
        %v1569 = vadd.f32 0.0, %v1568
        %v1570 = vpop.f32.mrb[0].mxu0
        %1571 = vdwg.mxu0
        %v1576 = vunpack.c.l.b16 %v1442
        %v1577 = vunpack.c.l.b16 %v1443
        %v1578 = vunpack.c.l.b16 %v1444
        %v1579 = vunpack.c.l.b16 %v1445
        %v1580 = vpack.c.b16 %v1577, %v1576
        %v1581 = vpack.c.b16 %v1579, %v1578
        %1584 = vmatprep.subr.bf16.mxu0 0
        %1585 = vmatpush1.bf16.msra.mxu0 %v1580
        %1586 = vmatprep.subr.bf16.mxu0 0
        %1587 = vmatpush1.bf16.msra.mxu0 %v1581
        %1588 = vmatprep.subr.bf16.mxu0 0
        %1589 = vmatpush1.bf16.msra.mxu0 0
        %1590 = vmatprep.subr.bf16.mxu0 0
        %1591 = vmatpush1.bf16.msra.mxu0 0
        %1592 = vmatprep.subr.bf16.mxu0 0
        %1593 = vmatpush1.bf16.msra.mxu0 0
        %1594 = vmatprep.subr.bf16.mxu0 0
        %1595 = vmatpush1.bf16.msra.mxu0 0
        %1596 = vmatprep.subr.bf16.mxu0 0
        %1597 = vmatpush1.bf16.msra.mxu0 0
        %1598 = vmatprep.subr.bf16.mxu0 0
        %1599 = vmatpush1.bf16.msra.mxu0 0
        %1600 = vmatprep.subr.bf16.mxu0 0
        %1601 = vmatpush1.bf16.msra.mxu0 0
        %1602 = vmatprep.subr.bf16.mxu0 0
        %1603 = vmatpush1.bf16.msra.mxu0 0
        %1604 = vmatprep.subr.bf16.mxu0 0
        %1605 = vmatpush1.bf16.msra.mxu0 0
        %1606 = vmatprep.subr.bf16.mxu0 0
        %1607 = vmatpush1.bf16.msra.mxu0 0
        %1608 = vmatprep.subr.bf16.mxu0 0
        %1609 = vmatpush1.bf16.msra.mxu0 0
        %1610 = vmatprep.subr.bf16.mxu0 0
        %1611 = vmatpush1.bf16.msra.mxu0 0
        %1612 = vmatprep.subr.bf16.mxu0 0
        %1613 = vmatpush1.bf16.msra.mxu0 0
        %1614 = vmatprep.subr.bf16.mxu0 0
        %1615 = vmatpush1.bf16.msra.mxu0 0
        %1616 = vmatprep.mubr.bf16.mxu0 0
        %1617 = vmatmul.mubr.bf16.gmra.mrb[0].mxu0 %v564
        %v1618 = vpop.f32.mrb[0].mxu0
        %v1619 = vadd.f32 0.0, %v1618
        %v1620 = vpop.f32.mrb[0].mxu0
        %v1621 = vpop.f32.mrb[0].mxu0
        %v1622 = vadd.f32 0.0, %v1621
        %v1623 = vpop.f32.mrb[0].mxu0
        %1624 = vdwg.mxu0
        %v1629 = vunpack.c.l.b16 %v1446
        %v1630 = vunpack.c.l.b16 %v1447
        %v1631 = vunpack.c.l.b16 %v1448
        %v1632 = vunpack.c.l.b16 %v1449
        %v1633 = vpack.c.b16 %v1630, %v1629
        %v1634 = vpack.c.b16 %v1632, %v1631
        %1637 = vmatprep.subr.bf16.mxu0 0
        %1638 = vmatpush1.bf16.msra.mxu0 %v1633
        %1639 = vmatprep.subr.bf16.mxu0 0
        %1640 = vmatpush1.bf16.msra.mxu0 %v1634
        %1641 = vmatprep.subr.bf16.mxu0 0
        %1642 = vmatpush1.bf16.msra.mxu0 0
        %1643 = vmatprep.subr.bf16.mxu0 0
        %1644 = vmatpush1.bf16.msra.mxu0 0
        %1645 = vmatprep.subr.bf16.mxu0 0
        %1646 = vmatpush1.bf16.msra.mxu0 0
        %1647 = vmatprep.subr.bf16.mxu0 0
        %1648 = vmatpush1.bf16.msra.mxu0 0
        %1649 = vmatprep.subr.bf16.mxu0 0
        %1650 = vmatpush1.bf16.msra.mxu0 0
        %1651 = vmatprep.subr.bf16.mxu0 0
        %1652 = vmatpush1.bf16.msra.mxu0 0
        %1653 = vmatprep.subr.bf16.mxu0 0
        %1654 = vmatpush1.bf16.msra.mxu0 0
        %1655 = vmatprep.subr.bf16.mxu0 0
        %1656 = vmatpush1.bf16.msra.mxu0 0
        %1657 = vmatprep.subr.bf16.mxu0 0
        %1658 = vmatpush1.bf16.msra.mxu0 0
        %1659 = vmatprep.subr.bf16.mxu0 0
        %1660 = vmatpush1.bf16.msra.mxu0 0
        %1661 = vmatprep.subr.bf16.mxu0 0
        %1662 = vmatpush1.bf16.msra.mxu0 0
        %1663 = vmatprep.subr.bf16.mxu0 0
        %1664 = vmatpush1.bf16.msra.mxu0 0
        %1665 = vmatprep.subr.bf16.mxu0 0
        %1666 = vmatpush1.bf16.msra.mxu0 0
        %1667 = vmatprep.subr.bf16.mxu0 0
        %1668 = vmatpush1.bf16.msra.mxu0 0
        %1669 = vmatprep.mubr.bf16.mxu0 0
        %1670 = vmatmul.mubr.bf16.gmra.mrb[0].mxu0 %v564
        %v1671 = vpop.f32.mrb[0].mxu0
        %v1672 = vadd.f32 0.0, %v1671
        %v1673 = vpop.f32.mrb[0].mxu0
        %v1674 = vpop.f32.mrb[0].mxu0
        %v1675 = vadd.f32 0.0, %v1674
        %v1676 = vpop.f32.mrb[0].mxu0
        %1677 = vdwg.mxu0
        %v1682 = vunpack.c.l.b16 %v1450
        %v1683 = vunpack.c.l.b16 %v1451
        %v1684 = vunpack.c.l.b16 %v1452
        %v1685 = vunpack.c.l.b16 %v1453
        %v1686 = vpack.c.b16 %v1683, %v1682
        %v1687 = vpack.c.b16 %v1685, %v1684
        %1690 = vmatprep.subr.bf16.mxu0 0
        %1691 = vmatpush1.bf16.msra.mxu0 %v1686
        %1692 = vmatprep.subr.bf16.mxu0 0
        %1693 = vmatpush1.bf16.msra.mxu0 %v1687
        %1694 = vmatprep.subr.bf16.mxu0 0
        %1695 = vmatpush1.bf16.msra.mxu0 0
        %1696 = vmatprep.subr.bf16.mxu0 0
        %1697 = vmatpush1.bf16.msra.mxu0 0
        %1698 = vmatprep.subr.bf16.mxu0 0
        %1699 = vmatpush1.bf16.msra.mxu0 0
        %1700 = vmatprep.subr.bf16.mxu0 0
        %1701 = vmatpush1.bf16.msra.mxu0 0
        %1702 = vmatprep.subr.bf16.mxu0 0
        %1703 = vmatpush1.bf16.msra.mxu0 0
        %1704 = vmatprep.subr.bf16.mxu0 0
        %1705 = vmatpush1.bf16.msra.mxu0 0
        %1706 = vmatprep.subr.bf16.mxu0 0
        %1707 = vmatpush1.bf16.msra.mxu0 0
        %1708 = vmatprep.subr.bf16.mxu0 0
        %1709 = vmatpush1.bf16.msra.mxu0 0
        %1710 = vmatprep.subr.bf16.mxu0 0
        %1711 = vmatpush1.bf16.msra.mxu0 0
        %1712 = vmatprep.subr.bf16.mxu0 0
        %1713 = vmatpush1.bf16.msra.mxu0 0
        %1714 = vmatprep.subr.bf16.mxu0 0
        %1715 = vmatpush1.bf16.msra.mxu0 0
        %1716 = vmatprep.subr.bf16.mxu0 0
        %1717 = vmatpush1.bf16.msra.mxu0 0
        %1718 = vmatprep.subr.bf16.mxu0 0
        %1719 = vmatpush1.bf16.msra.mxu0 0
        %1720 = vmatprep.subr.bf16.mxu0 0
        %1721 = vmatpush1.bf16.msra.mxu0 0
        %1722 = vmatprep.mubr.bf16.mxu0 0
        %1723 = vmatmul.mubr.bf16.gmra.mrb[0].mxu0 %v564
        %v1724 = vpop.f32.mrb[0].mxu0
        %v1725 = vadd.f32 0.0, %v1724
        %v1726 = vpop.f32.mrb[0].mxu0
        %v1727 = vpop.f32.mrb[0].mxu0
        %v1728 = vadd.f32 0.0, %v1727
        %v1729 = vpop.f32.mrb[0].mxu0
        %1730 = vdwg.mxu0
        %v1735 = vunpack.c.l.b16 %v1454
        %v1736 = vunpack.c.l.b16 %v1455
        %v1737 = vunpack.c.l.b16 %v1456
        %v1738 = vunpack.c.l.b16 %v1457
        %v1739 = vpack.c.b16 %v1736, %v1735
        %v1740 = vpack.c.b16 %v1738, %v1737
        %1743 = vmatprep.subr.bf16.mxu0 0
        %1744 = vmatpush1.bf16.msra.mxu0 %v1739
        %1745 = vmatprep.subr.bf16.mxu0 0
        %1746 = vmatpush1.bf16.msra.mxu0 %v1740
        %1747 = vmatprep.subr.bf16.mxu0 0
        %1748 = vmatpush1.bf16.msra.mxu0 0
        %1749 = vmatprep.subr.bf16.mxu0 0
        %1750 = vmatpush1.bf16.msra.mxu0 0
        %1751 = vmatprep.subr.bf16.mxu0 0
        %1752 = vmatpush1.bf16.msra.mxu0 0
        %1753 = vmatprep.subr.bf16.mxu0 0
        %1754 = vmatpush1.bf16.msra.mxu0 0
        %1755 = vmatprep.subr.bf16.mxu0 0
        %1756 = vmatpush1.bf16.msra.mxu0 0
        %1757 = vmatprep.subr.bf16.mxu0 0
        %1758 = vmatpush1.bf16.msra.mxu0 0
        %1759 = vmatprep.subr.bf16.mxu0 0
        %1760 = vmatpush1.bf16.msra.mxu0 0
        %1761 = vmatprep.subr.bf16.mxu0 0
        %1762 = vmatpush1.bf16.msra.mxu0 0
        %1763 = vmatprep.subr.bf16.mxu0 0
        %1764 = vmatpush1.bf16.msra.mxu0 0
        %1765 = vmatprep.subr.bf16.mxu0 0
        %1766 = vmatpush1.bf16.msra.mxu0 0
        %1767 = vmatprep.subr.bf16.mxu0 0
        %1768 = vmatpush1.bf16.msra.mxu0 0
        %1769 = vmatprep.subr.bf16.mxu0 0
        %1770 = vmatpush1.bf16.msra.mxu0 0
        %1771 = vmatprep.subr.bf16.mxu0 0
        %1772 = vmatpush1.bf16.msra.mxu0 0
        %1773 = vmatprep.subr.bf16.mxu0 0
        %1774 = vmatpush1.bf16.msra.mxu0 0
        %1775 = vmatprep.mubr.bf16.mxu0 0
        %1776 = vmatmul.mubr.bf16.gmra.mrb[0].mxu0 %v564
        %v1777 = vpop.f32.mrb[0].mxu0
        %v1778 = vadd.f32 0.0, %v1777
        %v1779 = vpop.f32.mrb[0].mxu0
        %v1780 = vpop.f32.mrb[0].mxu0
        %v1781 = vadd.f32 0.0, %v1780
        %v1782 = vpop.f32.mrb[0].mxu0
        %1783 = vdwg.mxu0
        %v1788 = vunpack.c.l.b16 %v1458
        %v1789 = vunpack.c.l.b16 %v1459
        %v1790 = vunpack.c.l.b16 %v1460
        %v1791 = vunpack.c.l.b16 %v1461
        %v1792 = vpack.c.b16 %v1789, %v1788
        %v1793 = vpack.c.b16 %v1791, %v1790
        %1796 = vmatprep.subr.bf16.mxu0 0
        %1797 = vmatpush1.bf16.msra.mxu0 %v1792
        %1798 = vmatprep.subr.bf16.mxu0 0
        %1799 = vmatpush1.bf16.msra.mxu0 %v1793
        %1800 = vmatprep.subr.bf16.mxu0 0
        %1801 = vmatpush1.bf16.msra.mxu0 0
        %1802 = vmatprep.subr.bf16.mxu0 0
        %1803 = vmatpush1.bf16.msra.mxu0 0
        %1804 = vmatprep.subr.bf16.mxu0 0
        %1805 = vmatpush1.bf16.msra.mxu0 0
        %1806 = vmatprep.subr.bf16.mxu0 0
        %1807 = vmatpush1.bf16.msra.mxu0 0
        %1808 = vmatprep.subr.bf16.mxu0 0
        %1809 = vmatpush1.bf16.msra.mxu0 0
        %1810 = vmatprep.subr.bf16.mxu0 0
        %1811 = vmatpush1.bf16.msra.mxu0 0
        %1812 = vmatprep.subr.bf16.mxu0 0
        %1813 = vmatpush1.bf16.msra.mxu0 0
        %1814 = vmatprep.subr.bf16.mxu0 0
        %1815 = vmatpush1.bf16.msra.mxu0 0
        %1816 = vmatprep.subr.bf16.mxu0 0
        %1817 = vmatpush1.bf16.msra.mxu0 0
        %1818 = vmatprep.subr.bf16.mxu0 0
        %1819 = vmatpush1.bf16.msra.mxu0 0
        %1820 = vmatprep.subr.bf16.mxu0 0
        %1821 = vmatpush1.bf16.msra.mxu0 0
        %1822 = vmatprep.subr.bf16.mxu0 0
        %1823 = vmatpush1.bf16.msra.mxu0 0
        %1824 = vmatprep.subr.bf16.mxu0 0
        %1825 = vmatpush1.bf16.msra.mxu0 0
        %1826 = vmatprep.subr.bf16.mxu0 0
        %1827 = vmatpush1.bf16.msra.mxu0 0
        %1828 = vmatprep.mubr.bf16.mxu0 0
        %1829 = vmatmul.mubr.bf16.gmra.mrb[0].mxu0 %v564
        %v1830 = vpop.f32.mrb[0].mxu0
        %v1831 = vadd.f32 0.0, %v1830
        %v1832 = vpop.f32.mrb[0].mxu0
        %v1833 = vpop.f32.mrb[0].mxu0
        %v1834 = vadd.f32 0.0, %v1833
        %v1835 = vpop.f32.mrb[0].mxu0
        %1836 = vdwg.mxu0
        %v1841 = vunpack.c.l.b16 %v1462
        %v1842 = vunpack.c.l.b16 %v1463
        %v1843 = vunpack.c.l.b16 %v1464
        %v1844 = vunpack.c.l.b16 %v1465
        %v1845 = vpack.c.b16 %v1842, %v1841
        %v1846 = vpack.c.b16 %v1844, %v1843
        %1849 = vmatprep.subr.bf16.mxu0 0
        %1850 = vmatpush1.bf16.msra.mxu0 %v1845
        %1851 = vmatprep.subr.bf16.mxu0 0
        %1852 = vmatpush1.bf16.msra.mxu0 %v1846
        %1853 = vmatprep.subr.bf16.mxu0 0
        %1854 = vmatpush1.bf16.msra.mxu0 0
        %1855 = vmatprep.subr.bf16.mxu0 0
        %1856 = vmatpush1.bf16.msra.mxu0 0
        %1857 = vmatprep.subr.bf16.mxu0 0
        %1858 = vmatpush1.bf16.msra.mxu0 0
        %1859 = vmatprep.subr.bf16.mxu0 0
        %1860 = vmatpush1.bf16.msra.mxu0 0
        %1861 = vmatprep.subr.bf16.mxu0 0
        %1862 = vmatpush1.bf16.msra.mxu0 0
        %1863 = vmatprep.subr.bf16.mxu0 0
        %1864 = vmatpush1.bf16.msra.mxu0 0
        %1865 = vmatprep.subr.bf16.mxu0 0
        %1866 = vmatpush1.bf16.msra.mxu0 0
        %1867 = vmatprep.subr.bf16.mxu0 0
        %1868 = vmatpush1.bf16.msra.mxu0 0
        %1869 = vmatprep.subr.bf16.mxu0 0
        %1870 = vmatpush1.bf16.msra.mxu0 0
        %1871 = vmatprep.subr.bf16.mxu0 0
        %1872 = vmatpush1.bf16.msra.mxu0 0
        %1873 = vmatprep.subr.bf16.mxu0 0
        %1874 = vmatpush1.bf16.msra.mxu0 0
        %1875 = vmatprep.subr.bf16.mxu0 0
        %1876 = vmatpush1.bf16.msra.mxu0 0
        %1877 = vmatprep.subr.bf16.mxu0 0
        %1878 = vmatpush1.bf16.msra.mxu0 0
        %1879 = vmatprep.subr.bf16.mxu0 0
        %1880 = vmatpush1.bf16.msra.mxu0 0
        %1881 = vmatprep.mubr.bf16.mxu0 0
        %1882 = vmatmul.mubr.bf16.gmra.mrb[0].mxu0 %v564
        %v1883 = vpop.f32.mrb[0].mxu0
        %v1884 = vadd.f32 0.0, %v1883
        %v1885 = vpop.f32.mrb[0].mxu0
        %v1886 = vpop.f32.mrb[0].mxu0
        %v1887 = vadd.f32 0.0, %v1886
        %v1888 = vpop.f32.mrb[0].mxu0
        %1889 = vdwg.mxu0
        %v1890 = vpack.c.bf16 %v601, %v601
        %v1891 = vpack.c.bf16 %v654, %v654
        %v1892 = vpack.c.bf16 %v707, %v707
        %v1893 = vpack.c.bf16 %v760, %v760
        %v1894 = vpack.c.bf16 %v813, %v813
        %v1895 = vpack.c.bf16 %v866, %v866
        %v1896 = vpack.c.bf16 %v919, %v919
        %v1897 = vpack.c.bf16 %v972, %v972
        %v1898 = vpack.c.bf16 %v1057, %v1057
        %v1899 = vpack.c.bf16 %v1110, %v1110
        %v1900 = vpack.c.bf16 %v1163, %v1163
        %v1901 = vpack.c.bf16 %v1216, %v1216
        %v1902 = vpack.c.bf16 %v1269, %v1269
        %v1903 = vpack.c.bf16 %v1322, %v1322
        %v1904 = vpack.c.bf16 %v1375, %v1375
        %v1905 = vpack.c.bf16 %v1428, %v1428
        %v1906 = vpack.c.bf16 %v1513, %v1513
        %v1907 = vpack.c.bf16 %v1566, %v1566
        %v1908 = vpack.c.bf16 %v1619, %v1619
        %v1909 = vpack.c.bf16 %v1672, %v1672
        %v1910 = vpack.c.bf16 %v1725, %v1725
        %v1911 = vpack.c.bf16 %v1778, %v1778
        %v1912 = vpack.c.bf16 %v1831, %v1831
        %v1913 = vpack.c.bf16 %v1884, %v1884
        %vm1914 = vcmask 31744
        %v1916 = vsel %vm1914, %v1890, 0
        %v1919 = vsel %vm1914, %v1898, 0
        %1921 = vmatprep.subr.bf16.mxu0 0
        %1922 = vmatpush1.bf16.xpose.msra.mxu0 %v1919
        %1923 = vmatprep.subr.bf16.mxu0 0
        %1924 = vmatpush1.bf16.xpose.msra.mxu0 0
        %1925 = vmatprep.subr.bf16.mxu0 0
        %1926 = vmatpush1.bf16.xpose.msra.mxu0 0
        %1927 = vmatprep.subr.bf16.mxu0 0
        %1928 = vmatpush1.bf16.xpose.msra.mxu0 0
        %1929 = vmatprep.subr.bf16.mxu0 0
        %1930 = vmatpush1.bf16.xpose.msra.mxu0 0
        %1931 = vmatprep.subr.bf16.mxu0 0
        %1932 = vmatpush1.bf16.xpose.msra.mxu0 0
        %1933 = vmatprep.subr.bf16.mxu0 0
        %1934 = vmatpush1.bf16.xpose.msra.mxu0 0
        %1935 = vmatprep.subr.bf16.mxu0 0
        %1936 = vmatpush1.bf16.xpose.msra.mxu0 0
        %1937 = vmatprep.subr.bf16.mxu0 0
        %1938 = vmatpush1.bf16.xpose.msra.mxu0 0
        %1939 = vmatprep.subr.bf16.mxu0 0
        %1940 = vmatpush1.bf16.xpose.msra.mxu0 0
        %1941 = vmatprep.subr.bf16.mxu0 0
        %1942 = vmatpush1.bf16.xpose.msra.mxu0 0
        %1943 = vmatprep.subr.bf16.mxu0 0
        %1944 = vmatpush1.bf16.xpose.msra.mxu0 0
        %1945 = vmatprep.subr.bf16.mxu0 0
        %1946 = vmatpush1.bf16.xpose.msra.mxu0 0
        %1947 = vmatprep.subr.bf16.mxu0 0
        %1948 = vmatpush1.bf16.xpose.msra.mxu0 0
        %1949 = vmatprep.subr.bf16.mxu0 0
        %1950 = vmatpush1.bf16.xpose.msra.mxu0 0
        %1951 = vmatprep.subr.bf16.mxu0 0
        %1952 = vmatpush1.bf16.xpose.msra.mxu0 0
        %1953 = vmatprep.mubr.bf16.mxu0 0
        %1954 = vmatmul.mubr.bf16.gmra.mrb[0].mxu0 %v1916
        %v1955 = vpop.f32.mrb[0].mxu0
        %v1956 = vadd.f32 0.0, %v1955
        %v1957 = vpop.f32.mrb[0].mxu0
        %v1958 = vpop.f32.mrb[0].mxu0
        %v1959 = vpop.f32.mrb[0].mxu0
        %1960 = vdwg.mxu0
        %v1962 = vsel %vm1914, %v1891, 0
        %v1965 = vsel %vm1914, %v1899, 0
        %1967 = vmatprep.subr.bf16.mxu0 0
        %1968 = vmatpush1.bf16.xpose.msra.mxu0 %v1965
        %1969 = vmatprep.subr.bf16.mxu0 0
        %1970 = vmatpush1.bf16.xpose.msra.mxu0 0
        %1971 = vmatprep.subr.bf16.mxu0 0
        %1972 = vmatpush1.bf16.xpose.msra.mxu0 0
        %1973 = vmatprep.subr.bf16.mxu0 0
        %1974 = vmatpush1.bf16.xpose.msra.mxu0 0
        %1975 = vmatprep.subr.bf16.mxu0 0
        %1976 = vmatpush1.bf16.xpose.msra.mxu0 0
        %1977 = vmatprep.subr.bf16.mxu0 0
        %1978 = vmatpush1.bf16.xpose.msra.mxu0 0
        %1979 = vmatprep.subr.bf16.mxu0 0
        %1980 = vmatpush1.bf16.xpose.msra.mxu0 0
        %1981 = vmatprep.subr.bf16.mxu0 0
        %1982 = vmatpush1.bf16.xpose.msra.mxu0 0
        %1983 = vmatprep.subr.bf16.mxu0 0
        %1984 = vmatpush1.bf16.xpose.msra.mxu0 0
        %1985 = vmatprep.subr.bf16.mxu0 0
        %1986 = vmatpush1.bf16.xpose.msra.mxu0 0
        %1987 = vmatprep.subr.bf16.mxu0 0
        %1988 = vmatpush1.bf16.xpose.msra.mxu0 0
        %1989 = vmatprep.subr.bf16.mxu0 0
        %1990 = vmatpush1.bf16.xpose.msra.mxu0 0
        %1991 = vmatprep.subr.bf16.mxu0 0
        %1992 = vmatpush1.bf16.xpose.msra.mxu0 0
        %1993 = vmatprep.subr.bf16.mxu0 0
        %1994 = vmatpush1.bf16.xpose.msra.mxu0 0
        %1995 = vmatprep.subr.bf16.mxu0 0
        %1996 = vmatpush1.bf16.xpose.msra.mxu0 0
        %1997 = vmatprep.subr.bf16.mxu0 0
        %1998 = vmatpush1.bf16.xpose.msra.mxu0 0
        %1999 = vmatprep.mubr.bf16.mxu0 0
        %2000 = vmatmul.mubr.bf16.gmra.mrb[0].mxu0 %v1962
        %v2001 = vpop.f32.mrb[0].mxu0
        %v2002 = vadd.f32 0.0, %v2001
        %v2003 = vpop.f32.mrb[0].mxu0
        %v2004 = vpop.f32.mrb[0].mxu0
        %v2005 = vpop.f32.mrb[0].mxu0
        %2006 = vdwg.mxu0
        %v2008 = vsel %vm1914, %v1892, 0
        %v2011 = vsel %vm1914, %v1900, 0
        %2013 = vmatprep.subr.bf16.mxu0 0
        %2014 = vmatpush1.bf16.xpose.msra.mxu0 %v2011
        %2015 = vmatprep.subr.bf16.mxu0 0
        %2016 = vmatpush1.bf16.xpose.msra.mxu0 0
        %2017 = vmatprep.subr.bf16.mxu0 0
        %2018 = vmatpush1.bf16.xpose.msra.mxu0 0
        %2019 = vmatprep.subr.bf16.mxu0 0
        %2020 = vmatpush1.bf16.xpose.msra.mxu0 0
        %2021 = vmatprep.subr.bf16.mxu0 0
        %2022 = vmatpush1.bf16.xpose.msra.mxu0 0
        %2023 = vmatprep.subr.bf16.mxu0 0
        %2024 = vmatpush1.bf16.xpose.msra.mxu0 0
        %2025 = vmatprep.subr.bf16.mxu0 0
        %2026 = vmatpush1.bf16.xpose.msra.mxu0 0
        %2027 = vmatprep.subr.bf16.mxu0 0
        %2028 = vmatpush1.bf16.xpose.msra.mxu0 0
        %2029 = vmatprep.subr.bf16.mxu0 0
        %2030 = vmatpush1.bf16.xpose.msra.mxu0 0
        %2031 = vmatprep.subr.bf16.mxu0 0
        %2032 = vmatpush1.bf16.xpose.msra.mxu0 0
        %2033 = vmatprep.subr.bf16.mxu0 0
        %2034 = vmatpush1.bf16.xpose.msra.mxu0 0
        %2035 = vmatprep.subr.bf16.mxu0 0
        %2036 = vmatpush1.bf16.xpose.msra.mxu0 0
        %2037 = vmatprep.subr.bf16.mxu0 0
        %2038 = vmatpush1.bf16.xpose.msra.mxu0 0
        %2039 = vmatprep.subr.bf16.mxu0 0
        %2040 = vmatpush1.bf16.xpose.msra.mxu0 0
        %2041 = vmatprep.subr.bf16.mxu0 0
        %2042 = vmatpush1.bf16.xpose.msra.mxu0 0
        %2043 = vmatprep.subr.bf16.mxu0 0
        %2044 = vmatpush1.bf16.xpose.msra.mxu0 0
        %2045 = vmatprep.mubr.bf16.mxu0 0
        %2046 = vmatmul.mubr.bf16.gmra.mrb[0].mxu0 %v2008
        %v2047 = vpop.f32.mrb[0].mxu0
        %v2048 = vadd.f32 0.0, %v2047
        %v2049 = vpop.f32.mrb[0].mxu0
        %v2050 = vpop.f32.mrb[0].mxu0
        %v2051 = vpop.f32.mrb[0].mxu0
        %2052 = vdwg.mxu0
        %v2054 = vsel %vm1914, %v1893, 0
        %v2057 = vsel %vm1914, %v1901, 0
        %2059 = vmatprep.subr.bf16.mxu0 0
        %2060 = vmatpush1.bf16.xpose.msra.mxu0 %v2057
        %2061 = vmatprep.subr.bf16.mxu0 0
        %2062 = vmatpush1.bf16.xpose.msra.mxu0 0
        %2063 = vmatprep.subr.bf16.mxu0 0
        %2064 = vmatpush1.bf16.xpose.msra.mxu0 0
        %2065 = vmatprep.subr.bf16.mxu0 0
        %2066 = vmatpush1.bf16.xpose.msra.mxu0 0
        %2067 = vmatprep.subr.bf16.mxu0 0
        %2068 = vmatpush1.bf16.xpose.msra.mxu0 0
        %2069 = vmatprep.subr.bf16.mxu0 0
        %2070 = vmatpush1.bf16.xpose.msra.mxu0 0
        %2071 = vmatprep.subr.bf16.mxu0 0
        %2072 = vmatpush1.bf16.xpose.msra.mxu0 0
        %2073 = vmatprep.subr.bf16.mxu0 0
        %2074 = vmatpush1.bf16.xpose.msra.mxu0 0
        %2075 = vmatprep.subr.bf16.mxu0 0
        %2076 = vmatpush1.bf16.xpose.msra.mxu0 0
        %2077 = vmatprep.subr.bf16.mxu0 0
        %2078 = vmatpush1.bf16.xpose.msra.mxu0 0
        %2079 = vmatprep.subr.bf16.mxu0 0
        %2080 = vmatpush1.bf16.xpose.msra.mxu0 0
        %2081 = vmatprep.subr.bf16.mxu0 0
        %2082 = vmatpush1.bf16.xpose.msra.mxu0 0
        %2083 = vmatprep.subr.bf16.mxu0 0
        %2084 = vmatpush1.bf16.xpose.msra.mxu0 0
        %2085 = vmatprep.subr.bf16.mxu0 0
        %2086 = vmatpush1.bf16.xpose.msra.mxu0 0
        %2087 = vmatprep.subr.bf16.mxu0 0
        %2088 = vmatpush1.bf16.xpose.msra.mxu0 0
        %2089 = vmatprep.subr.bf16.mxu0 0
        %2090 = vmatpush1.bf16.xpose.msra.mxu0 0
        %2091 = vmatprep.mubr.bf16.mxu0 0
        %2092 = vmatmul.mubr.bf16.gmra.mrb[0].mxu0 %v2054
        %v2093 = vpop.f32.mrb[0].mxu0
        %v2094 = vadd.f32 0.0, %v2093
        %v2095 = vpop.f32.mrb[0].mxu0
        %v2096 = vpop.f32.mrb[0].mxu0
        %v2097 = vpop.f32.mrb[0].mxu0
        %2098 = vdwg.mxu0
        %v2100 = vsel %vm1914, %v1894, 0
        %v2103 = vsel %vm1914, %v1902, 0
        %2105 = vmatprep.subr.bf16.mxu0 0
        %2106 = vmatpush1.bf16.xpose.msra.mxu0 %v2103
        %2107 = vmatprep.subr.bf16.mxu0 0
        %2108 = vmatpush1.bf16.xpose.msra.mxu0 0
        %2109 = vmatprep.subr.bf16.mxu0 0
        %2110 = vmatpush1.bf16.xpose.msra.mxu0 0
        %2111 = vmatprep.subr.bf16.mxu0 0
        %2112 = vmatpush1.bf16.xpose.msra.mxu0 0
        %2113 = vmatprep.subr.bf16.mxu0 0
        %2114 = vmatpush1.bf16.xpose.msra.mxu0 0
        %2115 = vmatprep.subr.bf16.mxu0 0
        %2116 = vmatpush1.bf16.xpose.msra.mxu0 0
        %2117 = vmatprep.subr.bf16.mxu0 0
        %2118 = vmatpush1.bf16.xpose.msra.mxu0 0
        %2119 = vmatprep.subr.bf16.mxu0 0
        %2120 = vmatpush1.bf16.xpose.msra.mxu0 0
        %2121 = vmatprep.subr.bf16.mxu0 0
        %2122 = vmatpush1.bf16.xpose.msra.mxu0 0
        %2123 = vmatprep.subr.bf16.mxu0 0
        %2124 = vmatpush1.bf16.xpose.msra.mxu0 0
        %2125 = vmatprep.subr.bf16.mxu0 0
        %2126 = vmatpush1.bf16.xpose.msra.mxu0 0
        %2127 = vmatprep.subr.bf16.mxu0 0
        %2128 = vmatpush1.bf16.xpose.msra.mxu0 0
        %2129 = vmatprep.subr.bf16.mxu0 0
        %2130 = vmatpush1.bf16.xpose.msra.mxu0 0
        %2131 = vmatprep.subr.bf16.mxu0 0
        %2132 = vmatpush1.bf16.xpose.msra.mxu0 0
        %2133 = vmatprep.subr.bf16.mxu0 0
        %2134 = vmatpush1.bf16.xpose.msra.mxu0 0
        %2135 = vmatprep.subr.bf16.mxu0 0
        %2136 = vmatpush1.bf16.xpose.msra.mxu0 0
        %2137 = vmatprep.mubr.bf16.mxu0 0
        %2138 = vmatmul.mubr.bf16.gmra.mrb[0].mxu0 %v2100
        %v2139 = vpop.f32.mrb[0].mxu0
        %v2140 = vadd.f32 0.0, %v2139
        %v2141 = vpop.f32.mrb[0].mxu0
        %v2142 = vpop.f32.mrb[0].mxu0
        %v2143 = vpop.f32.mrb[0].mxu0
        %2144 = vdwg.mxu0
        %v2146 = vsel %vm1914, %v1895, 0
        %v2149 = vsel %vm1914, %v1903, 0
        %2151 = vmatprep.subr.bf16.mxu0 0
        %2152 = vmatpush1.bf16.xpose.msra.mxu0 %v2149
        %2153 = vmatprep.subr.bf16.mxu0 0
        %2154 = vmatpush1.bf16.xpose.msra.mxu0 0
        %2155 = vmatprep.subr.bf16.mxu0 0
        %2156 = vmatpush1.bf16.xpose.msra.mxu0 0
        %2157 = vmatprep.subr.bf16.mxu0 0
        %2158 = vmatpush1.bf16.xpose.msra.mxu0 0
        %2159 = vmatprep.subr.bf16.mxu0 0
        %2160 = vmatpush1.bf16.xpose.msra.mxu0 0
        %2161 = vmatprep.subr.bf16.mxu0 0
        %2162 = vmatpush1.bf16.xpose.msra.mxu0 0
        %2163 = vmatprep.subr.bf16.mxu0 0
        %2164 = vmatpush1.bf16.xpose.msra.mxu0 0
        %2165 = vmatprep.subr.bf16.mxu0 0
        %2166 = vmatpush1.bf16.xpose.msra.mxu0 0
        %2167 = vmatprep.subr.bf16.mxu0 0
        %2168 = vmatpush1.bf16.xpose.msra.mxu0 0
        %2169 = vmatprep.subr.bf16.mxu0 0
        %2170 = vmatpush1.bf16.xpose.msra.mxu0 0
        %2171 = vmatprep.subr.bf16.mxu0 0
        %2172 = vmatpush1.bf16.xpose.msra.mxu0 0
        %2173 = vmatprep.subr.bf16.mxu0 0
        %2174 = vmatpush1.bf16.xpose.msra.mxu0 0
        %2175 = vmatprep.subr.bf16.mxu0 0
        %2176 = vmatpush1.bf16.xpose.msra.mxu0 0
        %2177 = vmatprep.subr.bf16.mxu0 0
        %2178 = vmatpush1.bf16.xpose.msra.mxu0 0
        %2179 = vmatprep.subr.bf16.mxu0 0
        %2180 = vmatpush1.bf16.xpose.msra.mxu0 0
        %2181 = vmatprep.subr.bf16.mxu0 0
        %2182 = vmatpush1.bf16.xpose.msra.mxu0 0
        %2183 = vmatprep.mubr.bf16.mxu0 0
        %2184 = vmatmul.mubr.bf16.gmra.mrb[0].mxu0 %v2146
        %v2185 = vpop.f32.mrb[0].mxu0
        %v2186 = vadd.f32 0.0, %v2185
        %v2187 = vpop.f32.mrb[0].mxu0
        %v2188 = vpop.f32.mrb[0].mxu0
        %v2189 = vpop.f32.mrb[0].mxu0
        %2190 = vdwg.mxu0
        %v2192 = vsel %vm1914, %v1896, 0
        %v2195 = vsel %vm1914, %v1904, 0
        %2197 = vmatprep.subr.bf16.mxu0 0
        %2198 = vmatpush1.bf16.xpose.msra.mxu0 %v2195
        %2199 = vmatprep.subr.bf16.mxu0 0
        %2200 = vmatpush1.bf16.xpose.msra.mxu0 0
        %2201 = vmatprep.subr.bf16.mxu0 0
        %2202 = vmatpush1.bf16.xpose.msra.mxu0 0
        %2203 = vmatprep.subr.bf16.mxu0 0
        %2204 = vmatpush1.bf16.xpose.msra.mxu0 0
        %2205 = vmatprep.subr.bf16.mxu0 0
        %2206 = vmatpush1.bf16.xpose.msra.mxu0 0
        %2207 = vmatprep.subr.bf16.mxu0 0
        %2208 = vmatpush1.bf16.xpose.msra.mxu0 0
        %2209 = vmatprep.subr.bf16.mxu0 0
        %2210 = vmatpush1.bf16.xpose.msra.mxu0 0
        %2211 = vmatprep.subr.bf16.mxu0 0
        %2212 = vmatpush1.bf16.xpose.msra.mxu0 0
        %2213 = vmatprep.subr.bf16.mxu0 0
        %2214 = vmatpush1.bf16.xpose.msra.mxu0 0
        %2215 = vmatprep.subr.bf16.mxu0 0
        %2216 = vmatpush1.bf16.xpose.msra.mxu0 0
        %2217 = vmatprep.subr.bf16.mxu0 0
        %2218 = vmatpush1.bf16.xpose.msra.mxu0 0
        %2219 = vmatprep.subr.bf16.mxu0 0
        %2220 = vmatpush1.bf16.xpose.msra.mxu0 0
        %2221 = vmatprep.subr.bf16.mxu0 0
        %2222 = vmatpush1.bf16.xpose.msra.mxu0 0
        %2223 = vmatprep.subr.bf16.mxu0 0
        %2224 = vmatpush1.bf16.xpose.msra.mxu0 0
        %2225 = vmatprep.subr.bf16.mxu0 0
        %2226 = vmatpush1.bf16.xpose.msra.mxu0 0
        %2227 = vmatprep.subr.bf16.mxu0 0
        %2228 = vmatpush1.bf16.xpose.msra.mxu0 0
        %2229 = vmatprep.mubr.bf16.mxu0 0
        %2230 = vmatmul.mubr.bf16.gmra.mrb[0].mxu0 %v2192
        %v2231 = vpop.f32.mrb[0].mxu0
        %v2232 = vadd.f32 0.0, %v2231
        %v2233 = vpop.f32.mrb[0].mxu0
        %v2234 = vpop.f32.mrb[0].mxu0
        %v2235 = vpop.f32.mrb[0].mxu0
        %2236 = vdwg.mxu0
        %v2238 = vsel %vm1914, %v1897, 0
        %v2241 = vsel %vm1914, %v1905, 0
        %2243 = vmatprep.subr.bf16.mxu0 0
        %2244 = vmatpush1.bf16.xpose.msra.mxu0 %v2241
        %2245 = vmatprep.subr.bf16.mxu0 0
        %2246 = vmatpush1.bf16.xpose.msra.mxu0 0
        %2247 = vmatprep.subr.bf16.mxu0 0
        %2248 = vmatpush1.bf16.xpose.msra.mxu0 0
        %2249 = vmatprep.subr.bf16.mxu0 0
        %2250 = vmatpush1.bf16.xpose.msra.mxu0 0
        %2251 = vmatprep.subr.bf16.mxu0 0
        %2252 = vmatpush1.bf16.xpose.msra.mxu0 0
        %2253 = vmatprep.subr.bf16.mxu0 0
        %2254 = vmatpush1.bf16.xpose.msra.mxu0 0
        %2255 = vmatprep.subr.bf16.mxu0 0
        %2256 = vmatpush1.bf16.xpose.msra.mxu0 0
        %2257 = vmatprep.subr.bf16.mxu0 0
        %2258 = vmatpush1.bf16.xpose.msra.mxu0 0
        %2259 = vmatprep.subr.bf16.mxu0 0
        %2260 = vmatpush1.bf16.xpose.msra.mxu0 0
        %2261 = vmatprep.subr.bf16.mxu0 0
        %2262 = vmatpush1.bf16.xpose.msra.mxu0 0
        %2263 = vmatprep.subr.bf16.mxu0 0
        %2264 = vmatpush1.bf16.xpose.msra.mxu0 0
        %2265 = vmatprep.subr.bf16.mxu0 0
        %2266 = vmatpush1.bf16.xpose.msra.mxu0 0
        %2267 = vmatprep.subr.bf16.mxu0 0
        %2268 = vmatpush1.bf16.xpose.msra.mxu0 0
        %2269 = vmatprep.subr.bf16.mxu0 0
        %2270 = vmatpush1.bf16.xpose.msra.mxu0 0
        %2271 = vmatprep.subr.bf16.mxu0 0
        %2272 = vmatpush1.bf16.xpose.msra.mxu0 0
        %2273 = vmatprep.subr.bf16.mxu0 0
        %2274 = vmatpush1.bf16.xpose.msra.mxu0 0
        %2275 = vmatprep.mubr.bf16.mxu0 0
        %2276 = vmatmul.mubr.bf16.gmra.mrb[0].mxu0 %v2238
        %v2277 = vpop.f32.mrb[0].mxu0
        %v2278 = vadd.f32 0.0, %v2277
        %v2279 = vpop.f32.mrb[0].mxu0
        %v2280 = vpop.f32.mrb[0].mxu0
        %v2281 = vpop.f32.mrb[0].mxu0
        %2282 = vdwg.mxu0
        %v2283 = vmul.f32 %v1956, 0.5
        %v2284 = vmul.f32 %v2002, 0.5
        %v2285 = vmul.f32 %v2048, 0.5
        %v2286 = vmul.f32 %v2094, 0.5
        %v2287 = vmul.f32 %v2140, 0.5
        %v2288 = vmul.f32 %v2186, 0.5
        %v2289 = vmul.f32 %v2232, 0.5
        %v2290 = vmul.f32 %v2278, 0.5
        %vm2291 = vcmask 64512
        %v2292 = vsel %vm2291, %v2283, -inf
        %2293 = vmax.xlane.f32.xlu0 %v2292
        %v2294 = vpop.xlane.xlu0 %2293
        %v2295 = vsel %vm2291, %v2284, -inf
        %2296 = vmax.xlane.f32.xlu0 %v2295
        %v2297 = vpop.xlane.xlu0 %2296
        %v2298 = vsel %vm2291, %v2285, -inf
        %2299 = vmax.xlane.f32.xlu0 %v2298
        %v2300 = vpop.xlane.xlu0 %2299
        %v2301 = vsel %vm2291, %v2286, -inf
        %2302 = vmax.xlane.f32.xlu0 %v2301
        %v2303 = vpop.xlane.xlu0 %2302
        %v2304 = vsel %vm2291, %v2287, -inf
        %2305 = vmax.xlane.f32.xlu0 %v2304
        %v2306 = vpop.xlane.xlu0 %2305
        %v2307 = vsel %vm2291, %v2288, -inf
        %2308 = vmax.xlane.f32.xlu0 %v2307
        %v2309 = vpop.xlane.xlu0 %2308
        %v2310 = vsel %vm2291, %v2289, -inf
        %2311 = vmax.xlane.f32.xlu0 %v2310
        %v2312 = vpop.xlane.xlu0 %2311
        %v2313 = vsel %vm2291, %v2290, -inf
        %2314 = vmax.xlane.f32.xlu0 %v2313
        %v2315 = vpop.xlane.xlu0 %2314
        %v2316 = vsub.f32 %v2283, %v2294
        %v2317 = vsub.f32 %v2284, %v2297
        %v2318 = vsub.f32 %v2285, %v2300
        %v2319 = vsub.f32 %v2286, %v2303
        %v2320 = vsub.f32 %v2287, %v2306
        %v2321 = vsub.f32 %v2288, %v2309
        %v2322 = vsub.f32 %v2289, %v2312
        %v2323 = vsub.f32 %v2290, %v2315
        %v2324 = vmul.f32 %v2316, 1.442695
        %v2325 = vpow.pop %v2324
        %v2326 = vmul.f32 %v2317, 1.442695
        %v2327 = vpow.pop %v2326
        %v2328 = vmul.f32 %v2318, 1.442695
        %v2329 = vpow.pop %v2328
        %v2330 = vmul.f32 %v2319, 1.442695
        %v2331 = vpow.pop %v2330
        %v2332 = vmul.f32 %v2320, 1.442695
        %v2333 = vpow.pop %v2332
        %v2334 = vmul.f32 %v2321, 1.442695
        %v2335 = vpow.pop %v2334
        %v2336 = vmul.f32 %v2322, 1.442695
        %v2337 = vpow.pop %v2336
        %v2338 = vmul.f32 %v2323, 1.442695
        %v2339 = vpow.pop %v2338
        %v2340 = vsel %vm2291, %v2325, 0.0
        %2341 = vadd.xlane.f32.xlu0 %v2340
        %v2342 = vpop.xlane.xlu0 %2341
        %v2343 = vsel %vm2291, %v2327, 0.0
        %2344 = vadd.xlane.f32.xlu0 %v2343
        %v2345 = vpop.xlane.xlu0 %2344
        %v2346 = vsel %vm2291, %v2329, 0.0
        %2347 = vadd.xlane.f32.xlu0 %v2346
        %v2348 = vpop.xlane.xlu0 %2347
        %v2349 = vsel %vm2291, %v2331, 0.0
        %2350 = vadd.xlane.f32.xlu0 %v2349
        %v2351 = vpop.xlane.xlu0 %2350
        %v2352 = vsel %vm2291, %v2333, 0.0
        %2353 = vadd.xlane.f32.xlu0 %v2352
        %v2354 = vpop.xlane.xlu0 %2353
        %v2355 = vsel %vm2291, %v2335, 0.0
        %2356 = vadd.xlane.f32.xlu0 %v2355
        %v2357 = vpop.xlane.xlu0 %2356
        %v2358 = vsel %vm2291, %v2337, 0.0
        %2359 = vadd.xlane.f32.xlu0 %v2358
        %v2360 = vpop.xlane.xlu0 %2359
        %v2361 = vsel %vm2291, %v2339, 0.0
        %2362 = vadd.xlane.f32.xlu0 %v2361
        %v2363 = vpop.xlane.xlu0 %2362
        %v2364 = vrcp.pop %v2342
        %v2365 = vrcp.pop %v2345
        %v2366 = vrcp.pop %v2348
        %v2367 = vrcp.pop %v2351
        %v2368 = vrcp.pop %v2354
        %v2369 = vrcp.pop %v2357
        %v2370 = vrcp.pop %v2360
        %v2371 = vrcp.pop %v2363
        %v2372 = vmul.f32 %v2325, %v2364
        %v2373 = vmul.f32 %v2327, %v2365
        %v2374 = vmul.f32 %v2329, %v2366
        %v2375 = vmul.f32 %v2331, %v2367
        %v2376 = vmul.f32 %v2333, %v2368
        %v2377 = vmul.f32 %v2335, %v2369
        %v2378 = vmul.f32 %v2337, %v2370
        %v2379 = vmul.f32 %v2339, %v2371
        %v2380 = vpack.c.bf16 %v2372, %v2372
        %v2381 = vpack.c.bf16 %v2373, %v2373
        %v2382 = vpack.c.bf16 %v2374, %v2374
        %v2383 = vpack.c.bf16 %v2375, %v2375
        %v2384 = vpack.c.bf16 %v2376, %v2376
        %v2385 = vpack.c.bf16 %v2377, %v2377
        %v2386 = vpack.c.bf16 %v2378, %v2378
        %v2387 = vpack.c.bf16 %v2379, %v2379
        %v2389 = vsel %vm2291, %v2380, 0
        %vm2391 = vcmask 1043456
        %v2393 = vsel %vm2391, %v1906, 0
        %2395 = vmatprep.subr.bf16.mxu0 0
        %2396 = vmatpush1.bf16.msra.mxu0 %v2393
        %2397 = vmatprep.subr.bf16.mxu0 0
        %2398 = vmatpush1.bf16.msra.mxu0 0
        %2399 = vmatprep.subr.bf16.mxu0 0
        %2400 = vmatpush1.bf16.msra.mxu0 0
        %2401 = vmatprep.subr.bf16.mxu0 0
        %2402 = vmatpush1.bf16.msra.mxu0 0
        %2403 = vmatprep.subr.bf16.mxu0 0
        %2404 = vmatpush1.bf16.msra.mxu0 0
        %2405 = vmatprep.subr.bf16.mxu0 0
        %2406 = vmatpush1.bf16.msra.mxu0 0
        %2407 = vmatprep.subr.bf16.mxu0 0
        %2408 = vmatpush1.bf16.msra.mxu0 0
        %2409 = vmatprep.subr.bf16.mxu0 0
        %2410 = vmatpush1.bf16.msra.mxu0 0
        %2411 = vmatprep.subr.bf16.mxu0 0
        %2412 = vmatpush1.bf16.msra.mxu0 0
        %2413 = vmatprep.subr.bf16.mxu0 0
        %2414 = vmatpush1.bf16.msra.mxu0 0
        %2415 = vmatprep.subr.bf16.mxu0 0
        %2416 = vmatpush1.bf16.msra.mxu0 0
        %2417 = vmatprep.subr.bf16.mxu0 0
        %2418 = vmatpush1.bf16.msra.mxu0 0
        %2419 = vmatprep.subr.bf16.mxu0 0
        %2420 = vmatpush1.bf16.msra.mxu0 0
        %2421 = vmatprep.subr.bf16.mxu0 0
        %2422 = vmatpush1.bf16.msra.mxu0 0
        %2423 = vmatprep.subr.bf16.mxu0 0
        %2424 = vmatpush1.bf16.msra.mxu0 0
        %2425 = vmatprep.subr.bf16.mxu0 0
        %2426 = vmatpush1.bf16.msra.mxu0 0
        %2427 = vmatprep.mubr.bf16.mxu0 0
        %2428 = vmatmul.mubr.bf16.gmra.mrb[0].mxu0 %v2389
        %v2429 = vpop.f32.mrb[0].mxu0
        %v2430 = vadd.f32 0.0, %v2429
        %v2431 = vpop.f32.mrb[0].mxu0
        %v2432 = vpop.f32.mrb[0].mxu0
        %v2433 = vpop.f32.mrb[0].mxu0
        %2434 = vdwg.mxu0
        %v2436 = vsel %vm2291, %v2381, 0
        %v2439 = vsel %vm2391, %v1907, 0
        %2441 = vmatprep.subr.bf16.mxu0 0
        %2442 = vmatpush1.bf16.msra.mxu0 %v2439
        %2443 = vmatprep.subr.bf16.mxu0 0
        %2444 = vmatpush1.bf16.msra.mxu0 0
        %2445 = vmatprep.subr.bf16.mxu0 0
        %2446 = vmatpush1.bf16.msra.mxu0 0
        %2447 = vmatprep.subr.bf16.mxu0 0
        %2448 = vmatpush1.bf16.msra.mxu0 0
        %2449 = vmatprep.subr.bf16.mxu0 0
        %2450 = vmatpush1.bf16.msra.mxu0 0
        %2451 = vmatprep.subr.bf16.mxu0 0
        %2452 = vmatpush1.bf16.msra.mxu0 0
        %2453 = vmatprep.subr.bf16.mxu0 0
        %2454 = vmatpush1.bf16.msra.mxu0 0
        %2455 = vmatprep.subr.bf16.mxu0 0
        %2456 = vmatpush1.bf16.msra.mxu0 0
        %2457 = vmatprep.subr.bf16.mxu0 0
        %2458 = vmatpush1.bf16.msra.mxu0 0
        %2459 = vmatprep.subr.bf16.mxu0 0
        %2460 = vmatpush1.bf16.msra.mxu0 0
        %2461 = vmatprep.subr.bf16.mxu0 0
        %2462 = vmatpush1.bf16.msra.mxu0 0
        %2463 = vmatprep.subr.bf16.mxu0 0
        %2464 = vmatpush1.bf16.msra.mxu0 0
        %2465 = vmatprep.subr.bf16.mxu0 0
        %2466 = vmatpush1.bf16.msra.mxu0 0
        %2467 = vmatprep.subr.bf16.mxu0 0
        %2468 = vmatpush1.bf16.msra.mxu0 0
        %2469 = vmatprep.subr.bf16.mxu0 0
        %2470 = vmatpush1.bf16.msra.mxu0 0
        %2471 = vmatprep.subr.bf16.mxu0 0
        %2472 = vmatpush1.bf16.msra.mxu0 0
        %2473 = vmatprep.mubr.bf16.mxu0 0
        %2474 = vmatmul.mubr.bf16.gmra.mrb[0].mxu0 %v2436
        %v2475 = vpop.f32.mrb[0].mxu0
        %v2476 = vadd.f32 0.0, %v2475
        %v2477 = vpop.f32.mrb[0].mxu0
        %v2478 = vpop.f32.mrb[0].mxu0
        %v2479 = vpop.f32.mrb[0].mxu0
        %2480 = vdwg.mxu0
        %v2482 = vsel %vm2291, %v2382, 0
        %v2485 = vsel %vm2391, %v1908, 0
        %2487 = vmatprep.subr.bf16.mxu0 0
        %2488 = vmatpush1.bf16.msra.mxu0 %v2485
        %2489 = vmatprep.subr.bf16.mxu0 0
        %2490 = vmatpush1.bf16.msra.mxu0 0
        %2491 = vmatprep.subr.bf16.mxu0 0
        %2492 = vmatpush1.bf16.msra.mxu0 0
        %2493 = vmatprep.subr.bf16.mxu0 0
        %2494 = vmatpush1.bf16.msra.mxu0 0
        %2495 = vmatprep.subr.bf16.mxu0 0
        %2496 = vmatpush1.bf16.msra.mxu0 0
        %2497 = vmatprep.subr.bf16.mxu0 0
        %2498 = vmatpush1.bf16.msra.mxu0 0
        %2499 = vmatprep.subr.bf16.mxu0 0
        %2500 = vmatpush1.bf16.msra.mxu0 0
        %2501 = vmatprep.subr.bf16.mxu0 0
        %2502 = vmatpush1.bf16.msra.mxu0 0
        %2503 = vmatprep.subr.bf16.mxu0 0
        %2504 = vmatpush1.bf16.msra.mxu0 0
        %2505 = vmatprep.subr.bf16.mxu0 0
        %2506 = vmatpush1.bf16.msra.mxu0 0
        %2507 = vmatprep.subr.bf16.mxu0 0
        %2508 = vmatpush1.bf16.msra.mxu0 0
        %2509 = vmatprep.subr.bf16.mxu0 0
        %2510 = vmatpush1.bf16.msra.mxu0 0
        %2511 = vmatprep.subr.bf16.mxu0 0
        %2512 = vmatpush1.bf16.msra.mxu0 0
        %2513 = vmatprep.subr.bf16.mxu0 0
        %2514 = vmatpush1.bf16.msra.mxu0 0
        %2515 = vmatprep.subr.bf16.mxu0 0
        %2516 = vmatpush1.bf16.msra.mxu0 0
        %2517 = vmatprep.subr.bf16.mxu0 0
        %2518 = vmatpush1.bf16.msra.mxu0 0
        %2519 = vmatprep.mubr.bf16.mxu0 0
        %2520 = vmatmul.mubr.bf16.gmra.mrb[0].mxu0 %v2482
        %v2521 = vpop.f32.mrb[0].mxu0
        %v2522 = vadd.f32 0.0, %v2521
        %v2523 = vpop.f32.mrb[0].mxu0
        %v2524 = vpop.f32.mrb[0].mxu0
        %v2525 = vpop.f32.mrb[0].mxu0
        %2526 = vdwg.mxu0
        %v2528 = vsel %vm2291, %v2383, 0
        %v2531 = vsel %vm2391, %v1909, 0
        %2533 = vmatprep.subr.bf16.mxu0 0
        %2534 = vmatpush1.bf16.msra.mxu0 %v2531
        %2535 = vmatprep.subr.bf16.mxu0 0
        %2536 = vmatpush1.bf16.msra.mxu0 0
        %2537 = vmatprep.subr.bf16.mxu0 0
        %2538 = vmatpush1.bf16.msra.mxu0 0
        %2539 = vmatprep.subr.bf16.mxu0 0
        %2540 = vmatpush1.bf16.msra.mxu0 0
        %2541 = vmatprep.subr.bf16.mxu0 0
        %2542 = vmatpush1.bf16.msra.mxu0 0
        %2543 = vmatprep.subr.bf16.mxu0 0
        %2544 = vmatpush1.bf16.msra.mxu0 0
        %2545 = vmatprep.subr.bf16.mxu0 0
        %2546 = vmatpush1.bf16.msra.mxu0 0
        %2547 = vmatprep.subr.bf16.mxu0 0
        %2548 = vmatpush1.bf16.msra.mxu0 0
        %2549 = vmatprep.subr.bf16.mxu0 0
        %2550 = vmatpush1.bf16.msra.mxu0 0
        %2551 = vmatprep.subr.bf16.mxu0 0
        %2552 = vmatpush1.bf16.msra.mxu0 0
        %2553 = vmatprep.subr.bf16.mxu0 0
        %2554 = vmatpush1.bf16.msra.mxu0 0
        %2555 = vmatprep.subr.bf16.mxu0 0
        %2556 = vmatpush1.bf16.msra.mxu0 0
        %2557 = vmatprep.subr.bf16.mxu0 0
        %2558 = vmatpush1.bf16.msra.mxu0 0
        %2559 = vmatprep.subr.bf16.mxu0 0
        %2560 = vmatpush1.bf16.msra.mxu0 0
        %2561 = vmatprep.subr.bf16.mxu0 0
        %2562 = vmatpush1.bf16.msra.mxu0 0
        %2563 = vmatprep.subr.bf16.mxu0 0
        %2564 = vmatpush1.bf16.msra.mxu0 0
        %2565 = vmatprep.mubr.bf16.mxu0 0
        %2566 = vmatmul.mubr.bf16.gmra.mrb[0].mxu0 %v2528
        %v2567 = vpop.f32.mrb[0].mxu0
        %v2568 = vadd.f32 0.0, %v2567
        %v2569 = vpop.f32.mrb[0].mxu0
        %v2570 = vpop.f32.mrb[0].mxu0
        %v2571 = vpop.f32.mrb[0].mxu0
        %2572 = vdwg.mxu0
        %v2574 = vsel %vm2291, %v2384, 0
        %v2577 = vsel %vm2391, %v1910, 0
        %2579 = vmatprep.subr.bf16.mxu0 0
        %2580 = vmatpush1.bf16.msra.mxu0 %v2577
        %2581 = vmatprep.subr.bf16.mxu0 0
        %2582 = vmatpush1.bf16.msra.mxu0 0
        %2583 = vmatprep.subr.bf16.mxu0 0
        %2584 = vmatpush1.bf16.msra.mxu0 0
        %2585 = vmatprep.subr.bf16.mxu0 0
        %2586 = vmatpush1.bf16.msra.mxu0 0
        %2587 = vmatprep.subr.bf16.mxu0 0
        %2588 = vmatpush1.bf16.msra.mxu0 0
        %2589 = vmatprep.subr.bf16.mxu0 0
        %2590 = vmatpush1.bf16.msra.mxu0 0
        %2591 = vmatprep.subr.bf16.mxu0 0
        %2592 = vmatpush1.bf16.msra.mxu0 0
        %2593 = vmatprep.subr.bf16.mxu0 0
        %2594 = vmatpush1.bf16.msra.mxu0 0
        %2595 = vmatprep.subr.bf16.mxu0 0
        %2596 = vmatpush1.bf16.msra.mxu0 0
        %2597 = vmatprep.subr.bf16.mxu0 0
        %2598 = vmatpush1.bf16.msra.mxu0 0
        %2599 = vmatprep.subr.bf16.mxu0 0
        %2600 = vmatpush1.bf16.msra.mxu0 0
        %2601 = vmatprep.subr.bf16.mxu0 0
        %2602 = vmatpush1.bf16.msra.mxu0 0
        %2603 = vmatprep.subr.bf16.mxu0 0
        %2604 = vmatpush1.bf16.msra.mxu0 0
        %2605 = vmatprep.subr.bf16.mxu0 0
        %2606 = vmatpush1.bf16.msra.mxu0 0
        %2607 = vmatprep.subr.bf16.mxu0 0
        %2608 = vmatpush1.bf16.msra.mxu0 0
        %2609 = vmatprep.subr.bf16.mxu0 0
        %2610 = vmatpush1.bf16.msra.mxu0 0
        %2611 = vmatprep.mubr.bf16.mxu0 0
        %2612 = vmatmul.mubr.bf16.gmra.mrb[0].mxu0 %v2574
        %v2613 = vpop.f32.mrb[0].mxu0
        %v2614 = vadd.f32 0.0, %v2613
        %v2615 = vpop.f32.mrb[0].mxu0
        %v2616 = vpop.f32.mrb[0].mxu0
        %v2617 = vpop.f32.mrb[0].mxu0
        %2618 = vdwg.mxu0
        %v2620 = vsel %vm2291, %v2385, 0
        %v2623 = vsel %vm2391, %v1911, 0
        %2625 = vmatprep.subr.bf16.mxu0 0
        %2626 = vmatpush1.bf16.msra.mxu0 %v2623
        %2627 = vmatprep.subr.bf16.mxu0 0
        %2628 = vmatpush1.bf16.msra.mxu0 0
        %2629 = vmatprep.subr.bf16.mxu0 0
        %2630 = vmatpush1.bf16.msra.mxu0 0
        %2631 = vmatprep.subr.bf16.mxu0 0
        %2632 = vmatpush1.bf16.msra.mxu0 0
        %2633 = vmatprep.subr.bf16.mxu0 0
        %2634 = vmatpush1.bf16.msra.mxu0 0
        %2635 = vmatprep.subr.bf16.mxu0 0
        %2636 = vmatpush1.bf16.msra.mxu0 0
        %2637 = vmatprep.subr.bf16.mxu0 0
        %2638 = vmatpush1.bf16.msra.mxu0 0
        %2639 = vmatprep.subr.bf16.mxu0 0
        %2640 = vmatpush1.bf16.msra.mxu0 0
        %2641 = vmatprep.subr.bf16.mxu0 0
        %2642 = vmatpush1.bf16.msra.mxu0 0
        %2643 = vmatprep.subr.bf16.mxu0 0
        %2644 = vmatpush1.bf16.msra.mxu0 0
        %2645 = vmatprep.subr.bf16.mxu0 0
        %2646 = vmatpush1.bf16.msra.mxu0 0
        %2647 = vmatprep.subr.bf16.mxu0 0
        %2648 = vmatpush1.bf16.msra.mxu0 0
        %2649 = vmatprep.subr.bf16.mxu0 0
        %2650 = vmatpush1.bf16.msra.mxu0 0
        %2651 = vmatprep.subr.bf16.mxu0 0
        %2652 = vmatpush1.bf16.msra.mxu0 0
        %2653 = vmatprep.subr.bf16.mxu0 0
        %2654 = vmatpush1.bf16.msra.mxu0 0
        %2655 = vmatprep.subr.bf16.mxu0 0
        %2656 = vmatpush1.bf16.msra.mxu0 0
        %2657 = vmatprep.mubr.bf16.mxu0 0
        %2658 = vmatmul.mubr.bf16.gmra.mrb[0].mxu0 %v2620
        %v2659 = vpop.f32.mrb[0].mxu0
        %v2660 = vadd.f32 0.0, %v2659
        %v2661 = vpop.f32.mrb[0].mxu0
        %v2662 = vpop.f32.mrb[0].mxu0
        %v2663 = vpop.f32.mrb[0].mxu0
        %2664 = vdwg.mxu0
        %v2666 = vsel %vm2291, %v2386, 0
        %v2669 = vsel %vm2391, %v1912, 0
        %2671 = vmatprep.subr.bf16.mxu0 0
        %2672 = vmatpush1.bf16.msra.mxu0 %v2669
        %2673 = vmatprep.subr.bf16.mxu0 0
        %2674 = vmatpush1.bf16.msra.mxu0 0
        %2675 = vmatprep.subr.bf16.mxu0 0
        %2676 = vmatpush1.bf16.msra.mxu0 0
        %2677 = vmatprep.subr.bf16.mxu0 0
        %2678 = vmatpush1.bf16.msra.mxu0 0
        %2679 = vmatprep.subr.bf16.mxu0 0
        %2680 = vmatpush1.bf16.msra.mxu0 0
        %2681 = vmatprep.subr.bf16.mxu0 0
        %2682 = vmatpush1.bf16.msra.mxu0 0
        %2683 = vmatprep.subr.bf16.mxu0 0
        %2684 = vmatpush1.bf16.msra.mxu0 0
        %2685 = vmatprep.subr.bf16.mxu0 0
        %2686 = vmatpush1.bf16.msra.mxu0 0
        %2687 = vmatprep.subr.bf16.mxu0 0
        %2688 = vmatpush1.bf16.msra.mxu0 0
        %2689 = vmatprep.subr.bf16.mxu0 0
        %2690 = vmatpush1.bf16.msra.mxu0 0
        %2691 = vmatprep.subr.bf16.mxu0 0
        %2692 = vmatpush1.bf16.msra.mxu0 0
        %2693 = vmatprep.subr.bf16.mxu0 0
        %2694 = vmatpush1.bf16.msra.mxu0 0
        %2695 = vmatprep.subr.bf16.mxu0 0
        %2696 = vmatpush1.bf16.msra.mxu0 0
        %2697 = vmatprep.subr.bf16.mxu0 0
        %2698 = vmatpush1.bf16.msra.mxu0 0
        %2699 = vmatprep.subr.bf16.mxu0 0
        %2700 = vmatpush1.bf16.msra.mxu0 0
        %2701 = vmatprep.subr.bf16.mxu0 0
        %2702 = vmatpush1.bf16.msra.mxu0 0
        %2703 = vmatprep.mubr.bf16.mxu0 0
        %2704 = vmatmul.mubr.bf16.gmra.mrb[0].mxu0 %v2666
        %v2705 = vpop.f32.mrb[0].mxu0
        %v2706 = vadd.f32 0.0, %v2705
        %v2707 = vpop.f32.mrb[0].mxu0
        %v2708 = vpop.f32.mrb[0].mxu0
        %v2709 = vpop.f32.mrb[0].mxu0
        %2710 = vdwg.mxu0
        %v2712 = vsel %vm2291, %v2387, 0
        %v2715 = vsel %vm2391, %v1913, 0
        %2717 = vmatprep.subr.bf16.mxu0 0
        %2718 = vmatpush1.bf16.msra.mxu0 %v2715
        %2719 = vmatprep.subr.bf16.mxu0 0
        %2720 = vmatpush1.bf16.msra.mxu0 0
        %2721 = vmatprep.subr.bf16.mxu0 0
        %2722 = vmatpush1.bf16.msra.mxu0 0
        %2723 = vmatprep.subr.bf16.mxu0 0
        %2724 = vmatpush1.bf16.msra.mxu0 0
        %2725 = vmatprep.subr.bf16.mxu0 0
        %2726 = vmatpush1.bf16.msra.mxu0 0
        %2727 = vmatprep.subr.bf16.mxu0 0
        %2728 = vmatpush1.bf16.msra.mxu0 0
        %2729 = vmatprep.subr.bf16.mxu0 0
        %2730 = vmatpush1.bf16.msra.mxu0 0
        %2731 = vmatprep.subr.bf16.mxu0 0
        %2732 = vmatpush1.bf16.msra.mxu0 0
        %2733 = vmatprep.subr.bf16.mxu0 0
        %2734 = vmatpush1.bf16.msra.mxu0 0
        %2735 = vmatprep.subr.bf16.mxu0 0
        %2736 = vmatpush1.bf16.msra.mxu0 0
        %2737 = vmatprep.subr.bf16.mxu0 0
        %2738 = vmatpush1.bf16.msra.mxu0 0
        %2739 = vmatprep.subr.bf16.mxu0 0
        %2740 = vmatpush1.bf16.msra.mxu0 0
        %2741 = vmatprep.subr.bf16.mxu0 0
        %2742 = vmatpush1.bf16.msra.mxu0 0
        %2743 = vmatprep.subr.bf16.mxu0 0
        %2744 = vmatpush1.bf16.msra.mxu0 0
        %2745 = vmatprep.subr.bf16.mxu0 0
        %2746 = vmatpush1.bf16.msra.mxu0 0
        %2747 = vmatprep.subr.bf16.mxu0 0
        %2748 = vmatpush1.bf16.msra.mxu0 0
        %2749 = vmatprep.mubr.bf16.mxu0 0
        %2750 = vmatmul.mubr.bf16.gmra.mrb[0].mxu0 %v2712
        %v2751 = vpop.f32.mrb[0].mxu0
        %v2752 = vadd.f32 0.0, %v2751
        %v2753 = vpop.f32.mrb[0].mxu0
        %v2754 = vpop.f32.mrb[0].mxu0
        %v2755 = vpop.f32.mrb[0].mxu0
        %2756 = vdwg.mxu0
        %v2757 = vpack.c.bf16 %v604, %v604
        %v2758 = vpack.c.bf16 %v657, %v657
        %v2759 = vpack.c.bf16 %v710, %v710
        %v2760 = vpack.c.bf16 %v763, %v763
        %v2761 = vpack.c.bf16 %v816, %v816
        %v2762 = vpack.c.bf16 %v869, %v869
        %v2763 = vpack.c.bf16 %v922, %v922
        %v2764 = vpack.c.bf16 %v975, %v975
        %v2765 = vpack.c.bf16 %v1060, %v1060
        %v2766 = vpack.c.bf16 %v1113, %v1113
        %v2767 = vpack.c.bf16 %v1166, %v1166
        %v2768 = vpack.c.bf16 %v1219, %v1219
        %v2769 = vpack.c.bf16 %v1272, %v1272
        %v2770 = vpack.c.bf16 %v1325, %v1325
        %v2771 = vpack.c.bf16 %v1378, %v1378
        %v2772 = vpack.c.bf16 %v1431, %v1431
        %v2773 = vpack.c.bf16 %v1516, %v1516
        %v2774 = vpack.c.bf16 %v1569, %v1569
        %v2775 = vpack.c.bf16 %v1622, %v1622
        %v2776 = vpack.c.bf16 %v1675, %v1675
        %v2777 = vpack.c.bf16 %v1728, %v1728
        %v2778 = vpack.c.bf16 %v1781, %v1781
        %v2779 = vpack.c.bf16 %v1834, %v1834
        %v2780 = vpack.c.bf16 %v1887, %v1887
        %v2782 = vsel %vm1914, %v2757, 0
        %v2785 = vsel %vm1914, %v2765, 0
        %2787 = vmatprep.subr.bf16.mxu0 0
        %2788 = vmatpush1.bf16.xpose.msra.mxu0 %v2785
        %2789 = vmatprep.subr.bf16.mxu0 0
        %2790 = vmatpush1.bf16.xpose.msra.mxu0 0
        %2791 = vmatprep.subr.bf16.mxu0 0
        %2792 = vmatpush1.bf16.xpose.msra.mxu0 0
        %2793 = vmatprep.subr.bf16.mxu0 0
        %2794 = vmatpush1.bf16.xpose.msra.mxu0 0
        %2795 = vmatprep.subr.bf16.mxu0 0
        %2796 = vmatpush1.bf16.xpose.msra.mxu0 0
        %2797 = vmatprep.subr.bf16.mxu0 0
        %2798 = vmatpush1.bf16.xpose.msra.mxu0 0
        %2799 = vmatprep.subr.bf16.mxu0 0
        %2800 = vmatpush1.bf16.xpose.msra.mxu0 0
        %2801 = vmatprep.subr.bf16.mxu0 0
        %2802 = vmatpush1.bf16.xpose.msra.mxu0 0
        %2803 = vmatprep.subr.bf16.mxu0 0
        %2804 = vmatpush1.bf16.xpose.msra.mxu0 0
        %2805 = vmatprep.subr.bf16.mxu0 0
        %2806 = vmatpush1.bf16.xpose.msra.mxu0 0
        %2807 = vmatprep.subr.bf16.mxu0 0
        %2808 = vmatpush1.bf16.xpose.msra.mxu0 0
        %2809 = vmatprep.subr.bf16.mxu0 0
        %2810 = vmatpush1.bf16.xpose.msra.mxu0 0
        %2811 = vmatprep.subr.bf16.mxu0 0
        %2812 = vmatpush1.bf16.xpose.msra.mxu0 0
        %2813 = vmatprep.subr.bf16.mxu0 0
        %2814 = vmatpush1.bf16.xpose.msra.mxu0 0
        %2815 = vmatprep.subr.bf16.mxu0 0
        %2816 = vmatpush1.bf16.xpose.msra.mxu0 0
        %2817 = vmatprep.subr.bf16.mxu0 0
        %2818 = vmatpush1.bf16.xpose.msra.mxu0 0
        %2819 = vmatprep.mubr.bf16.mxu0 0
        %2820 = vmatmul.mubr.bf16.gmra.mrb[0].mxu0 %v2782
        %v2821 = vpop.f32.mrb[0].mxu0
        %v2822 = vadd.f32 0.0, %v2821
        %v2823 = vpop.f32.mrb[0].mxu0
        %v2824 = vpop.f32.mrb[0].mxu0
        %v2825 = vpop.f32.mrb[0].mxu0
        %2826 = vdwg.mxu0
        %v2828 = vsel %vm1914, %v2758, 0
        %v2831 = vsel %vm1914, %v2766, 0
        %2833 = vmatprep.subr.bf16.mxu0 0
        %2834 = vmatpush1.bf16.xpose.msra.mxu0 %v2831
        %2835 = vmatprep.subr.bf16.mxu0 0
        %2836 = vmatpush1.bf16.xpose.msra.mxu0 0
        %2837 = vmatprep.subr.bf16.mxu0 0
        %2838 = vmatpush1.bf16.xpose.msra.mxu0 0
        %2839 = vmatprep.subr.bf16.mxu0 0
        %2840 = vmatpush1.bf16.xpose.msra.mxu0 0
        %2841 = vmatprep.subr.bf16.mxu0 0
        %2842 = vmatpush1.bf16.xpose.msra.mxu0 0
        %2843 = vmatprep.subr.bf16.mxu0 0
        %2844 = vmatpush1.bf16.xpose.msra.mxu0 0
        %2845 = vmatprep.subr.bf16.mxu0 0
        %2846 = vmatpush1.bf16.xpose.msra.mxu0 0
        %2847 = vmatprep.subr.bf16.mxu0 0
        %2848 = vmatpush1.bf16.xpose.msra.mxu0 0
        %2849 = vmatprep.subr.bf16.mxu0 0
        %2850 = vmatpush1.bf16.xpose.msra.mxu0 0
        %2851 = vmatprep.subr.bf16.mxu0 0
        %2852 = vmatpush1.bf16.xpose.msra.mxu0 0
        %2853 = vmatprep.subr.bf16.mxu0 0
        %2854 = vmatpush1.bf16.xpose.msra.mxu0 0
        %2855 = vmatprep.subr.bf16.mxu0 0
        %2856 = vmatpush1.bf16.xpose.msra.mxu0 0
        %2857 = vmatprep.subr.bf16.mxu0 0
        %2858 = vmatpush1.bf16.xpose.msra.mxu0 0
        %2859 = vmatprep.subr.bf16.mxu0 0
        %2860 = vmatpush1.bf16.xpose.msra.mxu0 0
        %2861 = vmatprep.subr.bf16.mxu0 0
        %2862 = vmatpush1.bf16.xpose.msra.mxu0 0
        %2863 = vmatprep.subr.bf16.mxu0 0
        %2864 = vmatpush1.bf16.xpose.msra.mxu0 0
        %2865 = vmatprep.mubr.bf16.mxu0 0
        %2866 = vmatmul.mubr.bf16.gmra.mrb[0].mxu0 %v2828
        %v2867 = vpop.f32.mrb[0].mxu0
        %v2868 = vadd.f32 0.0, %v2867
        %v2869 = vpop.f32.mrb[0].mxu0
        %v2870 = vpop.f32.mrb[0].mxu0
        %v2871 = vpop.f32.mrb[0].mxu0
        %2872 = vdwg.mxu0
        %v2874 = vsel %vm1914, %v2759, 0
        %v2877 = vsel %vm1914, %v2767, 0
        %2879 = vmatprep.subr.bf16.mxu0 0
        %2880 = vmatpush1.bf16.xpose.msra.mxu0 %v2877
        %2881 = vmatprep.subr.bf16.mxu0 0
        %2882 = vmatpush1.bf16.xpose.msra.mxu0 0
        %2883 = vmatprep.subr.bf16.mxu0 0
        %2884 = vmatpush1.bf16.xpose.msra.mxu0 0
        %2885 = vmatprep.subr.bf16.mxu0 0
        %2886 = vmatpush1.bf16.xpose.msra.mxu0 0
        %2887 = vmatprep.subr.bf16.mxu0 0
        %2888 = vmatpush1.bf16.xpose.msra.mxu0 0
        %2889 = vmatprep.subr.bf16.mxu0 0
        %2890 = vmatpush1.bf16.xpose.msra.mxu0 0
        %2891 = vmatprep.subr.bf16.mxu0 0
        %2892 = vmatpush1.bf16.xpose.msra.mxu0 0
        %2893 = vmatprep.subr.bf16.mxu0 0
        %2894 = vmatpush1.bf16.xpose.msra.mxu0 0
        %2895 = vmatprep.subr.bf16.mxu0 0
        %2896 = vmatpush1.bf16.xpose.msra.mxu0 0
        %2897 = vmatprep.subr.bf16.mxu0 0
        %2898 = vmatpush1.bf16.xpose.msra.mxu0 0
        %2899 = vmatprep.subr.bf16.mxu0 0
        %2900 = vmatpush1.bf16.xpose.msra.mxu0 0
        %2901 = vmatprep.subr.bf16.mxu0 0
        %2902 = vmatpush1.bf16.xpose.msra.mxu0 0
        %2903 = vmatprep.subr.bf16.mxu0 0
        %2904 = vmatpush1.bf16.xpose.msra.mxu0 0
        %2905 = vmatprep.subr.bf16.mxu0 0
        %2906 = vmatpush1.bf16.xpose.msra.mxu0 0
        %2907 = vmatprep.subr.bf16.mxu0 0
        %2908 = vmatpush1.bf16.xpose.msra.mxu0 0
        %2909 = vmatprep.subr.bf16.mxu0 0
        %2910 = vmatpush1.bf16.xpose.msra.mxu0 0
        %2911 = vmatprep.mubr.bf16.mxu0 0
        %2912 = vmatmul.mubr.bf16.gmra.mrb[0].mxu0 %v2874
        %v2913 = vpop.f32.mrb[0].mxu0
        %v2914 = vadd.f32 0.0, %v2913
        %v2915 = vpop.f32.mrb[0].mxu0
        %v2916 = vpop.f32.mrb[0].mxu0
        %v2917 = vpop.f32.mrb[0].mxu0
        %2918 = vdwg.mxu0
        %v2920 = vsel %vm1914, %v2760, 0
        %v2923 = vsel %vm1914, %v2768, 0
        %2925 = vmatprep.subr.bf16.mxu0 0
        %2926 = vmatpush1.bf16.xpose.msra.mxu0 %v2923
        %2927 = vmatprep.subr.bf16.mxu0 0
        %2928 = vmatpush1.bf16.xpose.msra.mxu0 0
        %2929 = vmatprep.subr.bf16.mxu0 0
        %2930 = vmatpush1.bf16.xpose.msra.mxu0 0
        %2931 = vmatprep.subr.bf16.mxu0 0
        %2932 = vmatpush1.bf16.xpose.msra.mxu0 0
        %2933 = vmatprep.subr.bf16.mxu0 0
        %2934 = vmatpush1.bf16.xpose.msra.mxu0 0
        %2935 = vmatprep.subr.bf16.mxu0 0
        %2936 = vmatpush1.bf16.xpose.msra.mxu0 0
        %2937 = vmatprep.subr.bf16.mxu0 0
        %2938 = vmatpush1.bf16.xpose.msra.mxu0 0
        %2939 = vmatprep.subr.bf16.mxu0 0
        %2940 = vmatpush1.bf16.xpose.msra.mxu0 0
        %2941 = vmatprep.subr.bf16.mxu0 0
        %2942 = vmatpush1.bf16.xpose.msra.mxu0 0
        %2943 = vmatprep.subr.bf16.mxu0 0
        %2944 = vmatpush1.bf16.xpose.msra.mxu0 0
        %2945 = vmatprep.subr.bf16.mxu0 0
        %2946 = vmatpush1.bf16.xpose.msra.mxu0 0
        %2947 = vmatprep.subr.bf16.mxu0 0
        %2948 = vmatpush1.bf16.xpose.msra.mxu0 0
        %2949 = vmatprep.subr.bf16.mxu0 0
        %2950 = vmatpush1.bf16.xpose.msra.mxu0 0
        %2951 = vmatprep.subr.bf16.mxu0 0
        %2952 = vmatpush1.bf16.xpose.msra.mxu0 0
        %2953 = vmatprep.subr.bf16.mxu0 0
        %2954 = vmatpush1.bf16.xpose.msra.mxu0 0
        %2955 = vmatprep.subr.bf16.mxu0 0
        %2956 = vmatpush1.bf16.xpose.msra.mxu0 0
        %2957 = vmatprep.mubr.bf16.mxu0 0
        %2958 = vmatmul.mubr.bf16.gmra.mrb[0].mxu0 %v2920
        %v2959 = vpop.f32.mrb[0].mxu0
        %v2960 = vadd.f32 0.0, %v2959
        %v2961 = vpop.f32.mrb[0].mxu0
        %v2962 = vpop.f32.mrb[0].mxu0
        %v2963 = vpop.f32.mrb[0].mxu0
        %2964 = vdwg.mxu0
        %v2966 = vsel %vm1914, %v2761, 0
        %v2969 = vsel %vm1914, %v2769, 0
        %2971 = vmatprep.subr.bf16.mxu0 0
        %2972 = vmatpush1.bf16.xpose.msra.mxu0 %v2969
        %2973 = vmatprep.subr.bf16.mxu0 0
        %2974 = vmatpush1.bf16.xpose.msra.mxu0 0
        %2975 = vmatprep.subr.bf16.mxu0 0
        %2976 = vmatpush1.bf16.xpose.msra.mxu0 0
        %2977 = vmatprep.subr.bf16.mxu0 0
        %2978 = vmatpush1.bf16.xpose.msra.mxu0 0
        %2979 = vmatprep.subr.bf16.mxu0 0
        %2980 = vmatpush1.bf16.xpose.msra.mxu0 0
        %2981 = vmatprep.subr.bf16.mxu0 0
        %2982 = vmatpush1.bf16.xpose.msra.mxu0 0
        %2983 = vmatprep.subr.bf16.mxu0 0
        %2984 = vmatpush1.bf16.xpose.msra.mxu0 0
        %2985 = vmatprep.subr.bf16.mxu0 0
        %2986 = vmatpush1.bf16.xpose.msra.mxu0 0
        %2987 = vmatprep.subr.bf16.mxu0 0
        %2988 = vmatpush1.bf16.xpose.msra.mxu0 0
        %2989 = vmatprep.subr.bf16.mxu0 0
        %2990 = vmatpush1.bf16.xpose.msra.mxu0 0
        %2991 = vmatprep.subr.bf16.mxu0 0
        %2992 = vmatpush1.bf16.xpose.msra.mxu0 0
        %2993 = vmatprep.subr.bf16.mxu0 0
        %2994 = vmatpush1.bf16.xpose.msra.mxu0 0
        %2995 = vmatprep.subr.bf16.mxu0 0
        %2996 = vmatpush1.bf16.xpose.msra.mxu0 0
        %2997 = vmatprep.subr.bf16.mxu0 0
        %2998 = vmatpush1.bf16.xpose.msra.mxu0 0
        %2999 = vmatprep.subr.bf16.mxu0 0
        %3000 = vmatpush1.bf16.xpose.msra.mxu0 0
        %3001 = vmatprep.subr.bf16.mxu0 0
        %3002 = vmatpush1.bf16.xpose.msra.mxu0 0
        %3003 = vmatprep.mubr.bf16.mxu0 0
        %3004 = vmatmul.mubr.bf16.gmra.mrb[0].mxu0 %v2966
        %v3005 = vpop.f32.mrb[0].mxu0
        %v3006 = vadd.f32 0.0, %v3005
        %v3007 = vpop.f32.mrb[0].mxu0
        %v3008 = vpop.f32.mrb[0].mxu0
        %v3009 = vpop.f32.mrb[0].mxu0
        %3010 = vdwg.mxu0
        %v3012 = vsel %vm1914, %v2762, 0
        %v3015 = vsel %vm1914, %v2770, 0
        %3017 = vmatprep.subr.bf16.mxu0 0
        %3018 = vmatpush1.bf16.xpose.msra.mxu0 %v3015
        %3019 = vmatprep.subr.bf16.mxu0 0
        %3020 = vmatpush1.bf16.xpose.msra.mxu0 0
        %3021 = vmatprep.subr.bf16.mxu0 0
        %3022 = vmatpush1.bf16.xpose.msra.mxu0 0
        %3023 = vmatprep.subr.bf16.mxu0 0
        %3024 = vmatpush1.bf16.xpose.msra.mxu0 0
        %3025 = vmatprep.subr.bf16.mxu0 0
        %3026 = vmatpush1.bf16.xpose.msra.mxu0 0
        %3027 = vmatprep.subr.bf16.mxu0 0
        %3028 = vmatpush1.bf16.xpose.msra.mxu0 0
        %3029 = vmatprep.subr.bf16.mxu0 0
        %3030 = vmatpush1.bf16.xpose.msra.mxu0 0
        %3031 = vmatprep.subr.bf16.mxu0 0
        %3032 = vmatpush1.bf16.xpose.msra.mxu0 0
        %3033 = vmatprep.subr.bf16.mxu0 0
        %3034 = vmatpush1.bf16.xpose.msra.mxu0 0
        %3035 = vmatprep.subr.bf16.mxu0 0
        %3036 = vmatpush1.bf16.xpose.msra.mxu0 0
        %3037 = vmatprep.subr.bf16.mxu0 0
        %3038 = vmatpush1.bf16.xpose.msra.mxu0 0
        %3039 = vmatprep.subr.bf16.mxu0 0
        %3040 = vmatpush1.bf16.xpose.msra.mxu0 0
        %3041 = vmatprep.subr.bf16.mxu0 0
        %3042 = vmatpush1.bf16.xpose.msra.mxu0 0
        %3043 = vmatprep.subr.bf16.mxu0 0
        %3044 = vmatpush1.bf16.xpose.msra.mxu0 0
        %3045 = vmatprep.subr.bf16.mxu0 0
        %3046 = vmatpush1.bf16.xpose.msra.mxu0 0
        %3047 = vmatprep.subr.bf16.mxu0 0
        %3048 = vmatpush1.bf16.xpose.msra.mxu0 0
        %3049 = vmatprep.mubr.bf16.mxu0 0
        %3050 = vmatmul.mubr.bf16.gmra.mrb[0].mxu0 %v3012
        %v3051 = vpop.f32.mrb[0].mxu0
        %v3052 = vadd.f32 0.0, %v3051
        %v3053 = vpop.f32.mrb[0].mxu0
        %v3054 = vpop.f32.mrb[0].mxu0
        %v3055 = vpop.f32.mrb[0].mxu0
        %3056 = vdwg.mxu0
        %v3058 = vsel %vm1914, %v2763, 0
        %v3061 = vsel %vm1914, %v2771, 0
        %3063 = vmatprep.subr.bf16.mxu0 0
        %3064 = vmatpush1.bf16.xpose.msra.mxu0 %v3061
        %3065 = vmatprep.subr.bf16.mxu0 0
        %3066 = vmatpush1.bf16.xpose.msra.mxu0 0
        %3067 = vmatprep.subr.bf16.mxu0 0
        %3068 = vmatpush1.bf16.xpose.msra.mxu0 0
        %3069 = vmatprep.subr.bf16.mxu0 0
        %3070 = vmatpush1.bf16.xpose.msra.mxu0 0
        %3071 = vmatprep.subr.bf16.mxu0 0
        %3072 = vmatpush1.bf16.xpose.msra.mxu0 0
        %3073 = vmatprep.subr.bf16.mxu0 0
        %3074 = vmatpush1.bf16.xpose.msra.mxu0 0
        %3075 = vmatprep.subr.bf16.mxu0 0
        %3076 = vmatpush1.bf16.xpose.msra.mxu0 0
        %3077 = vmatprep.subr.bf16.mxu0 0
        %3078 = vmatpush1.bf16.xpose.msra.mxu0 0
        %3079 = vmatprep.subr.bf16.mxu0 0
        %3080 = vmatpush1.bf16.xpose.msra.mxu0 0
        %3081 = vmatprep.subr.bf16.mxu0 0
        %3082 = vmatpush1.bf16.xpose.msra.mxu0 0
        %3083 = vmatprep.subr.bf16.mxu0 0
        %3084 = vmatpush1.bf16.xpose.msra.mxu0 0
        %3085 = vmatprep.subr.bf16.mxu0 0
        %3086 = vmatpush1.bf16.xpose.msra.mxu0 0
        %3087 = vmatprep.subr.bf16.mxu0 0
        %3088 = vmatpush1.bf16.xpose.msra.mxu0 0
        %3089 = vmatprep.subr.bf16.mxu0 0
        %3090 = vmatpush1.bf16.xpose.msra.mxu0 0
        %3091 = vmatprep.subr.bf16.mxu0 0
        %3092 = vmatpush1.bf16.xpose.msra.mxu0 0
        %3093 = vmatprep.subr.bf16.mxu0 0
        %3094 = vmatpush1.bf16.xpose.msra.mxu0 0
        %3095 = vmatprep.mubr.bf16.mxu0 0
        %3096 = vmatmul.mubr.bf16.gmra.mrb[0].mxu0 %v3058
        %v3097 = vpop.f32.mrb[0].mxu0
        %v3098 = vadd.f32 0.0, %v3097
        %v3099 = vpop.f32.mrb[0].mxu0
        %v3100 = vpop.f32.mrb[0].mxu0
        %v3101 = vpop.f32.mrb[0].mxu0
        %3102 = vdwg.mxu0
        %v3104 = vsel %vm1914, %v2764, 0
        %v3107 = vsel %vm1914, %v2772, 0
        %3109 = vmatprep.subr.bf16.mxu0 0
        %3110 = vmatpush1.bf16.xpose.msra.mxu0 %v3107
        %3111 = vmatprep.subr.bf16.mxu0 0
        %3112 = vmatpush1.bf16.xpose.msra.mxu0 0
        %3113 = vmatprep.subr.bf16.mxu0 0
        %3114 = vmatpush1.bf16.xpose.msra.mxu0 0
        %3115 = vmatprep.subr.bf16.mxu0 0
        %3116 = vmatpush1.bf16.xpose.msra.mxu0 0
        %3117 = vmatprep.subr.bf16.mxu0 0
        %3118 = vmatpush1.bf16.xpose.msra.mxu0 0
        %3119 = vmatprep.subr.bf16.mxu0 0
        %3120 = vmatpush1.bf16.xpose.msra.mxu0 0
        %3121 = vmatprep.subr.bf16.mxu0 0
        %3122 = vmatpush1.bf16.xpose.msra.mxu0 0
        %3123 = vmatprep.subr.bf16.mxu0 0
        %3124 = vmatpush1.bf16.xpose.msra.mxu0 0
        %3125 = vmatprep.subr.bf16.mxu0 0
        %3126 = vmatpush1.bf16.xpose.msra.mxu0 0
        %3127 = vmatprep.subr.bf16.mxu0 0
        %3128 = vmatpush1.bf16.xpose.msra.mxu0 0
        %3129 = vmatprep.subr.bf16.mxu0 0
        %3130 = vmatpush1.bf16.xpose.msra.mxu0 0
        %3131 = vmatprep.subr.bf16.mxu0 0
        %3132 = vmatpush1.bf16.xpose.msra.mxu0 0
        %3133 = vmatprep.subr.bf16.mxu0 0
        %3134 = vmatpush1.bf16.xpose.msra.mxu0 0
        %3135 = vmatprep.subr.bf16.mxu0 0
        %3136 = vmatpush1.bf16.xpose.msra.mxu0 0
        %3137 = vmatprep.subr.bf16.mxu0 0
        %3138 = vmatpush1.bf16.xpose.msra.mxu0 0
        %3139 = vmatprep.subr.bf16.mxu0 0
        %3140 = vmatpush1.bf16.xpose.msra.mxu0 0
        %3141 = vmatprep.mubr.bf16.mxu0 0
        %3142 = vmatmul.mubr.bf16.gmra.mrb[0].mxu0 %v3104
        %v3143 = vpop.f32.mrb[0].mxu0
        %v3144 = vadd.f32 0.0, %v3143
        %v3145 = vpop.f32.mrb[0].mxu0
        %v3146 = vpop.f32.mrb[0].mxu0
        %v3147 = vpop.f32.mrb[0].mxu0
        %3148 = vdwg.mxu0
        %v3149 = vmul.f32 %v2822, 0.5
        %v3150 = vmul.f32 %v2868, 0.5
        %v3151 = vmul.f32 %v2914, 0.5
        %v3152 = vmul.f32 %v2960, 0.5
        %v3153 = vmul.f32 %v3006, 0.5
        %v3154 = vmul.f32 %v3052, 0.5
        %v3155 = vmul.f32 %v3098, 0.5
        %v3156 = vmul.f32 %v3144, 0.5
        %v3157 = vsel %vm2291, %v3149, -inf
        %3158 = vmax.xlane.f32.xlu0 %v3157
        %v3159 = vpop.xlane.xlu0 %3158
        %v3160 = vsel %vm2291, %v3150, -inf
        %3161 = vmax.xlane.f32.xlu0 %v3160
        %v3162 = vpop.xlane.xlu0 %3161
        %v3163 = vsel %vm2291, %v3151, -inf
        %3164 = vmax.xlane.f32.xlu0 %v3163
        %v3165 = vpop.xlane.xlu0 %3164
        %v3166 = vsel %vm2291, %v3152, -inf
        %3167 = vmax.xlane.f32.xlu0 %v3166
        %v3168 = vpop.xlane.xlu0 %3167
        %v3169 = vsel %vm2291, %v3153, -inf
        %3170 = vmax.xlane.f32.xlu0 %v3169
        %v3171 = vpop.xlane.xlu0 %3170
        %v3172 = vsel %vm2291, %v3154, -inf
        %3173 = vmax.xlane.f32.xlu0 %v3172
        %v3174 = vpop.xlane.xlu0 %3173
        %v3175 = vsel %vm2291, %v3155, -inf
        %3176 = vmax.xlane.f32.xlu0 %v3175
        %v3177 = vpop.xlane.xlu0 %3176
        %v3178 = vsel %vm2291, %v3156, -inf
        %3179 = vmax.xlane.f32.xlu0 %v3178
        %v3180 = vpop.xlane.xlu0 %3179
        %v3181 = vsub.f32 %v3149, %v3159
        %v3182 = vsub.f32 %v3150, %v3162
        %v3183 = vsub.f32 %v3151, %v3165
        %v3184 = vsub.f32 %v3152, %v3168
        %v3185 = vsub.f32 %v3153, %v3171
        %v3186 = vsub.f32 %v3154, %v3174
        %v3187 = vsub.f32 %v3155, %v3177
        %v3188 = vsub.f32 %v3156, %v3180
        %v3189 = vmul.f32 %v3181, 1.442695
        %v3190 = vpow.pop %v3189
        %v3191 = vmul.f32 %v3182, 1.442695
        %v3192 = vpow.pop %v3191
        %v3193 = vmul.f32 %v3183, 1.442695
        %v3194 = vpow.pop %v3193
        %v3195 = vmul.f32 %v3184, 1.442695
        %v3196 = vpow.pop %v3195
        %v3197 = vmul.f32 %v3185, 1.442695
        %v3198 = vpow.pop %v3197
        %v3199 = vmul.f32 %v3186, 1.442695
        %v3200 = vpow.pop %v3199
        %v3201 = vmul.f32 %v3187, 1.442695
        %v3202 = vpow.pop %v3201
        %v3203 = vmul.f32 %v3188, 1.442695
        %v3204 = vpow.pop %v3203
        %v3205 = vsel %vm2291, %v3190, 0.0
        %3206 = vadd.xlane.f32.xlu0 %v3205
        %v3207 = vpop.xlane.xlu0 %3206
        %v3208 = vsel %vm2291, %v3192, 0.0
        %3209 = vadd.xlane.f32.xlu0 %v3208
        %v3210 = vpop.xlane.xlu0 %3209
        %v3211 = vsel %vm2291, %v3194, 0.0
        %3212 = vadd.xlane.f32.xlu0 %v3211
        %v3213 = vpop.xlane.xlu0 %3212
        %v3214 = vsel %vm2291, %v3196, 0.0
        %3215 = vadd.xlane.f32.xlu0 %v3214
        %v3216 = vpop.xlane.xlu0 %3215
        %v3217 = vsel %vm2291, %v3198, 0.0
        %3218 = vadd.xlane.f32.xlu0 %v3217
        %v3219 = vpop.xlane.xlu0 %3218
        %v3220 = vsel %vm2291, %v3200, 0.0
        %3221 = vadd.xlane.f32.xlu0 %v3220
        %v3222 = vpop.xlane.xlu0 %3221
        %v3223 = vsel %vm2291, %v3202, 0.0
        %3224 = vadd.xlane.f32.xlu0 %v3223
        %v3225 = vpop.xlane.xlu0 %3224
        %v3226 = vsel %vm2291, %v3204, 0.0
        %3227 = vadd.xlane.f32.xlu0 %v3226
        %v3228 = vpop.xlane.xlu0 %3227
        %v3229 = vrcp.pop %v3207
        %v3230 = vrcp.pop %v3210
        %v3231 = vrcp.pop %v3213
        %v3232 = vrcp.pop %v3216
        %v3233 = vrcp.pop %v3219
        %v3234 = vrcp.pop %v3222
        %v3235 = vrcp.pop %v3225
        %v3236 = vrcp.pop %v3228
        %v3237 = vmul.f32 %v3190, %v3229
        %v3238 = vmul.f32 %v3192, %v3230
        %v3239 = vmul.f32 %v3194, %v3231
        %v3240 = vmul.f32 %v3196, %v3232
        %v3241 = vmul.f32 %v3198, %v3233
        %v3242 = vmul.f32 %v3200, %v3234
        %v3243 = vmul.f32 %v3202, %v3235
        %v3244 = vmul.f32 %v3204, %v3236
        %v3245 = vpack.c.bf16 %v3237, %v3237
        %v3246 = vpack.c.bf16 %v3238, %v3238
        %v3247 = vpack.c.bf16 %v3239, %v3239
        %v3248 = vpack.c.bf16 %v3240, %v3240
        %v3249 = vpack.c.bf16 %v3241, %v3241
        %v3250 = vpack.c.bf16 %v3242, %v3242
        %v3251 = vpack.c.bf16 %v3243, %v3243
        %v3252 = vpack.c.bf16 %v3244, %v3244
        %v3254 = vsel %vm2291, %v3245, 0
        %v3257 = vsel %vm2391, %v2773, 0
        %3259 = vmatprep.subr.bf16.mxu0 0
        %3260 = vmatpush1.bf16.msra.mxu0 %v3257
        %3261 = vmatprep.subr.bf16.mxu0 0
        %3262 = vmatpush1.bf16.msra.mxu0 0
        %3263 = vmatprep.subr.bf16.mxu0 0
        %3264 = vmatpush1.bf16.msra.mxu0 0
        %3265 = vmatprep.subr.bf16.mxu0 0
        %3266 = vmatpush1.bf16.msra.mxu0 0
        %3267 = vmatprep.subr.bf16.mxu0 0
        %3268 = vmatpush1.bf16.msra.mxu0 0
        %3269 = vmatprep.subr.bf16.mxu0 0
        %3270 = vmatpush1.bf16.msra.mxu0 0
        %3271 = vmatprep.subr.bf16.mxu0 0
        %3272 = vmatpush1.bf16.msra.mxu0 0
        %3273 = vmatprep.subr.bf16.mxu0 0
        %3274 = vmatpush1.bf16.msra.mxu0 0
        %3275 = vmatprep.subr.bf16.mxu0 0
        %3276 = vmatpush1.bf16.msra.mxu0 0
        %3277 = vmatprep.subr.bf16.mxu0 0
        %3278 = vmatpush1.bf16.msra.mxu0 0
        %3279 = vmatprep.subr.bf16.mxu0 0
        %3280 = vmatpush1.bf16.msra.mxu0 0
        %3281 = vmatprep.subr.bf16.mxu0 0
        %3282 = vmatpush1.bf16.msra.mxu0 0
        %3283 = vmatprep.subr.bf16.mxu0 0
        %3284 = vmatpush1.bf16.msra.mxu0 0
        %3285 = vmatprep.subr.bf16.mxu0 0
        %3286 = vmatpush1.bf16.msra.mxu0 0
        %3287 = vmatprep.subr.bf16.mxu0 0
        %3288 = vmatpush1.bf16.msra.mxu0 0
        %3289 = vmatprep.subr.bf16.mxu0 0
        %3290 = vmatpush1.bf16.msra.mxu0 0
        %3291 = vmatprep.mubr.bf16.mxu0 0
        %3292 = vmatmul.mubr.bf16.gmra.mrb[0].mxu0 %v3254
        %v3293 = vpop.f32.mrb[0].mxu0
        %v3294 = vadd.f32 0.0, %v3293
        %v3295 = vpop.f32.mrb[0].mxu0
        %v3296 = vpop.f32.mrb[0].mxu0
        %v3297 = vpop.f32.mrb[0].mxu0
        %3298 = vdwg.mxu0
        %v3300 = vsel %vm2291, %v3246, 0
        %v3303 = vsel %vm2391, %v2774, 0
        %3305 = vmatprep.subr.bf16.mxu0 0
        %3306 = vmatpush1.bf16.msra.mxu0 %v3303
        %3307 = vmatprep.subr.bf16.mxu0 0
        %3308 = vmatpush1.bf16.msra.mxu0 0
        %3309 = vmatprep.subr.bf16.mxu0 0
        %3310 = vmatpush1.bf16.msra.mxu0 0
        %3311 = vmatprep.subr.bf16.mxu0 0
        %3312 = vmatpush1.bf16.msra.mxu0 0
        %3313 = vmatprep.subr.bf16.mxu0 0
        %3314 = vmatpush1.bf16.msra.mxu0 0
        %3315 = vmatprep.subr.bf16.mxu0 0
        %3316 = vmatpush1.bf16.msra.mxu0 0
        %3317 = vmatprep.subr.bf16.mxu0 0
        %3318 = vmatpush1.bf16.msra.mxu0 0
        %3319 = vmatprep.subr.bf16.mxu0 0
        %3320 = vmatpush1.bf16.msra.mxu0 0
        %3321 = vmatprep.subr.bf16.mxu0 0
        %3322 = vmatpush1.bf16.msra.mxu0 0
        %3323 = vmatprep.subr.bf16.mxu0 0
        %3324 = vmatpush1.bf16.msra.mxu0 0
        %3325 = vmatprep.subr.bf16.mxu0 0
        %3326 = vmatpush1.bf16.msra.mxu0 0
        %3327 = vmatprep.subr.bf16.mxu0 0
        %3328 = vmatpush1.bf16.msra.mxu0 0
        %3329 = vmatprep.subr.bf16.mxu0 0
        %3330 = vmatpush1.bf16.msra.mxu0 0
        %3331 = vmatprep.subr.bf16.mxu0 0
        %3332 = vmatpush1.bf16.msra.mxu0 0
        %3333 = vmatprep.subr.bf16.mxu0 0
        %3334 = vmatpush1.bf16.msra.mxu0 0
        %3335 = vmatprep.subr.bf16.mxu0 0
        %3336 = vmatpush1.bf16.msra.mxu0 0
        %3337 = vmatprep.mubr.bf16.mxu0 0
        %3338 = vmatmul.mubr.bf16.gmra.mrb[0].mxu0 %v3300
        %v3339 = vpop.f32.mrb[0].mxu0
        %v3340 = vadd.f32 0.0, %v3339
        %v3341 = vpop.f32.mrb[0].mxu0
        %v3342 = vpop.f32.mrb[0].mxu0
        %v3343 = vpop.f32.mrb[0].mxu0
        %3344 = vdwg.mxu0
        %v3346 = vsel %vm2291, %v3247, 0
        %v3349 = vsel %vm2391, %v2775, 0
        %3351 = vmatprep.subr.bf16.mxu0 0
        %3352 = vmatpush1.bf16.msra.mxu0 %v3349
        %3353 = vmatprep.subr.bf16.mxu0 0
        %3354 = vmatpush1.bf16.msra.mxu0 0
        %3355 = vmatprep.subr.bf16.mxu0 0
        %3356 = vmatpush1.bf16.msra.mxu0 0
        %3357 = vmatprep.subr.bf16.mxu0 0
        %3358 = vmatpush1.bf16.msra.mxu0 0
        %3359 = vmatprep.subr.bf16.mxu0 0
        %3360 = vmatpush1.bf16.msra.mxu0 0
        %3361 = vmatprep.subr.bf16.mxu0 0
        %3362 = vmatpush1.bf16.msra.mxu0 0
        %3363 = vmatprep.subr.bf16.mxu0 0
        %3364 = vmatpush1.bf16.msra.mxu0 0
        %3365 = vmatprep.subr.bf16.mxu0 0
        %3366 = vmatpush1.bf16.msra.mxu0 0
        %3367 = vmatprep.subr.bf16.mxu0 0
        %3368 = vmatpush1.bf16.msra.mxu0 0
        %3369 = vmatprep.subr.bf16.mxu0 0
        %3370 = vmatpush1.bf16.msra.mxu0 0
        %3371 = vmatprep.subr.bf16.mxu0 0
        %3372 = vmatpush1.bf16.msra.mxu0 0
        %3373 = vmatprep.subr.bf16.mxu0 0
        %3374 = vmatpush1.bf16.msra.mxu0 0
        %3375 = vmatprep.subr.bf16.mxu0 0
        %3376 = vmatpush1.bf16.msra.mxu0 0
        %3377 = vmatprep.subr.bf16.mxu0 0
        %3378 = vmatpush1.bf16.msra.mxu0 0
        %3379 = vmatprep.subr.bf16.mxu0 0
        %3380 = vmatpush1.bf16.msra.mxu0 0
        %3381 = vmatprep.subr.bf16.mxu0 0
        %3382 = vmatpush1.bf16.msra.mxu0 0
        %3383 = vmatprep.mubr.bf16.mxu0 0
        %3384 = vmatmul.mubr.bf16.gmra.mrb[0].mxu0 %v3346
        %v3385 = vpop.f32.mrb[0].mxu0
        %v3386 = vadd.f32 0.0, %v3385
        %v3387 = vpop.f32.mrb[0].mxu0
        %v3388 = vpop.f32.mrb[0].mxu0
        %v3389 = vpop.f32.mrb[0].mxu0
        %3390 = vdwg.mxu0
        %v3392 = vsel %vm2291, %v3248, 0
        %v3395 = vsel %vm2391, %v2776, 0
        %3397 = vmatprep.subr.bf16.mxu0 0
        %3398 = vmatpush1.bf16.msra.mxu0 %v3395
        %3399 = vmatprep.subr.bf16.mxu0 0
        %3400 = vmatpush1.bf16.msra.mxu0 0
        %3401 = vmatprep.subr.bf16.mxu0 0
        %3402 = vmatpush1.bf16.msra.mxu0 0
        %3403 = vmatprep.subr.bf16.mxu0 0
        %3404 = vmatpush1.bf16.msra.mxu0 0
        %3405 = vmatprep.subr.bf16.mxu0 0
        %3406 = vmatpush1.bf16.msra.mxu0 0
        %3407 = vmatprep.subr.bf16.mxu0 0
        %3408 = vmatpush1.bf16.msra.mxu0 0
        %3409 = vmatprep.subr.bf16.mxu0 0
        %3410 = vmatpush1.bf16.msra.mxu0 0
        %3411 = vmatprep.subr.bf16.mxu0 0
        %3412 = vmatpush1.bf16.msra.mxu0 0
        %3413 = vmatprep.subr.bf16.mxu0 0
        %3414 = vmatpush1.bf16.msra.mxu0 0
        %3415 = vmatprep.subr.bf16.mxu0 0
        %3416 = vmatpush1.bf16.msra.mxu0 0
        %3417 = vmatprep.subr.bf16.mxu0 0
        %3418 = vmatpush1.bf16.msra.mxu0 0
        %3419 = vmatprep.subr.bf16.mxu0 0
        %3420 = vmatpush1.bf16.msra.mxu0 0
        %3421 = vmatprep.subr.bf16.mxu0 0
        %3422 = vmatpush1.bf16.msra.mxu0 0
        %3423 = vmatprep.subr.bf16.mxu0 0
        %3424 = vmatpush1.bf16.msra.mxu0 0
        %3425 = vmatprep.subr.bf16.mxu0 0
        %3426 = vmatpush1.bf16.msra.mxu0 0
        %3427 = vmatprep.subr.bf16.mxu0 0
        %3428 = vmatpush1.bf16.msra.mxu0 0
        %3429 = vmatprep.mubr.bf16.mxu0 0
        %3430 = vmatmul.mubr.bf16.gmra.mrb[0].mxu0 %v3392
        %v3431 = vpop.f32.mrb[0].mxu0
        %v3432 = vadd.f32 0.0, %v3431
        %v3433 = vpop.f32.mrb[0].mxu0
        %v3434 = vpop.f32.mrb[0].mxu0
        %v3435 = vpop.f32.mrb[0].mxu0
        %3436 = vdwg.mxu0
        %v3438 = vsel %vm2291, %v3249, 0
        %v3441 = vsel %vm2391, %v2777, 0
        %3443 = vmatprep.subr.bf16.mxu0 0
        %3444 = vmatpush1.bf16.msra.mxu0 %v3441
        %3445 = vmatprep.subr.bf16.mxu0 0
        %3446 = vmatpush1.bf16.msra.mxu0 0
        %3447 = vmatprep.subr.bf16.mxu0 0
        %3448 = vmatpush1.bf16.msra.mxu0 0
        %3449 = vmatprep.subr.bf16.mxu0 0
        %3450 = vmatpush1.bf16.msra.mxu0 0
        %3451 = vmatprep.subr.bf16.mxu0 0
        %3452 = vmatpush1.bf16.msra.mxu0 0
        %3453 = vmatprep.subr.bf16.mxu0 0
        %3454 = vmatpush1.bf16.msra.mxu0 0
        %3455 = vmatprep.subr.bf16.mxu0 0
        %3456 = vmatpush1.bf16.msra.mxu0 0
        %3457 = vmatprep.subr.bf16.mxu0 0
        %3458 = vmatpush1.bf16.msra.mxu0 0
        %3459 = vmatprep.subr.bf16.mxu0 0
        %3460 = vmatpush1.bf16.msra.mxu0 0
        %3461 = vmatprep.subr.bf16.mxu0 0
        %3462 = vmatpush1.bf16.msra.mxu0 0
        %3463 = vmatprep.subr.bf16.mxu0 0
        %3464 = vmatpush1.bf16.msra.mxu0 0
        %3465 = vmatprep.subr.bf16.mxu0 0
        %3466 = vmatpush1.bf16.msra.mxu0 0
        %3467 = vmatprep.subr.bf16.mxu0 0
        %3468 = vmatpush1.bf16.msra.mxu0 0
        %3469 = vmatprep.subr.bf16.mxu0 0
        %3470 = vmatpush1.bf16.msra.mxu0 0
        %3471 = vmatprep.subr.bf16.mxu0 0
        %3472 = vmatpush1.bf16.msra.mxu0 0
        %3473 = vmatprep.subr.bf16.mxu0 0
        %3474 = vmatpush1.bf16.msra.mxu0 0
        %3475 = vmatprep.mubr.bf16.mxu0 0
        %3476 = vmatmul.mubr.bf16.gmra.mrb[0].mxu0 %v3438
        %v3477 = vpop.f32.mrb[0].mxu0
        %v3478 = vadd.f32 0.0, %v3477
        %v3479 = vpop.f32.mrb[0].mxu0
        %v3480 = vpop.f32.mrb[0].mxu0
        %v3481 = vpop.f32.mrb[0].mxu0
        %3482 = vdwg.mxu0
        %v3484 = vsel %vm2291, %v3250, 0
        %v3487 = vsel %vm2391, %v2778, 0
        %3489 = vmatprep.subr.bf16.mxu0 0
        %3490 = vmatpush1.bf16.msra.mxu0 %v3487
        %3491 = vmatprep.subr.bf16.mxu0 0
        %3492 = vmatpush1.bf16.msra.mxu0 0
        %3493 = vmatprep.subr.bf16.mxu0 0
        %3494 = vmatpush1.bf16.msra.mxu0 0
        %3495 = vmatprep.subr.bf16.mxu0 0
        %3496 = vmatpush1.bf16.msra.mxu0 0
        %3497 = vmatprep.subr.bf16.mxu0 0
        %3498 = vmatpush1.bf16.msra.mxu0 0
        %3499 = vmatprep.subr.bf16.mxu0 0
        %3500 = vmatpush1.bf16.msra.mxu0 0
        %3501 = vmatprep.subr.bf16.mxu0 0
        %3502 = vmatpush1.bf16.msra.mxu0 0
        %3503 = vmatprep.subr.bf16.mxu0 0
        %3504 = vmatpush1.bf16.msra.mxu0 0
        %3505 = vmatprep.subr.bf16.mxu0 0
        %3506 = vmatpush1.bf16.msra.mxu0 0
        %3507 = vmatprep.subr.bf16.mxu0 0
        %3508 = vmatpush1.bf16.msra.mxu0 0
        %3509 = vmatprep.subr.bf16.mxu0 0
        %3510 = vmatpush1.bf16.msra.mxu0 0
        %3511 = vmatprep.subr.bf16.mxu0 0
        %3512 = vmatpush1.bf16.msra.mxu0 0
        %3513 = vmatprep.subr.bf16.mxu0 0
        %3514 = vmatpush1.bf16.msra.mxu0 0
        %3515 = vmatprep.subr.bf16.mxu0 0
        %3516 = vmatpush1.bf16.msra.mxu0 0
        %3517 = vmatprep.subr.bf16.mxu0 0
        %3518 = vmatpush1.bf16.msra.mxu0 0
        %3519 = vmatprep.subr.bf16.mxu0 0
        %3520 = vmatpush1.bf16.msra.mxu0 0
        %3521 = vmatprep.mubr.bf16.mxu0 0
        %3522 = vmatmul.mubr.bf16.gmra.mrb[0].mxu0 %v3484
        %v3523 = vpop.f32.mrb[0].mxu0
        %v3524 = vadd.f32 0.0, %v3523
        %v3525 = vpop.f32.mrb[0].mxu0
        %v3526 = vpop.f32.mrb[0].mxu0
        %v3527 = vpop.f32.mrb[0].mxu0
        %3528 = vdwg.mxu0
        %v3530 = vsel %vm2291, %v3251, 0
        %v3533 = vsel %vm2391, %v2779, 0
        %3535 = vmatprep.subr.bf16.mxu0 0
        %3536 = vmatpush1.bf16.msra.mxu0 %v3533
        %3537 = vmatprep.subr.bf16.mxu0 0
        %3538 = vmatpush1.bf16.msra.mxu0 0
        %3539 = vmatprep.subr.bf16.mxu0 0
        %3540 = vmatpush1.bf16.msra.mxu0 0
        %3541 = vmatprep.subr.bf16.mxu0 0
        %3542 = vmatpush1.bf16.msra.mxu0 0
        %3543 = vmatprep.subr.bf16.mxu0 0
        %3544 = vmatpush1.bf16.msra.mxu0 0
        %3545 = vmatprep.subr.bf16.mxu0 0
        %3546 = vmatpush1.bf16.msra.mxu0 0
        %3547 = vmatprep.subr.bf16.mxu0 0
        %3548 = vmatpush1.bf16.msra.mxu0 0
        %3549 = vmatprep.subr.bf16.mxu0 0
        %3550 = vmatpush1.bf16.msra.mxu0 0
        %3551 = vmatprep.subr.bf16.mxu0 0
        %3552 = vmatpush1.bf16.msra.mxu0 0
        %3553 = vmatprep.subr.bf16.mxu0 0
        %3554 = vmatpush1.bf16.msra.mxu0 0
        %3555 = vmatprep.subr.bf16.mxu0 0
        %3556 = vmatpush1.bf16.msra.mxu0 0
        %3557 = vmatprep.subr.bf16.mxu0 0
        %3558 = vmatpush1.bf16.msra.mxu0 0
        %3559 = vmatprep.subr.bf16.mxu0 0
        %3560 = vmatpush1.bf16.msra.mxu0 0
        %3561 = vmatprep.subr.bf16.mxu0 0
        %3562 = vmatpush1.bf16.msra.mxu0 0
        %3563 = vmatprep.subr.bf16.mxu0 0
        %3564 = vmatpush1.bf16.msra.mxu0 0
        %3565 = vmatprep.subr.bf16.mxu0 0
        %3566 = vmatpush1.bf16.msra.mxu0 0
        %3567 = vmatprep.mubr.bf16.mxu0 0
        %3568 = vmatmul.mubr.bf16.gmra.mrb[0].mxu0 %v3530
        %v3569 = vpop.f32.mrb[0].mxu0
        %v3570 = vadd.f32 0.0, %v3569
        %v3571 = vpop.f32.mrb[0].mxu0
        %v3572 = vpop.f32.mrb[0].mxu0
        %v3573 = vpop.f32.mrb[0].mxu0
        %3574 = vdwg.mxu0
        %v3576 = vsel %vm2291, %v3252, 0
        %v3579 = vsel %vm2391, %v2780, 0
        %3581 = vmatprep.subr.bf16.mxu0 0
        %3582 = vmatpush1.bf16.msra.mxu0 %v3579
        %3583 = vmatprep.subr.bf16.mxu0 0
        %3584 = vmatpush1.bf16.msra.mxu0 0
        %3585 = vmatprep.subr.bf16.mxu0 0
        %3586 = vmatpush1.bf16.msra.mxu0 0
        %3587 = vmatprep.subr.bf16.mxu0 0
        %3588 = vmatpush1.bf16.msra.mxu0 0
        %3589 = vmatprep.subr.bf16.mxu0 0
        %3590 = vmatpush1.bf16.msra.mxu0 0
        %3591 = vmatprep.subr.bf16.mxu0 0
        %3592 = vmatpush1.bf16.msra.mxu0 0
        %3593 = vmatprep.subr.bf16.mxu0 0
        %3594 = vmatpush1.bf16.msra.mxu0 0
        %3595 = vmatprep.subr.bf16.mxu0 0
        %3596 = vmatpush1.bf16.msra.mxu0 0
        %3597 = vmatprep.subr.bf16.mxu0 0
        %3598 = vmatpush1.bf16.msra.mxu0 0
        %3599 = vmatprep.subr.bf16.mxu0 0
        %3600 = vmatpush1.bf16.msra.mxu0 0
        %3601 = vmatprep.subr.bf16.mxu0 0
        %3602 = vmatpush1.bf16.msra.mxu0 0
        %3603 = vmatprep.subr.bf16.mxu0 0
        %3604 = vmatpush1.bf16.msra.mxu0 0
        %3605 = vmatprep.subr.bf16.mxu0 0
        %3606 = vmatpush1.bf16.msra.mxu0 0
        %3607 = vmatprep.subr.bf16.mxu0 0
        %3608 = vmatpush1.bf16.msra.mxu0 0
        %3609 = vmatprep.subr.bf16.mxu0 0
        %3610 = vmatpush1.bf16.msra.mxu0 0
        %3611 = vmatprep.subr.bf16.mxu0 0
        %3612 = vmatpush1.bf16.msra.mxu0 0
        %3613 = vmatprep.mubr.bf16.mxu0 0
        %3614 = vmatmul.mubr.bf16.gmra.mrb[0].mxu0 %v3576
        %v3615 = vpop.f32.mrb[0].mxu0
        %v3616 = vadd.f32 0.0, %v3615
        %v3617 = vpop.f32.mrb[0].mxu0
        %v3618 = vpop.f32.mrb[0].mxu0
        %v3619 = vpop.f32.mrb[0].mxu0
        %3620 = vdwg.mxu0
        %v3621 = vpack.c.bf16 %v3294, %v2430
        %v3622 = vpack.c.bf16 %v3340, %v2476
        %v3623 = vpack.c.bf16 %v3386, %v2522
        %v3624 = vpack.c.bf16 %v3432, %v2568
        %v3625 = vpack.c.bf16 %v3478, %v2614
        %v3626 = vpack.c.bf16 %v3524, %v2660
        %v3627 = vpack.c.bf16 %v3570, %v2706
        %v3628 = vpack.c.bf16 %v3616, %v2752
        %v3629 = vld [vmem:[%s6] sm:$0x3]
        %v3630 = vld [vmem:[%s6 + $0x2] sm:$0x3]
        %v3631 = vld [vmem:[%s6 + $0x4] sm:$0x3]
        %v3632 = vld [vmem:[%s6 + $0x6] sm:$0x3]
        %v3633 = vld [vmem:[%s6 + $0x8] sm:$0x3]
        %v3634 = vld [vmem:[%s6 + $0xa] sm:$0x3]
        %v3635 = vld [vmem:[%s6 + $0xc] sm:$0x3]
        %v3636 = vld [vmem:[%s6 + $0xe] sm:$0x3]
        %v3638 = vsel %vm1914, %v3621, 0
        %vm3640 = vcmask 1041408
        %v3642 = vsel %vm3640, %v3629, 0
        %3644 = vmatprep.subr.bf16.mxu0 0
        %3645 = vmatpush1.bf16.msra.mxu0 %v3642
        %3646 = vmatprep.subr.bf16.mxu0 0
        %3647 = vmatpush1.bf16.msra.mxu0 0
        %3648 = vmatprep.subr.bf16.mxu0 0
        %3649 = vmatpush1.bf16.msra.mxu0 0
        %3650 = vmatprep.subr.bf16.mxu0 0
        %3651 = vmatpush1.bf16.msra.mxu0 0
        %3652 = vmatprep.subr.bf16.mxu0 0
        %3653 = vmatpush1.bf16.msra.mxu0 0
        %3654 = vmatprep.subr.bf16.mxu0 0
        %3655 = vmatpush1.bf16.msra.mxu0 0
        %3656 = vmatprep.subr.bf16.mxu0 0
        %3657 = vmatpush1.bf16.msra.mxu0 0
        %3658 = vmatprep.subr.bf16.mxu0 0
        %3659 = vmatpush1.bf16.msra.mxu0 0
        %3660 = vmatprep.subr.bf16.mxu0 0
        %3661 = vmatpush1.bf16.msra.mxu0 0
        %3662 = vmatprep.subr.bf16.mxu0 0
        %3663 = vmatpush1.bf16.msra.mxu0 0
        %3664 = vmatprep.subr.bf16.mxu0 0
        %3665 = vmatpush1.bf16.msra.mxu0 0
        %3666 = vmatprep.subr.bf16.mxu0 0
        %3667 = vmatpush1.bf16.msra.mxu0 0
        %3668 = vmatprep.subr.bf16.mxu0 0
        %3669 = vmatpush1.bf16.msra.mxu0 0
        %3670 = vmatprep.subr.bf16.mxu0 0
        %3671 = vmatpush1.bf16.msra.mxu0 0
        %3672 = vmatprep.subr.bf16.mxu0 0
        %3673 = vmatpush1.bf16.msra.mxu0 0
        %3674 = vmatprep.subr.bf16.mxu0 0
        %3675 = vmatpush1.bf16.msra.mxu0 0
        %3676 = vmatprep.mubr.bf16.mxu0 0
        %3677 = vmatmul.mubr.bf16.gmra.mrb[0].mxu0 %v3638
        %v3678 = vpop.f32.mrb[0].mxu0
        %v3679 = vadd.f32 0.0, %v3678
        %v3680 = vpop.f32.mrb[0].mxu0
        %v3681 = vpop.f32.mrb[0].mxu0
        %v3682 = vadd.f32 0.0, %v3681
        %v3683 = vpop.f32.mrb[0].mxu0
        %3684 = vdwg.mxu0
        %v3686 = vsel %vm1914, %v3622, 0
        %v3689 = vsel %vm3640, %v3630, 0
        %3691 = vmatprep.subr.bf16.mxu0 0
        %3692 = vmatpush1.bf16.msra.mxu0 %v3689
        %3693 = vmatprep.subr.bf16.mxu0 0
        %3694 = vmatpush1.bf16.msra.mxu0 0
        %3695 = vmatprep.subr.bf16.mxu0 0
        %3696 = vmatpush1.bf16.msra.mxu0 0
        %3697 = vmatprep.subr.bf16.mxu0 0
        %3698 = vmatpush1.bf16.msra.mxu0 0
        %3699 = vmatprep.subr.bf16.mxu0 0
        %3700 = vmatpush1.bf16.msra.mxu0 0
        %3701 = vmatprep.subr.bf16.mxu0 0
        %3702 = vmatpush1.bf16.msra.mxu0 0
        %3703 = vmatprep.subr.bf16.mxu0 0
        %3704 = vmatpush1.bf16.msra.mxu0 0
        %3705 = vmatprep.subr.bf16.mxu0 0
        %3706 = vmatpush1.bf16.msra.mxu0 0
        %3707 = vmatprep.subr.bf16.mxu0 0
        %3708 = vmatpush1.bf16.msra.mxu0 0
        %3709 = vmatprep.subr.bf16.mxu0 0
        %3710 = vmatpush1.bf16.msra.mxu0 0
        %3711 = vmatprep.subr.bf16.mxu0 0
        %3712 = vmatpush1.bf16.msra.mxu0 0
        %3713 = vmatprep.subr.bf16.mxu0 0
        %3714 = vmatpush1.bf16.msra.mxu0 0
        %3715 = vmatprep.subr.bf16.mxu0 0
        %3716 = vmatpush1.bf16.msra.mxu0 0
        %3717 = vmatprep.subr.bf16.mxu0 0
        %3718 = vmatpush1.bf16.msra.mxu0 0
        %3719 = vmatprep.subr.bf16.mxu0 0
        %3720 = vmatpush1.bf16.msra.mxu0 0
        %3721 = vmatprep.subr.bf16.mxu0 0
        %3722 = vmatpush1.bf16.msra.mxu0 0
        %3723 = vmatprep.mubr.bf16.mxu0 0
        %3724 = vmatmul.mubr.bf16.gmra.mrb[0].mxu0 %v3686
        %v3725 = vpop.f32.mrb[0].mxu0
        %v3726 = vadd.f32 0.0, %v3725
        %v3727 = vpop.f32.mrb[0].mxu0
        %v3728 = vpop.f32.mrb[0].mxu0
        %v3729 = vadd.f32 0.0, %v3728
        %v3730 = vpop.f32.mrb[0].mxu0
        %3731 = vdwg.mxu0
        %v3733 = vsel %vm1914, %v3623, 0
        %v3736 = vsel %vm3640, %v3631, 0
        %3738 = vmatprep.subr.bf16.mxu0 0
        %3739 = vmatpush1.bf16.msra.mxu0 %v3736
        %3740 = vmatprep.subr.bf16.mxu0 0
        %3741 = vmatpush1.bf16.msra.mxu0 0
        %3742 = vmatprep.subr.bf16.mxu0 0
        %3743 = vmatpush1.bf16.msra.mxu0 0
        %3744 = vmatprep.subr.bf16.mxu0 0
        %3745 = vmatpush1.bf16.msra.mxu0 0
        %3746 = vmatprep.subr.bf16.mxu0 0
        %3747 = vmatpush1.bf16.msra.mxu0 0
        %3748 = vmatprep.subr.bf16.mxu0 0
        %3749 = vmatpush1.bf16.msra.mxu0 0
        %3750 = vmatprep.subr.bf16.mxu0 0
        %3751 = vmatpush1.bf16.msra.mxu0 0
        %3752 = vmatprep.subr.bf16.mxu0 0
        %3753 = vmatpush1.bf16.msra.mxu0 0
        %3754 = vmatprep.subr.bf16.mxu0 0
        %3755 = vmatpush1.bf16.msra.mxu0 0
        %3756 = vmatprep.subr.bf16.mxu0 0
        %3757 = vmatpush1.bf16.msra.mxu0 0
        %3758 = vmatprep.subr.bf16.mxu0 0
        %3759 = vmatpush1.bf16.msra.mxu0 0
        %3760 = vmatprep.subr.bf16.mxu0 0
        %3761 = vmatpush1.bf16.msra.mxu0 0
        %3762 = vmatprep.subr.bf16.mxu0 0
        %3763 = vmatpush1.bf16.msra.mxu0 0
        %3764 = vmatprep.subr.bf16.mxu0 0
        %3765 = vmatpush1.bf16.msra.mxu0 0
        %3766 = vmatprep.subr.bf16.mxu0 0
        %3767 = vmatpush1.bf16.msra.mxu0 0
        %3768 = vmatprep.subr.bf16.mxu0 0
        %3769 = vmatpush1.bf16.msra.mxu0 0
        %3770 = vmatprep.mubr.bf16.mxu0 0
        %3771 = vmatmul.mubr.bf16.gmra.mrb[0].mxu0 %v3733
        %v3772 = vpop.f32.mrb[0].mxu0
        %v3773 = vadd.f32 0.0, %v3772
        %v3774 = vpop.f32.mrb[0].mxu0
        %v3775 = vpop.f32.mrb[0].mxu0
        %v3776 = vadd.f32 0.0, %v3775
        %v3777 = vpop.f32.mrb[0].mxu0
        %3778 = vdwg.mxu0
        %v3780 = vsel %vm1914, %v3624, 0
        %v3783 = vsel %vm3640, %v3632, 0
        %3785 = vmatprep.subr.bf16.mxu0 0
        %3786 = vmatpush1.bf16.msra.mxu0 %v3783
        %3787 = vmatprep.subr.bf16.mxu0 0
        %3788 = vmatpush1.bf16.msra.mxu0 0
        %3789 = vmatprep.subr.bf16.mxu0 0
        %3790 = vmatpush1.bf16.msra.mxu0 0
        %3791 = vmatprep.subr.bf16.mxu0 0
        %3792 = vmatpush1.bf16.msra.mxu0 0
        %3793 = vmatprep.subr.bf16.mxu0 0
        %3794 = vmatpush1.bf16.msra.mxu0 0
        %3795 = vmatprep.subr.bf16.mxu0 0
        %3796 = vmatpush1.bf16.msra.mxu0 0
        %3797 = vmatprep.subr.bf16.mxu0 0
        %3798 = vmatpush1.bf16.msra.mxu0 0
        %3799 = vmatprep.subr.bf16.mxu0 0
        %3800 = vmatpush1.bf16.msra.mxu0 0
        %3801 = vmatprep.subr.bf16.mxu0 0
        %3802 = vmatpush1.bf16.msra.mxu0 0
        %3803 = vmatprep.subr.bf16.mxu0 0
        %3804 = vmatpush1.bf16.msra.mxu0 0
        %3805 = vmatprep.subr.bf16.mxu0 0
        %3806 = vmatpush1.bf16.msra.mxu0 0
        %3807 = vmatprep.subr.bf16.mxu0 0
        %3808 = vmatpush1.bf16.msra.mxu0 0
        %3809 = vmatprep.subr.bf16.mxu0 0
        %3810 = vmatpush1.bf16.msra.mxu0 0
        %3811 = vmatprep.subr.bf16.mxu0 0
        %3812 = vmatpush1.bf16.msra.mxu0 0
        %3813 = vmatprep.subr.bf16.mxu0 0
        %3814 = vmatpush1.bf16.msra.mxu0 0
        %3815 = vmatprep.subr.bf16.mxu0 0
        %3816 = vmatpush1.bf16.msra.mxu0 0
        %3817 = vmatprep.mubr.bf16.mxu0 0
        %3818 = vmatmul.mubr.bf16.gmra.mrb[0].mxu0 %v3780
        %v3819 = vpop.f32.mrb[0].mxu0
        %v3820 = vadd.f32 0.0, %v3819
        %v3821 = vpop.f32.mrb[0].mxu0
        %v3822 = vpop.f32.mrb[0].mxu0
        %v3823 = vadd.f32 0.0, %v3822
        %v3824 = vpop.f32.mrb[0].mxu0
        %3825 = vdwg.mxu0
        %v3827 = vsel %vm1914, %v3625, 0
        %v3830 = vsel %vm3640, %v3633, 0
        %3832 = vmatprep.subr.bf16.mxu0 0
        %3833 = vmatpush1.bf16.msra.mxu0 %v3830
        %3834 = vmatprep.subr.bf16.mxu0 0
        %3835 = vmatpush1.bf16.msra.mxu0 0
        %3836 = vmatprep.subr.bf16.mxu0 0
        %3837 = vmatpush1.bf16.msra.mxu0 0
        %3838 = vmatprep.subr.bf16.mxu0 0
        %3839 = vmatpush1.bf16.msra.mxu0 0
        %3840 = vmatprep.subr.bf16.mxu0 0
        %3841 = vmatpush1.bf16.msra.mxu0 0
        %3842 = vmatprep.subr.bf16.mxu0 0
        %3843 = vmatpush1.bf16.msra.mxu0 0
        %3844 = vmatprep.subr.bf16.mxu0 0
        %3845 = vmatpush1.bf16.msra.mxu0 0
        %3846 = vmatprep.subr.bf16.mxu0 0
        %3847 = vmatpush1.bf16.msra.mxu0 0
        %3848 = vmatprep.subr.bf16.mxu0 0
        %3849 = vmatpush1.bf16.msra.mxu0 0
        %3850 = vmatprep.subr.bf16.mxu0 0
        %3851 = vmatpush1.bf16.msra.mxu0 0
        %3852 = vmatprep.subr.bf16.mxu0 0
        %3853 = vmatpush1.bf16.msra.mxu0 0
        %3854 = vmatprep.subr.bf16.mxu0 0
        %3855 = vmatpush1.bf16.msra.mxu0 0
        %3856 = vmatprep.subr.bf16.mxu0 0
        %3857 = vmatpush1.bf16.msra.mxu0 0
        %3858 = vmatprep.subr.bf16.mxu0 0
        %3859 = vmatpush1.bf16.msra.mxu0 0
        %3860 = vmatprep.subr.bf16.mxu0 0
        %3861 = vmatpush1.bf16.msra.mxu0 0
        %3862 = vmatprep.subr.bf16.mxu0 0
        %3863 = vmatpush1.bf16.msra.mxu0 0
        %3864 = vmatprep.mubr.bf16.mxu0 0
        %3865 = vmatmul.mubr.bf16.gmra.mrb[0].mxu0 %v3827
        %v3866 = vpop.f32.mrb[0].mxu0
        %v3867 = vadd.f32 0.0, %v3866
        %v3868 = vpop.f32.mrb[0].mxu0
        %v3869 = vpop.f32.mrb[0].mxu0
        %v3870 = vadd.f32 0.0, %v3869
        %v3871 = vpop.f32.mrb[0].mxu0
        %3872 = vdwg.mxu0
        %v3874 = vsel %vm1914, %v3626, 0
        %v3877 = vsel %vm3640, %v3634, 0
        %3879 = vmatprep.subr.bf16.mxu0 0
        %3880 = vmatpush1.bf16.msra.mxu0 %v3877
        %3881 = vmatprep.subr.bf16.mxu0 0
        %3882 = vmatpush1.bf16.msra.mxu0 0
        %3883 = vmatprep.subr.bf16.mxu0 0
        %3884 = vmatpush1.bf16.msra.mxu0 0
        %3885 = vmatprep.subr.bf16.mxu0 0
        %3886 = vmatpush1.bf16.msra.mxu0 0
        %3887 = vmatprep.subr.bf16.mxu0 0
        %3888 = vmatpush1.bf16.msra.mxu0 0
        %3889 = vmatprep.subr.bf16.mxu0 0
        %3890 = vmatpush1.bf16.msra.mxu0 0
        %3891 = vmatprep.subr.bf16.mxu0 0
        %3892 = vmatpush1.bf16.msra.mxu0 0
        %3893 = vmatprep.subr.bf16.mxu0 0
        %3894 = vmatpush1.bf16.msra.mxu0 0
        %3895 = vmatprep.subr.bf16.mxu0 0
        %3896 = vmatpush1.bf16.msra.mxu0 0
        %3897 = vmatprep.subr.bf16.mxu0 0
        %3898 = vmatpush1.bf16.msra.mxu0 0
        %3899 = vmatprep.subr.bf16.mxu0 0
        %3900 = vmatpush1.bf16.msra.mxu0 0
        %3901 = vmatprep.subr.bf16.mxu0 0
        %3902 = vmatpush1.bf16.msra.mxu0 0
        %3903 = vmatprep.subr.bf16.mxu0 0
        %3904 = vmatpush1.bf16.msra.mxu0 0
        %3905 = vmatprep.subr.bf16.mxu0 0
        %3906 = vmatpush1.bf16.msra.mxu0 0
        %3907 = vmatprep.subr.bf16.mxu0 0
        %3908 = vmatpush1.bf16.msra.mxu0 0
        %3909 = vmatprep.subr.bf16.mxu0 0
        %3910 = vmatpush1.bf16.msra.mxu0 0
        %3911 = vmatprep.mubr.bf16.mxu0 0
        %3912 = vmatmul.mubr.bf16.gmra.mrb[0].mxu0 %v3874
        %v3913 = vpop.f32.mrb[0].mxu0
        %v3914 = vadd.f32 0.0, %v3913
        %v3915 = vpop.f32.mrb[0].mxu0
        %v3916 = vpop.f32.mrb[0].mxu0
        %v3917 = vadd.f32 0.0, %v3916
        %v3918 = vpop.f32.mrb[0].mxu0
        %3919 = vdwg.mxu0
        %v3921 = vsel %vm1914, %v3627, 0
        %v3924 = vsel %vm3640, %v3635, 0
        %3926 = vmatprep.subr.bf16.mxu0 0
        %3927 = vmatpush1.bf16.msra.mxu0 %v3924
        %3928 = vmatprep.subr.bf16.mxu0 0
        %3929 = vmatpush1.bf16.msra.mxu0 0
        %3930 = vmatprep.subr.bf16.mxu0 0
        %3931 = vmatpush1.bf16.msra.mxu0 0
        %3932 = vmatprep.subr.bf16.mxu0 0
        %3933 = vmatpush1.bf16.msra.mxu0 0
        %3934 = vmatprep.subr.bf16.mxu0 0
        %3935 = vmatpush1.bf16.msra.mxu0 0
        %3936 = vmatprep.subr.bf16.mxu0 0
        %3937 = vmatpush1.bf16.msra.mxu0 0
        %3938 = vmatprep.subr.bf16.mxu0 0
        %3939 = vmatpush1.bf16.msra.mxu0 0
        %3940 = vmatprep.subr.bf16.mxu0 0
        %3941 = vmatpush1.bf16.msra.mxu0 0
        %3942 = vmatprep.subr.bf16.mxu0 0
        %3943 = vmatpush1.bf16.msra.mxu0 0
        %3944 = vmatprep.subr.bf16.mxu0 0
        %3945 = vmatpush1.bf16.msra.mxu0 0
        %3946 = vmatprep.subr.bf16.mxu0 0
        %3947 = vmatpush1.bf16.msra.mxu0 0
        %3948 = vmatprep.subr.bf16.mxu0 0
        %3949 = vmatpush1.bf16.msra.mxu0 0
        %3950 = vmatprep.subr.bf16.mxu0 0
        %3951 = vmatpush1.bf16.msra.mxu0 0
        %3952 = vmatprep.subr.bf16.mxu0 0
        %3953 = vmatpush1.bf16.msra.mxu0 0
        %3954 = vmatprep.subr.bf16.mxu0 0
        %3955 = vmatpush1.bf16.msra.mxu0 0
        %3956 = vmatprep.subr.bf16.mxu0 0
        %3957 = vmatpush1.bf16.msra.mxu0 0
        %3958 = vmatprep.mubr.bf16.mxu0 0
        %3959 = vmatmul.mubr.bf16.gmra.mrb[0].mxu0 %v3921
        %v3960 = vpop.f32.mrb[0].mxu0
        %v3961 = vadd.f32 0.0, %v3960
        %v3962 = vpop.f32.mrb[0].mxu0
        %v3963 = vpop.f32.mrb[0].mxu0
        %v3964 = vadd.f32 0.0, %v3963
        %v3965 = vpop.f32.mrb[0].mxu0
        %3966 = vdwg.mxu0
        %v3968 = vsel %vm1914, %v3628, 0
        %v3971 = vsel %vm3640, %v3636, 0
        %3973 = vmatprep.subr.bf16.mxu0 0
        %3974 = vmatpush1.bf16.msra.mxu0 %v3971
        %3975 = vmatprep.subr.bf16.mxu0 0
        %3976 = vmatpush1.bf16.msra.mxu0 0
        %3977 = vmatprep.subr.bf16.mxu0 0
        %3978 = vmatpush1.bf16.msra.mxu0 0
        %3979 = vmatprep.subr.bf16.mxu0 0
        %3980 = vmatpush1.bf16.msra.mxu0 0
        %3981 = vmatprep.subr.bf16.mxu0 0
        %3982 = vmatpush1.bf16.msra.mxu0 0
        %3983 = vmatprep.subr.bf16.mxu0 0
        %3984 = vmatpush1.bf16.msra.mxu0 0
        %3985 = vmatprep.subr.bf16.mxu0 0
        %3986 = vmatpush1.bf16.msra.mxu0 0
        %3987 = vmatprep.subr.bf16.mxu0 0
        %3988 = vmatpush1.bf16.msra.mxu0 0
        %3989 = vmatprep.subr.bf16.mxu0 0
        %3990 = vmatpush1.bf16.msra.mxu0 0
        %3991 = vmatprep.subr.bf16.mxu0 0
        %3992 = vmatpush1.bf16.msra.mxu0 0
        %3993 = vmatprep.subr.bf16.mxu0 0
        %3994 = vmatpush1.bf16.msra.mxu0 0
        %3995 = vmatprep.subr.bf16.mxu0 0
        %3996 = vmatpush1.bf16.msra.mxu0 0
        %3997 = vmatprep.subr.bf16.mxu0 0
        %3998 = vmatpush1.bf16.msra.mxu0 0
        %3999 = vmatprep.subr.bf16.mxu0 0
        %4000 = vmatpush1.bf16.msra.mxu0 0
        %4001 = vmatprep.subr.bf16.mxu0 0
        %4002 = vmatpush1.bf16.msra.mxu0 0
        %4003 = vmatprep.subr.bf16.mxu0 0
        %4004 = vmatpush1.bf16.msra.mxu0 0
        %4005 = vmatprep.mubr.bf16.mxu0 0
        %4006 = vmatmul.mubr.bf16.gmra.mrb[0].mxu0 %v3968
        %v4007 = vpop.f32.mrb[0].mxu0
        %v4008 = vadd.f32 0.0, %v4007
        %v4009 = vpop.f32.mrb[0].mxu0
        %v4010 = vpop.f32.mrb[0].mxu0
        %v4011 = vadd.f32 0.0, %v4010
        %v4012 = vpop.f32.mrb[0].mxu0
        %4013 = vdwg.mxu0
        %v4014 = vsel %vm474, %v3679, 0.0
        %v4015 = vsel %vm474, %v3726, 0.0
        %v4016 = vadd.f32 %v4014, %v4015
        %v4017 = vsel %vm474, %v3773, 0.0
        %v4018 = vadd.f32 %v4016, %v4017
        %v4019 = vsel %vm474, %v3820, 0.0
        %v4020 = vadd.f32 %v4018, %v4019
        %v4021 = vsel %vm474, %v3867, 0.0
        %v4022 = vadd.f32 %v4020, %v4021
        %v4023 = vsel %vm474, %v3914, 0.0
        %v4024 = vadd.f32 %v4022, %v4023
        %v4025 = vsel %vm474, %v3961, 0.0
        %v4026 = vadd.f32 %v4024, %v4025
        %v4027 = vsel %vm474, %v4008, 0.0
        %v4028 = vadd.f32 %v4026, %v4027
        %v4029 = vsel %vm474, %v3682, 0.0
        %v4030 = vsel %vm474, %v3729, 0.0
        %v4031 = vadd.f32 %v4029, %v4030
        %v4032 = vsel %vm474, %v3776, 0.0
        %v4033 = vadd.f32 %v4031, %v4032
        %v4034 = vsel %vm474, %v3823, 0.0
        %v4035 = vadd.f32 %v4033, %v4034
        %v4036 = vsel %vm474, %v3870, 0.0
        %v4037 = vadd.f32 %v4035, %v4036
        %v4038 = vsel %vm474, %v3917, 0.0
        %v4039 = vadd.f32 %v4037, %v4038
        %v4040 = vsel %vm474, %v3964, 0.0
        %v4041 = vadd.f32 %v4039, %v4040
        %v4042 = vsel %vm474, %v4011, 0.0
        %v4043 = vadd.f32 %v4041, %v4042
        %v4044 = vld [vmem:[%s7] sm:$0x1]
        %v4046 = vlaneseq
        %v4047 = vshrl.u32 %v4046, 7
        %v4048 = vsub.s32 0, %v4047
        %v4049 = vrot.slane %v4044, %v4048
        %v4051 = vadd.f32 %v4028, %v4049
        %v4052 = vadd.f32 %v4043, %v4049
        %v4053 = vadd.f32 %v470, %v4051
        %v4054 = vadd.f32 %v471, %v4052
        %v4055 = vld [vmem:[%s8] sm:$0x1]
        %v4056 = vld [vmem:[%s9] sm:$0x1]
        %v4057 = vsel %vm474, %v4053, 0.0
        %4058 = vadd.xlane.f32.xlu0 %v4057
        %v4059 = vpop.xlane.xlu0 %4058
        %v4060 = vsel %vm474, %v4054, 0.0
        %4061 = vadd.xlane.f32.xlu0 %v4060
        %v4062 = vpop.xlane.xlu0 %4061
        %v4063 = vmul.f32 %v4059, %v481
        %v4064 = vmul.f32 %v4062, %v481
        %v4065 = vsub.f32 %v4053, %v4063
        %v4066 = vsub.f32 %v4054, %v4064
        %v4067 = vmul.f32 %v4065, %v4065
        %v4068 = vmul.f32 %v4066, %v4066
        %v4069 = vsel %vm474, %v4067, 0.0
        %4070 = vadd.xlane.f32.xlu0 %v4069
        %v4071 = vpop.xlane.xlu0 %4070
        %v4072 = vsel %vm474, %v4068, 0.0
        %4073 = vadd.xlane.f32.xlu0 %v4072
        %v4074 = vpop.xlane.xlu0 %4073
        %v4075 = vmul.f32 %v4071, %v481
        %v4076 = vmul.f32 %v4074, %v481
        %v4077 = vadd.f32 %v4075, 1e-05
        %v4078 = vadd.f32 %v4076, 1e-05
        %v4079 = vrsqrt.pop %v4077
        %v4080 = vrsqrt.pop %v4078
        %v4081 = vmul.f32 %v4065, %v4079
        %v4082 = vmul.f32 %v4066, %v4080
        %v4084 = vlaneseq
        %v4085 = vshrl.u32 %v4084, 7
        %v4086 = vsub.s32 0, %v4085
        %v4087 = vrot.slane %v4055, %v4086
        %v4089 = vmul.f32 %v4081, %v4087
        %v4090 = vmul.f32 %v4082, %v4087
        %v4092 = vlaneseq
        %v4093 = vshrl.u32 %v4092, 7
        %v4094 = vsub.s32 0, %v4093
        %v4095 = vrot.slane %v4056, %v4094
        %v4097 = vadd.f32 %v4089, %v4095
        %v4098 = vadd.f32 %v4090, %v4095
        %v4099 = vpack.c.bf16 %v4098, %v4097
        %v4100 = vld [vmem:[%s10] sm:$0xf]
        %v4101 = vld [vmem:[%s10 + $0x4] sm:$0xf]
        %v4102 = vld [vmem:[%s10 + $0x8] sm:$0xf]
        %v4103 = vld [vmem:[%s10 + $0xc] sm:$0xf]
        %v4104 = vld [vmem:[%s11] sm:$0x1]
        %v4106 = vlaneseq
        %v4107 = vshrl.u32 %v4106, 7
        %v4108 = vsub.s32 0, %v4107
        %v4109 = vrot.slane %v4104, %v4108
        %v4115 = vunpack.c.l.b16 %v4100
        %v4116 = vunpack.c.l.b16 %v4101
        %v4117 = vunpack.c.l.b16 %v4102
        %v4118 = vunpack.c.l.b16 %v4103
        %v4119 = vpack.c.b16 %v4116, %v4115
        %v4120 = vpack.c.b16 %v4118, %v4117
        %v4124 = vsel %vm474, %v4099, 0
        %4126 = vmatprep.subr.bf16.mxu0 0
        %4127 = vmatpush1.bf16.msra.mxu0 %v4119
        %4128 = vmatprep.subr.bf16.mxu0 0
        %4129 = vmatpush1.bf16.msra.mxu0 %v4120
        %4130 = vmatprep.subr.bf16.mxu0 0
        %4131 = vmatpush1.bf16.msra.mxu0 0
        %4132 = vmatprep.subr.bf16.mxu0 0
        %4133 = vmatpush1.bf16.msra.mxu0 0
        %4134 = vmatprep.subr.bf16.mxu0 0
        %4135 = vmatpush1.bf16.msra.mxu0 0
        %4136 = vmatprep.subr.bf16.mxu0 0
        %4137 = vmatpush1.bf16.msra.mxu0 0
        %4138 = vmatprep.subr.bf16.mxu0 0
        %4139 = vmatpush1.bf16.msra.mxu0 0
        %4140 = vmatprep.subr.bf16.mxu0 0
        %4141 = vmatpush1.bf16.msra.mxu0 0
        %4142 = vmatprep.subr.bf16.mxu0 0
        %4143 = vmatpush1.bf16.msra.mxu0 0
        %4144 = vmatprep.subr.bf16.mxu0 0
        %4145 = vmatpush1.bf16.msra.mxu0 0
        %4146 = vmatprep.subr.bf16.mxu0 0
        %4147 = vmatpush1.bf16.msra.mxu0 0
        %4148 = vmatprep.subr.bf16.mxu0 0
        %4149 = vmatpush1.bf16.msra.mxu0 0
        %4150 = vmatprep.subr.bf16.mxu0 0
        %4151 = vmatpush1.bf16.msra.mxu0 0
        %4152 = vmatprep.subr.bf16.mxu0 0
        %4153 = vmatpush1.bf16.msra.mxu0 0
        %4154 = vmatprep.subr.bf16.mxu0 0
        %4155 = vmatpush1.bf16.msra.mxu0 0
        %4156 = vmatprep.subr.bf16.mxu0 0
        %4157 = vmatpush1.bf16.msra.mxu0 0
        %4158 = vmatprep.mubr.bf16.mxu0 0
        %4159 = vmatmul.mubr.bf16.gmra.mrb[0].mxu0 %v4124
        %v4160 = vpop.f32.mrb[0].mxu0
        %v4161 = vadd.f32 %v4109, %v4160
        %v4162 = vpop.f32.mrb[0].mxu0
        %v4163 = vpop.f32.mrb[0].mxu0
        %v4164 = vadd.f32 %v4109, %v4163
        %v4165 = vpop.f32.mrb[0].mxu0
        %4166 = vdwg.mxu0
        %v4167 = vmul.f32 %v4161, 0.5
        %v4168 = vmul.f32 %v4164, 0.5
        %v4169 = vmul.f32 %v4161, 0.044715
        %v4170 = vmul.f32 %v4164, 0.044715
        %v4171 = vmul.f32 %v4169, %v4161
        %v4172 = vmul.f32 %v4170, %v4164
        %v4173 = vmul.f32 %v4171, %v4161
        %v4174 = vmul.f32 %v4172, %v4164
        %v4175 = vadd.f32 %v4161, %v4173
        %v4176 = vadd.f32 %v4164, %v4174
        %v4177 = vmul.f32 %v4175, 0.7978846
        %v4178 = vmul.f32 %v4176, 0.7978846
        %v4179 = vtanh.pop %v4177
        %v4180 = vtanh.pop %v4178
        %v4181 = vadd.f32 %v4179, 1.0
        %v4182 = vadd.f32 %v4180, 1.0
        %v4183 = vmul.f32 %v4167, %v4181
        %v4184 = vmul.f32 %v4168, %v4182
        %v4185 = vpack.c.bf16 %v4184, %v4183
        %v4186 = vld [vmem:[%s12] sm:$0xf]
        %v4187 = vld [vmem:[%s12 + $0x4] sm:$0xf]
        %v4188 = vld [vmem:[%s12 + $0x8] sm:$0xf]
        %v4189 = vld [vmem:[%s12 + $0xc] sm:$0xf]
        %v4190 = vld [vmem:[%s12 + $0x10] sm:$0xf]
        %v4191 = vld [vmem:[%s12 + $0x14] sm:$0xf]
        %v4192 = vld [vmem:[%s12 + $0x18] sm:$0xf]
        %v4193 = vld [vmem:[%s12 + $0x1c] sm:$0xf]
        %v4194 = vld [vmem:[%s12 + $0x20] sm:$0xf]
        %v4195 = vld [vmem:[%s12 + $0x24] sm:$0xf]
        %v4196 = vld [vmem:[%s12 + $0x28] sm:$0xf]
        %v4197 = vld [vmem:[%s12 + $0x2c] sm:$0xf]
        %v4198 = vld [vmem:[%s12 + $0x30] sm:$0xf]
        %v4199 = vld [vmem:[%s12 + $0x34] sm:$0xf]
        %v4200 = vld [vmem:[%s12 + $0x38] sm:$0xf]
        %v4201 = vld [vmem:[%s12 + $0x3c] sm:$0xf]
        %v4202 = vld [vmem:[%s13] sm:$0x1]
        %v4204 = vlaneseq
        %v4205 = vshrl.u32 %v4204, 7
        %v4206 = vsub.s32 0, %v4205
        %v4207 = vrot.slane %v4202, %v4206
        %v4225 = vunpack.c.l.b16 %v4186
        %v4226 = vunpack.c.l.b16 %v4187
        %v4227 = vunpack.c.l.b16 %v4188
        %v4228 = vunpack.c.l.b16 %v4189
        %v4229 = vunpack.c.l.b16 %v4190
        %v4230 = vunpack.c.l.b16 %v4191
        %v4231 = vunpack.c.l.b16 %v4192
        %v4232 = vunpack.c.l.b16 %v4193
        %v4233 = vunpack.c.l.b16 %v4194
        %v4234 = vunpack.c.l.b16 %v4195
        %v4235 = vunpack.c.l.b16 %v4196
        %v4236 = vunpack.c.l.b16 %v4197
        %v4237 = vunpack.c.l.b16 %v4198
        %v4238 = vunpack.c.l.b16 %v4199
        %v4239 = vunpack.c.l.b16 %v4200
        %v4240 = vunpack.c.l.b16 %v4201
        %v4241 = vpack.c.b16 %v4226, %v4225
        %v4242 = vpack.c.b16 %v4228, %v4227
        %v4243 = vpack.c.b16 %v4230, %v4229
        %v4244 = vpack.c.b16 %v4232, %v4231
        %v4245 = vpack.c.b16 %v4234, %v4233
        %v4246 = vpack.c.b16 %v4236, %v4235
        %v4247 = vpack.c.b16 %v4238, %v4237
        %v4248 = vpack.c.b16 %v4240, %v4239
        %4257 = vmatprep.subr.bf16.mxu0 0
        %4258 = vmatpush1.bf16.msra.mxu0 %v4241
        %4259 = vmatprep.subr.bf16.mxu0 0
        %4260 = vmatpush1.bf16.msra.mxu0 %v4242
        %4261 = vmatprep.subr.bf16.mxu0 0
        %4262 = vmatpush1.bf16.msra.mxu0 %v4243
        %4263 = vmatprep.subr.bf16.mxu0 0
        %4264 = vmatpush1.bf16.msra.mxu0 %v4244
        %4265 = vmatprep.subr.bf16.mxu0 0
        %4266 = vmatpush1.bf16.msra.mxu0 %v4245
        %4267 = vmatprep.subr.bf16.mxu0 0
        %4268 = vmatpush1.bf16.msra.mxu0 %v4246
        %4269 = vmatprep.subr.bf16.mxu0 0
        %4270 = vmatpush1.bf16.msra.mxu0 %v4247
        %4271 = vmatprep.subr.bf16.mxu0 0
        %4272 = vmatpush1.bf16.msra.mxu0 %v4248
        %4273 = vmatprep.subr.bf16.mxu0 0
        %4274 = vmatpush1.bf16.msra.mxu0 0
        %4275 = vmatprep.subr.bf16.mxu0 0
        %4276 = vmatpush1.bf16.msra.mxu0 0
        %4277 = vmatprep.subr.bf16.mxu0 0
        %4278 = vmatpush1.bf16.msra.mxu0 0
        %4279 = vmatprep.subr.bf16.mxu0 0
        %4280 = vmatpush1.bf16.msra.mxu0 0
        %4281 = vmatprep.subr.bf16.mxu0 0
        %4282 = vmatpush1.bf16.msra.mxu0 0
        %4283 = vmatprep.subr.bf16.mxu0 0
        %4284 = vmatpush1.bf16.msra.mxu0 0
        %4285 = vmatprep.subr.bf16.mxu0 0
        %4286 = vmatpush1.bf16.msra.mxu0 0
        %4287 = vmatprep.subr.bf16.mxu0 0
        %4288 = vmatpush1.bf16.msra.mxu0 0
        %4289 = vmatprep.mubr.bf16.mxu0 0
        %4290 = vmatmul.mubr.bf16.gmra.mrb[0].mxu0 %v4185
        %v4291 = vpop.f32.mrb[0].mxu0
        %v4292 = vadd.f32 %v4207, %v4291
        %v4293 = vpop.f32.mrb[0].mxu0
        %v4294 = vpop.f32.mrb[0].mxu0
        %v4295 = vadd.f32 %v4207, %v4294
        %v4296 = vpop.f32.mrb[0].mxu0
        %4297 = vdwg.mxu0
        %v4298 = vadd.f32 %v4053, %v4292
        %v4299 = vadd.f32 %v4054, %v4295
        %4300 = vst.msk [vmem:[%s461] sm:$0xff] %vm474, %v4298
        %4301 = vst.msk [vmem:[%s461 + $0x8] sm:$0xff] %vm474, %v4299
        %s4302 = sand.u32 %s335, 1
        %s4303 = scalar_lea.sflag [#allocation3], %s4302
        %s4304 = sand.u32 %s335, 1
        %s4305 = smul.addr %s4304, 16
        %s4306 = scalar_lea.vmem [#allocation2], %s4305
        // Predicated region
        $region77: #{tpu_custom_call.1} parent=75 // pred_check
          %p4307 = pneg %p345
        $region78: #{tpu_custom_call.1} parent=75 // pred_check_branch
          %4309 = sbr.rel (%p4307) target = $region80
        $region79: #{tpu_custom_call.1} parent=75 // pred_region
          %s4310 = smul.u32 2, %s28
          %s4312 = ssub.s32 256, 256
          %4313 = vsyncadd %s4303, %s4312
          %s4314 = smul.addr %s4310, 128
          %s4315 = scalar_lea.hbm %s14, %s4314
          %s4316 = sshll.u32 %s4306, 4
          %s4317 = int_to_ptr.vmem [resolvable:$true] %s4316
          %4322 = dma.vmem_to_hbm [thread:$0]  %s4317, 256, %s4315, %s4303, 128, 128, 8
        $region80: #{tpu_custom_call.1} parent=75 // pred_fallthru
          _
      $region76: #{tpu_custom_call.1} parent=5 // pred_fallthru
        _
      %p4323 = scmp.le.s32.totalorder 2, %s23
      // Predicated region
      $region81: #{tpu_custom_call.1} parent=5 // pred_check
        %p4324 = pneg %p4323
      $region82: #{tpu_custom_call.1} parent=5 // pred_check_branch
        %4326 = sbr.rel (%p4324) target = $region84
      $region83: #{tpu_custom_call.1} parent=5 // pred_region
        %s4327 = ssub.s32 %s23, 2
        // Predicated region
        $region85: #{tpu_custom_call.1} parent=83 // pred_check
          %p4328 = pneg %p351
        $region86: #{tpu_custom_call.1} parent=83 // pred_check_branch
          %4330 = sbr.rel (%p4328) target = $region88
        $region87: #{tpu_custom_call.1} parent=83 // pred_region
          %s4331 = sand.u32 %s336, 1
          %s4332 = scalar_lea.sflag [#allocation3], %s4331
          %s4333 = sand.u32 %s336, 1
          %s4334 = smul.addr %s4333, 16
          %s4335 = scalar_lea.vmem [#allocation2], %s4334
          %4336 = dma.done %s4332, 256
        $region88: #{tpu_custom_call.1} parent=83 // pred_fallthru
          _
      $region84: #{tpu_custom_call.1} parent=5 // pred_fallthru
        _
    $region6: #{tpu_custom_call.1} parent=1 // loop_footer
      %s27 = sadd.s32 1, %s23
    $region7: #{tpu_custom_call.1} parent=1 // loop_footer_branch
      %22 = sbr.rel target = $region3
    $region8: #{tpu_custom_call.1} parent=1 // loop_exit
      _
    %4337 = vsyncpa [#allocation3], 1
    %s4338 = scalar_lea.sflag [#allocation3], 1
    %4339 = vsyncpa %s4338, 1

// kernel: tpu_custom_call.1
$region0: #{tpu_custom_call.1}
  #allocation0 [shape = 'u32[]', space=smem, size = 0x4, offset = 0x4, fixed_abs, tag = 'smem constant byte address 0x4 - core index']
  #allocation1 [shape = 'u32[144,128]{1,0:T(1,128)}', space=vmem, size = 0x12000, scoped, tag = 'internal scratch']
  %s0 = inlined_call_operand.vmem [shape: f32[8,8,32], index: 0, kind: input, shape index: {}]
  %s1 = inlined_call_operand.vmem [shape: f32[1,32], index: 1, kind: input, shape index: {}]
  %s2 = inlined_call_operand.vmem [shape: f32[1,32], index: 2, kind: input, shape index: {}]
  %s3 = inlined_call_operand.vmem [shape: bf16[8,32,4], index: 3, kind: input, shape index: {}]
  %s4 = inlined_call_operand.vmem [shape: bf16[8,32,4], index: 4, kind: input, shape index: {}]
  %s5 = inlined_call_operand.vmem [shape: bf16[8,32,4], index: 5, kind: input, shape index: {}]
  %s6 = inlined_call_operand.vmem [shape: bf16[8,4,32], index: 6, kind: input, shape index: {}]
  %s7 = inlined_call_operand.vmem [shape: f32[1,32], index: 7, kind: input, shape index: {}]
  %s8 = inlined_call_operand.vmem [shape: f32[1,32], index: 8, kind: input, shape index: {}]
  %s9 = inlined_call_operand.vmem [shape: f32[1,32], index: 9, kind: input, shape index: {}]
  %s10 = inlined_call_operand.vmem [shape: bf16[32,128], index: 10, kind: input, shape index: {}]
  %s11 = inlined_call_operand.vmem [shape: f32[1,128], index: 11, kind: input, shape index: {}]
  %s12 = inlined_call_operand.vmem [shape: bf16[128,32], index: 12, kind: input, shape index: {}]
  %s13 = inlined_call_operand.vmem [shape: f32[1,32], index: 13, kind: input, shape index: {}]
  %s14 = inlined_call_operand.hbm [shape: f32[8,8,32], index: 14, kind: output, shape index: {}]
  %s15 = sld [smem:[#allocation0]]
  $region89: #{tpu_custom_call.1} parent=0
    _
  %s17 = ssub.s32 1, %s15
  %s18 = scalar_select 0, %s17, %s15
  $region1: #{tpu_custom_call.1} parent=0
    #allocation2 [shape = 'u8[16384]{0}', space=vmem, size = 0x4000, scoped, tag = 'output window, operand 0']
    #allocation3 [shape = 's32[2]{0}', space=sflag, size = 0x8, scoped, tag = 'scoped memory for tpu_custom_call.1']
    %19 = vsyncpa [#allocation3], 0
    %s20 = scalar_lea.sflag [#allocation3], 1
    %21 = vsyncpa %s20, 0
    loop: start=0, step=1, limit=6
    $region2: #{tpu_custom_call.1} parent=1 // loop_pre_header
      _
    $region3: #{tpu_custom_call.1} parent=1 // loop_header
      %s23 = sphi 0, %s27
      %p24 = scmp.ge.s32.totalorder %s23, 6
      %s33 = sphi 0, %s35
      %s36 = sphi 0, %s33
      %s37 = sphi 0, %s36
      %s53 = sphi 0, %s37
      %s57 = sphi 0, %s57
      %s59 = sphi 0, %s57
      %s60 = sphi 0, %s59
      %s74 = sphi 0, %s60
      %s78 = sphi 0, %s78
      %s80 = sphi 0, %s78
      %s81 = sphi 0, %s80
      %s95 = sphi 0, %s81
      %s99 = sphi 0, %s99
      %s101 = sphi 0, %s99
      %s102 = sphi 0, %s101
      %s116 = sphi 0, %s102
      %s120 = sphi 0, %s120
      %s122 = sphi 0, %s120
      %s123 = sphi 0, %s122
      %s137 = sphi 0, %s123
      %s141 = sphi 0, %s141
      %s143 = sphi 0, %s141
      %s144 = sphi 0, %s143
      %s158 = sphi 0, %s144
      %s162 = sphi 0, %s162
      %s164 = sphi 0, %s162
      %s165 = sphi 0, %s164
      %s179 = sphi 0, %s165
      %s183 = sphi 0, %s183
      %s185 = sphi 0, %s183
      %s186 = sphi 0, %s185
      %s200 = sphi 0, %s186
      %s204 = sphi 0, %s204
      %s206 = sphi 0, %s204
      %s207 = sphi 0, %s206
      %s221 = sphi 0, %s207
      %s225 = sphi 0, %s225
      %s227 = sphi 0, %s225
      %s228 = sphi 0, %s227
      %s242 = sphi 0, %s228
      %s246 = sphi 0, %s246
      %s248 = sphi 0, %s246
      %s249 = sphi 0, %s248
      %s263 = sphi 0, %s249
      %s267 = sphi 0, %s267
      %s269 = sphi 0, %s267
      %s270 = sphi 0, %s269
      %s284 = sphi 0, %s270
      %s288 = sphi 0, %s288
      %s290 = sphi 0, %s288
      %s291 = sphi 0, %s290
      %s305 = sphi 0, %s291
      %s309 = sphi 0, %s309
      %s311 = sphi 0, %s309
      %s312 = sphi 0, %s311
      %s326 = sphi 0, %s312
      %s332 = sphi 0, %s334
      %s335 = sphi 0, %s332
      %s336 = sphi 0, %s335
      %s352 = sphi 0, %s336
    $region4: #{tpu_custom_call.1} parent=1 // loop_header_branch
      %26 = sbr.rel (%p24) target = $region8
    $region5: #{tpu_custom_call.1} parent=1 // loop_body
      %s28 = ssub.s32 %s23, 1
      %s29 = ssub.s32 %s23, 2
      %s30 = sadd.s32 %s23, 1
      %s31 = ssub.s32 %s23, %s30
      %p32 = scmp.eq.s32.totalorder %s31, 0
      %s34 = sadd.s32 %s33, 1
      %s35 = scalar_select %p32, %s33, %s34
      %p38 = pneg %p32
      %p39 = scmp.eq.s32.totalorder %s23, 3
      %p40 = por %p38, %p39
      %p41 = scmp.ne.s32.totalorder %s33, %s36
      %p42 = scmp.eq.s32.totalorder %s23, 0
      %p43 = por %p41, %p42
      %p44 = scmp.ne.s32.totalorder %s33, %s36
      %p45 = scmp.eq.s32.totalorder %s28, 3
      %p46 = por %p44, %p45
      %p47 = scmp.ne.s32.totalorder %s36, %s37
      %p48 = scmp.eq.s32.totalorder %s28, 0
      %p49 = por %p47, %p48
      %p50 = scmp.ne.s32.totalorder %s36, %s37
      %p51 = scmp.eq.s32.totalorder %s29, 3
      %p52 = por %p50, %p51
      %p54 = scmp.ne.s32.totalorder %s37, %s53
      %p55 = scmp.eq.s32.totalorder %s29, 0
      %p56 = por %p54, %p55
      %s58 = sadd.s32 %s57, 1
      %p61 = scmp.eq.s32.totalorder %s23, 3
      %p62 = scmp.ne.s32.totalorder %s57, %s59
      %p63 = scmp.eq.s32.totalorder %s23, 0
      %p64 = por %p62, %p63
      %p65 = scmp.ne.s32.totalorder %s57, %s59
      %p66 = scmp.eq.s32.totalorder %s28, 3
      %p67 = por %p65, %p66
      %p68 = scmp.ne.s32.totalorder %s59, %s60
      %p69 = scmp.eq.s32.totalorder %s28, 0
      %p70 = por %p68, %p69
      %p71 = scmp.ne.s32.totalorder %s59, %s60
      %p72 = scmp.eq.s32.totalorder %s29, 3
      %p73 = por %p71, %p72
      %p75 = scmp.ne.s32.totalorder %s60, %s74
      %p76 = scmp.eq.s32.totalorder %s29, 0
      %p77 = por %p75, %p76
      %s79 = sadd.s32 %s78, 1
      %p82 = scmp.eq.s32.totalorder %s23, 3
      %p83 = scmp.ne.s32.totalorder %s78, %s80
      %p84 = scmp.eq.s32.totalorder %s23, 0
      %p85 = por %p83, %p84
      %p86 = scmp.ne.s32.totalorder %s78, %s80
      %p87 = scmp.eq.s32.totalorder %s28, 3
      %p88 = por %p86, %p87
      %p89 = scmp.ne.s32.totalorder %s80, %s81
      %p90 = scmp.eq.s32.totalorder %s28, 0
      %p91 = por %p89, %p90
      %p92 = scmp.ne.s32.totalorder %s80, %s81
      %p93 = scmp.eq.s32.totalorder %s29, 3
      %p94 = por %p92, %p93
      %p96 = scmp.ne.s32.totalorder %s81, %s95
      %p97 = scmp.eq.s32.totalorder %s29, 0
      %p98 = por %p96, %p97
      %s100 = sadd.s32 %s99, 1
      %p103 = scmp.eq.s32.totalorder %s23, 3
      %p104 = scmp.ne.s32.totalorder %s99, %s101
      %p105 = scmp.eq.s32.totalorder %s23, 0
      %p106 = por %p104, %p105
      %p107 = scmp.ne.s32.totalorder %s99, %s101
      %p108 = scmp.eq.s32.totalorder %s28, 3
      %p109 = por %p107, %p108
      %p110 = scmp.ne.s32.totalorder %s101, %s102
      %p111 = scmp.eq.s32.totalorder %s28, 0
      %p112 = por %p110, %p111
      %p113 = scmp.ne.s32.totalorder %s101, %s102
      %p114 = scmp.eq.s32.totalorder %s29, 3
      %p115 = por %p113, %p114
      %p117 = scmp.ne.s32.totalorder %s102, %s116
      %p118 = scmp.eq.s32.totalorder %s29, 0
      %p119 = por %p117, %p118
      %s121 = sadd.s32 %s120, 1
      %p124 = scmp.eq.s32.totalorder %s23, 3
      %p125 = scmp.ne.s32.totalorder %s120, %s122
      %p126 = scmp.eq.s32.totalorder %s23, 0
      %p127 = por %p125, %p126
      %p128 = scmp.ne.s32.totalorder %s120, %s122
      %p129 = scmp.eq.s32.totalorder %s28, 3
      %p130 = por %p128, %p129
      %p131 = scmp.ne.s32.totalorder %s122, %s123
      %p132 = scmp.eq.s32.totalorder %s28, 0
      %p133 = por %p131, %p132
      %p134 = scmp.ne.s32.totalorder %s122, %s123
      %p135 = scmp.eq.s32.totalorder %s29, 3
      %p136 = por %p134, %p135
      %p138 = scmp.ne.s32.totalorder %s123, %s137
      %p139 = scmp.eq.s32.totalorder %s29, 0
      %p140 = por %p138, %p139
      %s142 = sadd.s32 %s141, 1
      %p145 = scmp.eq.s32.totalorder %s23, 3
      %p146 = scmp.ne.s32.totalorder %s141, %s143
      %p147 = scmp.eq.s32.totalorder %s23, 0
      %p148 = por %p146, %p147
      %p149 = scmp.ne.s32.totalorder %s141, %s143
      %p150 = scmp.eq.s32.totalorder %s28, 3
      %p151 = por %p149, %p150
      %p152 = scmp.ne.s32.totalorder %s143, %s144
      %p153 = scmp.eq.s32.totalorder %s28, 0
      %p154 = por %p152, %p153
      %p155 = scmp.ne.s32.totalorder %s143, %s144
      %p156 = scmp.eq.s32.totalorder %s29, 3
      %p157 = por %p155, %p156
      %p159 = scmp.ne.s32.totalorder %s144, %s158
      %p160 = scmp.eq.s32.totalorder %s29, 0
      %p161 = por %p159, %p160
      %s163 = sadd.s32 %s162, 1
      %p166 = scmp.eq.s32.totalorder %s23, 3
      %p167 = scmp.ne.s32.totalorder %s162, %s164
      %p168 = scmp.eq.s32.totalorder %s23, 0
      %p169 = por %p167, %p168
      %p170 = scmp.ne.s32.totalorder %s162, %s164
      %p171 = scmp.eq.s32.totalorder %s28, 3
      %p172 = por %p170, %p171
      %p173 = scmp.ne.s32.totalorder %s164, %s165
      %p174 = scmp.eq.s32.totalorder %s28, 0
      %p175 = por %p173, %p174
      %p176 = scmp.ne.s32.totalorder %s164, %s165
      %p177 = scmp.eq.s32.totalorder %s29, 3
      %p178 = por %p176, %p177
      %p180 = scmp.ne.s32.totalorder %s165, %s179
      %p181 = scmp.eq.s32.totalorder %s29, 0
      %p182 = por %p180, %p181
      %s184 = sadd.s32 %s183, 1
      %p187 = scmp.eq.s32.totalorder %s23, 3
      %p188 = scmp.ne.s32.totalorder %s183, %s185
      %p189 = scmp.eq.s32.totalorder %s23, 0
      %p190 = por %p188, %p189
      %p191 = scmp.ne.s32.totalorder %s183, %s185
      %p192 = scmp.eq.s32.totalorder %s28, 3
      %p193 = por %p191, %p192
      %p194 = scmp.ne.s32.totalorder %s185, %s186
      %p195 = scmp.eq.s32.totalorder %s28, 0
      %p196 = por %p194, %p195
      %p197 = scmp.ne.s32.totalorder %s185, %s186
      %p198 = scmp.eq.s32.totalorder %s29, 3
      %p199 = por %p197, %p198
      %p201 = scmp.ne.s32.totalorder %s186, %s200
      %p202 = scmp.eq.s32.totalorder %s29, 0
      %p203 = por %p201, %p202
      %s205 = sadd.s32 %s204, 1
      %p208 = scmp.eq.s32.totalorder %s23, 3
      %p209 = scmp.ne.s32.totalorder %s204, %s206
      %p210 = scmp.eq.s32.totalorder %s23, 0
      %p211 = por %p209, %p210
      %p212 = scmp.ne.s32.totalorder %s204, %s206
      %p213 = scmp.eq.s32.totalorder %s28, 3
      %p214 = por %p212, %p213
      %p215 = scmp.ne.s32.totalorder %s206, %s207
      %p216 = scmp.eq.s32.totalorder %s28, 0
      %p217 = por %p215, %p216
      %p218 = scmp.ne.s32.totalorder %s206, %s207
      %p219 = scmp.eq.s32.totalorder %s29, 3
      %p220 = por %p218, %p219
      %p222 = scmp.ne.s32.totalorder %s207, %s221
      %p223 = scmp.eq.s32.totalorder %s29, 0
      %p224 = por %p222, %p223
      %s226 = sadd.s32 %s225, 1
      %p229 = scmp.eq.s32.totalorder %s23, 3
      %p230 = scmp.ne.s32.totalorder %s225, %s227
      %p231 = scmp.eq.s32.totalorder %s23, 0
      %p232 = por %p230, %p231
      %p233 = scmp.ne.s32.totalorder %s225, %s227
      %p234 = scmp.eq.s32.totalorder %s28, 3
      %p235 = por %p233, %p234
      %p236 = scmp.ne.s32.totalorder %s227, %s228
      %p237 = scmp.eq.s32.totalorder %s28, 0
      %p238 = por %p236, %p237
      %p239 = scmp.ne.s32.totalorder %s227, %s228
      %p240 = scmp.eq.s32.totalorder %s29, 3
      %p241 = por %p239, %p240
      %p243 = scmp.ne.s32.totalorder %s228, %s242
      %p244 = scmp.eq.s32.totalorder %s29, 0
      %p245 = por %p243, %p244
      %s247 = sadd.s32 %s246, 1
      %p250 = scmp.eq.s32.totalorder %s23, 3
      %p251 = scmp.ne.s32.totalorder %s246, %s248
      %p252 = scmp.eq.s32.totalorder %s23, 0
      %p253 = por %p251, %p252
      %p254 = scmp.ne.s32.totalorder %s246, %s248
      %p255 = scmp.eq.s32.totalorder %s28, 3
      %p256 = por %p254, %p255
      %p257 = scmp.ne.s32.totalorder %s248, %s249
      %p258 = scmp.eq.s32.totalorder %s28, 0
      %p259 = por %p257, %p258
      %p260 = scmp.ne.s32.totalorder %s248, %s249
      %p261 = scmp.eq.s32.totalorder %s29, 3
      %p262 = por %p260, %p261
      %p264 = scmp.ne.s32.totalorder %s249, %s263
      %p265 = scmp.eq.s32.totalorder %s29, 0
      %p266 = por %p264, %p265
      %s268 = sadd.s32 %s267, 1
      %p271 = scmp.eq.s32.totalorder %s23, 3
      %p272 = scmp.ne.s32.totalorder %s267, %s269
      %p273 = scmp.eq.s32.totalorder %s23, 0
      %p274 = por %p272, %p273
      %p275 = scmp.ne.s32.totalorder %s267, %s269
      %p276 = scmp.eq.s32.totalorder %s28, 3
      %p277 = por %p275, %p276
      %p278 = scmp.ne.s32.totalorder %s269, %s270
      %p279 = scmp.eq.s32.totalorder %s28, 0
      %p280 = por %p278, %p279
      %p281 = scmp.ne.s32.totalorder %s269, %s270
      %p282 = scmp.eq.s32.totalorder %s29, 3
      %p283 = por %p281, %p282
      %p285 = scmp.ne.s32.totalorder %s270, %s284
      %p286 = scmp.eq.s32.totalorder %s29, 0
      %p287 = por %p285, %p286
      %s289 = sadd.s32 %s288, 1
      %p292 = scmp.eq.s32.totalorder %s23, 3
      %p293 = scmp.ne.s32.totalorder %s288, %s290
      %p294 = scmp.eq.s32.totalorder %s23, 0
      %p295 = por %p293, %p294
      %p296 = scmp.ne.s32.totalorder %s288, %s290
      %p297 = scmp.eq.s32.totalorder %s28, 3
      %p298 = por %p296, %p297
      %p299 = scmp.ne.s32.totalorder %s290, %s291
      %p300 = scmp.eq.s32.totalorder %s28, 0
      %p301 = por %p299, %p300
      %p302 = scmp.ne.s32.totalorder %s290, %s291
      %p303 = scmp.eq.s32.totalorder %s29, 3
      %p304 = por %p302, %p303
      %p306 = scmp.ne.s32.totalorder %s291, %s305
      %p307 = scmp.eq.s32.totalorder %s29, 0
      %p308 = por %p306, %p307
      %s310 = sadd.s32 %s309, 1
      %p313 = scmp.eq.s32.totalorder %s23, 3
      %p314 = scmp.ne.s32.totalorder %s309, %s311
      %p315 = scmp.eq.s32.totalorder %s23, 0
      %p316 = por %p314, %p315
      %p317 = scmp.ne.s32.totalorder %s309, %s311
      %p318 = scmp.eq.s32.totalorder %s28, 3
      %p319 = por %p317, %p318
      %p320 = scmp.ne.s32.totalorder %s311, %s312
      %p321 = scmp.eq.s32.totalorder %s28, 0
      %p322 = por %p320, %p321
      %p323 = scmp.ne.s32.totalorder %s311, %s312
      %p324 = scmp.eq.s32.totalorder %s29, 3
      %p325 = por %p323, %p324
      %p327 = scmp.ne.s32.totalorder %s312, %s326
      %p328 = scmp.eq.s32.totalorder %s29, 0
      %p329 = por %p327, %p328
      %s330 = ssub.s32 %s23, %s30
      %p331 = scmp.eq.s32.totalorder %s330, 0
      %s333 = sadd.s32 %s332, 1
      %s334 = scalar_select %p331, %s332, %s333
      %p337 = pneg %p331
      %p338 = scmp.eq.s32.totalorder %s23, 3
      %p339 = por %p337, %p338
      %p340 = scmp.ne.s32.totalorder %s332, %s335
      %p341 = scmp.eq.s32.totalorder %s23, 0
      %p342 = por %p340, %p341
      %p343 = scmp.ne.s32.totalorder %s332, %s335
      %p344 = scmp.eq.s32.totalorder %s28, 3
      %p345 = por %p343, %p344
      %p346 = scmp.ne.s32.totalorder %s335, %s336
      %p347 = scmp.eq.s32.totalorder %s28, 0
      %p348 = por %p346, %p347
      %p349 = scmp.ne.s32.totalorder %s335, %s336
      %p350 = scmp.eq.s32.totalorder %s29, 3
      %p351 = por %p349, %p350
      %p353 = scmp.ne.s32.totalorder %s336, %s352
      %p354 = scmp.eq.s32.totalorder %s29, 0
      %p355 = por %p353, %p354
      %p356 = scmp.le.s32.totalorder 1, %s23
      %p357 = scmp.lt.s32.totalorder %s23, 5
      %p358 = pnand %p356, %p357
      %p359 = pneg %p358
      // Predicated region
      $region9: #{tpu_custom_call.1} parent=5 // pred_check
        _
      $region10: #{tpu_custom_call.1} parent=5 // pred_check_branch
        %361 = sbr.rel (%p358) target = $region12
      $region11: #{tpu_custom_call.1} parent=5 // pred_region
        %s362 = ssub.s32 %s23, 1
        // Predicated region
        $region13: #{tpu_custom_call.1} parent=11 // pred_check
          %p363 = pneg %p70
        $region14: #{tpu_custom_call.1} parent=11 // pred_check_branch
          %365 = sbr.rel (%p363) target = $region16
        $region15: #{tpu_custom_call.1} parent=11 // pred_region
          _
        $region16: #{tpu_custom_call.1} parent=11 // pred_fallthru
          _
        // Predicated region
        $region17: #{tpu_custom_call.1} parent=11 // pred_check
          %p366 = pneg %p91
        $region18: #{tpu_custom_call.1} parent=11 // pred_check_branch
          %368 = sbr.rel (%p366) target = $region20
        $region19: #{tpu_custom_call.1} parent=11 // pred_region
          _
        $region20: #{tpu_custom_call.1} parent=11 // pred_fallthru
          _
        // Predicated region
        $region21: #{tpu_custom_call.1} parent=11 // pred_check
          %p369 = pneg %p112
        $region22: #{tpu_custom_call.1} parent=11 // pred_check_branch
          %371 = sbr.rel (%p369) target = $region24
        $region23: #{tpu_custom_call.1} parent=11 // pred_region
          _
        $region24: #{tpu_custom_call.1} parent=11 // pred_fallthru
          _
        // Predicated region
        $region25: #{tpu_custom_call.1} parent=11 // pred_check
          %p372 = pneg %p133
        $region26: #{tpu_custom_call.1} parent=11 // pred_check_branch
          %374 = sbr.rel (%p372) target = $region28
        $region27: #{tpu_custom_call.1} parent=11 // pred_region
          _
        $region28: #{tpu_custom_call.1} parent=11 // pred_fallthru
          _
        // Predicated region
        $region29: #{tpu_custom_call.1} parent=11 // pred_check
          %p375 = pneg %p154
        $region30: #{tpu_custom_call.1} parent=11 // pred_check_branch
          %377 = sbr.rel (%p375) target = $region32
        $region31: #{tpu_custom_call.1} parent=11 // pred_region
          _
        $region32: #{tpu_custom_call.1} parent=11 // pred_fallthru
          _
        // Predicated region
        $region33: #{tpu_custom_call.1} parent=11 // pred_check
          %p378 = pneg %p175
        $region34: #{tpu_custom_call.1} parent=11 // pred_check_branch
          %380 = sbr.rel (%p378) target = $region36
        $region35: #{tpu_custom_call.1} parent=11 // pred_region
          _
        $region36: #{tpu_custom_call.1} parent=11 // pred_fallthru
          _
        // Predicated region
        $region37: #{tpu_custom_call.1} parent=11 // pred_check
          %p381 = pneg %p196
        $region38: #{tpu_custom_call.1} parent=11 // pred_check_branch
          %383 = sbr.rel (%p381) target = $region40
        $region39: #{tpu_custom_call.1} parent=11 // pred_region
          _
        $region40: #{tpu_custom_call.1} parent=11 // pred_fallthru
          _
        // Predicated region
        $region41: #{tpu_custom_call.1} parent=11 // pred_check
          %p384 = pneg %p217
        $region42: #{tpu_custom_call.1} parent=11 // pred_check_branch
          %386 = sbr.rel (%p384) target = $region44
        $region43: #{tpu_custom_call.1} parent=11 // pred_region
          _
        $region44: #{tpu_custom_call.1} parent=11 // pred_fallthru
          _
        // Predicated region
        $region45: #{tpu_custom_call.1} parent=11 // pred_check
          %p387 = pneg %p238
        $region46: #{tpu_custom_call.1} parent=11 // pred_check_branch
          %389 = sbr.rel (%p387) target = $region48
        $region47: #{tpu_custom_call.1} parent=11 // pred_region
          _
        $region48: #{tpu_custom_call.1} parent=11 // pred_fallthru
          _
        // Predicated region
        $region49: #{tpu_custom_call.1} parent=11 // pred_check
          %p390 = pneg %p259
        $region50: #{tpu_custom_call.1} parent=11 // pred_check_branch
          %392 = sbr.rel (%p390) target = $region52
        $region51: #{tpu_custom_call.1} parent=11 // pred_region
          _
        $region52: #{tpu_custom_call.1} parent=11 // pred_fallthru
          _
        // Predicated region
        $region53: #{tpu_custom_call.1} parent=11 // pred_check
          %p393 = pneg %p280
        $region54: #{tpu_custom_call.1} parent=11 // pred_check_branch
          %395 = sbr.rel (%p393) target = $region56
        $region55: #{tpu_custom_call.1} parent=11 // pred_region
          _
        $region56: #{tpu_custom_call.1} parent=11 // pred_fallthru
          _
        // Predicated region
        $region57: #{tpu_custom_call.1} parent=11 // pred_check
          %p396 = pneg %p301
        $region58: #{tpu_custom_call.1} parent=11 // pred_check_branch
          %398 = sbr.rel (%p396) target = $region60
        $region59: #{tpu_custom_call.1} parent=11 // pred_region
          _
        $region60: #{tpu_custom_call.1} parent=11 // pred_fallthru
          _
        // Predicated region
        $region61: #{tpu_custom_call.1} parent=11 // pred_check
          %p399 = pneg %p322
        $region62: #{tpu_custom_call.1} parent=11 // pred_check_branch
          %401 = sbr.rel (%p399) target = $region64
        $region63: #{tpu_custom_call.1} parent=11 // pred_region
          _
        $region64: #{tpu_custom_call.1} parent=11 // pred_fallthru
          _
      $region12: #{tpu_custom_call.1} parent=5 // pred_fallthru
        _
      %p402 = scmp.lt.s32.totalorder %s23, 4
      // Predicated region
      $region65: #{tpu_custom_call.1} parent=5 // pred_check
        %p403 = pneg %p402
      $region66: #{tpu_custom_call.1} parent=5 // pred_check_branch
        %405 = sbr.rel (%p403) target = $region68
      $region67: #{tpu_custom_call.1} parent=5 // pred_region
        // Predicated region
        $region69: #{tpu_custom_call.1} parent=67 // pred_check
          %p406 = pneg %p43
        $region70: #{tpu_custom_call.1} parent=67 // pred_check_branch
          %408 = sbr.rel (%p406) target = $region72
        $region71: #{tpu_custom_call.1} parent=67 // pred_region
          %s409 = smul.u32 2, %s23
          %p410 = scmp.lt.s32.totalorder %s409, 7
          %s411 = scalar_select %p410, %s409, 7
          %s412 = smul.addr %s411, 8
          %s413 = scalar_lea.vmem %s0, %s412
          %s414 = smul.u32 2, %s23
        $region72: #{tpu_custom_call.1} parent=67 // pred_fallthru
          _
      $region68: #{tpu_custom_call.1} parent=5 // pred_fallthru
        _
      %p415 = scmp.le.s32.totalorder 1, %s23
      %p416 = scmp.lt.s32.totalorder %s23, 5
      %p417 = pnand %p415, %p416
      %p418 = pneg %p417
      // Predicated region
      $region73: #{tpu_custom_call.1} parent=5 // pred_check
        _
      $region74: #{tpu_custom_call.1} parent=5 // pred_check_branch
        %420 = sbr.rel (%p417) target = $region76
      $region75: #{tpu_custom_call.1} parent=5 // pred_region
        %s421 = ssub.s32 %s23, 1
        %s422 = smul.u32 2, %s28
        %p423 = scmp.lt.s32.totalorder %s422, 7
        %s424 = scalar_select %p423, %s422, 7
        %s425 = smul.addr %s424, 8
        %s426 = scalar_lea.vmem %s0, %s425
        %p427 = pneg %p49
        %p428 = pneg %p46
        %p429 = pneg %p70
        %p430 = pneg %p67
        %p431 = pneg %p91
        %p432 = pneg %p88
        %p433 = pneg %p112
        %p434 = pneg %p109
        %p435 = pneg %p133
        %p436 = pneg %p130
        %p437 = pneg %p154
        %p438 = pneg %p151
        %p439 = pneg %p175
        %p440 = pneg %p172
        %p441 = pneg %p196
        %p442 = pneg %p193
        %p443 = pneg %p217
        %p444 = pneg %p214
        %p445 = pneg %p238
        %p446 = pneg %p235
        %p447 = pneg %p259
        %p448 = pneg %p256
        %p449 = pneg %p280
        %p450 = pneg %p277
        %p451 = pneg %p301
        %p452 = pneg %p298
        %p453 = pneg %p322
        %p454 = pneg %p319
        %p455 = pneg %p348
        %p456 = pneg %p345
        %s457 = sand.u32 %s335, 1
        %s458 = scalar_lea.sflag [#allocation3], %s457
        %s459 = sand.u32 %s335, 1
        %s460 = smul.addr %s459, 16
        %s461 = scalar_lea.vmem [#allocation2], %s460
        %s462 = smul.u32 2, %s28
        %p463 = scmp.lt.s32.totalorder %s462, 7
        %s464 = scalar_select %p463, %s462, 7
        %s465 = smul.addr %s464, 8
        %s466 = scalar_lea.vmem %s0, %s465
        %s467 = smul.u32 2, %s28
        %s468 = smul.u32 2, %s28
        %v470 = vld [vmem:[%s466] sm:$0xff]
        %v471 = vld [vmem:[%s466 + $0x8] sm:$0xff]
        %v472 = vld [vmem:[%s1] sm:$0x1]
        %v473 = vld [vmem:[%s2] sm:$0x1]
        %vm474 = vcmask 261120
        %v475 = vsel %vm474, %v470, 0.0
        %476 = vadd.xlane.f32.xlu0 %v475
        %v477 = vpop.xlane.xlu0 %476
        %v478 = vsel %vm474, %v471, 0.0
        %479 = vadd.xlane.f32.xlu0 %v478
        %v480 = vpop.xlane.xlu0 %479
        %v481 = vrcp.pop 32.0
        %v482 = vmul.f32 %v477, %v481
        %v483 = vmul.f32 %v480, %v481
        %v484 = vsub.f32 %v470, %v482
        %v485 = vsub.f32 %v471, %v483
        %v486 = vmul.f32 %v484, %v484
        %v487 = vmul.f32 %v485, %v485
        %v488 = vsel %vm474, %v486, 0.0
        %489 = vadd.xlane.f32.xlu0 %v488
        %v490 = vpop.xlane.xlu0 %489
        %v491 = vsel %vm474, %v487, 0.0
        %492 = vadd.xlane.f32.xlu0 %v491
        %v493 = vpop.xlane.xlu0 %492
        %v494 = vmul.f32 %v490, %v481
        %v495 = vmul.f32 %v493, %v481
        %v496 = vadd.f32 %v494, 1e-05
        %v497 = vadd.f32 %v495, 1e-05
        %v498 = vrsqrt.pop %v496
        %v499 = vrsqrt.pop %v497
        %v500 = vmul.f32 %v484, %v498
        %v501 = vmul.f32 %v485, %v499
        %v503 = vlaneseq
        %v504 = vshrl.u32 %v503, 7
        %v505 = vsub.s32 0, %v504
        %v506 = vrot.slane %v472, %v505
        %v508 = vmul.f32 %v500, %v506
        %v509 = vmul.f32 %v501, %v506
        %v511 = vlaneseq
        %v512 = vshrl.u32 %v511, 7
        %v513 = vsub.s32 0, %v512
        %v514 = vrot.slane %v473, %v513
        %v516 = vadd.f32 %v508, %v514
        %v517 = vadd.f32 %v509, %v514
        %v518 = vpack.c.bf16 %v517, %v516
        %v519 = vld [vmem:[%s3] sm:$0xf]
        %v520 = vld [vmem:[%s3 + $0x4] sm:$0xf]
        %v521 = vld [vmem:[%s3 + $0x8] sm:$0xf]
        %v522 = vld [vmem:[%s3 + $0xc] sm:$0xf]
        %v523 = vld [vmem:[%s3 + $0x10] sm:$0xf]
        %v524 = vld [vmem:[%s3 + $0x14] sm:$0xf]
        %v525 = vld [vmem:[%s3 + $0x18] sm:$0xf]
        %v526 = vld [vmem:[%s3 + $0x1c] sm:$0xf]
        %v527 = vld [vmem:[%s3 + $0x20] sm:$0xf]
        %v528 = vld [vmem:[%s3 + $0x24] sm:$0xf]
        %v529 = vld [vmem:[%s3 + $0x28] sm:$0xf]
        %v530 = vld [vmem:[%s3 + $0x2c] sm:$0xf]
        %v531 = vld [vmem:[%s3 + $0x30] sm:$0xf]
        %v532 = vld [vmem:[%s3 + $0x34] sm:$0xf]
        %v533 = vld [vmem:[%s3 + $0x38] sm:$0xf]
        %v534 = vld [vmem:[%s3 + $0x3c] sm:$0xf]
        %v535 = vld [vmem:[%s3 + $0x40] sm:$0xf]
        %v536 = vld [vmem:[%s3 + $0x44] sm:$0xf]
        %v537 = vld [vmem:[%s3 + $0x48] sm:$0xf]
        %v538 = vld [vmem:[%s3 + $0x4c] sm:$0xf]
        %v539 = vld [vmem:[%s3 + $0x50] sm:$0xf]
        %v540 = vld [vmem:[%s3 + $0x54] sm:$0xf]
        %v541 = vld [vmem:[%s3 + $0x58] sm:$0xf]
        %v542 = vld [vmem:[%s3 + $0x5c] sm:$0xf]
        %v543 = vld [vmem:[%s3 + $0x60] sm:$0xf]
        %v544 = vld [vmem:[%s3 + $0x64] sm:$0xf]
        %v545 = vld [vmem:[%s3 + $0x68] sm:$0xf]
        %v546 = vld [vmem:[%s3 + $0x6c] sm:$0xf]
        %v547 = vld [vmem:[%s3 + $0x70] sm:$0xf]
        %v548 = vld [vmem:[%s3 + $0x74] sm:$0xf]
        %v549 = vld [vmem:[%s3 + $0x78] sm:$0xf]
        %v550 = vld [vmem:[%s3 + $0x7c] sm:$0xf]
        %v555 = vunpack.c.l.b16 %v519
        %v556 = vunpack.c.l.b16 %v520
        %v557 = vunpack.c.l.b16 %v521
        %v558 = vunpack.c.l.b16 %v522
        %v559 = vpack.c.b16 %v556, %v555
        %v560 = vpack.c.b16 %v558, %v557
        %v564 = vsel %vm474, %v518, 0
        %566 = vmatprep.subr.bf16.mxu0 0
        %567 = vmatpush1.bf16.msra.mxu0 %v559
        %568 = vmatprep.subr.bf16.mxu0 0
        %569 = vmatpush1.bf16.msra.mxu0 %v560
        %570 = vmatprep.subr.bf16.mxu0 0
        %571 = vmatpush1.bf16.msra.mxu0 0
        %572 = vmatprep.subr.bf16.mxu0 0
        %573 = vmatpush1.bf16.msra.mxu0 0
        %574 = vmatprep.subr.bf16.mxu0 0
        %575 = vmatpush1.bf16.msra.mxu0 0
        %576 = vmatprep.subr.bf16.mxu0 0
        %577 = vmatpush1.bf16.msra.mxu0 0
        %578 = vmatprep.subr.bf16.mxu0 0
        %579 = vmatpush1.bf16.msra.mxu0 0
        %580 = vmatprep.subr.bf16.mxu0 0
        %581 = vmatpush1.bf16.msra.mxu0 0
        %582 = vmatprep.subr.bf16.mxu0 0
        %583 = vmatpush1.bf16.msra.mxu0 0
        %584 = vmatprep.subr.bf16.mxu0 0
        %585 = vmatpush1.bf16.msra.mxu0 0
        %586 = vmatprep.subr.bf16.mxu0 0
        %587 = vmatpush1.bf16.msra.mxu0 0
        %588 = vmatprep.subr.bf16.mxu0 0
        %589 = vmatpush1.bf16.msra.mxu0 0
        %590 = vmatprep.subr.bf16.mxu0 0
        %591 = vmatpush1.bf16.msra.mxu0 0
        %592 = vmatprep.subr.bf16.mxu0 0
        %593 = vmatpush1.bf16.msra.mxu0 0
        %594 = vmatprep.subr.bf16.mxu0 0
        %595 = vmatpush1.bf16.msra.mxu0 0
        %596 = vmatprep.subr.bf16.mxu0 0
        %597 = vmatpush1.bf16.msra.mxu0 0
        %598 = vmatprep.mubr.bf16.mxu0 0
        %599 = vmatmul.mubr.bf16.gmra.mrb[0].mxu0 %v564
        %v600 = vpop.f32.mrb[0].mxu0
        %v601 = vadd.f32 0.0, %v600
        %v602 = vpop.f32.mrb[0].mxu0
        %v603 = vpop.f32.mrb[0].mxu0
        %v604 = vadd.f32 0.0, %v603
        %v605 = vpop.f32.mrb[0].mxu0
        %606 = vdwg.mxu0
        %v611 = vunpack.c.l.b16 %v523
        %v612 = vunpack.c.l.b16 %v524
        %v613 = vunpack.c.l.b16 %v525
        %v614 = vunpack.c.l.b16 %v526
        %v615 = vpack.c.b16 %v612, %v611
        %v616 = vpack.c.b16 %v614, %v613
        %619 = vmatprep.subr.bf16.mxu0 0
        %620 = vmatpush1.bf16.msra.mxu0 %v615
        %621 = vmatprep.subr.bf16.mxu0 0
        %622 = vmatpush1.bf16.msra.mxu0 %v616
        %623 = vmatprep.subr.bf16.mxu0 0
        %624 = vmatpush1.bf16.msra.mxu0 0
        %625 = vmatprep.subr.bf16.mxu0 0
        %626 = vmatpush1.bf16.msra.mxu0 0
        %627 = vmatprep.subr.bf16.mxu0 0
        %628 = vmatpush1.bf16.msra.mxu0 0
        %629 = vmatprep.subr.bf16.mxu0 0
        %630 = vmatpush1.bf16.msra.mxu0 0
        %631 = vmatprep.subr.bf16.mxu0 0
        %632 = vmatpush1.bf16.msra.mxu0 0
        %633 = vmatprep.subr.bf16.mxu0 0
        %634 = vmatpush1.bf16.msra.mxu0 0
        %635 = vmatprep.subr.bf16.mxu0 0
        %636 = vmatpush1.bf16.msra.mxu0 0
        %637 = vmatprep.subr.bf16.mxu0 0
        %638 = vmatpush1.bf16.msra.mxu0 0
        %639 = vmatprep.subr.bf16.mxu0 0
        %640 = vmatpush1.bf16.msra.mxu0 0
        %641 = vmatprep.subr.bf16.mxu0 0
        %642 = vmatpush1.bf16.msra.mxu0 0
        %643 = vmatprep.subr.bf16.mxu0 0
        %644 = vmatpush1.bf16.msra.mxu0 0
        %645 = vmatprep.subr.bf16.mxu0 0
        %646 = vmatpush1.bf16.msra.mxu0 0
        %647 = vmatprep.subr.bf16.mxu0 0
        %648 = vmatpush1.bf16.msra.mxu0 0
        %649 = vmatprep.subr.bf16.mxu0 0
        %650 = vmatpush1.bf16.msra.mxu0 0
        %651 = vmatprep.mubr.bf16.mxu0 0
        %652 = vmatmul.mubr.bf16.gmra.mrb[0].mxu0 %v564
        %v653 = vpop.f32.mrb[0].mxu0
        %v654 = vadd.f32 0.0, %v653
        %v655 = vpop.f32.mrb[0].mxu0
        %v656 = vpop.f32.mrb[0].mxu0
        %v657 = vadd.f32 0.0, %v656
        %v658 = vpop.f32.mrb[0].mxu0
        %659 = vdwg.mxu0
        %v664 = vunpack.c.l.b16 %v527
        %v665 = vunpack.c.l.b16 %v528
        %v666 = vunpack.c.l.b16 %v529
        %v667 = vunpack.c.l.b16 %v530
        %v668 = vpack.c.b16 %v665, %v664
        %v669 = vpack.c.b16 %v667, %v666
        %672 = vmatprep.subr.bf16.mxu0 0
        %673 = vmatpush1.bf16.msra.mxu0 %v668
        %674 = vmatprep.subr.bf16.mxu0 0
        %675 = vmatpush1.bf16.msra.mxu0 %v669
        %676 = vmatprep.subr.bf16.mxu0 0
        %677 = vmatpush1.bf16.msra.mxu0 0
        %678 = vmatprep.subr.bf16.mxu0 0
        %679 = vmatpush1.bf16.msra.mxu0 0
        %680 = vmatprep.subr.bf16.mxu0 0
        %681 = vmatpush1.bf16.msra.mxu0 0
        %682 = vmatprep.subr.bf16.mxu0 0
        %683 = vmatpush1.bf16.msra.mxu0 0
        %684 = vmatprep.subr.bf16.mxu0 0
        %685 = vmatpush1.bf16.msra.mxu0 0
        %686 = vmatprep.subr.bf16.mxu0 0
        %687 = vmatpush1.bf16.msra.mxu0 0
        %688 = vmatprep.subr.bf16.mxu0 0
        %689 = vmatpush1.bf16.msra.mxu0 0
        %690 = vmatprep.subr.bf16.mxu0 0
        %691 = vmatpush1.bf16.msra.mxu0 0
        %692 = vmatprep.subr.bf16.mxu0 0
        %693 = vmatpush1.bf16.msra.mxu0 0
        %694 = vmatprep.subr.bf16.mxu0 0
        %695 = vmatpush1.bf16.msra.mxu0 0
        %696 = vmatprep.subr.bf16.mxu0 0
        %697 = vmatpush1.bf16.msra.mxu0 0
        %698 = vmatprep.subr.bf16.mxu0 0
        %699 = vmatpush1.bf16.msra.mxu0 0
        %700 = vmatprep.subr.bf16.mxu0 0
        %701 = vmatpush1.bf16.msra.mxu0 0
        %702 = vmatprep.subr.bf16.mxu0 0
        %703 = vmatpush1.bf16.msra.mxu0 0
        %704 = vmatprep.mubr.bf16.mxu0 0
        %705 = vmatmul.mubr.bf16.gmra.mrb[0].mxu0 %v564
        %v706 = vpop.f32.mrb[0].mxu0
        %v707 = vadd.f32 0.0, %v706
        %v708 = vpop.f32.mrb[0].mxu0
        %v709 = vpop.f32.mrb[0].mxu0
        %v710 = vadd.f32 0.0, %v709
        %v711 = vpop.f32.mrb[0].mxu0
        %712 = vdwg.mxu0
        %v717 = vunpack.c.l.b16 %v531
        %v718 = vunpack.c.l.b16 %v532
        %v719 = vunpack.c.l.b16 %v533
        %v720 = vunpack.c.l.b16 %v534
        %v721 = vpack.c.b16 %v718, %v717
        %v722 = vpack.c.b16 %v720, %v719
        %725 = vmatprep.subr.bf16.mxu0 0
        %726 = vmatpush1.bf16.msra.mxu0 %v721
        %727 = vmatprep.subr.bf16.mxu0 0
        %728 = vmatpush1.bf16.msra.mxu0 %v722
        %729 = vmatprep.subr.bf16.mxu0 0
        %730 = vmatpush1.bf16.msra.mxu0 0
        %731 = vmatprep.subr.bf16.mxu0 0
        %732 = vmatpush1.bf16.msra.mxu0 0
        %733 = vmatprep.subr.bf16.mxu0 0
        %734 = vmatpush1.bf16.msra.mxu0 0
        %735 = vmatprep.subr.bf16.mxu0 0
        %736 = vmatpush1.bf16.msra.mxu0 0
        %737 = vmatprep.subr.bf16.mxu0 0
        %738 = vmatpush1.bf16.msra.mxu0 0
        %739 = vmatprep.subr.bf16.mxu0 0
        %740 = vmatpush1.bf16.msra.mxu0 0
        %741 = vmatprep.subr.bf16.mxu0 0
        %742 = vmatpush1.bf16.msra.mxu0 0
        %743 = vmatprep.subr.bf16.mxu0 0
        %744 = vmatpush1.bf16.msra.mxu0 0
        %745 = vmatprep.subr.bf16.mxu0 0
        %746 = vmatpush1.bf16.msra.mxu0 0
        %747 = vmatprep.subr.bf16.mxu0 0
        %748 = vmatpush1.bf16.msra.mxu0 0
        %749 = vmatprep.subr.bf16.mxu0 0
        %750 = vmatpush1.bf16.msra.mxu0 0
        %751 = vmatprep.subr.bf16.mxu0 0
        %752 = vmatpush1.bf16.msra.mxu0 0
        %753 = vmatprep.subr.bf16.mxu0 0
        %754 = vmatpush1.bf16.msra.mxu0 0
        %755 = vmatprep.subr.bf16.mxu0 0
        %756 = vmatpush1.bf16.msra.mxu0 0
        %757 = vmatprep.mubr.bf16.mxu0 0
        %758 = vmatmul.mubr.bf16.gmra.mrb[0].mxu0 %v564
        %v759 = vpop.f32.mrb[0].mxu0
        %v760 = vadd.f32 0.0, %v759
        %v761 = vpop.f32.mrb[0].mxu0
        %v762 = vpop.f32.mrb[0].mxu0
        %v763 = vadd.f32 0.0, %v762
        %v764 = vpop.f32.mrb[0].mxu0
        %765 = vdwg.mxu0
        %v770 = vunpack.c.l.b16 %v535
        %v771 = vunpack.c.l.b16 %v536
        %v772 = vunpack.c.l.b16 %v537
        %v773 = vunpack.c.l.b16 %v538
        %v774 = vpack.c.b16 %v771, %v770
        %v775 = vpack.c.b16 %v773, %v772
        %778 = vmatprep.subr.bf16.mxu0 0
        %779 = vmatpush1.bf16.msra.mxu0 %v774
        %780 = vmatprep.subr.bf16.mxu0 0
        %781 = vmatpush1.bf16.msra.mxu0 %v775
        %782 = vmatprep.subr.bf16.mxu0 0
        %783 = vmatpush1.bf16.msra.mxu0 0
        %784 = vmatprep.subr.bf16.mxu0 0
        %785 = vmatpush1.bf16.msra.mxu0 0
        %786 = vmatprep.subr.bf16.mxu0 0
        %787 = vmatpush1.bf16.msra.mxu0 0
        %788 = vmatprep.subr.bf16.mxu0 0
        %789 = vmatpush1.bf16.msra.mxu0 0
        %790 = vmatprep.subr.bf16.mxu0 0
        %791 = vmatpush1.bf16.msra.mxu0 0
        %792 = vmatprep.subr.bf16.mxu0 0
        %793 = vmatpush1.bf16.msra.mxu0 0
        %794 = vmatprep.subr.bf16.mxu0 0
        %795 = vmatpush1.bf16.msra.mxu0 0
        %796 = vmatprep.subr.bf16.mxu0 0
        %797 = vmatpush1.bf16.msra.mxu0 0
        %798 = vmatprep.subr.bf16.mxu0 0
        %799 = vmatpush1.bf16.msra.mxu0 0
        %800 = vmatprep.subr.bf16.mxu0 0
        %801 = vmatpush1.bf16.msra.mxu0 0
        %802 = vmatprep.subr.bf16.mxu0 0
        %803 = vmatpush1.bf16.msra.mxu0 0
        %804 = vmatprep.subr.bf16.mxu0 0
        %805 = vmatpush1.bf16.msra.mxu0 0
        %806 = vmatprep.subr.bf16.mxu0 0
        %807 = vmatpush1.bf16.msra.mxu0 0
        %808 = vmatprep.subr.bf16.mxu0 0
        %809 = vmatpush1.bf16.msra.mxu0 0
        %810 = vmatprep.mubr.bf16.mxu0 0
        %811 = vmatmul.mubr.bf16.gmra.mrb[0].mxu0 %v564
        %v812 = vpop.f32.mrb[0].mxu0
        %v813 = vadd.f32 0.0, %v812
        %v814 = vpop.f32.mrb[0].mxu0
        %v815 = vpop.f32.mrb[0].mxu0
        %v816 = vadd.f32 0.0, %v815
        %v817 = vpop.f32.mrb[0].mxu0
        %818 = vdwg.mxu0
        %v823 = vunpack.c.l.b16 %v539
        %v824 = vunpack.c.l.b16 %v540
        %v825 = vunpack.c.l.b16 %v541
        %v826 = vunpack.c.l.b16 %v542
        %v827 = vpack.c.b16 %v824, %v823
        %v828 = vpack.c.b16 %v826, %v825
        %831 = vmatprep.subr.bf16.mxu0 0
        %832 = vmatpush1.bf16.msra.mxu0 %v827
        %833 = vmatprep.subr.bf16.mxu0 0
        %834 = vmatpush1.bf16.msra.mxu0 %v828
        %835 = vmatprep.subr.bf16.mxu0 0
        %836 = vmatpush1.bf16.msra.mxu0 0
        %837 = vmatprep.subr.bf16.mxu0 0
        %838 = vmatpush1.bf16.msra.mxu0 0
        %839 = vmatprep.subr.bf16.mxu0 0
        %840 = vmatpush1.bf16.msra.mxu0 0
        %841 = vmatprep.subr.bf16.mxu0 0
        %842 = vmatpush1.bf16.msra.mxu0 0
        %843 = vmatprep.subr.bf16.mxu0 0
        %844 = vmatpush1.bf16.msra.mxu0 0
        %845 = vmatprep.subr.bf16.mxu0 0
        %846 = vmatpush1.bf16.msra.mxu0 0
        %847 = vmatprep.subr.bf16.mxu0 0
        %848 = vmatpush1.bf16.msra.mxu0 0
        %849 = vmatprep.subr.bf16.mxu0 0
        %850 = vmatpush1.bf16.msra.mxu0 0
        %851 = vmatprep.subr.bf16.mxu0 0
        %852 = vmatpush1.bf16.msra.mxu0 0
        %853 = vmatprep.subr.bf16.mxu0 0
        %854 = vmatpush1.bf16.msra.mxu0 0
        %855 = vmatprep.subr.bf16.mxu0 0
        %856 = vmatpush1.bf16.msra.mxu0 0
        %857 = vmatprep.subr.bf16.mxu0 0
        %858 = vmatpush1.bf16.msra.mxu0 0
        %859 = vmatprep.subr.bf16.mxu0 0
        %860 = vmatpush1.bf16.msra.mxu0 0
        %861 = vmatprep.subr.bf16.mxu0 0
        %862 = vmatpush1.bf16.msra.mxu0 0
        %863 = vmatprep.mubr.bf16.mxu0 0
        %864 = vmatmul.mubr.bf16.gmra.mrb[0].mxu0 %v564
        %v865 = vpop.f32.mrb[0].mxu0
        %v866 = vadd.f32 0.0, %v865
        %v867 = vpop.f32.mrb[0].mxu0
        %v868 = vpop.f32.mrb[0].mxu0
        %v869 = vadd.f32 0.0, %v868
        %v870 = vpop.f32.mrb[0].mxu0
        %871 = vdwg.mxu0
        %v876 = vunpack.c.l.b16 %v543
        %v877 = vunpack.c.l.b16 %v544
        %v878 = vunpack.c.l.b16 %v545
        %v879 = vunpack.c.l.b16 %v546
        %v880 = vpack.c.b16 %v877, %v876
        %v881 = vpack.c.b16 %v879, %v878
        %884 = vmatprep.subr.bf16.mxu0 0
        %885 = vmatpush1.bf16.msra.mxu0 %v880
        %886 = vmatprep.subr.bf16.mxu0 0
        %887 = vmatpush1.bf16.msra.mxu0 %v881
        %888 = vmatprep.subr.bf16.mxu0 0
        %889 = vmatpush1.bf16.msra.mxu0 0
        %890 = vmatprep.subr.bf16.mxu0 0
        %891 = vmatpush1.bf16.msra.mxu0 0
        %892 = vmatprep.subr.bf16.mxu0 0
        %893 = vmatpush1.bf16.msra.mxu0 0
        %894 = vmatprep.subr.bf16.mxu0 0
        %895 = vmatpush1.bf16.msra.mxu0 0
        %896 = vmatprep.subr.bf16.mxu0 0
        %897 = vmatpush1.bf16.msra.mxu0 0
        %898 = vmatprep.subr.bf16.mxu0 0
        %899 = vmatpush1.bf16.msra.mxu0 0
        %900 = vmatprep.subr.bf16.mxu0 0
        %901 = vmatpush1.bf16.msra.mxu0 0
        %902 = vmatprep.subr.bf16.mxu0 0
        %903 = vmatpush1.bf16.msra.mxu0 0
        %904 = vmatprep.subr.bf16.mxu0 0
        %905 = vmatpush1.bf16.msra.mxu0 0
        %906 = vmatprep.subr.bf16.mxu0 0
        %907 = vmatpush1.bf16.msra.mxu0 0
        %908 = vmatprep.subr.bf16.mxu0 0
        %909 = vmatpush1.bf16.msra.mxu0 0
        %910 = vmatprep.subr.bf16.mxu0 0
        %911 = vmatpush1.bf16.msra.mxu0 0
        %912 = vmatprep.subr.bf16.mxu0 0
        %913 = vmatpush1.bf16.msra.mxu0 0
        %914 = vmatprep.subr.bf16.mxu0 0
        %915 = vmatpush1.bf16.msra.mxu0 0
        %916 = vmatprep.mubr.bf16.mxu0 0
        %917 = vmatmul.mubr.bf16.gmra.mrb[0].mxu0 %v564
        %v918 = vpop.f32.mrb[0].mxu0
        %v919 = vadd.f32 0.0, %v918
        %v920 = vpop.f32.mrb[0].mxu0
        %v921 = vpop.f32.mrb[0].mxu0
        %v922 = vadd.f32 0.0, %v921
        %v923 = vpop.f32.mrb[0].mxu0
        %924 = vdwg.mxu0
        %v929 = vunpack.c.l.b16 %v547
        %v930 = vunpack.c.l.b16 %v548
        %v931 = vunpack.c.l.b16 %v549
        %v932 = vunpack.c.l.b16 %v550
        %v933 = vpack.c.b16 %v930, %v929
        %v934 = vpack.c.b16 %v932, %v931
        %937 = vmatprep.subr.bf16.mxu0 0
        %938 = vmatpush1.bf16.msra.mxu0 %v933
        %939 = vmatprep.subr.bf16.mxu0 0
        %940 = vmatpush1.bf16.msra.mxu0 %v934
        %941 = vmatprep.subr.bf16.mxu0 0
        %942 = vmatpush1.bf16.msra.mxu0 0
        %943 = vmatprep.subr.bf16.mxu0 0
        %944 = vmatpush1.bf16.msra.mxu0 0
        %945 = vmatprep.subr.bf16.mxu0 0
        %946 = vmatpush1.bf16.msra.mxu0 0
        %947 = vmatprep.subr.bf16.mxu0 0
        %948 = vmatpush1.bf16.msra.mxu0 0
        %949 = vmatprep.subr.bf16.mxu0 0
        %950 = vmatpush1.bf16.msra.mxu0 0
        %951 = vmatprep.subr.bf16.mxu0 0
        %952 = vmatpush1.bf16.msra.mxu0 0
        %953 = vmatprep.subr.bf16.mxu0 0
        %954 = vmatpush1.bf16.msra.mxu0 0
        %955 = vmatprep.subr.bf16.mxu0 0
        %956 = vmatpush1.bf16.msra.mxu0 0
        %957 = vmatprep.subr.bf16.mxu0 0
        %958 = vmatpush1.bf16.msra.mxu0 0
        %959 = vmatprep.subr.bf16.mxu0 0
        %960 = vmatpush1.bf16.msra.mxu0 0
        %961 = vmatprep.subr.bf16.mxu0 0
        %962 = vmatpush1.bf16.msra.mxu0 0
        %963 = vmatprep.subr.bf16.mxu0 0
        %964 = vmatpush1.bf16.msra.mxu0 0
        %965 = vmatprep.subr.bf16.mxu0 0
        %966 = vmatpush1.bf16.msra.mxu0 0
        %967 = vmatprep.subr.bf16.mxu0 0
        %968 = vmatpush1.bf16.msra.mxu0 0
        %969 = vmatprep.mubr.bf16.mxu0 0
        %970 = vmatmul.mubr.bf16.gmra.mrb[0].mxu0 %v564
        %v971 = vpop.f32.mrb[0].mxu0
        %v972 = vadd.f32 0.0, %v971
        %v973 = vpop.f32.mrb[0].mxu0
        %v974 = vpop.f32.mrb[0].mxu0
        %v975 = vadd.f32 0.0, %v974
        %v976 = vpop.f32.mrb[0].mxu0
        %977 = vdwg.mxu0
        %v978 = vld [vmem:[%s4] sm:$0xf]
        %v979 = vld [vmem:[%s4 + $0x4] sm:$0xf]
        %v980 = vld [vmem:[%s4 + $0x8] sm:$0xf]
        %v981 = vld [vmem:[%s4 + $0xc] sm:$0xf]
        %v982 = vld [vmem:[%s4 + $0x10] sm:$0xf]
        %v983 = vld [vmem:[%s4 + $0x14] sm:$0xf]
        %v984 = vld [vmem:[%s4 + $0x18] sm:$0xf]
        %v985 = vld [vmem:[%s4 + $0x1c] sm:$0xf]
        %v986 = vld [vmem:[%s4 + $0x20] sm:$0xf]
        %v987 = vld [vmem:[%s4 + $0x24] sm:$0xf]
        %v988 = vld [vmem:[%s4 + $0x28] sm:$0xf]
        %v989 = vld [vmem:[%s4 + $0x2c] sm:$0xf]
        %v990 = vld [vmem:[%s4 + $0x30] sm:$0xf]
        %v991 = vld [vmem:[%s4 + $0x34] sm:$0xf]
        %v992 = vld [vmem:[%s4 + $0x38] sm:$0xf]
        %v993 = vld [vmem:[%s4 + $0x3c] sm:$0xf]
        %v994 = vld [vmem:[%s4 + $0x40] sm:$0xf]
        %v995 = vld [vmem:[%s4 + $0x44] sm:$0xf]
        %v996 = vld [vmem:[%s4 + $0x48] sm:$0xf]
        %v997 = vld [vmem:[%s4 + $0x4c] sm:$0xf]
        %v998 = vld [vmem:[%s4 + $0x50] sm:$0xf]
        %v999 = vld [vmem:[%s4 + $0x54] sm:$0xf]
        %v1000 = vld [vmem:[%s4 + $0x58] sm:$0xf]
        %v1001 = vld [vmem:[%s4 + $0x5c] sm:$0xf]
        %v1002 = vld [vmem:[%s4 + $0x60] sm:$0xf]
        %v1003 = vld [vmem:[%s4 + $0x64] sm:$0xf]
        %v1004 = vld [vmem:[%s4 + $0x68] sm:$0xf]
        %v1005 = vld [vmem:[%s4 + $0x6c] sm:$0xf]
        %v1006 = vld [vmem:[%s4 + $0x70] sm:$0xf]
        %v1007 = vld [vmem:[%s4 + $0x74] sm:$0xf]
        %v1008 = vld [vmem:[%s4 + $0x78] sm:$0xf]
        %v1009 = vld [vmem:[%s4 + $0x7c] sm:$0xf]
        %v1014 = vunpack.c.l.b16 %v978
        %v1015 = vunpack.c.l.b16 %v979
        %v1016 = vunpack.c.l.b16 %v980
        %v1017 = vunpack.c.l.b16 %v981
        %v1018 = vpack.c.b16 %v1015, %v1014
        %v1019 = vpack.c.b16 %v1017, %v1016
        %1022 = vmatprep.subr.bf16.mxu0 0
        %1023 = vmatpush1.bf16.msra.mxu0 %v1018
        %1024 = vmatprep.subr.bf16.mxu0 0
        %1025 = vmatpush1.bf16.msra.mxu0 %v1019
        %1026 = vmatprep.subr.bf16.mxu0 0
        %1027 = vmatpush1.bf16.msra.mxu0 0
        %1028 = vmatprep.subr.bf16.mxu0 0
        %1029 = vmatpush1.bf16.msra.mxu0 0
        %1030 = vmatprep.subr.bf16.mxu0 0
        %1031 = vmatpush1.bf16.msra.mxu0 0
        %1032 = vmatprep.subr.bf16.mxu0 0
        %1033 = vmatpush1.bf16.msra.mxu0 0
        %1034 = vmatprep.subr.bf16.mxu0 0
        %1035 = vmatpush1.bf16.msra.mxu0 0
        %1036 = vmatprep.subr.bf16.mxu0 0
        %1037 = vmatpush1.bf16.msra.mxu0 0
        %1038 = vmatprep.subr.bf16.mxu0 0
        %1039 = vmatpush1.bf16.msra.mxu0 0
        %1040 = vmatprep.subr.bf16.mxu0 0
        %1041 = vmatpush1.bf16.msra.mxu0 0
        %1042 = vmatprep.subr.bf16.mxu0 0
        %1043 = vmatpush1.bf16.msra.mxu0 0
        %1044 = vmatprep.subr.bf16.mxu0 0
        %1045 = vmatpush1.bf16.msra.mxu0 0
        %1046 = vmatprep.subr.bf16.mxu0 0
        %1047 = vmatpush1.bf16.msra.mxu0 0
        %1048 = vmatprep.subr.bf16.mxu0 0
        %1049 = vmatpush1.bf16.msra.mxu0 0
        %1050 = vmatprep.subr.bf16.mxu0 0
        %1051 = vmatpush1.bf16.msra.mxu0 0
        %1052 = vmatprep.subr.bf16.mxu0 0
        %1053 = vmatpush1.bf16.msra.mxu0 0
        %1054 = vmatprep.mubr.bf16.mxu0 0
        %1055 = vmatmul.mubr.bf16.gmra.mrb[0].mxu0 %v564
        %v1056 = vpop.f32.mrb[0].mxu0
        %v1057 = vadd.f32 0.0, %v1056
        %v1058 = vpop.f32.mrb[0].mxu0
        %v1059 = vpop.f32.mrb[0].mxu0
        %v1060 = vadd.f32 0.0, %v1059
        %v1061 = vpop.f32.mrb[0].mxu0
        %1062 = vdwg.mxu0
        %v1067 = vunpack.c.l.b16 %v982
        %v1068 = vunpack.c.l.b16 %v983
        %v1069 = vunpack.c.l.b16 %v984
        %v1070 = vunpack.c.l.b16 %v985
        %v1071 = vpack.c.b16 %v1068, %v1067
        %v1072 = vpack.c.b16 %v1070, %v1069
        %1075 = vmatprep.subr.bf16.mxu0 0
        %1076 = vmatpush1.bf16.msra.mxu0 %v1071
        %1077 = vmatprep.subr.bf16.mxu0 0
        %1078 = vmatpush1.bf16.msra.mxu0 %v1072
        %1079 = vmatprep.subr.bf16.mxu0 0
        %1080 = vmatpush1.bf16.msra.mxu0 0
        %1081 = vmatprep.subr.bf16.mxu0 0
        %1082 = vmatpush1.bf16.msra.mxu0 0
        %1083 = vmatprep.subr.bf16.mxu0 0
        %1084 = vmatpush1.bf16.msra.mxu0 0
        %1085 = vmatprep.subr.bf16.mxu0 0
        %1086 = vmatpush1.bf16.msra.mxu0 0
        %1087 = vmatprep.subr.bf16.mxu0 0
        %1088 = vmatpush1.bf16.msra.mxu0 0
        %1089 = vmatprep.subr.bf16.mxu0 0
        %1090 = vmatpush1.bf16.msra.mxu0 0
        %1091 = vmatprep.subr.bf16.mxu0 0
        %1092 = vmatpush1.bf16.msra.mxu0 0
        %1093 = vmatprep.subr.bf16.mxu0 0
        %1094 = vmatpush1.bf16.msra.mxu0 0
        %1095 = vmatprep.subr.bf16.mxu0 0
        %1096 = vmatpush1.bf16.msra.mxu0 0
        %1097 = vmatprep.subr.bf16.mxu0 0
        %1098 = vmatpush1.bf16.msra.mxu0 0
        %1099 = vmatprep.subr.bf16.mxu0 0
        %1100 = vmatpush1.bf16.msra.mxu0 0
        %1101 = vmatprep.subr.bf16.mxu0 0
        %1102 = vmatpush1.bf16.msra.mxu0 0
        %1103 = vmatprep.subr.bf16.mxu0 0
        %1104 = vmatpush1.bf16.msra.mxu0 0
        %1105 = vmatprep.subr.bf16.mxu0 0
        %1106 = vmatpush1.bf16.msra.mxu0 0
        %1107 = vmatprep.mubr.bf16.mxu0 0
        %1108 = vmatmul.mubr.bf16.gmra.mrb[0].mxu0 %v564
        %v1109 = vpop.f32.mrb[0].mxu0
        %v1110 = vadd.f32 0.0, %v1109
        %v1111 = vpop.f32.mrb[0].mxu0
        %v1112 = vpop.f32.mrb[0].mxu0
        %v1113 = vadd.f32 0.0, %v1112
        %v1114 = vpop.f32.mrb[0].mxu0
        %1115 = vdwg.mxu0
        %v1120 = vunpack.c.l.b16 %v986
        %v1121 = vunpack.c.l.b16 %v987
        %v1122 = vunpack.c.l.b16 %v988
        %v1123 = vunpack.c.l.b16 %v989
        %v1124 = vpack.c.b16 %v1121, %v1120
        %v1125 = vpack.c.b16 %v1123, %v1122
        %1128 = vmatprep.subr.bf16.mxu0 0
        %1129 = vmatpush1.bf16.msra.mxu0 %v1124
        %1130 = vmatprep.subr.bf16.mxu0 0
        %1131 = vmatpush1.bf16.msra.mxu0 %v1125
        %1132 = vmatprep.subr.bf16.mxu0 0
        %1133 = vmatpush1.bf16.msra.mxu0 0
        %1134 = vmatprep.subr.bf16.mxu0 0
        %1135 = vmatpush1.bf16.msra.mxu0 0
        %1136 = vmatprep.subr.bf16.mxu0 0
        %1137 = vmatpush1.bf16.msra.mxu0 0
        %1138 = vmatprep.subr.bf16.mxu0 0
        %1139 = vmatpush1.bf16.msra.mxu0 0
        %1140 = vmatprep.subr.bf16.mxu0 0
        %1141 = vmatpush1.bf16.msra.mxu0 0
        %1142 = vmatprep.subr.bf16.mxu0 0
        %1143 = vmatpush1.bf16.msra.mxu0 0
        %1144 = vmatprep.subr.bf16.mxu0 0
        %1145 = vmatpush1.bf16.msra.mxu0 0
        %1146 = vmatprep.subr.bf16.mxu0 0
        %1147 = vmatpush1.bf16.msra.mxu0 0
        %1148 = vmatprep.subr.bf16.mxu0 0
        %1149 = vmatpush1.bf16.msra.mxu0 0
        %1150 = vmatprep.subr.bf16.mxu0 0
        %1151 = vmatpush1.bf16.msra.mxu0 0
        %1152 = vmatprep.subr.bf16.mxu0 0
        %1153 = vmatpush1.bf16.msra.mxu0 0
        %1154 = vmatprep.subr.bf16.mxu0 0
        %1155 = vmatpush1.bf16.msra.mxu0 0
        %1156 = vmatprep.subr.bf16.mxu0 0
        %1157 = vmatpush1.bf16.msra.mxu0 0
        %1158 = vmatprep.subr.bf16.mxu0 0
        %1159 = vmatpush1.bf16.msra.mxu0 0
        %1160 = vmatprep.mubr.bf16.mxu0 0
        %1161 = vmatmul.mubr.bf16.gmra.mrb[0].mxu0 %v564
        %v1162 = vpop.f32.mrb[0].mxu0
        %v1163 = vadd.f32 0.0, %v1162
        %v1164 = vpop.f32.mrb[0].mxu0
        %v1165 = vpop.f32.mrb[0].mxu0
        %v1166 = vadd.f32 0.0, %v1165
        %v1167 = vpop.f32.mrb[0].mxu0
        %1168 = vdwg.mxu0
        %v1173 = vunpack.c.l.b16 %v990
        %v1174 = vunpack.c.l.b16 %v991
        %v1175 = vunpack.c.l.b16 %v992
        %v1176 = vunpack.c.l.b16 %v993
        %v1177 = vpack.c.b16 %v1174, %v1173
        %v1178 = vpack.c.b16 %v1176, %v1175
        %1181 = vmatprep.subr.bf16.mxu0 0
        %1182 = vmatpush1.bf16.msra.mxu0 %v1177
        %1183 = vmatprep.subr.bf16.mxu0 0
        %1184 = vmatpush1.bf16.msra.mxu0 %v1178
        %1185 = vmatprep.subr.bf16.mxu0 0
        %1186 = vmatpush1.bf16.msra.mxu0 0
        %1187 = vmatprep.subr.bf16.mxu0 0
        %1188 = vmatpush1.bf16.msra.mxu0 0
        %1189 = vmatprep.subr.bf16.mxu0 0
        %1190 = vmatpush1.bf16.msra.mxu0 0
        %1191 = vmatprep.subr.bf16.mxu0 0
        %1192 = vmatpush1.bf16.msra.mxu0 0
        %1193 = vmatprep.subr.bf16.mxu0 0
        %1194 = vmatpush1.bf16.msra.mxu0 0
        %1195 = vmatprep.subr.bf16.mxu0 0
        %1196 = vmatpush1.bf16.msra.mxu0 0
        %1197 = vmatprep.subr.bf16.mxu0 0
        %1198 = vmatpush1.bf16.msra.mxu0 0
        %1199 = vmatprep.subr.bf16.mxu0 0
        %1200 = vmatpush1.bf16.msra.mxu0 0
        %1201 = vmatprep.subr.bf16.mxu0 0
        %1202 = vmatpush1.bf16.msra.mxu0 0
        %1203 = vmatprep.subr.bf16.mxu0 0
        %1204 = vmatpush1.bf16.msra.mxu0 0
        %1205 = vmatprep.subr.bf16.mxu0 0
        %1206 = vmatpush1.bf16.msra.mxu0 0
        %1207 = vmatprep.subr.bf16.mxu0 0
        %1208 = vmatpush1.bf16.msra.mxu0 0
        %1209 = vmatprep.subr.bf16.mxu0 0
        %1210 = vmatpush1.bf16.msra.mxu0 0
        %1211 = vmatprep.subr.bf16.mxu0 0
        %1212 = vmatpush1.bf16.msra.mxu0 0
        %1213 = vmatprep.mubr.bf16.mxu0 0
        %1214 = vmatmul.mubr.bf16.gmra.mrb[0].mxu0 %v564
        %v1215 = vpop.f32.mrb[0].mxu0
        %v1216 = vadd.f32 0.0, %v1215
        %v1217 = vpop.f32.mrb[0].mxu0
        %v1218 = vpop.f32.mrb[0].mxu0
        %v1219 = vadd.f32 0.0, %v1218
        %v1220 = vpop.f32.mrb[0].mxu0
        %1221 = vdwg.mxu0
        %v1226 = vunpack.c.l.b16 %v994
        %v1227 = vunpack.c.l.b16 %v995
        %v1228 = vunpack.c.l.b16 %v996
        %v1229 = vunpack.c.l.b16 %v997
        %v1230 = vpack.c.b16 %v1227, %v1226
        %v1231 = vpack.c.b16 %v1229, %v1228
        %1234 = vmatprep.subr.bf16.mxu0 0
        %1235 = vmatpush1.bf16.msra.mxu0 %v1230
        %1236 = vmatprep.subr.bf16.mxu0 0
        %1237 = vmatpush1.bf16.msra.mxu0 %v1231
        %1238 = vmatprep.subr.bf16.mxu0 0
        %1239 = vmatpush1.bf16.msra.mxu0 0
        %1240 = vmatprep.subr.bf16.mxu0 0
        %1241 = vmatpush1.bf16.msra.mxu0 0
        %1242 = vmatprep.subr.bf16.mxu0 0
        %1243 = vmatpush1.bf16.msra.mxu0 0
        %1244 = vmatprep.subr.bf16.mxu0 0
        %1245 = vmatpush1.bf16.msra.mxu0 0
        %1246 = vmatprep.subr.bf16.mxu0 0
        %1247 = vmatpush1.bf16.msra.mxu0 0
        %1248 = vmatprep.subr.bf16.mxu0 0
        %1249 = vmatpush1.bf16.msra.mxu0 0
        %1250 = vmatprep.subr.bf16.mxu0 0
        %1251 = vmatpush1.bf16.msra.mxu0 0
        %1252 = vmatprep.subr.bf16.mxu0 0
        %1253 = vmatpush1.bf16.msra.mxu0 0
        %1254 = vmatprep.subr.bf16.mxu0 0
        %1255 = vmatpush1.bf16.msra.mxu0 0
        %1256 = vmatprep.subr.bf16.mxu0 0
        %1257 = vmatpush1.bf16.msra.mxu0 0
        %1258 = vmatprep.subr.bf16.mxu0 0
        %1259 = vmatpush1.bf16.msra.mxu0 0
        %1260 = vmatprep.subr.bf16.mxu0 0
        %1261 = vmatpush1.bf16.msra.mxu0 0
        %1262 = vmatprep.subr.bf16.mxu0 0
        %1263 = vmatpush1.bf16.msra.mxu0 0
        %1264 = vmatprep.subr.bf16.mxu0 0
        %1265 = vmatpush1.bf16.msra.mxu0 0
        %1266 = vmatprep.mubr.bf16.mxu0 0
        %1267 = vmatmul.mubr.bf16.gmra.mrb[0].mxu0 %v564
        %v1268 = vpop.f32.mrb[0].mxu0
        %v1269 = vadd.f32 0.0, %v1268
        %v1270 = vpop.f32.mrb[0].mxu0
        %v1271 = vpop.f32.mrb[0].mxu0
        %v1272 = vadd.f32 0.0, %v1271
        %v1273 = vpop.f32.mrb[0].mxu0
        %1274 = vdwg.mxu0
        %v1279 = vunpack.c.l.b16 %v998
        %v1280 = vunpack.c.l.b16 %v999
        %v1281 = vunpack.c.l.b16 %v1000
        %v1282 = vunpack.c.l.b16 %v1001
        %v1283 = vpack.c.b16 %v1280, %v1279
        %v1284 = vpack.c.b16 %v1282, %v1281
        %1287 = vmatprep.subr.bf16.mxu0 0
        %1288 = vmatpush1.bf16.msra.mxu0 %v1283
        %1289 = vmatprep.subr.bf16.mxu0 0
        %1290 = vmatpush1.bf16.msra.mxu0 %v1284
        %1291 = vmatprep.subr.bf16.mxu0 0
        %1292 = vmatpush1.bf16.msra.mxu0 0
        %1293 = vmatprep.subr.bf16.mxu0 0
        %1294 = vmatpush1.bf16.msra.mxu0 0
        %1295 = vmatprep.subr.bf16.mxu0 0
        %1296 = vmatpush1.bf16.msra.mxu0 0
        %1297 = vmatprep.subr.bf16.mxu0 0
        %1298 = vmatpush1.bf16.msra.mxu0 0
        %1299 = vmatprep.subr.bf16.mxu0 0
        %1300 = vmatpush1.bf16.msra.mxu0 0
        %1301 = vmatprep.subr.bf16.mxu0 0
        %1302 = vmatpush1.bf16.msra.mxu0 0
        %1303 = vmatprep.subr.bf16.mxu0 0
        %1304 = vmatpush1.bf16.msra.mxu0 0
        %1305 = vmatprep.subr.bf16.mxu0 0
        %1306 = vmatpush1.bf16.msra.mxu0 0
        %1307 = vmatprep.subr.bf16.mxu0 0
        %1308 = vmatpush1.bf16.msra.mxu0 0
        %1309 = vmatprep.subr.bf16.mxu0 0
        %1310 = vmatpush1.bf16.msra.mxu0 0
        %1311 = vmatprep.subr.bf16.mxu0 0
        %1312 = vmatpush1.bf16.msra.mxu0 0
        %1313 = vmatprep.subr.bf16.mxu0 0
        %1314 = vmatpush1.bf16.msra.mxu0 0
        %1315 = vmatprep.subr.bf16.mxu0 0
        %1316 = vmatpush1.bf16.msra.mxu0 0
        %1317 = vmatprep.subr.bf16.mxu0 0
        %1318 = vmatpush1.bf16.msra.mxu0 0
        %1319 = vmatprep.mubr.bf16.mxu0 0
        %1320 = vmatmul.mubr.bf16.gmra.mrb[0].mxu0 %v564
        %v1321 = vpop.f32.mrb[0].mxu0
        %v1322 = vadd.f32 0.0, %v1321
        %v1323 = vpop.f32.mrb[0].mxu0
        %v1324 = vpop.f32.mrb[0].mxu0
        %v1325 = vadd.f32 0.0, %v1324
        %v1326 = vpop.f32.mrb[0].mxu0
        %1327 = vdwg.mxu0
        %v1332 = vunpack.c.l.b16 %v1002
        %v1333 = vunpack.c.l.b16 %v1003
        %v1334 = vunpack.c.l.b16 %v1004
        %v1335 = vunpack.c.l.b16 %v1005
        %v1336 = vpack.c.b16 %v1333, %v1332
        %v1337 = vpack.c.b16 %v1335, %v1334
        %1340 = vmatprep.subr.bf16.mxu0 0
        %1341 = vmatpush1.bf16.msra.mxu0 %v1336
        %1342 = vmatprep.subr.bf16.mxu0 0
        %1343 = vmatpush1.bf16.msra.mxu0 %v1337
        %1344 = vmatprep.subr.bf16.mxu0 0
        %1345 = vmatpush1.bf16.msra.mxu0 0
        %1346 = vmatprep.subr.bf16.mxu0 0
        %1347 = vmatpush1.bf16.msra.mxu0 0
        %1348 = vmatprep.subr.bf16.mxu0 0
        %1349 = vmatpush1.bf16.msra.mxu0 0
        %1350 = vmatprep.subr.bf16.mxu0 0
        %1351 = vmatpush1.bf16.msra.mxu0 0
        %1352 = vmatprep.subr.bf16.mxu0 0
        %1353 = vmatpush1.bf16.msra.mxu0 0
        %1354 = vmatprep.subr.bf16.mxu0 0
        %1355 = vmatpush1.bf16.msra.mxu0 0
        %1356 = vmatprep.subr.bf16.mxu0 0
        %1357 = vmatpush1.bf16.msra.mxu0 0
        %1358 = vmatprep.subr.bf16.mxu0 0
        %1359 = vmatpush1.bf16.msra.mxu0 0
        %1360 = vmatprep.subr.bf16.mxu0 0
        %1361 = vmatpush1.bf16.msra.mxu0 0
        %1362 = vmatprep.subr.bf16.mxu0 0
        %1363 = vmatpush1.bf16.msra.mxu0 0
        %1364 = vmatprep.subr.bf16.mxu0 0
        %1365 = vmatpush1.bf16.msra.mxu0 0
        %1366 = vmatprep.subr.bf16.mxu0 0
        %1367 = vmatpush1.bf16.msra.mxu0 0
        %1368 = vmatprep.subr.bf16.mxu0 0
        %1369 = vmatpush1.bf16.msra.mxu0 0
        %1370 = vmatprep.subr.bf16.mxu0 0
        %1371 = vmatpush1.bf16.msra.mxu0 0
        %1372 = vmatprep.mubr.bf16.mxu0 0
        %1373 = vmatmul.mubr.bf16.gmra.mrb[0].mxu0 %v564
        %v1374 = vpop.f32.mrb[0].mxu0
        %v1375 = vadd.f32 0.0, %v1374
        %v1376 = vpop.f32.mrb[0].mxu0
        %v1377 = vpop.f32.mrb[0].mxu0
        %v1378 = vadd.f32 0.0, %v1377
        %v1379 = vpop.f32.mrb[0].mxu0
        %1380 = vdwg.mxu0
        %v1385 = vunpack.c.l.b16 %v1006
        %v1386 = vunpack.c.l.b16 %v1007
        %v1387 = vunpack.c.l.b16 %v1008
        %v1388 = vunpack.c.l.b16 %v1009
        %v1389 = vpack.c.b16 %v1386, %v1385
        %v1390 = vpack.c.b16 %v1388, %v1387
        %1393 = vmatprep.subr.bf16.mxu0 0
        %1394 = vmatpush1.bf16.msra.mxu0 %v1389
        %1395 = vmatprep.subr.bf16.mxu0 0
        %1396 = vmatpush1.bf16.msra.mxu0 %v1390
        %1397 = vmatprep.subr.bf16.mxu0 0
        %1398 = vmatpush1.bf16.msra.mxu0 0
        %1399 = vmatprep.subr.bf16.mxu0 0
        %1400 = vmatpush1.bf16.msra.mxu0 0
        %1401 = vmatprep.subr.bf16.mxu0 0
        %1402 = vmatpush1.bf16.msra.mxu0 0
        %1403 = vmatprep.subr.bf16.mxu0 0
        %1404 = vmatpush1.bf16.msra.mxu0 0
        %1405 = vmatprep.subr.bf16.mxu0 0
        %1406 = vmatpush1.bf16.msra.mxu0 0
        %1407 = vmatprep.subr.bf16.mxu0 0
        %1408 = vmatpush1.bf16.msra.mxu0 0
        %1409 = vmatprep.subr.bf16.mxu0 0
        %1410 = vmatpush1.bf16.msra.mxu0 0
        %1411 = vmatprep.subr.bf16.mxu0 0
        %1412 = vmatpush1.bf16.msra.mxu0 0
        %1413 = vmatprep.subr.bf16.mxu0 0
        %1414 = vmatpush1.bf16.msra.mxu0 0
        %1415 = vmatprep.subr.bf16.mxu0 0
        %1416 = vmatpush1.bf16.msra.mxu0 0
        %1417 = vmatprep.subr.bf16.mxu0 0
        %1418 = vmatpush1.bf16.msra.mxu0 0
        %1419 = vmatprep.subr.bf16.mxu0 0
        %1420 = vmatpush1.bf16.msra.mxu0 0
        %1421 = vmatprep.subr.bf16.mxu0 0
        %1422 = vmatpush1.bf16.msra.mxu0 0
        %1423 = vmatprep.subr.bf16.mxu0 0
        %1424 = vmatpush1.bf16.msra.mxu0 0
        %1425 = vmatprep.mubr.bf16.mxu0 0
        %1426 = vmatmul.mubr.bf16.gmra.mrb[0].mxu0 %v564
        %v1427 = vpop.f32.mrb[0].mxu0
        %v1428 = vadd.f32 0.0, %v1427
        %v1429 = vpop.f32.mrb[0].mxu0
        %v1430 = vpop.f32.mrb[0].mxu0
        %v1431 = vadd.f32 0.0, %v1430
        %v1432 = vpop.f32.mrb[0].mxu0
        %1433 = vdwg.mxu0
        %v1434 = vld [vmem:[%s5] sm:$0xf]
        %v1435 = vld [vmem:[%s5 + $0x4] sm:$0xf]
        %v1436 = vld [vmem:[%s5 + $0x8] sm:$0xf]
        %v1437 = vld [vmem:[%s5 + $0xc] sm:$0xf]
        %v1438 = vld [vmem:[%s5 + $0x10] sm:$0xf]
        %v1439 = vld [vmem:[%s5 + $0x14] sm:$0xf]
        %v1440 = vld [vmem:[%s5 + $0x18] sm:$0xf]
        %v1441 = vld [vmem:[%s5 + $0x1c] sm:$0xf]
        %v1442 = vld [vmem:[%s5 + $0x20] sm:$0xf]
        %v1443 = vld [vmem:[%s5 + $0x24] sm:$0xf]
        %v1444 = vld [vmem:[%s5 + $0x28] sm:$0xf]
        %v1445 = vld [vmem:[%s5 + $0x2c] sm:$0xf]
        %v1446 = vld [vmem:[%s5 + $0x30] sm:$0xf]
        %v1447 = vld [vmem:[%s5 + $0x34] sm:$0xf]
        %v1448 = vld [vmem:[%s5 + $0x38] sm:$0xf]
        %v1449 = vld [vmem:[%s5 + $0x3c] sm:$0xf]
        %v1450 = vld [vmem:[%s5 + $0x40] sm:$0xf]
        %v1451 = vld [vmem:[%s5 + $0x44] sm:$0xf]
        %v1452 = vld [vmem:[%s5 + $0x48] sm:$0xf]
        %v1453 = vld [vmem:[%s5 + $0x4c] sm:$0xf]
        %v1454 = vld [vmem:[%s5 + $0x50] sm:$0xf]
        %v1455 = vld [vmem:[%s5 + $0x54] sm:$0xf]
        %v1456 = vld [vmem:[%s5 + $0x58] sm:$0xf]
        %v1457 = vld [vmem:[%s5 + $0x5c] sm:$0xf]
        %v1458 = vld [vmem:[%s5 + $0x60] sm:$0xf]
        %v1459 = vld [vmem:[%s5 + $0x64] sm:$0xf]
        %v1460 = vld [vmem:[%s5 + $0x68] sm:$0xf]
        %v1461 = vld [vmem:[%s5 + $0x6c] sm:$0xf]
        %v1462 = vld [vmem:[%s5 + $0x70] sm:$0xf]
        %v1463 = vld [vmem:[%s5 + $0x74] sm:$0xf]
        %v1464 = vld [vmem:[%s5 + $0x78] sm:$0xf]
        %v1465 = vld [vmem:[%s5 + $0x7c] sm:$0xf]
        %v1470 = vunpack.c.l.b16 %v1434
        %v1471 = vunpack.c.l.b16 %v1435
        %v1472 = vunpack.c.l.b16 %v1436
        %v1473 = vunpack.c.l.b16 %v1437
        %v1474 = vpack.c.b16 %v1471, %v1470
        %v1475 = vpack.c.b16 %v1473, %v1472
        %1478 = vmatprep.subr.bf16.mxu0 0
        %1479 = vmatpush1.bf16.msra.mxu0 %v1474
        %1480 = vmatprep.subr.bf16.mxu0 0
        %1481 = vmatpush1.bf16.msra.mxu0 %v1475
        %1482 = vmatprep.subr.bf16.mxu0 0
        %1483 = vmatpush1.bf16.msra.mxu0 0
        %1484 = vmatprep.subr.bf16.mxu0 0
        %1485 = vmatpush1.bf16.msra.mxu0 0
        %1486 = vmatprep.subr.bf16.mxu0 0
        %1487 = vmatpush1.bf16.msra.mxu0 0
        %1488 = vmatprep.subr.bf16.mxu0 0
        %1489 = vmatpush1.bf16.msra.mxu0 0
        %1490 = vmatprep.subr.bf16.mxu0 0
        %1491 = vmatpush1.bf16.msra.mxu0 0
        %1492 = vmatprep.subr.bf16.mxu0 0
        %1493 = vmatpush1.bf16.msra.mxu0 0
        %1494 = vmatprep.subr.bf16.mxu0 0
        %1495 = vmatpush1.bf16.msra.mxu0 0
        %1496 = vmatprep.subr.bf16.mxu0 0
        %1497 = vmatpush1.bf16.msra.mxu0 0
        %1498 = vmatprep.subr.bf16.mxu0 0
        %1499 = vmatpush1.bf16.msra.mxu0 0
        %1500 = vmatprep.subr.bf16.mxu0 0
        %1501 = vmatpush1.bf16.msra.mxu0 0
        %1502 = vmatprep.subr.bf16.mxu0 0
        %1503 = vmatpush1.bf16.msra.mxu0 0
        %1504 = vmatprep.subr.bf16.mxu0 0
        %1505 = vmatpush1.bf16.msra.mxu0 0
        %1506 = vmatprep.subr.bf16.mxu0 0
        %1507 = vmatpush1.bf16.msra.mxu0 0
        %1508 = vmatprep.subr.bf16.mxu0 0
        %1509 = vmatpush1.bf16.msra.mxu0 0
        %1510 = vmatprep.mubr.bf16.mxu0 0
        %1511 = vmatmul.mubr.bf16.gmra.mrb[0].mxu0 %v564
        %v1512 = vpop.f32.mrb[0].mxu0
        %v1513 = vadd.f32 0.0, %v1512
        %v1514 = vpop.f32.mrb[0].mxu0
        %v1515 = vpop.f32.mrb[0].mxu0
        %v1516 = vadd.f32 0.0, %v1515
        %v1517 = vpop.f32.mrb[0].mxu0
        %1518 = vdwg.mxu0
        %v1523 = vunpack.c.l.b16 %v1438
        %v1524 = vunpack.c.l.b16 %v1439
        %v1525 = vunpack.c.l.b16 %v1440
        %v1526 = vunpack.c.l.b16 %v1441
        %v1527 = vpack.c.b16 %v1524, %v1523
        %v1528 = vpack.c.b16 %v1526, %v1525
        %1531 = vmatprep.subr.bf16.mxu0 0
        %1532 = vmatpush1.bf16.msra.mxu0 %v1527
        %1533 = vmatprep.subr.bf16.mxu0 0
        %1534 = vmatpush1.bf16.msra.mxu0 %v1528
        %1535 = vmatprep.subr.bf16.mxu0 0
        %1536 = vmatpush1.bf16.msra.mxu0 0
        %1537 = vmatprep.subr.bf16.mxu0 0
        %1538 = vmatpush1.bf16.msra.mxu0 0
        %1539 = vmatprep.subr.bf16.mxu0 0
        %1540 = vmatpush1.bf16.msra.mxu0 0
        %1541 = vmatprep.subr.bf16.mxu0 0
        %1542 = vmatpush1.bf16.msra.mxu0 0
        %1543 = vmatprep.subr.bf16.mxu0 0
        %1544 = vmatpush1.bf16.msra.mxu0 0
        %1545 = vmatprep.subr.bf16.mxu0 0
        %1546 = vmatpush1.bf16.msra.mxu0 0
        %1547 = vmatprep.subr.bf16.mxu0 0
        %1548 = vmatpush1.bf16.msra.mxu0 0
        %1549 = vmatprep.subr.bf16.mxu0 0
        %1550 = vmatpush1.bf16.msra.mxu0 0
        %1551 = vmatprep.subr.bf16.mxu0 0
        %1552 = vmatpush1.bf16.msra.mxu0 0
        %1553 = vmatprep.subr.bf16.mxu0 0
        %1554 = vmatpush1.bf16.msra.mxu0 0
        %1555 = vmatprep.subr.bf16.mxu0 0
        %1556 = vmatpush1.bf16.msra.mxu0 0
        %1557 = vmatprep.subr.bf16.mxu0 0
        %1558 = vmatpush1.bf16.msra.mxu0 0
        %1559 = vmatprep.subr.bf16.mxu0 0
        %1560 = vmatpush1.bf16.msra.mxu0 0
        %1561 = vmatprep.subr.bf16.mxu0 0
        %1562 = vmatpush1.bf16.msra.mxu0 0
        %1563 = vmatprep.mubr.bf16.mxu0 0
        %1564 = vmatmul.mubr.bf16.gmra.mrb[0].mxu0 %v564
        %v1565 = vpop.f32.mrb[0].mxu0
        %v1566 = vadd.f32 0.0, %v1565
        %v1567 = vpop.f32.mrb[0].mxu0
        %v1568 = vpop.f32.mrb[0].mxu0
        %v1569 = vadd.f32 0.0, %v1568
        %v1570 = vpop.f32.mrb[0].mxu0
        %1571 = vdwg.mxu0
        %v1576 = vunpack.c.l.b16 %v1442
        %v1577 = vunpack.c.l.b16 %v1443
        %v1578 = vunpack.c.l.b16 %v1444
        %v1579 = vunpack.c.l.b16 %v1445
        %v1580 = vpack.c.b16 %v1577, %v1576
        %v1581 = vpack.c.b16 %v1579, %v1578
        %1584 = vmatprep.subr.bf16.mxu0 0
        %1585 = vmatpush1.bf16.msra.mxu0 %v1580
        %1586 = vmatprep.subr.bf16.mxu0 0
        %1587 = vmatpush1.bf16.msra.mxu0 %v1581
        %1588 = vmatprep.subr.bf16.mxu0 0
        %1589 = vmatpush1.bf16.msra.mxu0 0
        %1590 = vmatprep.subr.bf16.mxu0 0
        %1591 = vmatpush1.bf16.msra.mxu0 0
        %1592 = vmatprep.subr.bf16.mxu0 0
        %1593 = vmatpush1.bf16.msra.mxu0 0
        %1594 = vmatprep.subr.bf16.mxu0 0
        %1595 = vmatpush1.bf16.msra.mxu0 0
        %1596 = vmatprep.subr.bf16.mxu0 0
        %1597 = vmatpush1.bf16.msra.mxu0 0
        %1598 = vmatprep.subr.bf16.mxu0 0
        %1599 = vmatpush1.bf16.msra.mxu0 0
        %1600 = vmatprep.subr.bf16.mxu0 0
        %1601 = vmatpush1.bf16.msra.mxu0 0
        %1602 = vmatprep.subr.bf16.mxu0 0
        %1603 = vmatpush1.bf16.msra.mxu0 0
        %1604 = vmatprep.subr.bf16.mxu0 0
        %1605 = vmatpush1.bf16.msra.mxu0 0
        %1606 = vmatprep.subr.bf16.mxu0 0
        %1607 = vmatpush1.bf16.msra.mxu0 0
        %1608 = vmatprep.subr.bf16.mxu0 0
        %1609 = vmatpush1.bf16.msra.mxu0 0
        %1610 = vmatprep.subr.bf16.mxu0 0
        %1611 = vmatpush1.bf16.msra.mxu0 0
        %1612 = vmatprep.subr.bf16.mxu0 0
        %1613 = vmatpush1.bf16.msra.mxu0 0
        %1614 = vmatprep.subr.bf16.mxu0 0
        %1615 = vmatpush1.bf16.msra.mxu0 0
        %1616 = vmatprep.mubr.bf16.mxu0 0
        %1617 = vmatmul.mubr.bf16.gmra.mrb[0].mxu0 %v564
        %v1618 = vpop.f32.mrb[0].mxu0
        %v1619 = vadd.f32 0.0, %v1618
        %v1620 = vpop.f32.mrb[0].mxu0
        %v1621 = vpop.f32.mrb[0].mxu0
        %v1622 = vadd.f32 0.0, %v1621
        %v1623 = vpop.f32.mrb[0].mxu0
        %1624 = vdwg.mxu0
        %v1629 = vunpack.c.l.b16 %v1446
        %v1630 = vunpack.c.l.b16 %v1447
        %v1631 = vunpack.c.l.b16 %v1448
        %v1632 = vunpack.c.l.b16 %v1449
        %v1633 = vpack.c.b16 %v1630, %v1629
        %v1634 = vpack.c.b16 %v1632, %v1631
        %1637 = vmatprep.subr.bf16.mxu0 0
        %1638 = vmatpush1.bf16.msra.mxu0 %v1633
        %1639 = vmatprep.subr.bf16.mxu0 0
        %1640 = vmatpush1.bf16.msra.mxu0 %v1634
        %1641 = vmatprep.subr.bf16.mxu0 0
        %1642 = vmatpush1.bf16.msra.mxu0 0
        %1643 = vmatprep.subr.bf16.mxu0 0
        %1644 = vmatpush1.bf16.msra.mxu0 0
        %1645 = vmatprep.subr.bf16.mxu0 0
        %1646 = vmatpush1.bf16.msra.mxu0 0
        %1647 = vmatprep.subr.bf16.mxu0 0
        %1648 = vmatpush1.bf16.msra.mxu0 0
        %1649 = vmatprep.subr.bf16.mxu0 0
        %1650 = vmatpush1.bf16.msra.mxu0 0
        %1651 = vmatprep.subr.bf16.mxu0 0
        %1652 = vmatpush1.bf16.msra.mxu0 0
        %1653 = vmatprep.subr.bf16.mxu0 0
        %1654 = vmatpush1.bf16.msra.mxu0 0
        %1655 = vmatprep.subr.bf16.mxu0 0
        %1656 = vmatpush1.bf16.msra.mxu0 0
        %1657 = vmatprep.subr.bf16.mxu0 0
        %1658 = vmatpush1.bf16.msra.mxu0 0
        %1659 = vmatprep.subr.bf16.mxu0 0
        %1660 = vmatpush1.bf16.msra.mxu0 0
        %1661 = vmatprep.subr.bf16.mxu0 0
        %1662 = vmatpush1.bf16.msra.mxu0 0
        %1663 = vmatprep.subr.bf16.mxu0 0
        %1664 = vmatpush1.bf16.msra.mxu0 0
        %1665 = vmatprep.subr.bf16.mxu0 0
        %1666 = vmatpush1.bf16.msra.mxu0 0
        %1667 = vmatprep.subr.bf16.mxu0 0
        %1668 = vmatpush1.bf16.msra.mxu0 0
        %1669 = vmatprep.mubr.bf16.mxu0 0
        %1670 = vmatmul.mubr.bf16.gmra.mrb[0].mxu0 %v564
        %v1671 = vpop.f32.mrb[0].mxu0
        %v1672 = vadd.f32 0.0, %v1671
        %v1673 = vpop.f32.mrb[0].mxu0
        %v1674 = vpop.f32.mrb[0].mxu0
        %v1675 = vadd.f32 0.0, %v1674
        %v1676 = vpop.f32.mrb[0].mxu0
        %1677 = vdwg.mxu0
        %v1682 = vunpack.c.l.b16 %v1450
        %v1683 = vunpack.c.l.b16 %v1451
        %v1684 = vunpack.c.l.b16 %v1452
        %v1685 = vunpack.c.l.b16 %v1453
        %v1686 = vpack.c.b16 %v1683, %v1682
        %v1687 = vpack.c.b16 %v1685, %v1684
        %1690 = vmatprep.subr.bf16.mxu0 0
        %1691 = vmatpush1.bf16.msra.mxu0 %v1686
        %1692 = vmatprep.subr.bf16.mxu0 0
        %1693 = vmatpush1.bf16.msra.mxu0 %v1687
        %1694 = vmatprep.subr.bf16.mxu0 0
        %1695 = vmatpush1.bf16.msra.mxu0 0
        %1696 = vmatprep.subr.bf16.mxu0 0
        %1697 = vmatpush1.bf16.msra.mxu0 0
        %1698 = vmatprep.subr.bf16.mxu0 0
        %1699 = vmatpush1.bf16.msra.mxu0 0
        %1700 = vmatprep.subr.bf16.mxu0 0
        %1701 = vmatpush1.bf16.msra.mxu0 0
        %1702 = vmatprep.subr.bf16.mxu0 0
        %1703 = vmatpush1.bf16.msra.mxu0 0
        %1704 = vmatprep.subr.bf16.mxu0 0
        %1705 = vmatpush1.bf16.msra.mxu0 0
        %1706 = vmatprep.subr.bf16.mxu0 0
        %1707 = vmatpush1.bf16.msra.mxu0 0
        %1708 = vmatprep.subr.bf16.mxu0 0
        %1709 = vmatpush1.bf16.msra.mxu0 0
        %1710 = vmatprep.subr.bf16.mxu0 0
        %1711 = vmatpush1.bf16.msra.mxu0 0
        %1712 = vmatprep.subr.bf16.mxu0 0
        %1713 = vmatpush1.bf16.msra.mxu0 0
        %1714 = vmatprep.subr.bf16.mxu0 0
        %1715 = vmatpush1.bf16.msra.mxu0 0
        %1716 = vmatprep.subr.bf16.mxu0 0
        %1717 = vmatpush1.bf16.msra.mxu0 0
        %1718 = vmatprep.subr.bf16.mxu0 0
        %1719 = vmatpush1.bf16.msra.mxu0 0
        %1720 = vmatprep.subr.bf16.mxu0 0
        %1721 = vmatpush1.bf16.msra.mxu0 0
        %1722 = vmatprep.mubr.bf16.mxu0 0
        %1723 = vmatmul.mubr.bf16.gmra.mrb[0].mxu0 %v564
        %v1724 = vpop.f32.mrb[0].mxu0
        %v1725 = vadd.f32 0.0, %v1724
        %v1726 = vpop.f32.mrb[0].mxu0
        %v1727 = vpop.f32.mrb[0].mxu0
        %v1728 = vadd.f32 0.0, %v1727
        %v1729 = vpop.f32.mrb[0].mxu0
        %1730 = vdwg.mxu0
        %v1735 = vunpack.c.l.b16 %v1454
        %v1736 = vunpack.c.l.b16 %v1455
        %v1737 = vunpack.c.l.b16 %v1456
        %v1738 = vunpack.c.l.b16 %v1457
        %v1739 = vpack.c.b16 %v1736, %v1735
        %v1740 = vpack.c.b16 %v1738, %v1737
        %1743 = vmatprep.subr.bf16.mxu0 0
        %1744 = vmatpush1.bf16.msra.mxu0 %v1739
        %1745 = vmatprep.subr.bf16.mxu0 0
        %1746 = vmatpush1.bf16.msra.mxu0 %v1740
        %1747 = vmatprep.subr.bf16.mxu0 0
        %1748 = vmatpush1.bf16.msra.mxu0 0
        %1749 = vmatprep.subr.bf16.mxu0 0
        %1750 = vmatpush1.bf16.msra.mxu0 0
        %1751 = vmatprep.subr.bf16.mxu0 0
        %1752 = vmatpush1.bf16.msra.mxu0 0
        %1753 = vmatprep.subr.bf16.mxu0 0
        %1754 = vmatpush1.bf16.msra.mxu0 0
        %1755 = vmatprep.subr.bf16.mxu0 0
        %1756 = vmatpush1.bf16.msra.mxu0 0
        %1757 = vmatprep.subr.bf16.mxu0 0
        %1758 = vmatpush1.bf16.msra.mxu0 0
        %1759 = vmatprep.subr.bf16.mxu0 0
        %1760 = vmatpush1.bf16.msra.mxu0 0
        %1761 = vmatprep.subr.bf16.mxu0 0
        %1762 = vmatpush1.bf16.msra.mxu0 0
        %1763 = vmatprep.subr.bf16.mxu0 0
        %1764 = vmatpush1.bf16.msra.mxu0 0
        %1765 = vmatprep.subr.bf16.mxu0 0
        %1766 = vmatpush1.bf16.msra.mxu0 0
        %1767 = vmatprep.subr.bf16.mxu0 0
        %1768 = vmatpush1.bf16.msra.mxu0 0
        %1769 = vmatprep.subr.bf16.mxu0 0
        %1770 = vmatpush1.bf16.msra.mxu0 0
        %1771 = vmatprep.subr.bf16.mxu0 0
        %1772 = vmatpush1.bf16.msra.mxu0 0
        %1773 = vmatprep.subr.bf16.mxu0 0
        %1774 = vmatpush1.bf16.msra.mxu0 0
        %1775 = vmatprep.mubr.bf16.mxu0 0
        %1776 = vmatmul.mubr.bf16.gmra.mrb[0].mxu0 %v564
        %v1777 = vpop.f32.mrb[0].mxu0
        %v1778 = vadd.f32 0.0, %v1777
        %v1779 = vpop.f32.mrb[0].mxu0
        %v1780 = vpop.f32.mrb[0].mxu0
        %v1781 = vadd.f32 0.0, %v1780
        %v1782 = vpop.f32.mrb[0].mxu0
        %1783 = vdwg.mxu0
        %v1788 = vunpack.c.l.b16 %v1458
        %v1789 = vunpack.c.l.b16 %v1459
        %v1790 = vunpack.c.l.b16 %v1460
        %v1791 = vunpack.c.l.b16 %v1461
        %v1792 = vpack.c.b16 %v1789, %v1788
        %v1793 = vpack.c.b16 %v1791, %v1790
        %1796 = vmatprep.subr.bf16.mxu0 0
        %1797 = vmatpush1.bf16.msra.mxu0 %v1792
        %1798 = vmatprep.subr.bf16.mxu0 0
        %1799 = vmatpush1.bf16.msra.mxu0 %v1793
        %1800 = vmatprep.subr.bf16.mxu0 0
        %1801 = vmatpush1.bf16.msra.mxu0 0
        %1802 = vmatprep.subr.bf16.mxu0 0
        %1803 = vmatpush1.bf16.msra.mxu0 0
        %1804 = vmatprep.subr.bf16.mxu0 0
        %1805 = vmatpush1.bf16.msra.mxu0 0
        %1806 = vmatprep.subr.bf16.mxu0 0
        %1807 = vmatpush1.bf16.msra.mxu0 0
        %1808 = vmatprep.subr.bf16.mxu0 0
        %1809 = vmatpush1.bf16.msra.mxu0 0
        %1810 = vmatprep.subr.bf16.mxu0 0
        %1811 = vmatpush1.bf16.msra.mxu0 0
        %1812 = vmatprep.subr.bf16.mxu0 0
        %1813 = vmatpush1.bf16.msra.mxu0 0
        %1814 = vmatprep.subr.bf16.mxu0 0
        %1815 = vmatpush1.bf16.msra.mxu0 0
        %1816 = vmatprep.subr.bf16.mxu0 0
        %1817 = vmatpush1.bf16.msra.mxu0 0
        %1818 = vmatprep.subr.bf16.mxu0 0
        %1819 = vmatpush1.bf16.msra.mxu0 0
        %1820 = vmatprep.subr.bf16.mxu0 0
        %1821 = vmatpush1.bf16.msra.mxu0 0
        %1822 = vmatprep.subr.bf16.mxu0 0
        %1823 = vmatpush1.bf16.msra.mxu0 0
        %1824 = vmatprep.subr.bf16.mxu0 0
        %1825 = vmatpush1.bf16.msra.mxu0 0
        %1826 = vmatprep.subr.bf16.mxu0 0
        %1827 = vmatpush1.bf16.msra.mxu0 0
        %1828 = vmatprep.mubr.bf16.mxu0 0
        %1829 = vmatmul.mubr.bf16.gmra.mrb[0].mxu0 %v564
        %v1830 = vpop.f32.mrb[0].mxu0
        %v1831 = vadd.f32 0.0, %v1830
        %v1832 = vpop.f32.mrb[0].mxu0
        %v1833 = vpop.f32.mrb[0].mxu0
        %v1834 = vadd.f32 0.0, %v1833
        %v1835 = vpop.f32.mrb[0].mxu0
        %1836 = vdwg.mxu0
        %v1841 = vunpack.c.l.b16 %v1462
        %v1842 = vunpack.c.l.b16 %v1463
        %v1843 = vunpack.c.l.b16 %v1464
        %v1844 = vunpack.c.l.b16 %v1465
        %v1845 = vpack.c.b16 %v1842, %v1841
        %v1846 = vpack.c.b16 %v1844, %v1843
        %1849 = vmatprep.subr.bf16.mxu0 0
        %1850 = vmatpush1.bf16.msra.mxu0 %v1845
        %1851 = vmatprep.subr.bf16.mxu0 0
        %1852 = vmatpush1.bf16.msra.mxu0 %v1846
        %1853 = vmatprep.subr.bf16.mxu0 0
        %1854 = vmatpush1.bf16.msra.mxu0 0
        %1855 = vmatprep.subr.bf16.mxu0 0
        %1856 = vmatpush1.bf16.msra.mxu0 0
        %1857 = vmatprep.subr.bf16.mxu0 0
        %1858 = vmatpush1.bf16.msra.mxu0 0
        %1859 = vmatprep.subr.bf16.mxu0 0
        %1860 = vmatpush1.bf16.msra.mxu0 0
        %1861 = vmatprep.subr.bf16.mxu0 0
        %1862 = vmatpush1.bf16.msra.mxu0 0
        %1863 = vmatprep.subr.bf16.mxu0 0
        %1864 = vmatpush1.bf16.msra.mxu0 0
        %1865 = vmatprep.subr.bf16.mxu0 0
        %1866 = vmatpush1.bf16.msra.mxu0 0
        %1867 = vmatprep.subr.bf16.mxu0 0
        %1868 = vmatpush1.bf16.msra.mxu0 0
        %1869 = vmatprep.subr.bf16.mxu0 0
        %1870 = vmatpush1.bf16.msra.mxu0 0
        %1871 = vmatprep.subr.bf16.mxu0 0
        %1872 = vmatpush1.bf16.msra.mxu0 0
        %1873 = vmatprep.subr.bf16.mxu0 0
        %1874 = vmatpush1.bf16.msra.mxu0 0
        %1875 = vmatprep.subr.bf16.mxu0 0
        %1876 = vmatpush1.bf16.msra.mxu0 0
        %1877 = vmatprep.subr.bf16.mxu0 0
        %1878 = vmatpush1.bf16.msra.mxu0 0
        %1879 = vmatprep.subr.bf16.mxu0 0
        %1880 = vmatpush1.bf16.msra.mxu0 0
        %1881 = vmatprep.mubr.bf16.mxu0 0
        %1882 = vmatmul.mubr.bf16.gmra.mrb[0].mxu0 %v564
        %v1883 = vpop.f32.mrb[0].mxu0
        %v1884 = vadd.f32 0.0, %v1883
        %v1885 = vpop.f32.mrb[0].mxu0
        %v1886 = vpop.f32.mrb[0].mxu0
        %v1887 = vadd.f32 0.0, %v1886
        %v1888 = vpop.f32.mrb[0].mxu0
        %1889 = vdwg.mxu0
        %v1890 = vpack.c.bf16 %v601, %v601
        %v1891 = vpack.c.bf16 %v654, %v654
        %v1892 = vpack.c.bf16 %v707, %v707
        %v1893 = vpack.c.bf16 %v760, %v760
        %v1894 = vpack.c.bf16 %v813, %v813
        %v1895 = vpack.c.bf16 %v866, %v866
        %v1896 = vpack.c.bf16 %v919, %v919
        %v1897 = vpack.c.bf16 %v972, %v972
        %v1898 = vpack.c.bf16 %v1057, %v1057
        %v1899 = vpack.c.bf16 %v1110, %v1110
        %v1900 = vpack.c.bf16 %v1163, %v1163
        %v1901 = vpack.c.bf16 %v1216, %v1216
        %v1902 = vpack.c.bf16 %v1269, %v1269
        %v1903 = vpack.c.bf16 %v1322, %v1322
        %v1904 = vpack.c.bf16 %v1375, %v1375
        %v1905 = vpack.c.bf16 %v1428, %v1428
        %v1906 = vpack.c.bf16 %v1513, %v1513
        %v1907 = vpack.c.bf16 %v1566, %v1566
        %v1908 = vpack.c.bf16 %v1619, %v1619
        %v1909 = vpack.c.bf16 %v1672, %v1672
        %v1910 = vpack.c.bf16 %v1725, %v1725
        %v1911 = vpack.c.bf16 %v1778, %v1778
        %v1912 = vpack.c.bf16 %v1831, %v1831
        %v1913 = vpack.c.bf16 %v1884, %v1884
        %vm1914 = vcmask 31744
        %v1916 = vsel %vm1914, %v1890, 0
        %v1919 = vsel %vm1914, %v1898, 0
        %1921 = vmatprep.subr.bf16.mxu0 0
        %1922 = vmatpush1.bf16.xpose.msra.mxu0 %v1919
        %1923 = vmatprep.subr.bf16.mxu0 0
        %1924 = vmatpush1.bf16.xpose.msra.mxu0 0
        %1925 = vmatprep.subr.bf16.mxu0 0
        %1926 = vmatpush1.bf16.xpose.msra.mxu0 0
        %1927 = vmatprep.subr.bf16.mxu0 0
        %1928 = vmatpush1.bf16.xpose.msra.mxu0 0
        %1929 = vmatprep.subr.bf16.mxu0 0
        %1930 = vmatpush1.bf16.xpose.msra.mxu0 0
        %1931 = vmatprep.subr.bf16.mxu0 0
        %1932 = vmatpush1.bf16.xpose.msra.mxu0 0
        %1933 = vmatprep.subr.bf16.mxu0 0
        %1934 = vmatpush1.bf16.xpose.msra.mxu0 0
        %1935 = vmatprep.subr.bf16.mxu0 0
        %1936 = vmatpush1.bf16.xpose.msra.mxu0 0
        %1937 = vmatprep.subr.bf16.mxu0 0
        %1938 = vmatpush1.bf16.xpose.msra.mxu0 0
        %1939 = vmatprep.subr.bf16.mxu0 0
        %1940 = vmatpush1.bf16.xpose.msra.mxu0 0
        %1941 = vmatprep.subr.bf16.mxu0 0
        %1942 = vmatpush1.bf16.xpose.msra.mxu0 0
        %1943 = vmatprep.subr.bf16.mxu0 0
        %1944 = vmatpush1.bf16.xpose.msra.mxu0 0
        %1945 = vmatprep.subr.bf16.mxu0 0
        %1946 = vmatpush1.bf16.xpose.msra.mxu0 0
        %1947 = vmatprep.subr.bf16.mxu0 0
        %1948 = vmatpush1.bf16.xpose.msra.mxu0 0
        %1949 = vmatprep.subr.bf16.mxu0 0
        %1950 = vmatpush1.bf16.xpose.msra.mxu0 0
        %1951 = vmatprep.subr.bf16.mxu0 0
        %1952 = vmatpush1.bf16.xpose.msra.mxu0 0
        %1953 = vmatprep.mubr.bf16.mxu0 0
        %1954 = vmatmul.mubr.bf16.gmra.mrb[0].mxu0 %v1916
        %v1955 = vpop.f32.mrb[0].mxu0
        %v1956 = vadd.f32 0.0, %v1955
        %v1957 = vpop.f32.mrb[0].mxu0
        %v1958 = vpop.f32.mrb[0].mxu0
        %v1959 = vpop.f32.mrb[0].mxu0
        %1960 = vdwg.mxu0
        %v1962 = vsel %vm1914, %v1891, 0
        %v1965 = vsel %vm1914, %v1899, 0
        %1967 = vmatprep.subr.bf16.mxu0 0
        %1968 = vmatpush1.bf16.xpose.msra.mxu0 %v1965
        %1969 = vmatprep.subr.bf16.mxu0 0
        %1970 = vmatpush1.bf16.xpose.msra.mxu0 0
        %1971 = vmatprep.subr.bf16.mxu0 0
        %1972 = vmatpush1.bf16.xpose.msra.mxu0 0
        %1973 = vmatprep.subr.bf16.mxu0 0
        %1974 = vmatpush1.bf16.xpose.msra.mxu0 0
        %1975 = vmatprep.subr.bf16.mxu0 0
        %1976 = vmatpush1.bf16.xpose.msra.mxu0 0
        %1977 = vmatprep.subr.bf16.mxu0 0
        %1978 = vmatpush1.bf16.xpose.msra.mxu0 0
        %1979 = vmatprep.subr.bf16.mxu0 0
        %1980 = vmatpush1.bf16.xpose.msra.mxu0 0
        %1981 = vmatprep.subr.bf16.mxu0 0
        %1982 = vmatpush1.bf16.xpose.msra.mxu0 0
        %1983 = vmatprep.subr.bf16.mxu0 0
        %1984 = vmatpush1.bf16.xpose.msra.mxu0 0
        %1985 = vmatprep.subr.bf16.mxu0 0
        %1986 = vmatpush1.bf16.xpose.msra.mxu0 0
        %1987 = vmatprep.subr.bf16.mxu0 0
        %1988 = vmatpush1.bf16.xpose.msra.mxu0 0
        %1989 = vmatprep.subr.bf16.mxu0 0
        %1990 = vmatpush1.bf16.xpose.msra.mxu0 0
        %1991 = vmatprep.subr.bf16.mxu0 0
        %1992 = vmatpush1.bf16.xpose.msra.mxu0 0
        %1993 = vmatprep.subr.bf16.mxu0 0
        %1994 = vmatpush1.bf16.xpose.msra.mxu0 0
        %1995 = vmatprep.subr.bf16.mxu0 0
        %1996 = vmatpush1.bf16.xpose.msra.mxu0 0
        %1997 = vmatprep.subr.bf16.mxu0 0
        %1998 = vmatpush1.bf16.xpose.msra.mxu0 0
        %1999 = vmatprep.mubr.bf16.mxu0 0
        %2000 = vmatmul.mubr.bf16.gmra.mrb[0].mxu0 %v1962
        %v2001 = vpop.f32.mrb[0].mxu0
        %v2002 = vadd.f32 0.0, %v2001
        %v2003 = vpop.f32.mrb[0].mxu0
        %v2004 = vpop.f32.mrb[0].mxu0
        %v2005 = vpop.f32.mrb[0].mxu0
        %2006 = vdwg.mxu0
        %v2008 = vsel %vm1914, %v1892, 0
        %v2011 = vsel %vm1914, %v1900, 0
        %2013 = vmatprep.subr.bf16.mxu0 0
        %2014 = vmatpush1.bf16.xpose.msra.mxu0 %v2011
        %2015 = vmatprep.subr.bf16.mxu0 0
        %2016 = vmatpush1.bf16.xpose.msra.mxu0 0
        %2017 = vmatprep.subr.bf16.mxu0 0
        %2018 = vmatpush1.bf16.xpose.msra.mxu0 0
        %2019 = vmatprep.subr.bf16.mxu0 0
        %2020 = vmatpush1.bf16.xpose.msra.mxu0 0
        %2021 = vmatprep.subr.bf16.mxu0 0
        %2022 = vmatpush1.bf16.xpose.msra.mxu0 0
        %2023 = vmatprep.subr.bf16.mxu0 0
        %2024 = vmatpush1.bf16.xpose.msra.mxu0 0
        %2025 = vmatprep.subr.bf16.mxu0 0
        %2026 = vmatpush1.bf16.xpose.msra.mxu0 0
        %2027 = vmatprep.subr.bf16.mxu0 0
        %2028 = vmatpush1.bf16.xpose.msra.mxu0 0
        %2029 = vmatprep.subr.bf16.mxu0 0
        %2030 = vmatpush1.bf16.xpose.msra.mxu0 0
        %2031 = vmatprep.subr.bf16.mxu0 0
        %2032 = vmatpush1.bf16.xpose.msra.mxu0 0
        %2033 = vmatprep.subr.bf16.mxu0 0
        %2034 = vmatpush1.bf16.xpose.msra.mxu0 0
        %2035 = vmatprep.subr.bf16.mxu0 0
        %2036 = vmatpush1.bf16.xpose.msra.mxu0 0
        %2037 = vmatprep.subr.bf16.mxu0 0
        %2038 = vmatpush1.bf16.xpose.msra.mxu0 0
        %2039 = vmatprep.subr.bf16.mxu0 0
        %2040 = vmatpush1.bf16.xpose.msra.mxu0 0
        %2041 = vmatprep.subr.bf16.mxu0 0
        %2042 = vmatpush1.bf16.xpose.msra.mxu0 0
        %2043 = vmatprep.subr.bf16.mxu0 0
        %2044 = vmatpush1.bf16.xpose.msra.mxu0 0
        %2045 = vmatprep.mubr.bf16.mxu0 0
        %2046 = vmatmul.mubr.bf16.gmra.mrb[0].mxu0 %v2008
        %v2047 = vpop.f32.mrb[0].mxu0
        %v2048 = vadd.f32 0.0, %v2047
        %v2049 = vpop.f32.mrb[0].mxu0
        %v2050 = vpop.f32.mrb[0].mxu0
        %v2051 = vpop.f32.mrb[0].mxu0
        %2052 = vdwg.mxu0
        %v2054 = vsel %vm1914, %v1893, 0
        %v2057 = vsel %vm1914, %v1901, 0
        %2059 = vmatprep.subr.bf16.mxu0 0
        %2060 = vmatpush1.bf16.xpose.msra.mxu0 %v2057
        %2061 = vmatprep.subr.bf16.mxu0 0
        %2062 = vmatpush1.bf16.xpose.msra.mxu0 0
        %2063 = vmatprep.subr.bf16.mxu0 0
        %2064 = vmatpush1.bf16.xpose.msra.mxu0 0
        %2065 = vmatprep.subr.bf16.mxu0 0
        %2066 = vmatpush1.bf16.xpose.msra.mxu0 0
        %2067 = vmatprep.subr.bf16.mxu0 0
        %2068 = vmatpush1.bf16.xpose.msra.mxu0 0
        %2069 = vmatprep.subr.bf16.mxu0 0
        %2070 = vmatpush1.bf16.xpose.msra.mxu0 0
        %2071 = vmatprep.subr.bf16.mxu0 0
        %2072 = vmatpush1.bf16.xpose.msra.mxu0 0
        %2073 = vmatprep.subr.bf16.mxu0 0
        %2074 = vmatpush1.bf16.xpose.msra.mxu0 0
        %2075 = vmatprep.subr.bf16.mxu0 0
        %2076 = vmatpush1.bf16.xpose.msra.mxu0 0
        %2077 = vmatprep.subr.bf16.mxu0 0
        %2078 = vmatpush1.bf16.xpose.msra.mxu0 0
        %2079 = vmatprep.subr.bf16.mxu0 0
        %2080 = vmatpush1.bf16.xpose.msra.mxu0 0
        %2081 = vmatprep.subr.bf16.mxu0 0
        %2082 = vmatpush1.bf16.xpose.msra.mxu0 0
        %2083 = vmatprep.subr.bf16.mxu0 0
        %2084 = vmatpush1.bf16.xpose.msra.mxu0 0
        %2085 = vmatprep.subr.bf16.mxu0 0
        %2086 = vmatpush1.bf16.xpose.msra.mxu0 0
        %2087 = vmatprep.subr.bf16.mxu0 0
        %2088 = vmatpush1.bf16.xpose.msra.mxu0 0
        %2089 = vmatprep.subr.bf16.mxu0 0
        %2090 = vmatpush1.bf16.xpose.msra.mxu0 0
        %2091 = vmatprep.mubr.bf16.mxu0 0
        %2092 = vmatmul.mubr.bf16.gmra.mrb[0].mxu0 %v2054
        %v2093 = vpop.f32.mrb[0].mxu0
        %v2094 = vadd.f32 0.0, %v2093
        %v2095 = vpop.f32.mrb[0].mxu0
        %v2096 = vpop.f32.mrb[0].mxu0
        %v2097 = vpop.f32.mrb[0].mxu0
        %2098 = vdwg.mxu0
        %v2100 = vsel %vm1914, %v1894, 0
        %v2103 = vsel %vm1914, %v1902, 0
        %2105 = vmatprep.subr.bf16.mxu0 0
        %2106 = vmatpush1.bf16.xpose.msra.mxu0 %v2103
        %2107 = vmatprep.subr.bf16.mxu0 0
        %2108 = vmatpush1.bf16.xpose.msra.mxu0 0
        %2109 = vmatprep.subr.bf16.mxu0 0
        %2110 = vmatpush1.bf16.xpose.msra.mxu0 0
        %2111 = vmatprep.subr.bf16.mxu0 0
        %2112 = vmatpush1.bf16.xpose.msra.mxu0 0
        %2113 = vmatprep.subr.bf16.mxu0 0
        %2114 = vmatpush1.bf16.xpose.msra.mxu0 0
        %2115 = vmatprep.subr.bf16.mxu0 0
        %2116 = vmatpush1.bf16.xpose.msra.mxu0 0
        %2117 = vmatprep.subr.bf16.mxu0 0
        %2118 = vmatpush1.bf16.xpose.msra.mxu0 0
        %2119 = vmatprep.subr.bf16.mxu0 0
        %2120 = vmatpush1.bf16.xpose.msra.mxu0 0
        %2121 = vmatprep.subr.bf16.mxu0 0
        %2122 = vmatpush1.bf16.xpose.msra.mxu0 0
        %2123 = vmatprep.subr.bf16.mxu0 0
        %2124 = vmatpush1.bf16.xpose.msra.mxu0 0
        %2125 = vmatprep.subr.bf16.mxu0 0
        %2126 = vmatpush1.bf16.xpose.msra.mxu0 0
        %2127 = vmatprep.subr.bf16.mxu0 0
        %2128 = vmatpush1.bf16.xpose.msra.mxu0 0
        %2129 = vmatprep.subr.bf16.mxu0 0
        %2130 = vmatpush1.bf16.xpose.msra.mxu0 0
        %2131 = vmatprep.subr.bf16.mxu0 0
        %2132 = vmatpush1.bf16.xpose.msra.mxu0 0
        %2133 = vmatprep.subr.bf16.mxu0 0
        %2134 = vmatpush1.bf16.xpose.msra.mxu0 0
        %2135 = vmatprep.subr.bf16.mxu0 0
        %2136 = vmatpush1.bf16.xpose.msra.mxu0 0
        %2137 = vmatprep.mubr.bf16.mxu0 0
        %2138 = vmatmul.mubr.bf16.gmra.mrb[0].mxu0 %v2100
        %v2139 = vpop.f32.mrb[0].mxu0
        %v2140 = vadd.f32 0.0, %v2139
        %v2141 = vpop.f32.mrb[0].mxu0
        %v2142 = vpop.f32.mrb[0].mxu0
        %v2143 = vpop.f32.mrb[0].mxu0
        %2144 = vdwg.mxu0
        %v2146 = vsel %vm1914, %v1895, 0
        %v2149 = vsel %vm1914, %v1903, 0
        %2151 = vmatprep.subr.bf16.mxu0 0
        %2152 = vmatpush1.bf16.xpose.msra.mxu0 %v2149
        %2153 = vmatprep.subr.bf16.mxu0 0
        %2154 = vmatpush1.bf16.xpose.msra.mxu0 0
        %2155 = vmatprep.subr.bf16.mxu0 0
        %2156 = vmatpush1.bf16.xpose.msra.mxu0 0
        %2157 = vmatprep.subr.bf16.mxu0 0
        %2158 = vmatpush1.bf16.xpose.msra.mxu0 0
        %2159 = vmatprep.subr.bf16.mxu0 0
        %2160 = vmatpush1.bf16.xpose.msra.mxu0 0
        %2161 = vmatprep.subr.bf16.mxu0 0
        %2162 = vmatpush1.bf16.xpose.msra.mxu0 0
        %2163 = vmatprep.subr.bf16.mxu0 0
        %2164 = vmatpush1.bf16.xpose.msra.mxu0 0
        %2165 = vmatprep.subr.bf16.mxu0 0
        %2166 = vmatpush1.bf16.xpose.msra.mxu0 0
        %2167 = vmatprep.subr.bf16.mxu0 0
        %2168 = vmatpush1.bf16.xpose.msra.mxu0 0
        %2169 = vmatprep.subr.bf16.mxu0 0
        %2170 = vmatpush1.bf16.xpose.msra.mxu0 0
        %2171 = vmatprep.subr.bf16.mxu0 0
        %2172 = vmatpush1.bf16.xpose.msra.mxu0 0
        %2173 = vmatprep.subr.bf16.mxu0 0
        %2174 = vmatpush1.bf16.xpose.msra.mxu0 0
        %2175 = vmatprep.subr.bf16.mxu0 0
        %2176 = vmatpush1.bf16.xpose.msra.mxu0 0
        %2177 = vmatprep.subr.bf16.mxu0 0
        %2178 = vmatpush1.bf16.xpose.msra.mxu0 0
        %2179 = vmatprep.subr.bf16.mxu0 0
        %2180 = vmatpush1.bf16.xpose.msra.mxu0 0
        %2181 = vmatprep.subr.bf16.mxu0 0
        %2182 = vmatpush1.bf16.xpose.msra.mxu0 0
        %2183 = vmatprep.mubr.bf16.mxu0 0
        %2184 = vmatmul.mubr.bf16.gmra.mrb[0].mxu0 %v2146
        %v2185 = vpop.f32.mrb[0].mxu0
        %v2186 = vadd.f32 0.0, %v2185
        %v2187 = vpop.f32.mrb[0].mxu0
        %v2188 = vpop.f32.mrb[0].mxu0
        %v2189 = vpop.f32.mrb[0].mxu0
        %2190 = vdwg.mxu0
        %v2192 = vsel %vm1914, %v1896, 0
        %v2195 = vsel %vm1914, %v1904, 0
        %2197 = vmatprep.subr.bf16.mxu0 0
        %2198 = vmatpush1.bf16.xpose.msra.mxu0 %v2195
        %2199 = vmatprep.subr.bf16.mxu0 0
        %2200 = vmatpush1.bf16.xpose.msra.mxu0 0
        %2201 = vmatprep.subr.bf16.mxu0 0
        %2202 = vmatpush1.bf16.xpose.msra.mxu0 0
        %2203 = vmatprep.subr.bf16.mxu0 0
        %2204 = vmatpush1.bf16.xpose.msra.mxu0 0
        %2205 = vmatprep.subr.bf16.mxu0 0
        %2206 = vmatpush1.bf16.xpose.msra.mxu0 0
        %2207 = vmatprep.subr.bf16.mxu0 0
        %2208 = vmatpush1.bf16.xpose.msra.mxu0 0
        %2209 = vmatprep.subr.bf16.mxu0 0
        %2210 = vmatpush1.bf16.xpose.msra.mxu0 0
        %2211 = vmatprep.subr.bf16.mxu0 0
        %2212 = vmatpush1.bf16.xpose.msra.mxu0 0
        %2213 = vmatprep.subr.bf16.mxu0 0
        %2214 = vmatpush1.bf16.xpose.msra.mxu0 0
        %2215 = vmatprep.subr.bf16.mxu0 0
        %2216 = vmatpush1.bf16.xpose.msra.mxu0 0
        %2217 = vmatprep.subr.bf16.mxu0 0
        %2218 = vmatpush1.bf16.xpose.msra.mxu0 0
        %2219 = vmatprep.subr.bf16.mxu0 0
        %2220 = vmatpush1.bf16.xpose.msra.mxu0 0
        %2221 = vmatprep.subr.bf16.mxu0 0
        %2222 = vmatpush1.bf16.xpose.msra.mxu0 0
        %2223 = vmatprep.subr.bf16.mxu0 0
        %2224 = vmatpush1.bf16.xpose.msra.mxu0 0
        %2225 = vmatprep.subr.bf16.mxu0 0
        %2226 = vmatpush1.bf16.xpose.msra.mxu0 0
        %2227 = vmatprep.subr.bf16.mxu0 0
        %2228 = vmatpush1.bf16.xpose.msra.mxu0 0
        %2229 = vmatprep.mubr.bf16.mxu0 0
        %2230 = vmatmul.mubr.bf16.gmra.mrb[0].mxu0 %v2192
        %v2231 = vpop.f32.mrb[0].mxu0
        %v2232 = vadd.f32 0.0, %v2231
        %v2233 = vpop.f32.mrb[0].mxu0
        %v2234 = vpop.f32.mrb[0].mxu0
        %v2235 = vpop.f32.mrb[0].mxu0
        %2236 = vdwg.mxu0
        %v2238 = vsel %vm1914, %v1897, 0
        %v2241 = vsel %vm1914, %v1905, 0
        %2243 = vmatprep.subr.bf16.mxu0 0
        %2244 = vmatpush1.bf16.xpose.msra.mxu0 %v2241
        %2245 = vmatprep.subr.bf16.mxu0 0
        %2246 = vmatpush1.bf16.xpose.msra.mxu0 0
        %2247 = vmatprep.subr.bf16.mxu0 0
        %2248 = vmatpush1.bf16.xpose.msra.mxu0 0
        %2249 = vmatprep.subr.bf16.mxu0 0
        %2250 = vmatpush1.bf16.xpose.msra.mxu0 0
        %2251 = vmatprep.subr.bf16.mxu0 0
        %2252 = vmatpush1.bf16.xpose.msra.mxu0 0
        %2253 = vmatprep.subr.bf16.mxu0 0
        %2254 = vmatpush1.bf16.xpose.msra.mxu0 0
        %2255 = vmatprep.subr.bf16.mxu0 0
        %2256 = vmatpush1.bf16.xpose.msra.mxu0 0
        %2257 = vmatprep.subr.bf16.mxu0 0
        %2258 = vmatpush1.bf16.xpose.msra.mxu0 0
        %2259 = vmatprep.subr.bf16.mxu0 0
        %2260 = vmatpush1.bf16.xpose.msra.mxu0 0
        %2261 = vmatprep.subr.bf16.mxu0 0
        %2262 = vmatpush1.bf16.xpose.msra.mxu0 0
        %2263 = vmatprep.subr.bf16.mxu0 0
        %2264 = vmatpush1.bf16.xpose.msra.mxu0 0
        %2265 = vmatprep.subr.bf16.mxu0 0
        %2266 = vmatpush1.bf16.xpose.msra.mxu0 0
        %2267 = vmatprep.subr.bf16.mxu0 0
        %2268 = vmatpush1.bf16.xpose.msra.mxu0 0
        %2269 = vmatprep.subr.bf16.mxu0 0
        %2270 = vmatpush1.bf16.xpose.msra.mxu0 0
        %2271 = vmatprep.subr.bf16.mxu0 0
        %2272 = vmatpush1.bf16.xpose.msra.mxu0 0
        %2273 = vmatprep.subr.bf16.mxu0 0
        %2274 = vmatpush1.bf16.xpose.msra.mxu0 0
        %2275 = vmatprep.mubr.bf16.mxu0 0
        %2276 = vmatmul.mubr.bf16.gmra.mrb[0].mxu0 %v2238
        %v2277 = vpop.f32.mrb[0].mxu0
        %v2278 = vadd.f32 0.0, %v2277
        %v2279 = vpop.f32.mrb[0].mxu0
        %v2280 = vpop.f32.mrb[0].mxu0
        %v2281 = vpop.f32.mrb[0].mxu0
        %2282 = vdwg.mxu0
        %v2283 = vmul.f32 %v1956, 0.5
        %v2284 = vmul.f32 %v2002, 0.5
        %v2285 = vmul.f32 %v2048, 0.5
        %v2286 = vmul.f32 %v2094, 0.5
        %v2287 = vmul.f32 %v2140, 0.5
        %v2288 = vmul.f32 %v2186, 0.5
        %v2289 = vmul.f32 %v2232, 0.5
        %v2290 = vmul.f32 %v2278, 0.5
        %vm2291 = vcmask 64512
        %v2292 = vsel %vm2291, %v2283, -inf
        %2293 = vmax.xlane.f32.xlu0 %v2292
        %v2294 = vpop.xlane.xlu0 %2293
        %v2295 = vsel %vm2291, %v2284, -inf
        %2296 = vmax.xlane.f32.xlu0 %v2295
        %v2297 = vpop.xlane.xlu0 %2296
        %v2298 = vsel %vm2291, %v2285, -inf
        %2299 = vmax.xlane.f32.xlu0 %v2298
        %v2300 = vpop.xlane.xlu0 %2299
        %v2301 = vsel %vm2291, %v2286, -inf
        %2302 = vmax.xlane.f32.xlu0 %v2301
        %v2303 = vpop.xlane.xlu0 %2302
        %v2304 = vsel %vm2291, %v2287, -inf
        %2305 = vmax.xlane.f32.xlu0 %v2304
        %v2306 = vpop.xlane.xlu0 %2305
        %v2307 = vsel %vm2291, %v2288, -inf
        %2308 = vmax.xlane.f32.xlu0 %v2307
        %v2309 = vpop.xlane.xlu0 %2308
        %v2310 = vsel %vm2291, %v2289, -inf
        %2311 = vmax.xlane.f32.xlu0 %v2310
        %v2312 = vpop.xlane.xlu0 %2311
        %v2313 = vsel %vm2291, %v2290, -inf
        %2314 = vmax.xlane.f32.xlu0 %v2313
        %v2315 = vpop.xlane.xlu0 %2314
        %v2316 = vsub.f32 %v2283, %v2294
        %v2317 = vsub.f32 %v2284, %v2297
        %v2318 = vsub.f32 %v2285, %v2300
        %v2319 = vsub.f32 %v2286, %v2303
        %v2320 = vsub.f32 %v2287, %v2306
        %v2321 = vsub.f32 %v2288, %v2309
        %v2322 = vsub.f32 %v2289, %v2312
        %v2323 = vsub.f32 %v2290, %v2315
        %v2324 = vmul.f32 %v2316, 1.442695
        %v2325 = vpow.pop %v2324
        %v2326 = vmul.f32 %v2317, 1.442695
        %v2327 = vpow.pop %v2326
        %v2328 = vmul.f32 %v2318, 1.442695
        %v2329 = vpow.pop %v2328
        %v2330 = vmul.f32 %v2319, 1.442695
        %v2331 = vpow.pop %v2330
        %v2332 = vmul.f32 %v2320, 1.442695
        %v2333 = vpow.pop %v2332
        %v2334 = vmul.f32 %v2321, 1.442695
        %v2335 = vpow.pop %v2334
        %v2336 = vmul.f32 %v2322, 1.442695
        %v2337 = vpow.pop %v2336
        %v2338 = vmul.f32 %v2323, 1.442695
        %v2339 = vpow.pop %v2338
        %v2340 = vsel %vm2291, %v2325, 0.0
        %2341 = vadd.xlane.f32.xlu0 %v2340
        %v2342 = vpop.xlane.xlu0 %2341
        %v2343 = vsel %vm2291, %v2327, 0.0
        %2344 = vadd.xlane.f32.xlu0 %v2343
        %v2345 = vpop.xlane.xlu0 %2344
        %v2346 = vsel %vm2291, %v2329, 0.0
        %2347 = vadd.xlane.f32.xlu0 %v2346
        %v2348 = vpop.xlane.xlu0 %2347
        %v2349 = vsel %vm2291, %v2331, 0.0
        %2350 = vadd.xlane.f32.xlu0 %v2349
        %v2351 = vpop.xlane.xlu0 %2350
        %v2352 = vsel %vm2291, %v2333, 0.0
        %2353 = vadd.xlane.f32.xlu0 %v2352
        %v2354 = vpop.xlane.xlu0 %2353
        %v2355 = vsel %vm2291, %v2335, 0.0
        %2356 = vadd.xlane.f32.xlu0 %v2355
        %v2357 = vpop.xlane.xlu0 %2356
        %v2358 = vsel %vm2291, %v2337, 0.0
        %2359 = vadd.xlane.f32.xlu0 %v2358
        %v2360 = vpop.xlane.xlu0 %2359
        %v2361 = vsel %vm2291, %v2339, 0.0
        %2362 = vadd.xlane.f32.xlu0 %v2361
        %v2363 = vpop.xlane.xlu0 %2362
        %v2364 = vrcp.pop %v2342
        %v2365 = vrcp.pop %v2345
        %v2366 = vrcp.pop %v2348
        %v2367 = vrcp.pop %v2351
        %v2368 = vrcp.pop %v2354
        %v2369 = vrcp.pop %v2357
        %v2370 = vrcp.pop %v2360
        %v2371 = vrcp.pop %v2363
        %v2372 = vmul.f32 %v2325, %v2364
        %v2373 = vmul.f32 %v2327, %v2365
        %v2374 = vmul.f32 %v2329, %v2366
        %v2375 = vmul.f32 %v2331, %v2367
        %v2376 = vmul.f32 %v2333, %v2368
        %v2377 = vmul.f32 %v2335, %v2369
        %v2378 = vmul.f32 %v2337, %v2370
        %v2379 = vmul.f32 %v2339, %v2371
        %v2380 = vpack.c.bf16 %v2372, %v2372
        %v2381 = vpack.c.bf16 %v2373, %v2373
        %v2382 = vpack.c.bf16 %v2374, %v2374
        %v2383 = vpack.c.bf16 %v2375, %v2375
        %v2384 = vpack.c.bf16 %v2376, %v2376
        %v2385 = vpack.c.bf16 %v2377, %v2377
        %v2386 = vpack.c.bf16 %v2378, %v2378
        %v2387 = vpack.c.bf16 %v2379, %v2379
        %v2389 = vsel %vm2291, %v2380, 0
        %vm2391 = vcmask 1043456
        %v2393 = vsel %vm2391, %v1906, 0
        %2395 = vmatprep.subr.bf16.mxu0 0
        %2396 = vmatpush1.bf16.msra.mxu0 %v2393
        %2397 = vmatprep.subr.bf16.mxu0 0
        %2398 = vmatpush1.bf16.msra.mxu0 0
        %2399 = vmatprep.subr.bf16.mxu0 0
        %2400 = vmatpush1.bf16.msra.mxu0 0
        %2401 = vmatprep.subr.bf16.mxu0 0
        %2402 = vmatpush1.bf16.msra.mxu0 0
        %2403 = vmatprep.subr.bf16.mxu0 0
        %2404 = vmatpush1.bf16.msra.mxu0 0
        %2405 = vmatprep.subr.bf16.mxu0 0
        %2406 = vmatpush1.bf16.msra.mxu0 0
        %2407 = vmatprep.subr.bf16.mxu0 0
        %2408 = vmatpush1.bf16.msra.mxu0 0
        %2409 = vmatprep.subr.bf16.mxu0 0
        %2410 = vmatpush1.bf16.msra.mxu0 0
        %2411 = vmatprep.subr.bf16.mxu0 0
        %2412 = vmatpush1.bf16.msra.mxu0 0
        %2413 = vmatprep.subr.bf16.mxu0 0
        %2414 = vmatpush1.bf16.msra.mxu0 0
        %2415 = vmatprep.subr.bf16.mxu0 0
        %2416 = vmatpush1.bf16.msra.mxu0 0
        %2417 = vmatprep.subr.bf16.mxu0 0
        %2418 = vmatpush1.bf16.msra.mxu0 0
        %2419 = vmatprep.subr.bf16.mxu0 0
        %2420 = vmatpush1.bf16.msra.mxu0 0
        %2421 = vmatprep.subr.bf16.mxu0 0
        %2422 = vmatpush1.bf16.msra.mxu0 0
        %2423 = vmatprep.subr.bf16.mxu0 0
        %2424 = vmatpush1.bf16.msra.mxu0 0
        %2425 = vmatprep.subr.bf16.mxu0 0
        %2426 = vmatpush1.bf16.msra.mxu0 0
        %2427 = vmatprep.mubr.bf16.mxu0 0
        %2428 = vmatmul.mubr.bf16.gmra.mrb[0].mxu0 %v2389
        %v2429 = vpop.f32.mrb[0].mxu0
        %v2430 = vadd.f32 0.0, %v2429
        %v2431 = vpop.f32.mrb[0].mxu0
        %v2432 = vpop.f32.mrb[0].mxu0
        %v2433 = vpop.f32.mrb[0].mxu0
        %2434 = vdwg.mxu0
        %v2436 = vsel %vm2291, %v2381, 0
        %v2439 = vsel %vm2391, %v1907, 0
        %2441 = vmatprep.subr.bf16.mxu0 0
        %2442 = vmatpush1.bf16.msra.mxu0 %v2439
        %2443 = vmatprep.subr.bf16.mxu0 0
        %2444 = vmatpush1.bf16.msra.mxu0 0
        %2445 = vmatprep.subr.bf16.mxu0 0
        %2446 = vmatpush1.bf16.msra.mxu0 0
        %2447 = vmatprep.subr.bf16.mxu0 0
        %2448 = vmatpush1.bf16.msra.mxu0 0
        %2449 = vmatprep.subr.bf16.mxu0 0
        %2450 = vmatpush1.bf16.msra.mxu0 0
        %2451 = vmatprep.subr.bf16.mxu0 0
        %2452 = vmatpush1.bf16.msra.mxu0 0
        %2453 = vmatprep.subr.bf16.mxu0 0
        %2454 = vmatpush1.bf16.msra.mxu0 0
        %2455 = vmatprep.subr.bf16.mxu0 0
        %2456 = vmatpush1.bf16.msra.mxu0 0
        %2457 = vmatprep.subr.bf16.mxu0 0
        %2458 = vmatpush1.bf16.msra.mxu0 0
        %2459 = vmatprep.subr.bf16.mxu0 0
        %2460 = vmatpush1.bf16.msra.mxu0 0
        %2461 = vmatprep.subr.bf16.mxu0 0
        %2462 = vmatpush1.bf16.msra.mxu0 0
        %2463 = vmatprep.subr.bf16.mxu0 0
        %2464 = vmatpush1.bf16.msra.mxu0 0
        %2465 = vmatprep.subr.bf16.mxu0 0
        %2466 = vmatpush1.bf16.msra.mxu0 0
        %2467 = vmatprep.subr.bf16.mxu0 0
        %2468 = vmatpush1.bf16.msra.mxu0 0
        %2469 = vmatprep.subr.bf16.mxu0 0
        %2470 = vmatpush1.bf16.msra.mxu0 0
        %2471 = vmatprep.subr.bf16.mxu0 0
        %2472 = vmatpush1.bf16.msra.mxu0 0
        %2473 = vmatprep.mubr.bf16.mxu0 0
        %2474 = vmatmul.mubr.bf16.gmra.mrb[0].mxu0 %v2436
        %v2475 = vpop.f32.mrb[0].mxu0
        %v2476 = vadd.f32 0.0, %v2475
        %v2477 = vpop.f32.mrb[0].mxu0
        %v2478 = vpop.f32.mrb[0].mxu0
        %v2479 = vpop.f32.mrb[0].mxu0
        %2480 = vdwg.mxu0
        %v2482 = vsel %vm2291, %v2382, 0
        %v2485 = vsel %vm2391, %v1908, 0
        %2487 = vmatprep.subr.bf16.mxu0 0
        %2488 = vmatpush1.bf16.msra.mxu0 %v2485
        %2489 = vmatprep.subr.bf16.mxu0 0
        %2490 = vmatpush1.bf16.msra.mxu0 0
        %2491 = vmatprep.subr.bf16.mxu0 0
        %2492 = vmatpush1.bf16.msra.mxu0 0
        %2493 = vmatprep.subr.bf16.mxu0 0
        %2494 = vmatpush1.bf16.msra.mxu0 0
        %2495 = vmatprep.subr.bf16.mxu0 0
        %2496 = vmatpush1.bf16.msra.mxu0 0
        %2497 = vmatprep.subr.bf16.mxu0 0
        %2498 = vmatpush1.bf16.msra.mxu0 0
        %2499 = vmatprep.subr.bf16.mxu0 0
        %2500 = vmatpush1.bf16.msra.mxu0 0
        %2501 = vmatprep.subr.bf16.mxu0 0
        %2502 = vmatpush1.bf16.msra.mxu0 0
        %2503 = vmatprep.subr.bf16.mxu0 0
        %2504 = vmatpush1.bf16.msra.mxu0 0
        %2505 = vmatprep.subr.bf16.mxu0 0
        %2506 = vmatpush1.bf16.msra.mxu0 0
        %2507 = vmatprep.subr.bf16.mxu0 0
        %2508 = vmatpush1.bf16.msra.mxu0 0
        %2509 = vmatprep.subr.bf16.mxu0 0
        %2510 = vmatpush1.bf16.msra.mxu0 0
        %2511 = vmatprep.subr.bf16.mxu0 0
        %2512 = vmatpush1.bf16.msra.mxu0 0
        %2513 = vmatprep.subr.bf16.mxu0 0
        %2514 = vmatpush1.bf16.msra.mxu0 0
        %2515 = vmatprep.subr.bf16.mxu0 0
        %2516 = vmatpush1.bf16.msra.mxu0 0
        %2517 = vmatprep.subr.bf16.mxu0 0
        %2518 = vmatpush1.bf16.msra.mxu0 0
        %2519 = vmatprep.mubr.bf16.mxu0 0
        %2520 = vmatmul.mubr.bf16.gmra.mrb[0].mxu0 %v2482
        %v2521 = vpop.f32.mrb[0].mxu0
        %v2522 = vadd.f32 0.0, %v2521
        %v2523 = vpop.f32.mrb[0].mxu0
        %v2524 = vpop.f32.mrb[0].mxu0
        %v2525 = vpop.f32.mrb[0].mxu0
        %2526 = vdwg.mxu0
        %v2528 = vsel %vm2291, %v2383, 0
        %v2531 = vsel %vm2391, %v1909, 0
        %2533 = vmatprep.subr.bf16.mxu0 0
        %2534 = vmatpush1.bf16.msra.mxu0 %v2531
        %2535 = vmatprep.subr.bf16.mxu0 0
        %2536 = vmatpush1.bf16.msra.mxu0 0
        %2537 = vmatprep.subr.bf16.mxu0 0
        %2538 = vmatpush1.bf16.msra.mxu0 0
        %2539 = vmatprep.subr.bf16.mxu0 0
        %2540 = vmatpush1.bf16.msra.mxu0 0
        %2541 = vmatprep.subr.bf16.mxu0 0
        %2542 = vmatpush1.bf16.msra.mxu0 0
        %2543 = vmatprep.subr.bf16.mxu0 0
        %2544 = vmatpush1.bf16.msra.mxu0 0
        %2545 = vmatprep.subr.bf16.mxu0 0
        %2546 = vmatpush1.bf16.msra.mxu0 0
        %2547 = vmatprep.subr.bf16.mxu0 0
        %2548 = vmatpush1.bf16.msra.mxu0 0
        %2549 = vmatprep.subr.bf16.mxu0 0
        %2550 = vmatpush1.bf16.msra.mxu0 0
        %2551 = vmatprep.subr.bf16.mxu0 0
        %2552 = vmatpush1.bf16.msra.mxu0 0
        %2553 = vmatprep.subr.bf16.mxu0 0
        %2554 = vmatpush1.bf16.msra.mxu0 0
        %2555 = vmatprep.subr.bf16.mxu0 0
        %2556 = vmatpush1.bf16.msra.mxu0 0
        %2557 = vmatprep.subr.bf16.mxu0 0
        %2558 = vmatpush1.bf16.msra.mxu0 0
        %2559 = vmatprep.subr.bf16.mxu0 0
        %2560 = vmatpush1.bf16.msra.mxu0 0
        %2561 = vmatprep.subr.bf16.mxu0 0
        %2562 = vmatpush1.bf16.msra.mxu0 0
        %2563 = vmatprep.subr.bf16.mxu0 0
        %2564 = vmatpush1.bf16.msra.mxu0 0
        %2565 = vmatprep.mubr.bf16.mxu0 0
        %2566 = vmatmul.mubr.bf16.gmra.mrb[0].mxu0 %v2528
        %v2567 = vpop.f32.mrb[0].mxu0
        %v2568 = vadd.f32 0.0, %v2567
        %v2569 = vpop.f32.mrb[0].mxu0
        %v2570 = vpop.f32.mrb[0].mxu0
        %v2571 = vpop.f32.mrb[0].mxu0
        %2572 = vdwg.mxu0
        %v2574 = vsel %vm2291, %v2384, 0
        %v2577 = vsel %vm2391, %v1910, 0
        %2579 = vmatprep.subr.bf16.mxu0 0
        %2580 = vmatpush1.bf16.msra.mxu0 %v2577
        %2581 = vmatprep.subr.bf16.mxu0 0
        %2582 = vmatpush1.bf16.msra.mxu0 0
        %2583 = vmatprep.subr.bf16.mxu0 0
        %2584 = vmatpush1.bf16.msra.mxu0 0
        %2585 = vmatprep.subr.bf16.mxu0 0
        %2586 = vmatpush1.bf16.msra.mxu0 0
        %2587 = vmatprep.subr.bf16.mxu0 0
        %2588 = vmatpush1.bf16.msra.mxu0 0
        %2589 = vmatprep.subr.bf16.mxu0 0
        %2590 = vmatpush1.bf16.msra.mxu0 0
        %2591 = vmatprep.subr.bf16.mxu0 0
        %2592 = vmatpush1.bf16.msra.mxu0 0
        %2593 = vmatprep.subr.bf16.mxu0 0
        %2594 = vmatpush1.bf16.msra.mxu0 0
        %2595 = vmatprep.subr.bf16.mxu0 0
        %2596 = vmatpush1.bf16.msra.mxu0 0
        %2597 = vmatprep.subr.bf16.mxu0 0
        %2598 = vmatpush1.bf16.msra.mxu0 0
        %2599 = vmatprep.subr.bf16.mxu0 0
        %2600 = vmatpush1.bf16.msra.mxu0 0
        %2601 = vmatprep.subr.bf16.mxu0 0
        %2602 = vmatpush1.bf16.msra.mxu0 0
        %2603 = vmatprep.subr.bf16.mxu0 0
        %2604 = vmatpush1.bf16.msra.mxu0 0
        %2605 = vmatprep.subr.bf16.mxu0 0
        %2606 = vmatpush1.bf16.msra.mxu0 0
        %2607 = vmatprep.subr.bf16.mxu0 0
        %2608 = vmatpush1.bf16.msra.mxu0 0
        %2609 = vmatprep.subr.bf16.mxu0 0
        %2610 = vmatpush1.bf16.msra.mxu0 0
        %2611 = vmatprep.mubr.bf16.mxu0 0
        %2612 = vmatmul.mubr.bf16.gmra.mrb[0].mxu0 %v2574
        %v2613 = vpop.f32.mrb[0].mxu0
        %v2614 = vadd.f32 0.0, %v2613
        %v2615 = vpop.f32.mrb[0].mxu0
        %v2616 = vpop.f32.mrb[0].mxu0
        %v2617 = vpop.f32.mrb[0].mxu0
        %2618 = vdwg.mxu0
        %v2620 = vsel %vm2291, %v2385, 0
        %v2623 = vsel %vm2391, %v1911, 0
        %2625 = vmatprep.subr.bf16.mxu0 0
        %2626 = vmatpush1.bf16.msra.mxu0 %v2623
        %2627 = vmatprep.subr.bf16.mxu0 0
        %2628 = vmatpush1.bf16.msra.mxu0 0
        %2629 = vmatprep.subr.bf16.mxu0 0
        %2630 = vmatpush1.bf16.msra.mxu0 0
        %2631 = vmatprep.subr.bf16.mxu0 0
        %2632 = vmatpush1.bf16.msra.mxu0 0
        %2633 = vmatprep.subr.bf16.mxu0 0
        %2634 = vmatpush1.bf16.msra.mxu0 0
        %2635 = vmatprep.subr.bf16.mxu0 0
        %2636 = vmatpush1.bf16.msra.mxu0 0
        %2637 = vmatprep.subr.bf16.mxu0 0
        %2638 = vmatpush1.bf16.msra.mxu0 0
        %2639 = vmatprep.subr.bf16.mxu0 0
        %2640 = vmatpush1.bf16.msra.mxu0 0
        %2641 = vmatprep.subr.bf16.mxu0 0
        %2642 = vmatpush1.bf16.msra.mxu0 0
        %2643 = vmatprep.subr.bf16.mxu0 0
        %2644 = vmatpush1.bf16.msra.mxu0 0
        %2645 = vmatprep.subr.bf16.mxu0 0
        %2646 = vmatpush1.bf16.msra.mxu0 0
        %2647 = vmatprep.subr.bf16.mxu0 0
        %2648 = vmatpush1.bf16.msra.mxu0 0
        %2649 = vmatprep.subr.bf16.mxu0 0
        %2650 = vmatpush1.bf16.msra.mxu0 0
        %2651 = vmatprep.subr.bf16.mxu0 0
        %2652 = vmatpush1.bf16.msra.mxu0 0
        %2653 = vmatprep.subr.bf16.mxu0 0
        %2654 = vmatpush1.bf16.msra.mxu0 0
        %2655 = vmatprep.subr.bf16.mxu0 0
        %2656 = vmatpush1.bf16.msra.mxu0 0
        %2657 = vmatprep.mubr.bf16.mxu0 0
        %2658 = vmatmul.mubr.bf16.gmra.mrb[0].mxu0 %v2620
        %v2659 = vpop.f32.mrb[0].mxu0
        %v2660 = vadd.f32 0.0, %v2659
        %v2661 = vpop.f32.mrb[0].mxu0
        %v2662 = vpop.f32.mrb[0].mxu0
        %v2663 = vpop.f32.mrb[0].mxu0
        %2664 = vdwg.mxu0
        %v2666 = vsel %vm2291, %v2386, 0
        %v2669 = vsel %vm2391, %v1912, 0
        %2671 = vmatprep.subr.bf16.mxu0 0
        %2672 = vmatpush1.bf16.msra.mxu0 %v2669
        %2673 = vmatprep.subr.bf16.mxu0 0
        %2674 = vmatpush1.bf16.msra.mxu0 0
        %2675 = vmatprep.subr.bf16.mxu0 0
        %2676 = vmatpush1.bf16.msra.mxu0 0
        %2677 = vmatprep.subr.bf16.mxu0 0
        %2678 = vmatpush1.bf16.msra.mxu0 0
        %2679 = vmatprep.subr.bf16.mxu0 0
        %2680 = vmatpush1.bf16.msra.mxu0 0
        %2681 = vmatprep.subr.bf16.mxu0 0
        %2682 = vmatpush1.bf16.msra.mxu0 0
        %2683 = vmatprep.subr.bf16.mxu0 0
        %2684 = vmatpush1.bf16.msra.mxu0 0
        %2685 = vmatprep.subr.bf16.mxu0 0
        %2686 = vmatpush1.bf16.msra.mxu0 0
        %2687 = vmatprep.subr.bf16.mxu0 0
        %2688 = vmatpush1.bf16.msra.mxu0 0
        %2689 = vmatprep.subr.bf16.mxu0 0
        %2690 = vmatpush1.bf16.msra.mxu0 0
        %2691 = vmatprep.subr.bf16.mxu0 0
        %2692 = vmatpush1.bf16.msra.mxu0 0
        %2693 = vmatprep.subr.bf16.mxu0 0
        %2694 = vmatpush1.bf16.msra.mxu0 0
        %2695 = vmatprep.subr.bf16.mxu0 0
        %2696 = vmatpush1.bf16.msra.mxu0 0
        %2697 = vmatprep.subr.bf16.mxu0 0
        %2698 = vmatpush1.bf16.msra.mxu0 0
        %2699 = vmatprep.subr.bf16.mxu0 0
        %2700 = vmatpush1.bf16.msra.mxu0 0
        %2701 = vmatprep.subr.bf16.mxu0 0
        %2702 = vmatpush1.bf16.msra.mxu0 0
        %2703 = vmatprep.mubr.bf16.mxu0 0
        %2704 = vmatmul.mubr.bf16.gmra.mrb[0].mxu0 %v2666
        %v2705 = vpop.f32.mrb[0].mxu0
        %v2706 = vadd.f32 0.0, %v2705
        %v2707 = vpop.f32.mrb[0].mxu0
        %v2708 = vpop.f32.mrb[0].mxu0
        %v2709 = vpop.f32.mrb[0].mxu0
        %2710 = vdwg.mxu0
        %v2712 = vsel %vm2291, %v2387, 0
        %v2715 = vsel %vm2391, %v1913, 0
        %2717 = vmatprep.subr.bf16.mxu0 0
        %2718 = vmatpush1.bf16.msra.mxu0 %v2715
        %2719 = vmatprep.subr.bf16.mxu0 0
        %2720 = vmatpush1.bf16.msra.mxu0 0
        %2721 = vmatprep.subr.bf16.mxu0 0
        %2722 = vmatpush1.bf16.msra.mxu0 0
        %2723 = vmatprep.subr.bf16.mxu0 0
        %2724 = vmatpush1.bf16.msra.mxu0 0
        %2725 = vmatprep.subr.bf16.mxu0 0
        %2726 = vmatpush1.bf16.msra.mxu0 0
        %2727 = vmatprep.subr.bf16.mxu0 0
        %2728 = vmatpush1.bf16.msra.mxu0 0
        %2729 = vmatprep.subr.bf16.mxu0 0
        %2730 = vmatpush1.bf16.msra.mxu0 0
        %2731 = vmatprep.subr.bf16.mxu0 0
        %2732 = vmatpush1.bf16.msra.mxu0 0
        %2733 = vmatprep.subr.bf16.mxu0 0
        %2734 = vmatpush1.bf16.msra.mxu0 0
        %2735 = vmatprep.subr.bf16.mxu0 0
        %2736 = vmatpush1.bf16.msra.mxu0 0
        %2737 = vmatprep.subr.bf16.mxu0 0
        %2738 = vmatpush1.bf16.msra.mxu0 0
        %2739 = vmatprep.subr.bf16.mxu0 0
        %2740 = vmatpush1.bf16.msra.mxu0 0
        %2741 = vmatprep.subr.bf16.mxu0 0
        %2742 = vmatpush1.bf16.msra.mxu0 0
        %2743 = vmatprep.subr.bf16.mxu0 0
        %2744 = vmatpush1.bf16.msra.mxu0 0
        %2745 = vmatprep.subr.bf16.mxu0 0
        %2746 = vmatpush1.bf16.msra.mxu0 0
        %2747 = vmatprep.subr.bf16.mxu0 0
        %2748 = vmatpush1.bf16.msra.mxu0 0
        %2749 = vmatprep.mubr.bf16.mxu0 0
        %2750 = vmatmul.mubr.bf16.gmra.mrb[0].mxu0 %v2712
        %v2751 = vpop.f32.mrb[0].mxu0
        %v2752 = vadd.f32 0.0, %v2751
        %v2753 = vpop.f32.mrb[0].mxu0
        %v2754 = vpop.f32.mrb[0].mxu0
        %v2755 = vpop.f32.mrb[0].mxu0
        %2756 = vdwg.mxu0
        %v2757 = vpack.c.bf16 %v604, %v604
        %v2758 = vpack.c.bf16 %v657, %v657
        %v2759 = vpack.c.bf16 %v710, %v710
        %v2760 = vpack.c.bf16 %v763, %v763
        %v2761 = vpack.c.bf16 %v816, %v816
        %v2762 = vpack.c.bf16 %v869, %v869
        %v2763 = vpack.c.bf16 %v922, %v922
        %v2764 = vpack.c.bf16 %v975, %v975
        %v2765 = vpack.c.bf16 %v1060, %v1060
        %v2766 = vpack.c.bf16 %v1113, %v1113
        %v2767 = vpack.c.bf16 %v1166, %v1166
        %v2768 = vpack.c.bf16 %v1219, %v1219
        %v2769 = vpack.c.bf16 %v1272, %v1272
        %v2770 = vpack.c.bf16 %v1325, %v1325
        %v2771 = vpack.c.bf16 %v1378, %v1378
        %v2772 = vpack.c.bf16 %v1431, %v1431
        %v2773 = vpack.c.bf16 %v1516, %v1516
        %v2774 = vpack.c.bf16 %v1569, %v1569
        %v2775 = vpack.c.bf16 %v1622, %v1622
        %v2776 = vpack.c.bf16 %v1675, %v1675
        %v2777 = vpack.c.bf16 %v1728, %v1728
        %v2778 = vpack.c.bf16 %v1781, %v1781
        %v2779 = vpack.c.bf16 %v1834, %v1834
        %v2780 = vpack.c.bf16 %v1887, %v1887
        %v2782 = vsel %vm1914, %v2757, 0
        %v2785 = vsel %vm1914, %v2765, 0
        %2787 = vmatprep.subr.bf16.mxu0 0
        %2788 = vmatpush1.bf16.xpose.msra.mxu0 %v2785
        %2789 = vmatprep.subr.bf16.mxu0 0
        %2790 = vmatpush1.bf16.xpose.msra.mxu0 0
        %2791 = vmatprep.subr.bf16.mxu0 0
        %2792 = vmatpush1.bf16.xpose.msra.mxu0 0
        %2793 = vmatprep.subr.bf16.mxu0 0
        %2794 = vmatpush1.bf16.xpose.msra.mxu0 0
        %2795 = vmatprep.subr.bf16.mxu0 0
        %2796 = vmatpush1.bf16.xpose.msra.mxu0 0
        %2797 = vmatprep.subr.bf16.mxu0 0
        %2798 = vmatpush1.bf16.xpose.msra.mxu0 0
        %2799 = vmatprep.subr.bf16.mxu0 0
        %2800 = vmatpush1.bf16.xpose.msra.mxu0 0
        %2801 = vmatprep.subr.bf16.mxu0 0
        %2802 = vmatpush1.bf16.xpose.msra.mxu0 0
        %2803 = vmatprep.subr.bf16.mxu0 0
        %2804 = vmatpush1.bf16.xpose.msra.mxu0 0
        %2805 = vmatprep.subr.bf16.mxu0 0
        %2806 = vmatpush1.bf16.xpose.msra.mxu0 0
        %2807 = vmatprep.subr.bf16.mxu0 0
        %2808 = vmatpush1.bf16.xpose.msra.mxu0 0
        %2809 = vmatprep.subr.bf16.mxu0 0
        %2810 = vmatpush1.bf16.xpose.msra.mxu0 0
        %2811 = vmatprep.subr.bf16.mxu0 0
        %2812 = vmatpush1.bf16.xpose.msra.mxu0 0
        %2813 = vmatprep.subr.bf16.mxu0 0
        %2814 = vmatpush1.bf16.xpose.msra.mxu0 0
        %2815 = vmatprep.subr.bf16.mxu0 0
        %2816 = vmatpush1.bf16.xpose.msra.mxu0 0
        %2817 = vmatprep.subr.bf16.mxu0 0
        %2818 = vmatpush1.bf16.xpose.msra.mxu0 0
        %2819 = vmatprep.mubr.bf16.mxu0 0
        %2820 = vmatmul.mubr.bf16.gmra.mrb[0].mxu0 %v2782
        %v2821 = vpop.f32.mrb[0].mxu0
        %v2822 = vadd.f32 0.0, %v2821
        %v2823 = vpop.f32.mrb[0].mxu0
        %v2824 = vpop.f32.mrb[0].mxu0
        %v2825 = vpop.f32.mrb[0].mxu0
        %2826 = vdwg.mxu0
        %v2828 = vsel %vm1914, %v2758, 0
        %v2831 = vsel %vm1914, %v2766, 0
        %2833 = vmatprep.subr.bf16.mxu0 0
        %2834 = vmatpush1.bf16.xpose.msra.mxu0 %v2831
        %2835 = vmatprep.subr.bf16.mxu0 0
        %2836 = vmatpush1.bf16.xpose.msra.mxu0 0
        %2837 = vmatprep.subr.bf16.mxu0 0
        %2838 = vmatpush1.bf16.xpose.msra.mxu0 0
        %2839 = vmatprep.subr.bf16.mxu0 0
        %2840 = vmatpush1.bf16.xpose.msra.mxu0 0
        %2841 = vmatprep.subr.bf16.mxu0 0
        %2842 = vmatpush1.bf16.xpose.msra.mxu0 0
        %2843 = vmatprep.subr.bf16.mxu0 0
        %2844 = vmatpush1.bf16.xpose.msra.mxu0 0
        %2845 = vmatprep.subr.bf16.mxu0 0
        %2846 = vmatpush1.bf16.xpose.msra.mxu0 0
        %2847 = vmatprep.subr.bf16.mxu0 0
        %2848 = vmatpush1.bf16.xpose.msra.mxu0 0
        %2849 = vmatprep.subr.bf16.mxu0 0
        %2850 = vmatpush1.bf16.xpose.msra.mxu0 0
        %2851 = vmatprep.subr.bf16.mxu0 0
        %2852 = vmatpush1.bf16.xpose.msra.mxu0 0
        %2853 = vmatprep.subr.bf16.mxu0 0
        %2854 = vmatpush1.bf16.xpose.msra.mxu0 0
        %2855 = vmatprep.subr.bf16.mxu0 0
        %2856 = vmatpush1.bf16.xpose.msra.mxu0 0
        %2857 = vmatprep.subr.bf16.mxu0 0
        %2858 = vmatpush1.bf16.xpose.msra.mxu0 0
        %2859 = vmatprep.subr.bf16.mxu0 0
        %2860 = vmatpush1.bf16.xpose.msra.mxu0 0
        %2861 = vmatprep.subr.bf16.mxu0 0
        %2862 = vmatpush1.bf16.xpose.msra.mxu0 0
        %2863 = vmatprep.subr.bf16.mxu0 0
        %2864 = vmatpush1.bf16.xpose.msra.mxu0 0
        %2865 = vmatprep.mubr.bf16.mxu0 0
        %2866 = vmatmul.mubr.bf16.gmra.mrb[0].mxu0 %v2828
        %v2867 = vpop.f32.mrb[0].mxu0
        %v2868 = vadd.f32 0.0, %v2867
        %v2869 = vpop.f32.mrb[0].mxu0
        %v2870 = vpop.f32.mrb[0].mxu0
        %v2871 = vpop.f32.mrb[0].mxu0
        %2872 = vdwg.mxu0
        %v2874 = vsel %vm1914, %v2759, 0
        %v2877 = vsel %vm1914, %v2767, 0
        %2879 = vmatprep.subr.bf16.mxu0 0
        %2880 = vmatpush1.bf16.xpose.msra.mxu0 %v2877
        %2881 = vmatprep.subr.bf16.mxu0 0
        %2882 = vmatpush1.bf16.xpose.msra.mxu0 0
        %2883 = vmatprep.subr.bf16.mxu0 0
        %2884 = vmatpush1.bf16.xpose.msra.mxu0 0
        %2885 = vmatprep.subr.bf16.mxu0 0
        %2886 = vmatpush1.bf16.xpose.msra.mxu0 0
        %2887 = vmatprep.subr.bf16.mxu0 0
        %2888 = vmatpush1.bf16.xpose.msra.mxu0 0
        %2889 = vmatprep.subr.bf16.mxu0 0
        %2890 = vmatpush1.bf16.xpose.msra.mxu0 0
        %2891 = vmatprep.subr.bf16.mxu0 0
        %2892 = vmatpush1.bf16.xpose.msra.mxu0 0
        %2893 = vmatprep.subr.bf16.mxu0 0
        %2894 = vmatpush1.bf16.xpose.msra.mxu0 0
        %2895 = vmatprep.subr.bf16.mxu0 0
        %2896 = vmatpush1.bf16.xpose.msra.mxu0 0
        %2897 = vmatprep.subr.bf16.mxu0 0
        %2898 = vmatpush1.bf16.xpose.msra.mxu0 0
        %2899 = vmatprep.subr.bf16.mxu0 0
        %2900 = vmatpush1.bf16.xpose.msra.mxu0 0
        %2901 = vmatprep.subr.bf16.mxu0 0
        %2902 = vmatpush1.bf16.xpose.msra.mxu0 0
        %2903 = vmatprep.subr.bf16.mxu0 0
        %2904 = vmatpush1.bf16.xpose.msra.mxu0 0
        %2905 = vmatprep.subr.bf16.mxu0 0
        %2906 = vmatpush1.bf16.xpose.msra.mxu0 0
        %2907 = vmatprep.subr.bf16.mxu0 0
        %2908 = vmatpush1.bf16.xpose.msra.mxu0 0
        %2909 = vmatprep.subr.bf16.mxu0 0
        %2910 = vmatpush1.bf16.xpose.msra.mxu0 0
        %2911 = vmatprep.mubr.bf16.mxu0 0
        %2912 = vmatmul.mubr.bf16.gmra.mrb[0].mxu0 %v2874
        %v2913 = vpop.f32.mrb[0].mxu0
        %v2914 = vadd.f32 0.0, %v2913
        %v2915 = vpop.f32.mrb[0].mxu0
        %v2916 = vpop.f32.mrb[0].mxu0
        %v2917 = vpop.f32.mrb[0].mxu0
        %2918 = vdwg.mxu0
        %v2920 = vsel %vm1914, %v2760, 0
        %v2923 = vsel %vm1914, %v2768, 0
        %2925 = vmatprep.subr.bf16.mxu0 0
        %2926 = vmatpush1.bf16.xpose.msra.mxu0 %v2923
        %2927 = vmatprep.subr.bf16.mxu0 0
        %2928 = vmatpush1.bf16.xpose.msra.mxu0 0
        %2929 = vmatprep.subr.bf16.mxu0 0
        %2930 = vmatpush1.bf16.xpose.msra.mxu0 0
        %2931 = vmatprep.subr.bf16.mxu0 0
        %2932 = vmatpush1.bf16.xpose.msra.mxu0 0
        %2933 = vmatprep.subr.bf16.mxu0 0
        %2934 = vmatpush1.bf16.xpose.msra.mxu0 0
        %2935 = vmatprep.subr.bf16.mxu0 0
        %2936 = vmatpush1.bf16.xpose.msra.mxu0 0
        %2937 = vmatprep.subr.bf16.mxu0 0
        %2938 = vmatpush1.bf16.xpose.msra.mxu0 0
        %2939 = vmatprep.subr.bf16.mxu0 0
        %2940 = vmatpush1.bf16.xpose.msra.mxu0 0
        %2941 = vmatprep.subr.bf16.mxu0 0
        %2942 = vmatpush1.bf16.xpose.msra.mxu0 0
        %2943 = vmatprep.subr.bf16.mxu0 0
        %2944 = vmatpush1.bf16.xpose.msra.mxu0 0
        %2945 = vmatprep.subr.bf16.mxu0 0
        %2946 = vmatpush1.bf16.xpose.msra.mxu0 0
        %2947 = vmatprep.subr.bf16.mxu0 0
        %2948 = vmatpush1.bf16.xpose.msra.mxu0 0
        %2949 = vmatprep.subr.bf16.mxu0 0
        %2950 = vmatpush1.bf16.xpose.msra.mxu0 0
        %2951 = vmatprep.subr.bf16.mxu0 0
        %2952 = vmatpush1.bf16.xpose.msra.mxu0 0
        %2953 = vmatprep.subr.bf16.mxu0 0
        %2954 = vmatpush1.bf16.xpose.msra.mxu0 0
        %2955 = vmatprep.subr.bf16.mxu0 0
        %2956 = vmatpush1.bf16.xpose.msra.mxu0 0
        %2957 = vmatprep.mubr.bf16.mxu0 0
        %2958 = vmatmul.mubr.bf16.gmra.mrb[0].mxu0 %v2920
        %v2959 = vpop.f32.mrb[0].mxu0
        %v2960 = vadd.f32 0.0, %v2959
        %v2961 = vpop.f32.mrb[0].mxu0
        %v2962 = vpop.f32.mrb[0].mxu0
        %v2963 = vpop.f32.mrb[0].mxu0
        %2964 = vdwg.mxu0
        %v2966 = vsel %vm1914, %v2761, 0
        %v2969 = vsel %vm1914, %v2769, 0
        %2971 = vmatprep.subr.bf16.mxu0 0
        %2972 = vmatpush1.bf16.xpose.msra.mxu0 %v2969
        %2973 = vmatprep.subr.bf16.mxu0 0
        %2974 = vmatpush1.bf16.xpose.msra.mxu0 0
        %2975 = vmatprep.subr.bf16.mxu0 0
        %2976 = vmatpush1.bf16.xpose.msra.mxu0 0
        %2977 = vmatprep.subr.bf16.mxu0 0
        %2978 = vmatpush1.bf16.xpose.msra.mxu0 0
        %2979 = vmatprep.subr.bf16.mxu0 0
        %2980 = vmatpush1.bf16.xpose.msra.mxu0 0
        %2981 = vmatprep.subr.bf16.mxu0 0
        %2982 = vmatpush1.bf16.xpose.msra.mxu0 0
        %2983 = vmatprep.subr.bf16.mxu0 0
        %2984 = vmatpush1.bf16.xpose.msra.mxu0 0
        %2985 = vmatprep.subr.bf16.mxu0 0
        %2986 = vmatpush1.bf16.xpose.msra.mxu0 0
        %2987 = vmatprep.subr.bf16.mxu0 0
        %2988 = vmatpush1.bf16.xpose.msra.mxu0 0
        %2989 = vmatprep.subr.bf16.mxu0 0
        %2990 = vmatpush1.bf16.xpose.msra.mxu0 0
        %2991 = vmatprep.subr.bf16.mxu0 0
        %2992 = vmatpush1.bf16.xpose.msra.mxu0 0
        %2993 = vmatprep.subr.bf16.mxu0 0
        %2994 = vmatpush1.bf16.xpose.msra.mxu0 0
        %2995 = vmatprep.subr.bf16.mxu0 0
        %2996 = vmatpush1.bf16.xpose.msra.mxu0 0
        %2997 = vmatprep.subr.bf16.mxu0 0
        %2998 = vmatpush1.bf16.xpose.msra.mxu0 0
        %2999 = vmatprep.subr.bf16.mxu0 0
        %3000 = vmatpush1.bf16.xpose.msra.mxu0 0
        %3001 = vmatprep.subr.bf16.mxu0 0
        %3002 = vmatpush1.bf16.xpose.msra.mxu0 0
        %3003 = vmatprep.mubr.bf16.mxu0 0
        %3004 = vmatmul.mubr.bf16.gmra.mrb[0].mxu0 %v2966
        %v3005 = vpop.f32.mrb[0].mxu0
        %v3006 = vadd.f32 0.0, %v3005
        %v3007 = vpop.f32.mrb[0].mxu0
        %v3008 = vpop.f32.mrb[0].mxu0
        %v3009 = vpop.f32.mrb[0].mxu0
        %3010 = vdwg.mxu0
        %v3012 = vsel %vm1914, %v2762, 0
        %v3015 = vsel %vm1914, %v2770, 0
        %3017 = vmatprep.subr.bf16.mxu0 0
        %3018 = vmatpush1.bf16.xpose.msra.mxu0 %v3015
        %3019 = vmatprep.subr.bf16.mxu0 0
        %3020 = vmatpush1.bf16.xpose.msra.mxu0 0
        %3021 = vmatprep.subr.bf16.mxu0 0
        %3022 = vmatpush1.bf16.xpose.msra.mxu0 0
        %3023 = vmatprep.subr.bf16.mxu0 0
        %3024 = vmatpush1.bf16.xpose.msra.mxu0 0
        %3025 = vmatprep.subr.bf16.mxu0 0
        %3026 = vmatpush1.bf16.xpose.msra.mxu0 0
        %3027 = vmatprep.subr.bf16.mxu0 0
        %3028 = vmatpush1.bf16.xpose.msra.mxu0 0
        %3029 = vmatprep.subr.bf16.mxu0 0
        %3030 = vmatpush1.bf16.xpose.msra.mxu0 0
        %3031 = vmatprep.subr.bf16.mxu0 0
        %3032 = vmatpush1.bf16.xpose.msra.mxu0 0
        %3033 = vmatprep.subr.bf16.mxu0 0
        %3034 = vmatpush1.bf16.xpose.msra.mxu0 0
        %3035 = vmatprep.subr.bf16.mxu0 0
        %3036 = vmatpush1.bf16.xpose.msra.mxu0 0
        %3037 = vmatprep.subr.bf16.mxu0 0
        %3038 = vmatpush1.bf16.xpose.msra.mxu0 0
        %3039 = vmatprep.subr.bf16.mxu0 0
        %3040 = vmatpush1.bf16.xpose.msra.mxu0 0
        %3041 = vmatprep.subr.bf16.mxu0 0
        %3042 = vmatpush1.bf16.xpose.msra.mxu0 0
        %3043 = vmatprep.subr.bf16.mxu0 0
        %3044 = vmatpush1.bf16.xpose.msra.mxu0 0
        %3045 = vmatprep.subr.bf16.mxu0 0
        %3046 = vmatpush1.bf16.xpose.msra.mxu0 0
        %3047 = vmatprep.subr.bf16.mxu0 0
        %3048 = vmatpush1.bf16.xpose.msra.mxu0 0
        %3049 = vmatprep.mubr.bf16.mxu0 0
        %3050 = vmatmul.mubr.bf16.gmra.mrb[0].mxu0 %v3012
        %v3051 = vpop.f32.mrb[0].mxu0
        %v3052 = vadd.f32 0.0, %v3051
        %v3053 = vpop.f32.mrb[0].mxu0
        %v3054 = vpop.f32.mrb[0].mxu0
        %v3055 = vpop.f32.mrb[0].mxu0
        %3056 = vdwg.mxu0
        %v3058 = vsel %vm1914, %v2763, 0
        %v3061 = vsel %vm1914, %v2771, 0
        %3063 = vmatprep.subr.bf16.mxu0 0
        %3064 = vmatpush1.bf16.xpose.msra.mxu0 %v3061
        %3065 = vmatprep.subr.bf16.mxu0 0
        %3066 = vmatpush1.bf16.xpose.msra.mxu0 0
        %3067 = vmatprep.subr.bf16.mxu0 0
        %3068 = vmatpush1.bf16.xpose.msra.mxu0 0
        %3069 = vmatprep.subr.bf16.mxu0 0
        %3070 = vmatpush1.bf16.xpose.msra.mxu0 0
        %3071 = vmatprep.subr.bf16.mxu0 0
        %3072 = vmatpush1.bf16.xpose.msra.mxu0 0
        %3073 = vmatprep.subr.bf16.mxu0 0
        %3074 = vmatpush1.bf16.xpose.msra.mxu0 0
        %3075 = vmatprep.subr.bf16.mxu0 0
        %3076 = vmatpush1.bf16.xpose.msra.mxu0 0
        %3077 = vmatprep.subr.bf16.mxu0 0
        %3078 = vmatpush1.bf16.xpose.msra.mxu0 0
        %3079 = vmatprep.subr.bf16.mxu0 0
        %3080 = vmatpush1.bf16.xpose.msra.mxu0 0
        %3081 = vmatprep.subr.bf16.mxu0 0
        %3082 = vmatpush1.bf16.xpose.msra.mxu0 0
        %3083 = vmatprep.subr.bf16.mxu0 0
        %3084 = vmatpush1.bf16.xpose.msra.mxu0 0
        %3085 = vmatprep.subr.bf16.mxu0 0
        %3086 = vmatpush1.bf16.xpose.msra.mxu0 0
        %3087 = vmatprep.subr.bf16.mxu0 0
        %3088 = vmatpush1.bf16.xpose.msra.mxu0 0
        %3089 = vmatprep.subr.bf16.mxu0 0
        %3090 = vmatpush1.bf16.xpose.msra.mxu0 0
        %3091 = vmatprep.subr.bf16.mxu0 0
        %3092 = vmatpush1.bf16.xpose.msra.mxu0 0
        %3093 = vmatprep.subr.bf16.mxu0 0
        %3094 = vmatpush1.bf16.xpose.msra.mxu0 0
        %3095 = vmatprep.mubr.bf16.mxu0 0
        %3096 = vmatmul.mubr.bf16.gmra.mrb[0].mxu0 %v3058
        %v3097 = vpop.f32.mrb[0].mxu0
        %v3098 = vadd.f32 0.0, %v3097
        %v3099 = vpop.f32.mrb[0].mxu0
        %v3100 = vpop.f32.mrb[0].mxu0
        %v3101 = vpop.f32.mrb[0].mxu0
        %3102 = vdwg.mxu0
        %v3104 = vsel %vm1914, %v2764, 0
        %v3107 = vsel %vm1914, %v2772, 0
        %3109 = vmatprep.subr.bf16.mxu0 0
        %3110 = vmatpush1.bf16.xpose.msra.mxu0 %v3107
        %3111 = vmatprep.subr.bf16.mxu0 0
        %3112 = vmatpush1.bf16.xpose.msra.mxu0 0
        %3113 = vmatprep.subr.bf16.mxu0 0
        %3114 = vmatpush1.bf16.xpose.msra.mxu0 0
        %3115 = vmatprep.subr.bf16.mxu0 0
        %3116 = vmatpush1.bf16.xpose.msra.mxu0 0
        %3117 = vmatprep.subr.bf16.mxu0 0
        %3118 = vmatpush1.bf16.xpose.msra.mxu0 0
        %3119 = vmatprep.subr.bf16.mxu0 0
        %3120 = vmatpush1.bf16.xpose.msra.mxu0 0
        %3121 = vmatprep.subr.bf16.mxu0 0
        %3122 = vmatpush1.bf16.xpose.msra.mxu0 0
        %3123 = vmatprep.subr.bf16.mxu0 0
        %3124 = vmatpush1.bf16.xpose.msra.mxu0 0
        %3125 = vmatprep.subr.bf16.mxu0 0
        %3126 = vmatpush1.bf16.xpose.msra.mxu0 0
        %3127 = vmatprep.subr.bf16.mxu0 0
        %3128 = vmatpush1.bf16.xpose.msra.mxu0 0
        %3129 = vmatprep.subr.bf16.mxu0 0
        %3130 = vmatpush1.bf16.xpose.msra.mxu0 0
        %3131 = vmatprep.subr.bf16.mxu0 0
        %3132 = vmatpush1.bf16.xpose.msra.mxu0 0
        %3133 = vmatprep.subr.bf16.mxu0 0
        %3134 = vmatpush1.bf16.xpose.msra.mxu0 0
        %3135 = vmatprep.subr.bf16.mxu0 0
        %3136 = vmatpush1.bf16.xpose.msra.mxu0 0
        %3137 = vmatprep.subr.bf16.mxu0 0
        %3138 = vmatpush1.bf16.xpose.msra.mxu0 0
        %3139 = vmatprep.subr.bf16.mxu0 0
        %3140 = vmatpush1.bf16.xpose.msra.mxu0 0
        %3141 = vmatprep.mubr.bf16.mxu0 0
        %3142 = vmatmul.mubr.bf16.gmra.mrb[0].mxu0 %v3104
        %v3143 = vpop.f32.mrb[0].mxu0
        %v3144 = vadd.f32 0.0, %v3143
        %v3145 = vpop.f32.mrb[0].mxu0
        %v3146 = vpop.f32.mrb[0].mxu0
        %v3147 = vpop.f32.mrb[0].mxu0
        %3148 = vdwg.mxu0
        %v3149 = vmul.f32 %v2822, 0.5
        %v3150 = vmul.f32 %v2868, 0.5
        %v3151 = vmul.f32 %v2914, 0.5
        %v3152 = vmul.f32 %v2960, 0.5
        %v3153 = vmul.f32 %v3006, 0.5
        %v3154 = vmul.f32 %v3052, 0.5
        %v3155 = vmul.f32 %v3098, 0.5
        %v3156 = vmul.f32 %v3144, 0.5
        %v3157 = vsel %vm2291, %v3149, -inf
        %3158 = vmax.xlane.f32.xlu0 %v3157
        %v3159 = vpop.xlane.xlu0 %3158
        %v3160 = vsel %vm2291, %v3150, -inf
        %3161 = vmax.xlane.f32.xlu0 %v3160
        %v3162 = vpop.xlane.xlu0 %3161
        %v3163 = vsel %vm2291, %v3151, -inf
        %3164 = vmax.xlane.f32.xlu0 %v3163
        %v3165 = vpop.xlane.xlu0 %3164
        %v3166 = vsel %vm2291, %v3152, -inf
        %3167 = vmax.xlane.f32.xlu0 %v3166
        %v3168 = vpop.xlane.xlu0 %3167
        %v3169 = vsel %vm2291, %v3153, -inf
        %3170 = vmax.xlane.f32.xlu0 %v3169
        %v3171 = vpop.xlane.xlu0 %3170
        %v3172 = vsel %vm2291, %v3154, -inf
        %3173 = vmax.xlane.f32.xlu0 %v3172
        %v3174 = vpop.xlane.xlu0 %3173
        %v3175 = vsel %vm2291, %v3155, -inf
        %3176 = vmax.xlane.f32.xlu0 %v3175
        %v3177 = vpop.xlane.xlu0 %3176
        %v3178 = vsel %vm2291, %v3156, -inf
        %3179 = vmax.xlane.f32.xlu0 %v3178
        %v3180 = vpop.xlane.xlu0 %3179
        %v3181 = vsub.f32 %v3149, %v3159
        %v3182 = vsub.f32 %v3150, %v3162
        %v3183 = vsub.f32 %v3151, %v3165
        %v3184 = vsub.f32 %v3152, %v3168
        %v3185 = vsub.f32 %v3153, %v3171
        %v3186 = vsub.f32 %v3154, %v3174
        %v3187 = vsub.f32 %v3155, %v3177
        %v3188 = vsub.f32 %v3156, %v3180
        %v3189 = vmul.f32 %v3181, 1.442695
        %v3190 = vpow.pop %v3189
        %v3191 = vmul.f32 %v3182, 1.442695
        %v3192 = vpow.pop %v3191
        %v3193 = vmul.f32 %v3183, 1.442695
        %v3194 = vpow.pop %v3193
        %v3195 = vmul.f32 %v3184, 1.442695
        %v3196 = vpow.pop %v3195
        %v3197 = vmul.f32 %v3185, 1.442695
        %v3198 = vpow.pop %v3197
        %v3199 = vmul.f32 %v3186, 1.442695
        %v3200 = vpow.pop %v3199
        %v3201 = vmul.f32 %v3187, 1.442695
        %v3202 = vpow.pop %v3201
        %v3203 = vmul.f32 %v3188, 1.442695
        %v3204 = vpow.pop %v3203
        %v3205 = vsel %vm2291, %v3190, 0.0
        %3206 = vadd.xlane.f32.xlu0 %v3205
        %v3207 = vpop.xlane.xlu0 %3206
        %v3208 = vsel %vm2291, %v3192, 0.0
        %3209 = vadd.xlane.f32.xlu0 %v3208
        %v3210 = vpop.xlane.xlu0 %3209
        %v3211 = vsel %vm2291, %v3194, 0.0
        %3212 = vadd.xlane.f32.xlu0 %v3211
        %v3213 = vpop.xlane.xlu0 %3212
        %v3214 = vsel %vm2291, %v3196, 0.0
        %3215 = vadd.xlane.f32.xlu0 %v3214
        %v3216 = vpop.xlane.xlu0 %3215
        %v3217 = vsel %vm2291, %v3198, 0.0
        %3218 = vadd.xlane.f32.xlu0 %v3217
        %v3219 = vpop.xlane.xlu0 %3218
        %v3220 = vsel %vm2291, %v3200, 0.0
        %3221 = vadd.xlane.f32.xlu0 %v3220
        %v3222 = vpop.xlane.xlu0 %3221
        %v3223 = vsel %vm2291, %v3202, 0.0
        %3224 = vadd.xlane.f32.xlu0 %v3223
        %v3225 = vpop.xlane.xlu0 %3224
        %v3226 = vsel %vm2291, %v3204, 0.0
        %3227 = vadd.xlane.f32.xlu0 %v3226
        %v3228 = vpop.xlane.xlu0 %3227
        %v3229 = vrcp.pop %v3207
        %v3230 = vrcp.pop %v3210
        %v3231 = vrcp.pop %v3213
        %v3232 = vrcp.pop %v3216
        %v3233 = vrcp.pop %v3219
        %v3234 = vrcp.pop %v3222
        %v3235 = vrcp.pop %v3225
        %v3236 = vrcp.pop %v3228
        %v3237 = vmul.f32 %v3190, %v3229
        %v3238 = vmul.f32 %v3192, %v3230
        %v3239 = vmul.f32 %v3194, %v3231
        %v3240 = vmul.f32 %v3196, %v3232
        %v3241 = vmul.f32 %v3198, %v3233
        %v3242 = vmul.f32 %v3200, %v3234
        %v3243 = vmul.f32 %v3202, %v3235
        %v3244 = vmul.f32 %v3204, %v3236
        %v3245 = vpack.c.bf16 %v3237, %v3237
        %v3246 = vpack.c.bf16 %v3238, %v3238
        %v3247 = vpack.c.bf16 %v3239, %v3239
        %v3248 = vpack.c.bf16 %v3240, %v3240
        %v3249 = vpack.c.bf16 %v3241, %v3241
        %v3250 = vpack.c.bf16 %v3242, %v3242
        %v3251 = vpack.c.bf16 %v3243, %v3243
        %v3252 = vpack.c.bf16 %v3244, %v3244
        %v3254 = vsel %vm2291, %v3245, 0
        %v3257 = vsel %vm2391, %v2773, 0
        %3259 = vmatprep.subr.bf16.mxu0 0
        %3260 = vmatpush1.bf16.msra.mxu0 %v3257
        %3261 = vmatprep.subr.bf16.mxu0 0
        %3262 = vmatpush1.bf16.msra.mxu0 0
        %3263 = vmatprep.subr.bf16.mxu0 0
        %3264 = vmatpush1.bf16.msra.mxu0 0
        %3265 = vmatprep.subr.bf16.mxu0 0
        %3266 = vmatpush1.bf16.msra.mxu0 0
        %3267 = vmatprep.subr.bf16.mxu0 0
        %3268 = vmatpush1.bf16.msra.mxu0 0
        %3269 = vmatprep.subr.bf16.mxu0 0
        %3270 = vmatpush1.bf16.msra.mxu0 0
        %3271 = vmatprep.subr.bf16.mxu0 0
        %3272 = vmatpush1.bf16.msra.mxu0 0
        %3273 = vmatprep.subr.bf16.mxu0 0
        %3274 = vmatpush1.bf16.msra.mxu0 0
        %3275 = vmatprep.subr.bf16.mxu0 0
        %3276 = vmatpush1.bf16.msra.mxu0 0
        %3277 = vmatprep.subr.bf16.mxu0 0
        %3278 = vmatpush1.bf16.msra.mxu0 0
        %3279 = vmatprep.subr.bf16.mxu0 0
        %3280 = vmatpush1.bf16.msra.mxu0 0
        %3281 = vmatprep.subr.bf16.mxu0 0
        %3282 = vmatpush1.bf16.msra.mxu0 0
        %3283 = vmatprep.subr.bf16.mxu0 0
        %3284 = vmatpush1.bf16.msra.mxu0 0
        %3285 = vmatprep.subr.bf16.mxu0 0
        %3286 = vmatpush1.bf16.msra.mxu0 0
        %3287 = vmatprep.subr.bf16.mxu0 0
        %3288 = vmatpush1.bf16.msra.mxu0 0
        %3289 = vmatprep.subr.bf16.mxu0 0
        %3290 = vmatpush1.bf16.msra.mxu0 0
        %3291 = vmatprep.mubr.bf16.mxu0 0
        %3292 = vmatmul.mubr.bf16.gmra.mrb[0].mxu0 %v3254
        %v3293 = vpop.f32.mrb[0].mxu0
        %v3294 = vadd.f32 0.0, %v3293
        %v3295 = vpop.f32.mrb[0].mxu0
        %v3296 = vpop.f32.mrb[0].mxu0
        %v3297 = vpop.f32.mrb[0].mxu0
        %3298 = vdwg.mxu0
        %v3300 = vsel %vm2291, %v3246, 0
        %v3303 = vsel %vm2391, %v2774, 0
        %3305 = vmatprep.subr.bf16.mxu0 0
        %3306 = vmatpush1.bf16.msra.mxu0 %v3303
        %3307 = vmatprep.subr.bf16.mxu0 0
        %3308 = vmatpush1.bf16.msra.mxu0 0
        %3309 = vmatprep.subr.bf16.mxu0 0
        %3310 = vmatpush1.bf16.msra.mxu0 0
        %3311 = vmatprep.subr.bf16.mxu0 0
        %3312 = vmatpush1.bf16.msra.mxu0 0
        %3313 = vmatprep.subr.bf16.mxu0 0
        %3314 = vmatpush1.bf16.msra.mxu0 0
        %3315 = vmatprep.subr.bf16.mxu0 0
        %3316 = vmatpush1.bf16.msra.mxu0 0
        %3317 = vmatprep.subr.bf16.mxu0 0
        %3318 = vmatpush1.bf16.msra.mxu0 0
        %3319 = vmatprep.subr.bf16.mxu0 0
        %3320 = vmatpush1.bf16.msra.mxu0 0
        %3321 = vmatprep.subr.bf16.mxu0 0
        %3322 = vmatpush1.bf16.msra.mxu0 0
        %3323 = vmatprep.subr.bf16.mxu0 0
        %3324 = vmatpush1.bf16.msra.mxu0 0
        %3325 = vmatprep.subr.bf16.mxu0 0
        %3326 = vmatpush1.bf16.msra.mxu0 0
        %3327 = vmatprep.subr.bf16.mxu0 0
        %3328 = vmatpush1.bf16.msra.mxu0 0
        %3329 = vmatprep.subr.bf16.mxu0 0
        %3330 = vmatpush1.bf16.msra.mxu0 0
        %3331 = vmatprep.subr.bf16.mxu0 0
        %3332 = vmatpush1.bf16.msra.mxu0 0
        %3333 = vmatprep.subr.bf16.mxu0 0
        %3334 = vmatpush1.bf16.msra.mxu0 0
        %3335 = vmatprep.subr.bf16.mxu0 0
        %3336 = vmatpush1.bf16.msra.mxu0 0
        %3337 = vmatprep.mubr.bf16.mxu0 0
        %3338 = vmatmul.mubr.bf16.gmra.mrb[0].mxu0 %v3300
        %v3339 = vpop.f32.mrb[0].mxu0
        %v3340 = vadd.f32 0.0, %v3339
        %v3341 = vpop.f32.mrb[0].mxu0
        %v3342 = vpop.f32.mrb[0].mxu0
        %v3343 = vpop.f32.mrb[0].mxu0
        %3344 = vdwg.mxu0
        %v3346 = vsel %vm2291, %v3247, 0
        %v3349 = vsel %vm2391, %v2775, 0
        %3351 = vmatprep.subr.bf16.mxu0 0
        %3352 = vmatpush1.bf16.msra.mxu0 %v3349
        %3353 = vmatprep.subr.bf16.mxu0 0
        %3354 = vmatpush1.bf16.msra.mxu0 0
        %3355 = vmatprep.subr.bf16.mxu0 0
        %3356 = vmatpush1.bf16.msra.mxu0 0
        %3357 = vmatprep.subr.bf16.mxu0 0
        %3358 = vmatpush1.bf16.msra.mxu0 0
        %3359 = vmatprep.subr.bf16.mxu0 0
        %3360 = vmatpush1.bf16.msra.mxu0 0
        %3361 = vmatprep.subr.bf16.mxu0 0
        %3362 = vmatpush1.bf16.msra.mxu0 0
        %3363 = vmatprep.subr.bf16.mxu0 0
        %3364 = vmatpush1.bf16.msra.mxu0 0
        %3365 = vmatprep.subr.bf16.mxu0 0
        %3366 = vmatpush1.bf16.msra.mxu0 0
        %3367 = vmatprep.subr.bf16.mxu0 0
        %3368 = vmatpush1.bf16.msra.mxu0 0
        %3369 = vmatprep.subr.bf16.mxu0 0
        %3370 = vmatpush1.bf16.msra.mxu0 0
        %3371 = vmatprep.subr.bf16.mxu0 0
        %3372 = vmatpush1.bf16.msra.mxu0 0
        %3373 = vmatprep.subr.bf16.mxu0 0
        %3374 = vmatpush1.bf16.msra.mxu0 0
        %3375 = vmatprep.subr.bf16.mxu0 0
        %3376 = vmatpush1.bf16.msra.mxu0 0
        %3377 = vmatprep.subr.bf16.mxu0 0
        %3378 = vmatpush1.bf16.msra.mxu0 0
        %3379 = vmatprep.subr.bf16.mxu0 0
        %3380 = vmatpush1.bf16.msra.mxu0 0
        %3381 = vmatprep.subr.bf16.mxu0 0
        %3382 = vmatpush1.bf16.msra.mxu0 0
        %3383 = vmatprep.mubr.bf16.mxu0 0
        %3384 = vmatmul.mubr.bf16.gmra.mrb[0].mxu0 %v3346
        %v3385 = vpop.f32.mrb[0].mxu0
        %v3386 = vadd.f32 0.0, %v3385
        %v3387 = vpop.f32.mrb[0].mxu0
        %v3388 = vpop.f32.mrb[0].mxu0
        %v3389 = vpop.f32.mrb[0].mxu0
        %3390 = vdwg.mxu0
        %v3392 = vsel %vm2291, %v3248, 0
        %v3395 = vsel %vm2391, %v2776, 0
        %3397 = vmatprep.subr.bf16.mxu0 0
        %3398 = vmatpush1.bf16.msra.mxu0 %v3395
        %3399 = vmatprep.subr.bf16.mxu0 0
        %3400 = vmatpush1.bf16.msra.mxu0 0
        %3401 = vmatprep.subr.bf16.mxu0 0
        %3402 = vmatpush1.bf16.msra.mxu0 0
        %3403 = vmatprep.subr.bf16.mxu0 0
        %3404 = vmatpush1.bf16.msra.mxu0 0
        %3405 = vmatprep.subr.bf16.mxu0 0
        %3406 = vmatpush1.bf16.msra.mxu0 0
        %3407 = vmatprep.subr.bf16.mxu0 0
        %3408 = vmatpush1.bf16.msra.mxu0 0
        %3409 = vmatprep.subr.bf16.mxu0 0
        %3410 = vmatpush1.bf16.msra.mxu0 0
        %3411 = vmatprep.subr.bf16.mxu0 0
        %3412 = vmatpush1.bf16.msra.mxu0 0
        %3413 = vmatprep.subr.bf16.mxu0 0
        %3414 = vmatpush1.bf16.msra.mxu0 0
        %3415 = vmatprep.subr.bf16.mxu0 0
        %3416 = vmatpush1.bf16.msra.mxu0 0
        %3417 = vmatprep.subr.bf16.mxu0 0
        %3418 = vmatpush1.bf16.msra.mxu0 0
        %3419 = vmatprep.subr.bf16.mxu0 0
        %3420 = vmatpush1.bf16.msra.mxu0 0
        %3421 = vmatprep.subr.bf16.mxu0 0
        %3422 = vmatpush1.bf16.msra.mxu0 0
        %3423 = vmatprep.subr.bf16.mxu0 0
        %3424 = vmatpush1.bf16.msra.mxu0 0
        %3425 = vmatprep.subr.bf16.mxu0 0
        %3426 = vmatpush1.bf16.msra.mxu0 0
        %3427 = vmatprep.subr.bf16.mxu0 0
        %3428 = vmatpush1.bf16.msra.mxu0 0
        %3429 = vmatprep.mubr.bf16.mxu0 0
        %3430 = vmatmul.mubr.bf16.gmra.mrb[0].mxu0 %v3392
        %v3431 = vpop.f32.mrb[0].mxu0
        %v3432 = vadd.f32 0.0, %v3431
        %v3433 = vpop.f32.mrb[0].mxu0
        %v3434 = vpop.f32.mrb[0].mxu0
        %v3435 = vpop.f32.mrb[0].mxu0
        %3436 = vdwg.mxu0
        %v3438 = vsel %vm2291, %v3249, 0
        %v3441 = vsel %vm2391, %v2777, 0
        %3443 = vmatprep.subr.bf16.mxu0 0
        %3444 = vmatpush1.bf16.msra.mxu0 %v3441
        %3445 = vmatprep.subr.bf16.mxu0 0
        %3446 = vmatpush1.bf16.msra.mxu0 0
        %3447 = vmatprep.subr.bf16.mxu0 0
        %3448 = vmatpush1.bf16.msra.mxu0 0
        %3449 = vmatprep.subr.bf16.mxu0 0
        %3450 = vmatpush1.bf16.msra.mxu0 0
        %3451 = vmatprep.subr.bf16.mxu0 0
        %3452 = vmatpush1.bf16.msra.mxu0 0
        %3453 = vmatprep.subr.bf16.mxu0 0
        %3454 = vmatpush1.bf16.msra.mxu0 0
        %3455 = vmatprep.subr.bf16.mxu0 0
        %3456 = vmatpush1.bf16.msra.mxu0 0
        %3457 = vmatprep.subr.bf16.mxu0 0
        %3458 = vmatpush1.bf16.msra.mxu0 0
        %3459 = vmatprep.subr.bf16.mxu0 0
        %3460 = vmatpush1.bf16.msra.mxu0 0
        %3461 = vmatprep.subr.bf16.mxu0 0
        %3462 = vmatpush1.bf16.msra.mxu0 0
        %3463 = vmatprep.subr.bf16.mxu0 0
        %3464 = vmatpush1.bf16.msra.mxu0 0
        %3465 = vmatprep.subr.bf16.mxu0 0
        %3466 = vmatpush1.bf16.msra.mxu0 0
        %3467 = vmatprep.subr.bf16.mxu0 0
        %3468 = vmatpush1.bf16.msra.mxu0 0
        %3469 = vmatprep.subr.bf16.mxu0 0
        %3470 = vmatpush1.bf16.msra.mxu0 0
        %3471 = vmatprep.subr.bf16.mxu0 0
        %3472 = vmatpush1.bf16.msra.mxu0 0
        %3473 = vmatprep.subr.bf16.mxu0 0
        %3474 = vmatpush1.bf16.msra.mxu0 0
        %3475 = vmatprep.mubr.bf16.mxu0 0
        %3476 = vmatmul.mubr.bf16.gmra.mrb[0].mxu0 %v3438
        %v3477 = vpop.f32.mrb[0].mxu0
        %v3478 = vadd.f32 0.0, %v3477
        %v3479 = vpop.f32.mrb[0].mxu0
        %v3480 = vpop.f32.mrb[0].mxu0
        %v3481 = vpop.f32.mrb[0].mxu0
        %3482 = vdwg.mxu0
        %v3484 = vsel %vm2291, %v3250, 0
        %v3487 = vsel %vm2391, %v2778, 0
        %3489 = vmatprep.subr.bf16.mxu0 0
        %3490 = vmatpush1.bf16.msra.mxu0 %v3487
        %3491 = vmatprep.subr.bf16.mxu0 0
        %3492 = vmatpush1.bf16.msra.mxu0 0
        %3493 = vmatprep.subr.bf16.mxu0 0
        %3494 = vmatpush1.bf16.msra.mxu0 0
        %3495 = vmatprep.subr.bf16.mxu0 0
        %3496 = vmatpush1.bf16.msra.mxu0 0
        %3497 = vmatprep.subr.bf16.mxu0 0
        %3498 = vmatpush1.bf16.msra.mxu0 0
        %3499 = vmatprep.subr.bf16.mxu0 0
        %3500 = vmatpush1.bf16.msra.mxu0 0
        %3501 = vmatprep.subr.bf16.mxu0 0
        %3502 = vmatpush1.bf16.msra.mxu0 0
        %3503 = vmatprep.subr.bf16.mxu0 0
        %3504 = vmatpush1.bf16.msra.mxu0 0
        %3505 = vmatprep.subr.bf16.mxu0 0
        %3506 = vmatpush1.bf16.msra.mxu0 0
        %3507 = vmatprep.subr.bf16.mxu0 0
        %3508 = vmatpush1.bf16.msra.mxu0 0
        %3509 = vmatprep.subr.bf16.mxu0 0
        %3510 = vmatpush1.bf16.msra.mxu0 0
        %3511 = vmatprep.subr.bf16.mxu0 0
        %3512 = vmatpush1.bf16.msra.mxu0 0
        %3513 = vmatprep.subr.bf16.mxu0 0
        %3514 = vmatpush1.bf16.msra.mxu0 0
        %3515 = vmatprep.subr.bf16.mxu0 0
        %3516 = vmatpush1.bf16.msra.mxu0 0
        %3517 = vmatprep.subr.bf16.mxu0 0
        %3518 = vmatpush1.bf16.msra.mxu0 0
        %3519 = vmatprep.subr.bf16.mxu0 0
        %3520 = vmatpush1.bf16.msra.mxu0 0
        %3521 = vmatprep.mubr.bf16.mxu0 0
        %3522 = vmatmul.mubr.bf16.gmra.mrb[0].mxu0 %v3484
        %v3523 = vpop.f32.mrb[0].mxu0
        %v3524 = vadd.f32 0.0, %v3523
        %v3525 = vpop.f32.mrb[0].mxu0
        %v3526 = vpop.f32.mrb[0].mxu0
        %v3527 = vpop.f32.mrb[0].mxu0
        %3528 = vdwg.mxu0
        %v3530 = vsel %vm2291, %v3251, 0
        %v3533 = vsel %vm2391, %v2779, 0
        %3535 = vmatprep.subr.bf16.mxu0 0
        %3536 = vmatpush1.bf16.msra.mxu0 %v3533
        %3537 = vmatprep.subr.bf16.mxu0 0
        %3538 = vmatpush1.bf16.msra.mxu0 0
        %3539 = vmatprep.subr.bf16.mxu0 0
        %3540 = vmatpush1.bf16.msra.mxu0 0
        %3541 = vmatprep.subr.bf16.mxu0 0
        %3542 = vmatpush1.bf16.msra.mxu0 0
        %3543 = vmatprep.subr.bf16.mxu0 0
        %3544 = vmatpush1.bf16.msra.mxu0 0
        %3545 = vmatprep.subr.bf16.mxu0 0
        %3546 = vmatpush1.bf16.msra.mxu0 0
        %3547 = vmatprep.subr.bf16.mxu0 0
        %3548 = vmatpush1.bf16.msra.mxu0 0
        %3549 = vmatprep.subr.bf16.mxu0 0
        %3550 = vmatpush1.bf16.msra.mxu0 0
        %3551 = vmatprep.subr.bf16.mxu0 0
        %3552 = vmatpush1.bf16.msra.mxu0 0
        %3553 = vmatprep.subr.bf16.mxu0 0
        %3554 = vmatpush1.bf16.msra.mxu0 0
        %3555 = vmatprep.subr.bf16.mxu0 0
        %3556 = vmatpush1.bf16.msra.mxu0 0
        %3557 = vmatprep.subr.bf16.mxu0 0
        %3558 = vmatpush1.bf16.msra.mxu0 0
        %3559 = vmatprep.subr.bf16.mxu0 0
        %3560 = vmatpush1.bf16.msra.mxu0 0
        %3561 = vmatprep.subr.bf16.mxu0 0
        %3562 = vmatpush1.bf16.msra.mxu0 0
        %3563 = vmatprep.subr.bf16.mxu0 0
        %3564 = vmatpush1.bf16.msra.mxu0 0
        %3565 = vmatprep.subr.bf16.mxu0 0
        %3566 = vmatpush1.bf16.msra.mxu0 0
        %3567 = vmatprep.mubr.bf16.mxu0 0
        %3568 = vmatmul.mubr.bf16.gmra.mrb[0].mxu0 %v3530
        %v3569 = vpop.f32.mrb[0].mxu0
        %v3570 = vadd.f32 0.0, %v3569
        %v3571 = vpop.f32.mrb[0].mxu0
        %v3572 = vpop.f32.mrb[0].mxu0
        %v3573 = vpop.f32.mrb[0].mxu0
        %3574 = vdwg.mxu0
        %v3576 = vsel %vm2291, %v3252, 0
        %v3579 = vsel %vm2391, %v2780, 0
        %3581 = vmatprep.subr.bf16.mxu0 0
        %3582 = vmatpush1.bf16.msra.mxu0 %v3579
        %3583 = vmatprep.subr.bf16.mxu0 0
        %3584 = vmatpush1.bf16.msra.mxu0 0
        %3585 = vmatprep.subr.bf16.mxu0 0
        %3586 = vmatpush1.bf16.msra.mxu0 0
        %3587 = vmatprep.subr.bf16.mxu0 0
        %3588 = vmatpush1.bf16.msra.mxu0 0
        %3589 = vmatprep.subr.bf16.mxu0 0
        %3590 = vmatpush1.bf16.msra.mxu0 0
        %3591 = vmatprep.subr.bf16.mxu0 0
        %3592 = vmatpush1.bf16.msra.mxu0 0
        %3593 = vmatprep.subr.bf16.mxu0 0
        %3594 = vmatpush1.bf16.msra.mxu0 0
        %3595 = vmatprep.subr.bf16.mxu0 0
        %3596 = vmatpush1.bf16.msra.mxu0 0
        %3597 = vmatprep.subr.bf16.mxu0 0
        %3598 = vmatpush1.bf16.msra.mxu0 0
        %3599 = vmatprep.subr.bf16.mxu0 0
        %3600 = vmatpush1.bf16.msra.mxu0 0
        %3601 = vmatprep.subr.bf16.mxu0 0
        %3602 = vmatpush1.bf16.msra.mxu0 0
        %3603 = vmatprep.subr.bf16.mxu0 0
        %3604 = vmatpush1.bf16.msra.mxu0 0
        %3605 = vmatprep.subr.bf16.mxu0 0
        %3606 = vmatpush1.bf16.msra.mxu0 0
        %3607 = vmatprep.subr.bf16.mxu0 0
        %3608 = vmatpush1.bf16.msra.mxu0 0
        %3609 = vmatprep.subr.bf16.mxu0 0
        %3610 = vmatpush1.bf16.msra.mxu0 0
        %3611 = vmatprep.subr.bf16.mxu0 0
        %3612 = vmatpush1.bf16.msra.mxu0 0
        %3613 = vmatprep.mubr.bf16.mxu0 0
        %3614 = vmatmul.mubr.bf16.gmra.mrb[0].mxu0 %v3576
        %v3615 = vpop.f32.mrb[0].mxu0
        %v3616 = vadd.f32 0.0, %v3615
        %v3617 = vpop.f32.mrb[0].mxu0
        %v3618 = vpop.f32.mrb[0].mxu0
        %v3619 = vpop.f32.mrb[0].mxu0
        %3620 = vdwg.mxu0
        %v3621 = vpack.c.bf16 %v3294, %v2430
        %v3622 = vpack.c.bf16 %v3340, %v2476
        %v3623 = vpack.c.bf16 %v3386, %v2522
        %v3624 = vpack.c.bf16 %v3432, %v2568
        %v3625 = vpack.c.bf16 %v3478, %v2614
        %v3626 = vpack.c.bf16 %v3524, %v2660
        %v3627 = vpack.c.bf16 %v3570, %v2706
        %v3628 = vpack.c.bf16 %v3616, %v2752
        %v3629 = vld [vmem:[%s6] sm:$0x3]
        %v3630 = vld [vmem:[%s6 + $0x2] sm:$0x3]
        %v3631 = vld [vmem:[%s6 + $0x4] sm:$0x3]
        %v3632 = vld [vmem:[%s6 + $0x6] sm:$0x3]
        %v3633 = vld [vmem:[%s6 + $0x8] sm:$0x3]
        %v3634 = vld [vmem:[%s6 + $0xa] sm:$0x3]
        %v3635 = vld [vmem:[%s6 + $0xc] sm:$0x3]
        %v3636 = vld [vmem:[%s6 + $0xe] sm:$0x3]
        %v3638 = vsel %vm1914, %v3621, 0
        %vm3640 = vcmask 1041408
        %v3642 = vsel %vm3640, %v3629, 0
        %3644 = vmatprep.subr.bf16.mxu0 0
        %3645 = vmatpush1.bf16.msra.mxu0 %v3642
        %3646 = vmatprep.subr.bf16.mxu0 0
        %3647 = vmatpush1.bf16.msra.mxu0 0
        %3648 = vmatprep.subr.bf16.mxu0 0
        %3649 = vmatpush1.bf16.msra.mxu0 0
        %3650 = vmatprep.subr.bf16.mxu0 0
        %3651 = vmatpush1.bf16.msra.mxu0 0
        %3652 = vmatprep.subr.bf16.mxu0 0
        %3653 = vmatpush1.bf16.msra.mxu0 0
        %3654 = vmatprep.subr.bf16.mxu0 0
        %3655 = vmatpush1.bf16.msra.mxu0 0
        %3656 = vmatprep.subr.bf16.mxu0 0
        %3657 = vmatpush1.bf16.msra.mxu0 0
        %3658 = vmatprep.subr.bf16.mxu0 0
        %3659 = vmatpush1.bf16.msra.mxu0 0
        %3660 = vmatprep.subr.bf16.mxu0 0
        %3661 = vmatpush1.bf16.msra.mxu0 0
        %3662 = vmatprep.subr.bf16.mxu0 0
        %3663 = vmatpush1.bf16.msra.mxu0 0
        %3664 = vmatprep.subr.bf16.mxu0 0
        %3665 = vmatpush1.bf16.msra.mxu0 0
        %3666 = vmatprep.subr.bf16.mxu0 0
        %3667 = vmatpush1.bf16.msra.mxu0 0
        %3668 = vmatprep.subr.bf16.mxu0 0
        %3669 = vmatpush1.bf16.msra.mxu0 0
        %3670 = vmatprep.subr.bf16.mxu0 0
        %3671 = vmatpush1.bf16.msra.mxu0 0
        %3672 = vmatprep.subr.bf16.mxu0 0
        %3673 = vmatpush1.bf16.msra.mxu0 0
        %3674 = vmatprep.subr.bf16.mxu0 0
        %3675 = vmatpush1.bf16.msra.mxu0 0
        %3676 = vmatprep.mubr.bf16.mxu0 0
        %3677 = vmatmul.mubr.bf16.gmra.mrb[0].mxu0 %v3638
        %v3678 = vpop.f32.mrb[0].mxu0
        %v3679 = vadd.f32 0.0, %v3678
        %v3680 = vpop.f32.mrb[0].mxu0
        %v3681 = vpop.f32.mrb[0].mxu0
        %v3682 = vadd.f32 0.0, %v3681
        %v3683 = vpop.f32.mrb[0].mxu0
        %3684 = vdwg.mxu0
        %v3686 = vsel %vm1914, %v3622, 0
        %v3689 = vsel %vm3640, %v3630, 0
        %3691 = vmatprep.subr.bf16.mxu0 0
        %3692 = vmatpush1.bf16.msra.mxu0 %v3689
        %3693 = vmatprep.subr.bf16.mxu0 0
        %3694 = vmatpush1.bf16.msra.mxu0 0
        %3695 = vmatprep.subr.bf16.mxu0 0
        %3696 = vmatpush1.bf16.msra.mxu0 0
        %3697 = vmatprep.subr.bf16.mxu0 0
        %3698 = vmatpush1.bf16.msra.mxu0 0
        %3699 = vmatprep.subr.bf16.mxu0 0
        %3700 = vmatpush1.bf16.msra.mxu0 0
        %3701 = vmatprep.subr.bf16.mxu0 0
        %3702 = vmatpush1.bf16.msra.mxu0 0
        %3703 = vmatprep.subr.bf16.mxu0 0
        %3704 = vmatpush1.bf16.msra.mxu0 0
        %3705 = vmatprep.subr.bf16.mxu0 0
        %3706 = vmatpush1.bf16.msra.mxu0 0
        %3707 = vmatprep.subr.bf16.mxu0 0
        %3708 = vmatpush1.bf16.msra.mxu0 0
        %3709 = vmatprep.subr.bf16.mxu0 0
        %3710 = vmatpush1.bf16.msra.mxu0 0
        %3711 = vmatprep.subr.bf16.mxu0 0
        %3712 = vmatpush1.bf16.msra.mxu0 0
        %3713 = vmatprep.subr.bf16.mxu0 0
        %3714 = vmatpush1.bf16.msra.mxu0 0
        %3715 = vmatprep.subr.bf16.mxu0 0
        %3716 = vmatpush1.bf16.msra.mxu0 0
        %3717 = vmatprep.subr.bf16.mxu0 0
        %3718 = vmatpush1.bf16.msra.mxu0 0
        %3719 = vmatprep.subr.bf16.mxu0 0
        %3720 = vmatpush1.bf16.msra.mxu0 0
        %3721 = vmatprep.subr.bf16.mxu0 0
        %3722 = vmatpush1.bf16.msra.mxu0 0
        %3723 = vmatprep.mubr.bf16.mxu0 0
        %3724 = vmatmul.mubr.bf16.gmra.mrb[0].mxu0 %v3686
        %v3725 = vpop.f32.mrb[0].mxu0
        %v3726 = vadd.f32 0.0, %v3725
        %v3727 = vpop.f32.mrb[0].mxu0
        %v3728 = vpop.f32.mrb[0].mxu0
        %v3729 = vadd.f32 0.0, %v3728
        %v3730 = vpop.f32.mrb[0].mxu0
        %3731 = vdwg.mxu0
        %v3733 = vsel %vm1914, %v3623, 0
        %v3736 = vsel %vm3640, %v3631, 0
        %3738 = vmatprep.subr.bf16.mxu0 0
        %3739 = vmatpush1.bf16.msra.mxu0 %v3736
        %3740 = vmatprep.subr.bf16.mxu0 0
        %3741 = vmatpush1.bf16.msra.mxu0 0
        %3742 = vmatprep.subr.bf16.mxu0 0
        %3743 = vmatpush1.bf16.msra.mxu0 0
        %3744 = vmatprep.subr.bf16.mxu0 0
        %3745 = vmatpush1.bf16.msra.mxu0 0
        %3746 = vmatprep.subr.bf16.mxu0 0
        %3747 = vmatpush1.bf16.msra.mxu0 0
        %3748 = vmatprep.subr.bf16.mxu0 0
        %3749 = vmatpush1.bf16.msra.mxu0 0
        %3750 = vmatprep.subr.bf16.mxu0 0
        %3751 = vmatpush1.bf16.msra.mxu0 0
        %3752 = vmatprep.subr.bf16.mxu0 0
        %3753 = vmatpush1.bf16.msra.mxu0 0
        %3754 = vmatprep.subr.bf16.mxu0 0
        %3755 = vmatpush1.bf16.msra.mxu0 0
        %3756 = vmatprep.subr.bf16.mxu0 0
        %3757 = vmatpush1.bf16.msra.mxu0 0
        %3758 = vmatprep.subr.bf16.mxu0 0
        %3759 = vmatpush1.bf16.msra.mxu0 0
        %3760 = vmatprep.subr.bf16.mxu0 0
        %3761 = vmatpush1.bf16.msra.mxu0 0
        %3762 = vmatprep.subr.bf16.mxu0 0
        %3763 = vmatpush1.bf16.msra.mxu0 0
        %3764 = vmatprep.subr.bf16.mxu0 0
        %3765 = vmatpush1.bf16.msra.mxu0 0
        %3766 = vmatprep.subr.bf16.mxu0 0
        %3767 = vmatpush1.bf16.msra.mxu0 0
        %3768 = vmatprep.subr.bf16.mxu0 0
        %3769 = vmatpush1.bf16.msra.mxu0 0
        %3770 = vmatprep.mubr.bf16.mxu0 0
        %3771 = vmatmul.mubr.bf16.gmra.mrb[0].mxu0 %v3733
        %v3772 = vpop.f32.mrb[0].mxu0
        %v3773 = vadd.f32 0.0, %v3772
        %v3774 = vpop.f32.mrb[0].mxu0
        %v3775 = vpop.f32.mrb[0].mxu0
        %v3776 = vadd.f32 0.0, %v3775
        %v3777 = vpop.f32.mrb[0].mxu0
        %3778 = vdwg.mxu0
        %v3780 = vsel %vm1914, %v3624, 0
        %v3783 = vsel %vm3640, %v3632, 0
        %3785 = vmatprep.subr.bf16.mxu0 0
        %3786 = vmatpush1.bf16.msra.mxu0 %v3783
        %3787 = vmatprep.subr.bf16.mxu0 0
        %3788 = vmatpush1.bf16.msra.mxu0 0
        %3789 = vmatprep.subr.bf16.mxu0 0
        %3790 = vmatpush1.bf16.msra.mxu0 0
        %3791 = vmatprep.subr.bf16.mxu0 0
        %3792 = vmatpush1.bf16.msra.mxu0 0
        %3793 = vmatprep.subr.bf16.mxu0 0
        %3794 = vmatpush1.bf16.msra.mxu0 0
        %3795 = vmatprep.subr.bf16.mxu0 0
        %3796 = vmatpush1.bf16.msra.mxu0 0
        %3797 = vmatprep.subr.bf16.mxu0 0
        %3798 = vmatpush1.bf16.msra.mxu0 0
        %3799 = vmatprep.subr.bf16.mxu0 0
        %3800 = vmatpush1.bf16.msra.mxu0 0
        %3801 = vmatprep.subr.bf16.mxu0 0
        %3802 = vmatpush1.bf16.msra.mxu0 0
        %3803 = vmatprep.subr.bf16.mxu0 0
        %3804 = vmatpush1.bf16.msra.mxu0 0
        %3805 = vmatprep.subr.bf16.mxu0 0
        %3806 = vmatpush1.bf16.msra.mxu0 0
        %3807 = vmatprep.subr.bf16.mxu0 0
        %3808 = vmatpush1.bf16.msra.mxu0 0
        %3809 = vmatprep.subr.bf16.mxu0 0
        %3810 = vmatpush1.bf16.msra.mxu0 0
        %3811 = vmatprep.subr.bf16.mxu0 0
        %3812 = vmatpush1.bf16.msra.mxu0 0
        %3813 = vmatprep.subr.bf16.mxu0 0
        %3814 = vmatpush1.bf16.msra.mxu0 0
        %3815 = vmatprep.subr.bf16.mxu0 0
        %3816 = vmatpush1.bf16.msra.mxu0 0
        %3817 = vmatprep.mubr.bf16.mxu0 0
        %3818 = vmatmul.mubr.bf16.gmra.mrb[0].mxu0 %v3780
        %v3819 = vpop.f32.mrb[0].mxu0
        %v3820 = vadd.f32 0.0, %v3819
        %v3821 = vpop.f32.mrb[0].mxu0
        %v3822 = vpop.f32.mrb[0].mxu0
        %v3823 = vadd.f32 0.0, %v3822
        %v3824 = vpop.f32.mrb[0].mxu0
        %3825 = vdwg.mxu0
        %v3827 = vsel %vm1914, %v3625, 0
        %v3830 = vsel %vm3640, %v3633, 0
        %3832 = vmatprep.subr.bf16.mxu0 0
        %3833 = vmatpush1.bf16.msra.mxu0 %v3830
        %3834 = vmatprep.subr.bf16.mxu0 0
        %3835 = vmatpush1.bf16.msra.mxu0 0
        %3836 = vmatprep.subr.bf16.mxu0 0
        %3837 = vmatpush1.bf16.msra.mxu0 0
        %3838 = vmatprep.subr.bf16.mxu0 0
        %3839 = vmatpush1.bf16.msra.mxu0 0
        %3840 = vmatprep.subr.bf16.mxu0 0
        %3841 = vmatpush1.bf16.msra.mxu0 0
        %3842 = vmatprep.subr.bf16.mxu0 0
        %3843 = vmatpush1.bf16.msra.mxu0 0
        %3844 = vmatprep.subr.bf16.mxu0 0
        %3845 = vmatpush1.bf16.msra.mxu0 0
        %3846 = vmatprep.subr.bf16.mxu0 0
        %3847 = vmatpush1.bf16.msra.mxu0 0
        %3848 = vmatprep.subr.bf16.mxu0 0
        %3849 = vmatpush1.bf16.msra.mxu0 0
        %3850 = vmatprep.subr.bf16.mxu0 0
        %3851 = vmatpush1.bf16.msra.mxu0 0
        %3852 = vmatprep.subr.bf16.mxu0 0
        %3853 = vmatpush1.bf16.msra.mxu0 0
        %3854 = vmatprep.subr.bf16.mxu0 0
        %3855 = vmatpush1.bf16.msra.mxu0 0
        %3856 = vmatprep.subr.bf16.mxu0 0
        %3857 = vmatpush1.bf16.msra.mxu0 0
        %3858 = vmatprep.subr.bf16.mxu0 0
        %3859 = vmatpush1.bf16.msra.mxu0 0
        %3860 = vmatprep.subr.bf16.mxu0 0
        %3861 = vmatpush1.bf16.msra.mxu0 0
        %3862 = vmatprep.subr.bf16.mxu0 0
        %3863 = vmatpush1.bf16.msra.mxu0 0
        %3864 = vmatprep.mubr.bf16.mxu0 0
        %3865 = vmatmul.mubr.bf16.gmra.mrb[0].mxu0 %v3827
        %v3866 = vpop.f32.mrb[0].mxu0
        %v3867 = vadd.f32 0.0, %v3866
        %v3868 = vpop.f32.mrb[0].mxu0
        %v3869 = vpop.f32.mrb[0].mxu0
        %v3870 = vadd.f32 0.0, %v3869
        %v3871 = vpop.f32.mrb[0].mxu0
        %3872 = vdwg.mxu0
        %v3874 = vsel %vm1914, %v3626, 0
        %v3877 = vsel %vm3640, %v3634, 0
        %3879 = vmatprep.subr.bf16.mxu0 0
        %3880 = vmatpush1.bf16.msra.mxu0 %v3877
        %3881 = vmatprep.subr.bf16.mxu0 0
        %3882 = vmatpush1.bf16.msra.mxu0 0
        %3883 = vmatprep.subr.bf16.mxu0 0
        %3884 = vmatpush1.bf16.msra.mxu0 0
        %3885 = vmatprep.subr.bf16.mxu0 0
        %3886 = vmatpush1.bf16.msra.mxu0 0
        %3887 = vmatprep.subr.bf16.mxu0 0
        %3888 = vmatpush1.bf16.msra.mxu0 0
        %3889 = vmatprep.subr.bf16.mxu0 0
        %3890 = vmatpush1.bf16.msra.mxu0 0
        %3891 = vmatprep.subr.bf16.mxu0 0
        %3892 = vmatpush1.bf16.msra.mxu0 0
        %3893 = vmatprep.subr.bf16.mxu0 0
        %3894 = vmatpush1.bf16.msra.mxu0 0
        %3895 = vmatprep.subr.bf16.mxu0 0
        %3896 = vmatpush1.bf16.msra.mxu0 0
        %3897 = vmatprep.subr.bf16.mxu0 0
        %3898 = vmatpush1.bf16.msra.mxu0 0
        %3899 = vmatprep.subr.bf16.mxu0 0
        %3900 = vmatpush1.bf16.msra.mxu0 0
        %3901 = vmatprep.subr.bf16.mxu0 0
        %3902 = vmatpush1.bf16.msra.mxu0 0
        %3903 = vmatprep.subr.bf16.mxu0 0
        %3904 = vmatpush1.bf16.msra.mxu0 0
        %3905 = vmatprep.subr.bf16.mxu0 0
        %3906 = vmatpush1.bf16.msra.mxu0 0
        %3907 = vmatprep.subr.bf16.mxu0 0
        %3908 = vmatpush1.bf16.msra.mxu0 0
        %3909 = vmatprep.subr.bf16.mxu0 0
        %3910 = vmatpush1.bf16.msra.mxu0 0
        %3911 = vmatprep.mubr.bf16.mxu0 0
        %3912 = vmatmul.mubr.bf16.gmra.mrb[0].mxu0 %v3874
        %v3913 = vpop.f32.mrb[0].mxu0
        %v3914 = vadd.f32 0.0, %v3913
        %v3915 = vpop.f32.mrb[0].mxu0
        %v3916 = vpop.f32.mrb[0].mxu0
        %v3917 = vadd.f32 0.0, %v3916
        %v3918 = vpop.f32.mrb[0].mxu0
        %3919 = vdwg.mxu0
        %v3921 = vsel %vm1914, %v3627, 0
        %v3924 = vsel %vm3640, %v3635, 0
        %3926 = vmatprep.subr.bf16.mxu0 0
        %3927 = vmatpush1.bf16.msra.mxu0 %v3924
        %3928 = vmatprep.subr.bf16.mxu0 0
        %3929 = vmatpush1.bf16.msra.mxu0 0
        %3930 = vmatprep.subr.bf16.mxu0 0
        %3931 = vmatpush1.bf16.msra.mxu0 0
        %3932 = vmatprep.subr.bf16.mxu0 0
        %3933 = vmatpush1.bf16.msra.mxu0 0
        %3934 = vmatprep.subr.bf16.mxu0 0
        %3935 = vmatpush1.bf16.msra.mxu0 0
        %3936 = vmatprep.subr.bf16.mxu0 0
        %3937 = vmatpush1.bf16.msra.mxu0 0
        %3938 = vmatprep.subr.bf16.mxu0 0
        %3939 = vmatpush1.bf16.msra.mxu0 0
        %3940 = vmatprep.subr.bf16.mxu0 0
        %3941 = vmatpush1.bf16.msra.mxu0 0
        %3942 = vmatprep.subr.bf16.mxu0 0
        %3943 = vmatpush1.bf16.msra.mxu0 0
        %3944 = vmatprep.subr.bf16.mxu0 0
        %3945 = vmatpush1.bf16.msra.mxu0 0
        %3946 = vmatprep.subr.bf16.mxu0 0
        %3947 = vmatpush1.bf16.msra.mxu0 0
        %3948 = vmatprep.subr.bf16.mxu0 0
        %3949 = vmatpush1.bf16.msra.mxu0 0
        %3950 = vmatprep.subr.bf16.mxu0 0
        %3951 = vmatpush1.bf16.msra.mxu0 0
        %3952 = vmatprep.subr.bf16.mxu0 0
        %3953 = vmatpush1.bf16.msra.mxu0 0
        %3954 = vmatprep.subr.bf16.mxu0 0
        %3955 = vmatpush1.bf16.msra.mxu0 0
        %3956 = vmatprep.subr.bf16.mxu0 0
        %3957 = vmatpush1.bf16.msra.mxu0 0
        %3958 = vmatprep.mubr.bf16.mxu0 0
        %3959 = vmatmul.mubr.bf16.gmra.mrb[0].mxu0 %v3921
        %v3960 = vpop.f32.mrb[0].mxu0
        %v3961 = vadd.f32 0.0, %v3960
        %v3962 = vpop.f32.mrb[0].mxu0
        %v3963 = vpop.f32.mrb[0].mxu0
        %v3964 = vadd.f32 0.0, %v3963
        %v3965 = vpop.f32.mrb[0].mxu0
        %3966 = vdwg.mxu0
        %v3968 = vsel %vm1914, %v3628, 0
        %v3971 = vsel %vm3640, %v3636, 0
        %3973 = vmatprep.subr.bf16.mxu0 0
        %3974 = vmatpush1.bf16.msra.mxu0 %v3971
        %3975 = vmatprep.subr.bf16.mxu0 0
        %3976 = vmatpush1.bf16.msra.mxu0 0
        %3977 = vmatprep.subr.bf16.mxu0 0
        %3978 = vmatpush1.bf16.msra.mxu0 0
        %3979 = vmatprep.subr.bf16.mxu0 0
        %3980 = vmatpush1.bf16.msra.mxu0 0
        %3981 = vmatprep.subr.bf16.mxu0 0
        %3982 = vmatpush1.bf16.msra.mxu0 0
        %3983 = vmatprep.subr.bf16.mxu0 0
        %3984 = vmatpush1.bf16.msra.mxu0 0
        %3985 = vmatprep.subr.bf16.mxu0 0
        %3986 = vmatpush1.bf16.msra.mxu0 0
        %3987 = vmatprep.subr.bf16.mxu0 0
        %3988 = vmatpush1.bf16.msra.mxu0 0
        %3989 = vmatprep.subr.bf16.mxu0 0
        %3990 = vmatpush1.bf16.msra.mxu0 0
        %3991 = vmatprep.subr.bf16.mxu0 0
        %3992 = vmatpush1.bf16.msra.mxu0 0
        %3993 = vmatprep.subr.bf16.mxu0 0
        %3994 = vmatpush1.bf16.msra.mxu0 0
        %3995 = vmatprep.subr.bf16.mxu0 0
        %3996 = vmatpush1.bf16.msra.mxu0 0
        %3997 = vmatprep.subr.bf16.mxu0 0
        %3998 = vmatpush1.bf16.msra.mxu0 0
        %3999 = vmatprep.subr.bf16.mxu0 0
        %4000 = vmatpush1.bf16.msra.mxu0 0
        %4001 = vmatprep.subr.bf16.mxu0 0
        %4002 = vmatpush1.bf16.msra.mxu0 0
        %4003 = vmatprep.subr.bf16.mxu0 0
        %4004 = vmatpush1.bf16.msra.mxu0 0
        %4005 = vmatprep.mubr.bf16.mxu0 0
        %4006 = vmatmul.mubr.bf16.gmra.mrb[0].mxu0 %v3968
        %v4007 = vpop.f32.mrb[0].mxu0
        %v4008 = vadd.f32 0.0, %v4007
        %v4009 = vpop.f32.mrb[0].mxu0
        %v4010 = vpop.f32.mrb[0].mxu0
        %v4011 = vadd.f32 0.0, %v4010
        %v4012 = vpop.f32.mrb[0].mxu0
        %4013 = vdwg.mxu0
        %v4014 = vsel %vm474, %v3679, 0.0
        %v4015 = vsel %vm474, %v3726, 0.0
        %v4016 = vadd.f32 %v4014, %v4015
        %v4017 = vsel %vm474, %v3773, 0.0
        %v4018 = vadd.f32 %v4016, %v4017
        %v4019 = vsel %vm474, %v3820, 0.0
        %v4020 = vadd.f32 %v4018, %v4019
        %v4021 = vsel %vm474, %v3867, 0.0
        %v4022 = vadd.f32 %v4020, %v4021
        %v4023 = vsel %vm474, %v3914, 0.0
        %v4024 = vadd.f32 %v4022, %v4023
        %v4025 = vsel %vm474, %v3961, 0.0
        %v4026 = vadd.f32 %v4024, %v4025
        %v4027 = vsel %vm474, %v4008, 0.0
        %v4028 = vadd.f32 %v4026, %v4027
        %v4029 = vsel %vm474, %v3682, 0.0
        %v4030 = vsel %vm474, %v3729, 0.0
        %v4031 = vadd.f32 %v4029, %v4030
        %v4032 = vsel %vm474, %v3776, 0.0
        %v4033 = vadd.f32 %v4031, %v4032
        %v4034 = vsel %vm474, %v3823, 0.0
        %v4035 = vadd.f32 %v4033, %v4034
        %v4036 = vsel %vm474, %v3870, 0.0
        %v4037 = vadd.f32 %v4035, %v4036
        %v4038 = vsel %vm474, %v3917, 0.0
        %v4039 = vadd.f32 %v4037, %v4038
        %v4040 = vsel %vm474, %v3964, 0.0
        %v4041 = vadd.f32 %v4039, %v4040
        %v4042 = vsel %vm474, %v4011, 0.0
        %v4043 = vadd.f32 %v4041, %v4042
        %v4044 = vld [vmem:[%s7] sm:$0x1]
        %v4046 = vlaneseq
        %v4047 = vshrl.u32 %v4046, 7
        %v4048 = vsub.s32 0, %v4047
        %v4049 = vrot.slane %v4044, %v4048
        %v4051 = vadd.f32 %v4028, %v4049
        %v4052 = vadd.f32 %v4043, %v4049
        %v4053 = vadd.f32 %v470, %v4051
        %v4054 = vadd.f32 %v471, %v4052
        %v4055 = vld [vmem:[%s8] sm:$0x1]
        %v4056 = vld [vmem:[%s9] sm:$0x1]
        %v4057 = vsel %vm474, %v4053, 0.0
        %4058 = vadd.xlane.f32.xlu0 %v4057
        %v4059 = vpop.xlane.xlu0 %4058
        %v4060 = vsel %vm474, %v4054, 0.0
        %4061 = vadd.xlane.f32.xlu0 %v4060
        %v4062 = vpop.xlane.xlu0 %4061
        %v4063 = vmul.f32 %v4059, %v481
        %v4064 = vmul.f32 %v4062, %v481
        %v4065 = vsub.f32 %v4053, %v4063
        %v4066 = vsub.f32 %v4054, %v4064
        %v4067 = vmul.f32 %v4065, %v4065
        %v4068 = vmul.f32 %v4066, %v4066
        %v4069 = vsel %vm474, %v4067, 0.0
        %4070 = vadd.xlane.f32.xlu0 %v4069
        %v4071 = vpop.xlane.xlu0 %4070
        %v4072 = vsel %vm474, %v4068, 0.0
        %4073 = vadd.xlane.f32.xlu0 %v4072
        %v4074 = vpop.xlane.xlu0 %4073
        %v4075 = vmul.f32 %v4071, %v481
        %v4076 = vmul.f32 %v4074, %v481
        %v4077 = vadd.f32 %v4075, 1e-05
        %v4078 = vadd.f32 %v4076, 1e-05
        %v4079 = vrsqrt.pop %v4077
        %v4080 = vrsqrt.pop %v4078
        %v4081 = vmul.f32 %v4065, %v4079
        %v4082 = vmul.f32 %v4066, %v4080
        %v4084 = vlaneseq
        %v4085 = vshrl.u32 %v4084, 7
        %v4086 = vsub.s32 0, %v4085
        %v4087 = vrot.slane %v4055, %v4086
        %v4089 = vmul.f32 %v4081, %v4087
        %v4090 = vmul.f32 %v4082, %v4087
        %v4092 = vlaneseq
        %v4093 = vshrl.u32 %v4092, 7
        %v4094 = vsub.s32 0, %v4093
        %v4095 = vrot.slane %v4056, %v4094
        %v4097 = vadd.f32 %v4089, %v4095
        %v4098 = vadd.f32 %v4090, %v4095
        %v4099 = vpack.c.bf16 %v4098, %v4097
        %v4100 = vld [vmem:[%s10] sm:$0xf]
        %v4101 = vld [vmem:[%s10 + $0x4] sm:$0xf]
        %v4102 = vld [vmem:[%s10 + $0x8] sm:$0xf]
        %v4103 = vld [vmem:[%s10 + $0xc] sm:$0xf]
        %v4104 = vld [vmem:[%s11] sm:$0x1]
        %v4106 = vlaneseq
        %v4107 = vshrl.u32 %v4106, 7
        %v4108 = vsub.s32 0, %v4107
        %v4109 = vrot.slane %v4104, %v4108
        %v4115 = vunpack.c.l.b16 %v4100
        %v4116 = vunpack.c.l.b16 %v4101
        %v4117 = vunpack.c.l.b16 %v4102
        %v4118 = vunpack.c.l.b16 %v4103
        %v4119 = vpack.c.b16 %v4116, %v4115
        %v4120 = vpack.c.b16 %v4118, %v4117
        %v4124 = vsel %vm474, %v4099, 0
        %4126 = vmatprep.subr.bf16.mxu0 0
        %4127 = vmatpush1.bf16.msra.mxu0 %v4119
        %4128 = vmatprep.subr.bf16.mxu0 0
        %4129 = vmatpush1.bf16.msra.mxu0 %v4120
        %4130 = vmatprep.subr.bf16.mxu0 0
        %4131 = vmatpush1.bf16.msra.mxu0 0
        %4132 = vmatprep.subr.bf16.mxu0 0
        %4133 = vmatpush1.bf16.msra.mxu0 0
        %4134 = vmatprep.subr.bf16.mxu0 0
        %4135 = vmatpush1.bf16.msra.mxu0 0
        %4136 = vmatprep.subr.bf16.mxu0 0
        %4137 = vmatpush1.bf16.msra.mxu0 0
        %4138 = vmatprep.subr.bf16.mxu0 0
        %4139 = vmatpush1.bf16.msra.mxu0 0
        %4140 = vmatprep.subr.bf16.mxu0 0
        %4141 = vmatpush1.bf16.msra.mxu0 0
        %4142 = vmatprep.subr.bf16.mxu0 0
        %4143 = vmatpush1.bf16.msra.mxu0 0
        %4144 = vmatprep.subr.bf16.mxu0 0
        %4145 = vmatpush1.bf16.msra.mxu0 0
        %4146 = vmatprep.subr.bf16.mxu0 0
        %4147 = vmatpush1.bf16.msra.mxu0 0
        %4148 = vmatprep.subr.bf16.mxu0 0
        %4149 = vmatpush1.bf16.msra.mxu0 0
        %4150 = vmatprep.subr.bf16.mxu0 0
        %4151 = vmatpush1.bf16.msra.mxu0 0
        %4152 = vmatprep.subr.bf16.mxu0 0
        %4153 = vmatpush1.bf16.msra.mxu0 0
        %4154 = vmatprep.subr.bf16.mxu0 0
        %4155 = vmatpush1.bf16.msra.mxu0 0
        %4156 = vmatprep.subr.bf16.mxu0 0
        %4157 = vmatpush1.bf16.msra.mxu0 0
        %4158 = vmatprep.mubr.bf16.mxu0 0
        %4159 = vmatmul.mubr.bf16.gmra.mrb[0].mxu0 %v4124
        %v4160 = vpop.f32.mrb[0].mxu0
        %v4161 = vadd.f32 %v4109, %v4160
        %v4162 = vpop.f32.mrb[0].mxu0
        %v4163 = vpop.f32.mrb[0].mxu0
        %v4164 = vadd.f32 %v4109, %v4163
        %v4165 = vpop.f32.mrb[0].mxu0
        %4166 = vdwg.mxu0
        %v4167 = vmul.f32 %v4161, 0.5
        %v4168 = vmul.f32 %v4164, 0.5
        %v4169 = vmul.f32 %v4161, 0.044715
        %v4170 = vmul.f32 %v4164, 0.044715
        %v4171 = vmul.f32 %v4169, %v4161
        %v4172 = vmul.f32 %v4170, %v4164
        %v4173 = vmul.f32 %v4171, %v4161
        %v4174 = vmul.f32 %v4172, %v4164
        %v4175 = vadd.f32 %v4161, %v4173
        %v4176 = vadd.f32 %v4164, %v4174
        %v4177 = vmul.f32 %v4175, 0.7978846
        %v4178 = vmul.f32 %v4176, 0.7978846
        %v4179 = vtanh.pop %v4177
        %v4180 = vtanh.pop %v4178
        %v4181 = vadd.f32 %v4179, 1.0
        %v4182 = vadd.f32 %v4180, 1.0
        %v4183 = vmul.f32 %v4167, %v4181
        %v4184 = vmul.f32 %v4168, %v4182
        %v4185 = vpack.c.bf16 %v4184, %v4183
        %v4186 = vld [vmem:[%s12] sm:$0xf]
        %v4187 = vld [vmem:[%s12 + $0x4] sm:$0xf]
        %v4188 = vld [vmem:[%s12 + $0x8] sm:$0xf]
        %v4189 = vld [vmem:[%s12 + $0xc] sm:$0xf]
        %v4190 = vld [vmem:[%s12 + $0x10] sm:$0xf]
        %v4191 = vld [vmem:[%s12 + $0x14] sm:$0xf]
        %v4192 = vld [vmem:[%s12 + $0x18] sm:$0xf]
        %v4193 = vld [vmem:[%s12 + $0x1c] sm:$0xf]
        %v4194 = vld [vmem:[%s12 + $0x20] sm:$0xf]
        %v4195 = vld [vmem:[%s12 + $0x24] sm:$0xf]
        %v4196 = vld [vmem:[%s12 + $0x28] sm:$0xf]
        %v4197 = vld [vmem:[%s12 + $0x2c] sm:$0xf]
        %v4198 = vld [vmem:[%s12 + $0x30] sm:$0xf]
        %v4199 = vld [vmem:[%s12 + $0x34] sm:$0xf]
        %v4200 = vld [vmem:[%s12 + $0x38] sm:$0xf]
        %v4201 = vld [vmem:[%s12 + $0x3c] sm:$0xf]
        %v4202 = vld [vmem:[%s13] sm:$0x1]
        %v4204 = vlaneseq
        %v4205 = vshrl.u32 %v4204, 7
        %v4206 = vsub.s32 0, %v4205
        %v4207 = vrot.slane %v4202, %v4206
        %v4225 = vunpack.c.l.b16 %v4186
        %v4226 = vunpack.c.l.b16 %v4187
        %v4227 = vunpack.c.l.b16 %v4188
        %v4228 = vunpack.c.l.b16 %v4189
        %v4229 = vunpack.c.l.b16 %v4190
        %v4230 = vunpack.c.l.b16 %v4191
        %v4231 = vunpack.c.l.b16 %v4192
        %v4232 = vunpack.c.l.b16 %v4193
        %v4233 = vunpack.c.l.b16 %v4194
        %v4234 = vunpack.c.l.b16 %v4195
        %v4235 = vunpack.c.l.b16 %v4196
        %v4236 = vunpack.c.l.b16 %v4197
        %v4237 = vunpack.c.l.b16 %v4198
        %v4238 = vunpack.c.l.b16 %v4199
        %v4239 = vunpack.c.l.b16 %v4200
        %v4240 = vunpack.c.l.b16 %v4201
        %v4241 = vpack.c.b16 %v4226, %v4225
        %v4242 = vpack.c.b16 %v4228, %v4227
        %v4243 = vpack.c.b16 %v4230, %v4229
        %v4244 = vpack.c.b16 %v4232, %v4231
        %v4245 = vpack.c.b16 %v4234, %v4233
        %v4246 = vpack.c.b16 %v4236, %v4235
        %v4247 = vpack.c.b16 %v4238, %v4237
        %v4248 = vpack.c.b16 %v4240, %v4239
        %4257 = vmatprep.subr.bf16.mxu0 0
        %4258 = vmatpush1.bf16.msra.mxu0 %v4241
        %4259 = vmatprep.subr.bf16.mxu0 0
        %4260 = vmatpush1.bf16.msra.mxu0 %v4242
        %4261 = vmatprep.subr.bf16.mxu0 0
        %4262 = vmatpush1.bf16.msra.mxu0 %v4243
        %4263 = vmatprep.subr.bf16.mxu0 0
        %4264 = vmatpush1.bf16.msra.mxu0 %v4244
        %4265 = vmatprep.subr.bf16.mxu0 0
        %4266 = vmatpush1.bf16.msra.mxu0 %v4245
        %4267 = vmatprep.subr.bf16.mxu0 0
        %4268 = vmatpush1.bf16.msra.mxu0 %v4246
        %4269 = vmatprep.subr.bf16.mxu0 0
        %4270 = vmatpush1.bf16.msra.mxu0 %v4247
        %4271 = vmatprep.subr.bf16.mxu0 0
        %4272 = vmatpush1.bf16.msra.mxu0 %v4248
        %4273 = vmatprep.subr.bf16.mxu0 0
        %4274 = vmatpush1.bf16.msra.mxu0 0
        %4275 = vmatprep.subr.bf16.mxu0 0
        %4276 = vmatpush1.bf16.msra.mxu0 0
        %4277 = vmatprep.subr.bf16.mxu0 0
        %4278 = vmatpush1.bf16.msra.mxu0 0
        %4279 = vmatprep.subr.bf16.mxu0 0
        %4280 = vmatpush1.bf16.msra.mxu0 0
        %4281 = vmatprep.subr.bf16.mxu0 0
        %4282 = vmatpush1.bf16.msra.mxu0 0
        %4283 = vmatprep.subr.bf16.mxu0 0
        %4284 = vmatpush1.bf16.msra.mxu0 0
        %4285 = vmatprep.subr.bf16.mxu0 0
        %4286 = vmatpush1.bf16.msra.mxu0 0
        %4287 = vmatprep.subr.bf16.mxu0 0
        %4288 = vmatpush1.bf16.msra.mxu0 0
        %4289 = vmatprep.mubr.bf16.mxu0 0
        %4290 = vmatmul.mubr.bf16.gmra.mrb[0].mxu0 %v4185
        %v4291 = vpop.f32.mrb[0].mxu0
        %v4292 = vadd.f32 %v4207, %v4291
        %v4293 = vpop.f32.mrb[0].mxu0
        %v4294 = vpop.f32.mrb[0].mxu0
        %v4295 = vadd.f32 %v4207, %v4294
        %v4296 = vpop.f32.mrb[0].mxu0
        %4297 = vdwg.mxu0
        %v4298 = vadd.f32 %v4053, %v4292
        %v4299 = vadd.f32 %v4054, %v4295
        %4300 = vst.msk [vmem:[%s461] sm:$0xff] %vm474, %v4298
        %4301 = vst.msk [vmem:[%s461 + $0x8] sm:$0xff] %vm474, %v4299
        %s4302 = sand.u32 %s335, 1
        %s4303 = scalar_lea.sflag [#allocation3], %s4302
        %s4304 = sand.u32 %s335, 1
        %s4305 = smul.addr %s4304, 16
        %s4306 = scalar_lea.vmem [#allocation2], %s4305
        // Predicated region
        $region77: #{tpu_custom_call.1} parent=75 // pred_check
          %p4307 = pneg %p345
        $region78: #{tpu_custom_call.1} parent=75 // pred_check_branch
          %4309 = sbr.rel (%p4307) target = $region80
        $region79: #{tpu_custom_call.1} parent=75 // pred_region
          %s4310 = smul.u32 2, %s28
          %s4312 = ssub.s32 256, 256
          %4313 = vsyncadd %s4303, %s4312
          %s4314 = smul.addr %s4310, 128
          %s4315 = scalar_lea.hbm %s14, %s4314
          %s4316 = sshll.u32 %s4306, 4
          %s4317 = int_to_ptr.vmem [resolvable:$true] %s4316
          %4322 = dma.vmem_to_hbm [thread:$0]  %s4317, 256, %s4315, %s4303, 128, 128, 8
        $region80: #{tpu_custom_call.1} parent=75 // pred_fallthru
          _
      $region76: #{tpu_custom_call.1} parent=5 // pred_fallthru
        _
      %p4323 = scmp.le.s32.totalorder 2, %s23
      // Predicated region
      $region81: #{tpu_custom_call.1} parent=5 // pred_check
        %p4324 = pneg %p4323
      $region82: #{tpu_custom_call.1} parent=5 // pred_check_branch
        %4326 = sbr.rel (%p4324) target = $region84
      $region83: #{tpu_custom_call.1} parent=5 // pred_region
        %s4327 = ssub.s32 %s23, 2
        // Predicated region
        $region85: #{tpu_custom_call.1} parent=83 // pred_check
          %p4328 = pneg %p351
        $region86: #{tpu_custom_call.1} parent=83 // pred_check_branch
          %4330 = sbr.rel (%p4328) target = $region88
        $region87: #{tpu_custom_call.1} parent=83 // pred_region
          %s4331 = sand.u32 %s336, 1
          %s4332 = scalar_lea.sflag [#allocation3], %s4331
          %s4333 = sand.u32 %s336, 1
          %s4334 = smul.addr %s4333, 16
          %s4335 = scalar_lea.vmem [#allocation2], %s4334
          %4336 = dma.done %s4332, 256
        $region88: #{tpu_custom_call.1} parent=83 // pred_fallthru
          _
      $region84: #{tpu_custom_call.1} parent=5 // pred_fallthru
        _
    $region6: #{tpu_custom_call.1} parent=1 // loop_footer
      %s27 = sadd.s32 1, %s23
    $region7: #{tpu_custom_call.1} parent=1 // loop_footer_branch
      %22 = sbr.rel target = $region3
    $region8: #{tpu_custom_call.1} parent=1 // loop_exit
      _
    %4337 = vsyncpa [#allocation3], 1
    %s4338 = scalar_lea.sflag [#allocation3], 1
    %4339 = vsyncpa %s4338, 1

</llo_original>
